<compile_context>
chip_gen: v5e
topology: v5e:2x2
jax: 0.10.0
libtpu: 0.0.40
codegen_flags: <defaults>
</compile_context>

<pallas_src>
import jax
import jax.numpy as jnp
from jax import lax
from jax.experimental import pallas as pl
from jax.experimental.pallas import tpu as pltpu


# ---------------------------------------------------------------------------
# Kernel 1: ConvTranspose2d(k=2, s=2, p=0) as a row-tiled bf16 matmul.
# out[n, 2h+i, 2w+j, co] = sum_ci x[n,h,w,ci] * W[ci,co,i,j] + b[co]
# -> rows = (n,h,w), columns = (i,j,co).
# ---------------------------------------------------------------------------
def _upconv_matmul_kernel(x_ref, w_ref, b_ref, o_ref):
    # x_ref: (TM, Cin) f32   w_ref: (Cin, 4*Cu) bf16   b_ref: (1, 4*Cu) f32
    x = x_ref[...].astype(jnp.bfloat16)
    o_ref[...] = (
        jnp.dot(x, w_ref[...], preferred_element_type=jnp.float32) + b_ref[...]
    )


def upconv2x2_s2(x_nhwc, w_iohw, b, *, tm=512, vmem_limit_bytes=64 * 1024 * 1024):
    """x: (N,H,W,Cin), w: (Cin,Cu,2,2) [PyTorch ConvTranspose2d layout], b: (Cu,)."""
    N, H, W, Cin = x_nhwc.shape
    Cu = w_iohw.shape[1]
    M = N * H * W

    # Row tile: whole M if it fits one tile, otherwise a multiple-of-8 tile.
    tm = min(tm, M)
    if tm != M and tm % 8 != 0:
        tm = max(8, (tm // 8) * 8)

    # columns ordered as (i*2 + j)*Cu + co ; bf16 weights for the native MXU path
    w_mat = (
        jnp.transpose(w_iohw, (0, 2, 3, 1)).reshape(Cin, 4 * Cu).astype(jnp.bfloat16)
    )
    b4 = jnp.tile(b, 4).reshape(1, 4 * Cu).astype(jnp.float32)
    x_flat = x_nhwc.reshape(M, Cin)

    out = pl.pallas_call(
        _upconv_matmul_kernel,
        out_shape=jax.ShapeDtypeStruct((M, 4 * Cu), jnp.float32),
        grid_spec=pltpu.PrefetchScalarGridSpec(
            num_scalar_prefetch=0,
            grid=(pl.cdiv(M, tm),),
            in_specs=[
                pl.BlockSpec((tm, Cin), lambda i: (i, 0)),
                pl.BlockSpec((Cin, 4 * Cu), lambda i: (0, 0)),
                pl.BlockSpec((1, 4 * Cu), lambda i: (0, 0)),
            ],
            out_specs=pl.BlockSpec((tm, 4 * Cu), lambda i: (i, 0)),
        ),
        compiler_params=pltpu.CompilerParams(
            dimension_semantics=("parallel",),
            vmem_limit_bytes=vmem_limit_bytes,
        ),
    )(x_flat, w_mat, b4)

    # subpixel interleave (n,h,w,i,j,c) -> (n, 2h+i, 2w+j, c)
    # TODO(synk): fuse this interleave into the conv1 kernel to save one HBM pass.
    out = out.reshape(N, H, W, 2, 2, Cu)
    out = jnp.transpose(out, (0, 1, 3, 2, 4, 5)).reshape(N, 2 * H, 2 * W, Cu)
    return out


# ---------------------------------------------------------------------------
# Kernel 2: fused 3x3 conv (pad=1) over one or more channel-concatenated
# inputs + folded-BN bias + ReLU.  Grid over batch, one image per step.
#   - the channel concat is fused: each input gets its own weight slice and
#     the partial matmuls accumulate into a shared f32 VMEM accumulator.
#   - the 1-pixel halo is built in a zero-filled bf16 VMEM scratch (no HBM
#     jnp.pad round trip).
# TODO(synk): H-strip tiling with halo rows for very large images (v7x 64MiB VMEM).
# ---------------------------------------------------------------------------
def _make_conv3x3_kernel(num_in):
    def kernel(*refs):
        x_refs = refs[:num_in]
        w_refs = refs[num_in:2 * num_in]
        b_ref = refs[2 * num_in]
        o_ref = refs[2 * num_in + 1]
        pad_refs = refs[2 * num_in + 2: 2 * num_in + 2 + num_in]
        acc_ref = refs[-1]

        Hout, Wout = o_ref.shape[1], o_ref.shape[2]

        acc_ref[...] = jnp.zeros_like(acc_ref)

        for x_ref, w_ref, p_ref in zip(x_refs, w_refs, pad_refs):
            # zero-filled padded slab: halo handled in VMEM, cast to bf16 once.
            p_ref[...] = jnp.zeros_like(p_ref)
            p_ref[pl.ds(1, Hout), pl.ds(1, Wout), :] = x_ref[0].astype(jnp.bfloat16)
            xpad = p_ref[...]            # (Hout+2, Wout+2, Ci) bf16
            w = w_ref[...]               # (3, 3, Ci, Cout)     bf16 (BN scale folded)

            # hoist the 3 width (sublane) shifts out of the tap loop
            for dx in range(3):
                slab = xpad[:, dx:dx + Wout, :]          # (Hout+2, Wout, Ci)
                for dy in range(3):
                    acc_ref[...] += jnp.dot(
                        slab[dy:dy + Hout],              # (Hout, Wout, Ci) bf16
                        w[dy, dx],                       # (Ci, Cout)       bf16
                        preferred_element_type=jnp.float32,
                    )

        o_ref[0] = jnp.maximum(acc_ref[...] + b_ref[0], 0.0).astype(o_ref.dtype)

    return kernel


def fused_conv3x3_bn_relu(xs, ws, bias, *, vmem_limit_bytes=64 * 1024 * 1024):
    """xs: list of (N,Hout,Wout,Ci) f32;  ws: list of (3,3,Ci,Cout) bf16 (BN scale
    folded in);  bias: (Cout,) f32 (conv bias + BN shift folded in)."""
    num_in = len(xs)
    N, Hout, Wout, _ = xs[0].shape
    Cout = ws[0].shape[-1]
    cins = [int(x.shape[-1]) for x in xs]
    b2 = bias.reshape(1, Cout).astype(jnp.float32)

    return pl.pallas_call(
        _make_conv3x3_kernel(num_in),
        out_shape=jax.ShapeDtypeStruct((N, Hout, Wout, Cout), jnp.float32),
        grid_spec=pltpu.PrefetchScalarGridSpec(
            num_scalar_prefetch=0,
            grid=(N,),
            in_specs=(
                [pl.BlockSpec((1, Hout, Wout, ci), lambda n: (n, 0, 0, 0)) for ci in cins]
                + [pl.BlockSpec((3, 3, ci, Cout), lambda n: (0, 0, 0, 0)) for ci in cins]
                + [pl.BlockSpec((1, Cout), lambda n: (0, 0))]
            ),
            out_specs=pl.BlockSpec((1, Hout, Wout, Cout), lambda n: (n, 0, 0, 0)),
            scratch_shapes=(
                [pltpu.VMEM((Hout + 2, Wout + 2, ci), jnp.bfloat16) for ci in cins]
                + [pltpu.VMEM((Hout, Wout, Cout), jnp.float32)]
            ),
        ),
        compiler_params=pltpu.CompilerParams(
            dimension_semantics=("parallel",),
            vmem_limit_bytes=vmem_limit_bytes,
        ),
    )(*xs, *ws, b2)


# ---------------------------------------------------------------------------
# DecoderBlock forward (wrapper: layout conversion + BN folding = glue)
# ---------------------------------------------------------------------------
def _fold_bn(w_oihw, b, gamma, beta, mean, var, eps=1e-5):
    scale = gamma / jnp.sqrt(var + eps)                              # (Cout,)
    w_hwio = (jnp.transpose(w_oihw, (2, 3, 1, 0)) * scale).astype(jnp.bfloat16)
    b_f = ((b - mean) * scale + beta).astype(jnp.float32)
    return w_hwio, b_f


def decoder_block_forward(x_nchw, skip_nchw, p):
    x = jnp.transpose(x_nchw, (0, 2, 3, 1))        # NCHW -> NHWC
    skip = jnp.transpose(skip_nchw, (0, 2, 3, 1))
    Cu = p["up_w"].shape[1]

    up = upconv2x2_s2(x, p["up_w"], p["up_b"])     # (N, 2H, 2W, Cu)

    w1, b1 = _fold_bn(p["c1_w"], p["c1_b"], p["bn1_g"], p["bn1_b"], p["bn1_m"], p["bn1_v"])
    # concat([up, skip], channel) is fused into conv1 by splitting w1 along Cin
    y = fused_conv3x3_bn_relu([up, skip], [w1[:, :, :Cu, :], w1[:, :, Cu:, :]], b1)

    w2, b2 = _fold_bn(p["c2_w"], p["c2_b"], p["bn2_g"], p["bn2_b"], p["bn2_m"], p["bn2_v"])
    y = fused_conv3x3_bn_relu([y], [w2], b2)

    return jnp.transpose(y, (0, 3, 1, 2))          # back to NCHW


# ---------------------------------------------------------------------------
# Pure-JAX reference (NCHW, like PyTorch) for verification.
# ---------------------------------------------------------------------------
def ref_forward(x, skip, p, eps=1e-5):
    up = jnp.einsum("nchw,cdij->ndhiwj", x, p["up_w"], precision=lax.Precision.HIGHEST)
    N, Cout, H, _, W, _ = up.shape
    up = up.reshape(N, Cout, 2 * H, 2 * W) + p["up_b"][None, :, None, None]
    y = jnp.concatenate([up, skip], axis=1)

    def conv_bn_relu(t, w, b, g, beta, m, v):
        t = lax.conv_general_dilated(
            t, w, (1, 1), ((1, 1), (1, 1)),
            dimension_numbers=("NCHW", "OIHW", "NCHW"),
            precision=lax.Precision.HIGHEST,
        ) + b[None, :, None, None]
        t = (t - m[None, :, None, None]) / jnp.sqrt(v[None, :, None, None] + eps)
        t = t * g[None, :, None, None] + beta[None, :, None, None]
        return jnp.maximum(t, 0.0)

    y = conv_bn_relu(y, p["c1_w"], p["c1_b"], p["bn1_g"], p["bn1_b"], p["bn1_m"], p["bn1_v"])
    y = conv_bn_relu(y, p["c2_w"], p["c2_b"], p["bn2_g"], p["bn2_b"], p["bn2_m"], p["bn2_v"])
    return y


if __name__ == "__main__":
    in_channels, out_channels = 16, 8
    N, H, W = 2, 8, 8

    key = jax.random.PRNGKey(0)
    ks = jax.random.split(key, 16)

    def init(k, shape, scale=0.1):
        return scale * jax.random.normal(k, shape, jnp.float32)

    params = {
        # ConvTranspose2d(in, out, k=2, s=2): weight (Cin, Cout, 2, 2)
        "up_w": init(ks[0], (in_channels, out_channels, 2, 2)),
        "up_b": init(ks[1], (out_channels,)),
        # conv1: Conv2d(2*out, out, 3, padding=1): weight (Cout, 2*Cout, 3, 3)
        "c1_w": init(ks[2], (out_channels, 2 * out_channels, 3, 3)),
        "c1_b": init(ks[3], (out_channels,)),
        "bn1_g": 1.0 + init(ks[4], (out_channels,)),
        "bn1_b": init(ks[5], (out_channels,)),
        "bn1_m": init(ks[6], (out_channels,)),
        "bn1_v": 1.0 + 0.05 * jnp.abs(jax.random.normal(ks[7], (out_channels,))),
        # conv2: Conv2d(out, out, 3, padding=1)
        "c2_w": init(ks[8], (out_channels, out_channels, 3, 3)),
        "c2_b": init(ks[9], (out_channels,)),
        "bn2_g": 1.0 + init(ks[10], (out_channels,)),
        "bn2_b": init(ks[11], (out_channels,)),
        "bn2_m": init(ks[12], (out_channels,)),
        "bn2_v": 1.0 + 0.05 * jnp.abs(jax.random.normal(ks[13], (out_channels,))),
    }

    x = jax.random.normal(ks[14], (N, in_channels, H, W), jnp.float32)          # NCHW
    skip = jax.random.normal(ks[15], (N, out_channels, 2 * H, 2 * W), jnp.float32)

    out = jax.jit(decoder_block_forward)(x, skip, params)
    out = jax.block_until_ready(out)

    ref = ref_forward(x, skip, params)
    assert out.shape == (N, out_channels, 2 * H, 2 * W), out.shape
    err = float(jnp.max(jnp.abs(out - ref)))
    # bf16 MXU operands vs. f32-HIGHEST reference -> relaxed tolerance
    assert jnp.allclose(out, ref, atol=5e-2, rtol=5e-2), err

    print("KERNEL_OK")
</pallas_src>

<mosaic_0001>
module attributes {stable_mosaic.version = 11 : i64} {
  func.func @_upconv_matmul_kernel(%arg0: i32, %arg1: memref<128x16xf32, #tpu.memory_space<vmem>>, %arg2: memref<16x32xbf16, #tpu.memory_space<vmem>>, %arg3: memref<1x32xf32, #tpu.memory_space<vmem>>, %arg4: memref<128x32xf32, #tpu.memory_space<vmem>>) attributes {dimension_semantics = [#tpu.dimension_semantics<parallel>], iteration_bounds = array<i64: 1>, scalar_prefetch = 0 : i64, scratch_operands = 0 : i64, tpu.core_type = #tpu.core_type<tc>, window_params = [{transform_indices = @transform_0, window_bounds = array<i64: 128, 16>}, {pipeline_mode = #tpu.pipeline_mode<synchronous>, transform_indices = @transform_1, window_bounds = array<i64: 16, 32>}, {pipeline_mode = #tpu.pipeline_mode<synchronous>, transform_indices = @transform_2, window_bounds = array<i64: 1, 32>}, {transform_indices = @transform_3, window_bounds = array<i64: 128, 32>}]} {
    %c0 = arith.constant 0 : index
    %c0_0 = arith.constant 0 : index
    %0 = vector.load %arg1[%c0, %c0_0] : memref<128x16xf32, #tpu.memory_space<vmem>>, vector<128x16xf32>
    %1 = arith.truncf %0 : vector<128x16xf32> to vector<128x16xbf16>
    %c0_1 = arith.constant 0 : index
    %c0_2 = arith.constant 0 : index
    %2 = vector.load %arg2[%c0_1, %c0_2] : memref<16x32xbf16, #tpu.memory_space<vmem>>, vector<16x32xbf16>
    %cst = arith.constant dense<0.000000e+00> : vector<128x32xf32>
    %3 = tpu.matmul %1, %2, %cst {dimension_numbers = #tpu.dot_dimension_numbers<[1], [0], [0], [1], [0, 0, 1, 1], [], []>} : vector<128x16xbf16>, vector<16x32xbf16>, vector<128x32xf32> -> vector<128x32xf32>
    %c0_3 = arith.constant 0 : index
    %c0_4 = arith.constant 0 : index
    %4 = vector.load %arg3[%c0_3, %c0_4] : memref<1x32xf32, #tpu.memory_space<vmem>>, vector<1x32xf32>
    %5 = vector.broadcast %4 : vector<1x32xf32> to vector<128x32xf32>
    %6 = arith.addf %3, %5 : vector<128x32xf32>
    %c0_5 = arith.constant 0 : index
    %c0_6 = arith.constant 0 : index
    %7 = vector.load %arg4[%c0_5, %c0_6] : memref<128x32xf32, #tpu.memory_space<vmem>>, vector<128x32xf32>
    tpu.vector_store %arg4[%c0_5, %c0_6], %6 {strides = array<i32>} : memref<128x32xf32, #tpu.memory_space<vmem>>, vector<128x32xf32>,
    return
  }
  func.func @transform_0(%arg0: i32) -> (i32, i32) {
    %c0_i32 = arith.constant 0 : i32
    %c0_i32_0 = arith.constant 0 : i32
    return %arg0, %c0_i32 : i32, i32
  }
  func.func @transform_1(%arg0: i32) -> (i32, i32) {
    %c0_i32 = arith.constant 0 : i32
    %c0_i32_0 = arith.constant 0 : i32
    %c0_i32_1 = arith.constant 0 : i32
    return %c0_i32, %c0_i32_0 : i32, i32
  }
  func.func @transform_2(%arg0: i32) -> (i32, i32) {
    %c0_i32 = arith.constant 0 : i32
    %c0_i32_0 = arith.constant 0 : i32
    %c0_i32_1 = arith.constant 0 : i32
    return %c0_i32, %c0_i32_0 : i32, i32
  }
  func.func @transform_3(%arg0: i32) -> (i32, i32) {
    %c0_i32 = arith.constant 0 : i32
    %c0_i32_0 = arith.constant 0 : i32
    return %arg0, %c0_i32 : i32, i32
  }
}

module attributes {stable_mosaic.version = 11 : i64} {
  func.func @kernel(%arg0: i32, %arg1: memref<1x16x16x8xf32, #tpu.memory_space<vmem>>, %arg2: memref<1x16x16x8xf32, #tpu.memory_space<vmem>>, %arg3: memref<3x3x8x8xbf16, #tpu.memory_space<vmem>>, %arg4: memref<3x3x8x8xbf16, #tpu.memory_space<vmem>>, %arg5: memref<1x8xf32, #tpu.memory_space<vmem>>, %arg6: memref<1x16x16x8xf32, #tpu.memory_space<vmem>>, %arg7: memref<18x18x8xbf16, #tpu.memory_space<vmem>>, %arg8: memref<18x18x8xbf16, #tpu.memory_space<vmem>>, %arg9: memref<16x16x8xf32, #tpu.memory_space<vmem>>) attributes {dimension_semantics = [#tpu.dimension_semantics<parallel>], iteration_bounds = array<i64: 2>, scalar_prefetch = 0 : i64, scratch_operands = 3 : i64, tpu.core_type = #tpu.core_type<tc>, window_params = [{transform_indices = @transform_0, window_bounds = array<i64: 1, 16, 16, 8>}, {transform_indices = @transform_1, window_bounds = array<i64: 1, 16, 16, 8>}, {pipeline_mode = #tpu.pipeline_mode<synchronous>, transform_indices = @transform_2, window_bounds = array<i64: 3, 3, 8, 8>}, {pipeline_mode = #tpu.pipeline_mode<synchronous>, transform_indices = @transform_3, window_bounds = array<i64: 3, 3, 8, 8>}, {pipeline_mode = #tpu.pipeline_mode<synchronous>, transform_indices = @transform_4, window_bounds = array<i64: 1, 8>}, {transform_indices = @transform_5, window_bounds = array<i64: 1, 16, 16, 8>}]} {
    %cst = arith.constant 0.000000e+00 : f32
    %0 = vector.broadcast %cst : f32 to vector<16x16x8xf32>
    %c0 = arith.constant 0 : index
    %c0_0 = arith.constant 0 : index
    %c0_1 = arith.constant 0 : index
    %1 = vector.load %arg9[%c0, %c0_0, %c0_1] : memref<16x16x8xf32, #tpu.memory_space<vmem>>, vector<16x16x8xf32>
    tpu.vector_store %arg9[%c0, %c0_0, %c0_1], %0 {strides = array<i32>} : memref<16x16x8xf32, #tpu.memory_space<vmem>>, vector<16x16x8xf32>,
    %cst_2 = arith.constant 0.000000e+00 : bf16
    %2 = vector.broadcast %cst_2 : bf16 to vector<18x18x8xbf16>
    %c0_3 = arith.constant 0 : index
    %c0_4 = arith.constant 0 : index
    %c0_5 = arith.constant 0 : index
    %3 = vector.load %arg7[%c0_3, %c0_4, %c0_5] : memref<18x18x8xbf16, #tpu.memory_space<vmem>>, vector<18x18x8xbf16>
    tpu.vector_store %arg7[%c0_3, %c0_4, %c0_5], %2 {strides = array<i32>} : memref<18x18x8xbf16, #tpu.memory_space<vmem>>, vector<18x18x8xbf16>,
    %c0_6 = arith.constant 0 : index
    %c0_7 = arith.constant 0 : index
    %c0_8 = arith.constant 0 : index
    %c0_9 = arith.constant 0 : index
    %4 = vector.load %arg1[%c0_6, %c0_7, %c0_8, %c0_9] : memref<1x16x16x8xf32, #tpu.memory_space<vmem>>, vector<1x16x16x8xf32>
    %5 = vector.shape_cast %4 : vector<1x16x16x8xf32> to vector<16x16x8xf32>
    %6 = arith.truncf %5 : vector<16x16x8xf32> to vector<16x16x8xbf16>
    %c1 = arith.constant 1 : index
    %c1_10 = arith.constant 1 : index
    %c0_11 = arith.constant 0 : index
    %7 = vector.load %arg7[%c1, %c1_10, %c0_11] : memref<18x18x8xbf16, #tpu.memory_space<vmem>>, vector<16x16x8xbf16>
    tpu.vector_store %arg7[%c1, %c1_10, %c0_11], %6 {strides = array<i32>} : memref<18x18x8xbf16, #tpu.memory_space<vmem>>, vector<16x16x8xbf16>,
    %c0_12 = arith.constant 0 : index
    %c0_13 = arith.constant 0 : index
    %c0_14 = arith.constant 0 : index
    %8 = vector.load %arg7[%c0_12, %c0_13, %c0_14] : memref<18x18x8xbf16, #tpu.memory_space<vmem>>, vector<18x18x8xbf16>
    %c0_15 = arith.constant 0 : index
    %c0_16 = arith.constant 0 : index
    %c0_17 = arith.constant 0 : index
    %c0_18 = arith.constant 0 : index
    %9 = vector.load %arg3[%c0_15, %c0_16, %c0_17, %c0_18] : memref<3x3x8x8xbf16, #tpu.memory_space<vmem>>, vector<3x3x8x8xbf16>
    %10 = vector.extract_strided_slice %8 {offsets = [0, 0, 0], sizes = [18, 16, 8], strides = [1, 1, 1]} : vector<18x18x8xbf16> to vector<18x16x8xbf16>
    %c0_19 = arith.constant 0 : index
    %c0_20 = arith.constant 0 : index
    %c0_21 = arith.constant 0 : index
    %11 = vector.load %arg9[%c0_19, %c0_20, %c0_21] : memref<16x16x8xf32, #tpu.memory_space<vmem>>, vector<16x16x8xf32>
    %12 = vector.extract_strided_slice %10 {offsets = [0, 0, 0], sizes = [16, 16, 8], strides = [1, 1, 1]} : vector<18x16x8xbf16> to vector<16x16x8xbf16>
    %13 = vector.extract_strided_slice %9 {offsets = [0, 0, 0, 0], sizes = [1, 1, 8, 8], strides = [1, 1, 1, 1]} : vector<3x3x8x8xbf16> to vector<1x1x8x8xbf16>
    %14 = vector.shape_cast %13 : vector<1x1x8x8xbf16> to vector<8x8xbf16>
    %cst_22 = arith.constant dense<0.000000e+00> : vector<16x16x8xf32>
    %15 = tpu.matmul %12, %14, %cst_22 {dimension_numbers = #tpu.dot_dimension_numbers<[2], [0], [0, 1], [1], [0, 0, 0, 1, 1, 1], [], []>} : vector<16x16x8xbf16>, vector<8x8xbf16>, vector<16x16x8xf32> -> vector<16x16x8xf32>
    %16 = arith.addf %11, %15 : vector<16x16x8xf32>
    %c0_23 = arith.constant 0 : index
    %c0_24 = arith.constant 0 : index
    %c0_25 = arith.constant 0 : index
    %17 = vector.load %arg9[%c0_23, %c0_24, %c0_25] : memref<16x16x8xf32, #tpu.memory_space<vmem>>, vector<16x16x8xf32>
    tpu.vector_store %arg9[%c0_23, %c0_24, %c0_25], %16 {strides = array<i32>} : memref<16x16x8xf32, #tpu.memory_space<vmem>>, vector<16x16x8xf32>,
    %c0_26 = arith.constant 0 : index
    %c0_27 = arith.constant 0 : index
    %c0_28 = arith.constant 0 : index
    %18 = vector.load %arg9[%c0_26, %c0_27, %c0_28] : memref<16x16x8xf32, #tpu.memory_space<vmem>>, vector<16x16x8xf32>
    %19 = vector.extract_strided_slice %10 {offsets = [1, 0, 0], sizes = [16, 16, 8], strides = [1, 1, 1]} : vector<18x16x8xbf16> to vector<16x16x8xbf16>
    %20 = vector.extract_strided_slice %9 {offsets = [1, 0, 0, 0], sizes = [1, 1, 8, 8], strides = [1, 1, 1, 1]} : vector<3x3x8x8xbf16> to vector<1x1x8x8xbf16>
    %21 = vector.shape_cast %20 : vector<1x1x8x8xbf16> to vector<8x8xbf16>
    %cst_29 = arith.constant dense<0.000000e+00> : vector<16x16x8xf32>
    %22 = tpu.matmul %19, %21, %cst_29 {dimension_numbers = #tpu.dot_dimension_numbers<[2], [0], [0, 1], [1], [0, 0, 0, 1, 1, 1], [], []>} : vector<16x16x8xbf16>, vector<8x8xbf16>, vector<16x16x8xf32> -> vector<16x16x8xf32>
    %23 = arith.addf %18, %22 : vector<16x16x8xf32>
    %c0_30 = arith.constant 0 : index
    %c0_31 = arith.constant 0 : index
    %c0_32 = arith.constant 0 : index
    %24 = vector.load %arg9[%c0_30, %c0_31, %c0_32] : memref<16x16x8xf32, #tpu.memory_space<vmem>>, vector<16x16x8xf32>
    tpu.vector_store %arg9[%c0_30, %c0_31, %c0_32], %23 {strides = array<i32>} : memref<16x16x8xf32, #tpu.memory_space<vmem>>, vector<16x16x8xf32>,
    %c0_33 = arith.constant 0 : index
    %c0_34 = arith.constant 0 : index
    %c0_35 = arith.constant 0 : index
    %25 = vector.load %arg9[%c0_33, %c0_34, %c0_35] : memref<16x16x8xf32, #tpu.memory_space<vmem>>, vector<16x16x8xf32>
    %26 = vector.extract_strided_slice %10 {offsets = [2, 0, 0], sizes = [16, 16, 8], strides = [1, 1, 1]} : vector<18x16x8xbf16> to vector<16x16x8xbf16>
    %27 = vector.extract_strided_slice %9 {offsets = [2, 0, 0, 0], sizes = [1, 1, 8, 8], strides = [1, 1, 1, 1]} : vector<3x3x8x8xbf16> to vector<1x1x8x8xbf16>
    %28 = vector.shape_cast %27 : vector<1x1x8x8xbf16> to vector<8x8xbf16>
    %cst_36 = arith.constant dense<0.000000e+00> : vector<16x16x8xf32>
    %29 = tpu.matmul %26, %28, %cst_36 {dimension_numbers = #tpu.dot_dimension_numbers<[2], [0], [0, 1], [1], [0, 0, 0, 1, 1, 1], [], []>} : vector<16x16x8xbf16>, vector<8x8xbf16>, vector<16x16x8xf32> -> vector<16x16x8xf32>
    %30 = arith.addf %25, %29 : vector<16x16x8xf32>
    %c0_37 = arith.constant 0 : index
    %c0_38 = arith.constant 0 : index
    %c0_39 = arith.constant 0 : index
    %31 = vector.load %arg9[%c0_37, %c0_38, %c0_39] : memref<16x16x8xf32, #tpu.memory_space<vmem>>, vector<16x16x8xf32>
    tpu.vector_store %arg9[%c0_37, %c0_38, %c0_39], %30 {strides = array<i32>} : memref<16x16x8xf32, #tpu.memory_space<vmem>>, vector<16x16x8xf32>,
    %32 = vector.extract_strided_slice %8 {offsets = [0, 1, 0], sizes = [18, 16, 8], strides = [1, 1, 1]} : vector<18x18x8xbf16> to vector<18x16x8xbf16>
    %c0_40 = arith.constant 0 : index
    %c0_41 = arith.constant 0 : index
    %c0_42 = arith.constant 0 : index
    %33 = vector.load %arg9[%c0_40, %c0_41, %c0_42] : memref<16x16x8xf32, #tpu.memory_space<vmem>>, vector<16x16x8xf32>
    %34 = vector.extract_strided_slice %32 {offsets = [0, 0, 0], sizes = [16, 16, 8], strides = [1, 1, 1]} : vector<18x16x8xbf16> to vector<16x16x8xbf16>
    %35 = vector.extract_strided_slice %9 {offsets = [0, 1, 0, 0], sizes = [1, 1, 8, 8], strides = [1, 1, 1, 1]} : vector<3x3x8x8xbf16> to vector<1x1x8x8xbf16>
    %36 = vector.shape_cast %35 : vector<1x1x8x8xbf16> to vector<8x8xbf16>
    %cst_43 = arith.constant dense<0.000000e+00> : vector<16x16x8xf32>
    %37 = tpu.matmul %34, %36, %cst_43 {dimension_numbers = #tpu.dot_dimension_numbers<[2], [0], [0, 1], [1], [0, 0, 0, 1, 1, 1], [], []>} : vector<16x16x8xbf16>, vector<8x8xbf16>, vector<16x16x8xf32> -> vector<16x16x8xf32>
    %38 = arith.addf %33, %37 : vector<16x16x8xf32>
    %c0_44 = arith.constant 0 : index
    %c0_45 = arith.constant 0 : index
    %c0_46 = arith.constant 0 : index
    %39 = vector.load %arg9[%c0_44, %c0_45, %c0_46] : memref<16x16x8xf32, #tpu.memory_space<vmem>>, vector<16x16x8xf32>
    tpu.vector_store %arg9[%c0_44, %c0_45, %c0_46], %38 {strides = array<i32>} : memref<16x16x8xf32, #tpu.memory_space<vmem>>, vector<16x16x8xf32>,
    %c0_47 = arith.constant 0 : index
    %c0_48 = arith.constant 0 : index
    %c0_49 = arith.constant 0 : index
    %40 = vector.load %arg9[%c0_47, %c0_48, %c0_49] : memref<16x16x8xf32, #tpu.memory_space<vmem>>, vector<16x16x8xf32>
    %41 = vector.extract_strided_slice %32 {offsets = [1, 0, 0], sizes = [16, 16, 8], strides = [1, 1, 1]} : vector<18x16x8xbf16> to vector<16x16x8xbf16>
    %42 = vector.extract_strided_slice %9 {offsets = [1, 1, 0, 0], sizes = [1, 1, 8, 8], strides = [1, 1, 1, 1]} : vector<3x3x8x8xbf16> to vector<1x1x8x8xbf16>
    %43 = vector.shape_cast %42 : vector<1x1x8x8xbf16> to vector<8x8xbf16>
    %cst_50 = arith.constant dense<0.000000e+00> : vector<16x16x8xf32>
    %44 = tpu.matmul %41, %43, %cst_50 {dimension_numbers = #tpu.dot_dimension_numbers<[2], [0], [0, 1], [1], [0, 0, 0, 1, 1, 1], [], []>} : vector<16x16x8xbf16>, vector<8x8xbf16>, vector<16x16x8xf32> -> vector<16x16x8xf32>
    %45 = arith.addf %40, %44 : vector<16x16x8xf32>
    %c0_51 = arith.constant 0 : index
    %c0_52 = arith.constant 0 : index
    %c0_53 = arith.constant 0 : index
    %46 = vector.load %arg9[%c0_51, %c0_52, %c0_53] : memref<16x16x8xf32, #tpu.memory_space<vmem>>, vector<16x16x8xf32>
    tpu.vector_store %arg9[%c0_51, %c0_52, %c0_53], %45 {strides = array<i32>} : memref<16x16x8xf32, #tpu.memory_space<vmem>>, vector<16x16x8xf32>,
    %c0_54 = arith.constant 0 : index
    %c0_55 = arith.constant 0 : index
    %c0_56 = arith.constant 0 : index
    %47 = vector.load %arg9[%c0_54, %c0_55, %c0_56] : memref<16x16x8xf32, #tpu.memory_space<vmem>>, vector<16x16x8xf32>
    %48 = vector.extract_strided_slice %32 {offsets = [2, 0, 0], sizes = [16, 16, 8], strides = [1, 1, 1]} : vector<18x16x8xbf16> to vector<16x16x8xbf16>
    %49 = vector.extract_strided_slice %9 {offsets = [2, 1, 0, 0], sizes = [1, 1, 8, 8], strides = [1, 1, 1, 1]} : vector<3x3x8x8xbf16> to vector<1x1x8x8xbf16>
    %50 = vector.shape_cast %49 : vector<1x1x8x8xbf16> to vector<8x8xbf16>
    %cst_57 = arith.constant dense<0.000000e+00> : vector<16x16x8xf32>
    %51 = tpu.matmul %48, %50, %cst_57 {dimension_numbers = #tpu.dot_dimension_numbers<[2], [0], [0, 1], [1], [0, 0, 0, 1, 1, 1], [], []>} : vector<16x16x8xbf16>, vector<8x8xbf16>, vector<16x16x8xf32> -> vector<16x16x8xf32>
    %52 = arith.addf %47, %51 : vector<16x16x8xf32>
    %c0_58 = arith.constant 0 : index
    %c0_59 = arith.constant 0 : index
    %c0_60 = arith.constant 0 : index
    %53 = vector.load %arg9[%c0_58, %c0_59, %c0_60] : memref<16x16x8xf32, #tpu.memory_space<vmem>>, vector<16x16x8xf32>
    tpu.vector_store %arg9[%c0_58, %c0_59, %c0_60], %52 {strides = array<i32>} : memref<16x16x8xf32, #tpu.memory_space<vmem>>, vector<16x16x8xf32>,
    %54 = vector.extract_strided_slice %8 {offsets = [0, 2, 0], sizes = [18, 16, 8], strides = [1, 1, 1]} : vector<18x18x8xbf16> to vector<18x16x8xbf16>
    %c0_61 = arith.constant 0 : index
    %c0_62 = arith.constant 0 : index
    %c0_63 = arith.constant 0 : index
    %55 = vector.load %arg9[%c0_61, %c0_62, %c0_63] : memref<16x16x8xf32, #tpu.memory_space<vmem>>, vector<16x16x8xf32>
    %56 = vector.extract_strided_slice %54 {offsets = [0, 0, 0], sizes = [16, 16, 8], strides = [1, 1, 1]} : vector<18x16x8xbf16> to vector<16x16x8xbf16>
    %57 = vector.extract_strided_slice %9 {offsets = [0, 2, 0, 0], sizes = [1, 1, 8, 8], strides = [1, 1, 1, 1]} : vector<3x3x8x8xbf16> to vector<1x1x8x8xbf16>
    %58 = vector.shape_cast %57 : vector<1x1x8x8xbf16> to vector<8x8xbf16>
    %cst_64 = arith.constant dense<0.000000e+00> : vector<16x16x8xf32>
    %59 = tpu.matmul %56, %58, %cst_64 {dimension_numbers = #tpu.dot_dimension_numbers<[2], [0], [0, 1], [1], [0, 0, 0, 1, 1, 1], [], []>} : vector<16x16x8xbf16>, vector<8x8xbf16>, vector<16x16x8xf32> -> vector<16x16x8xf32>
    %60 = arith.addf %55, %59 : vector<16x16x8xf32>
    %c0_65 = arith.constant 0 : index
    %c0_66 = arith.constant 0 : index
    %c0_67 = arith.constant 0 : index
    %61 = vector.load %arg9[%c0_65, %c0_66, %c0_67] : memref<16x16x8xf32, #tpu.memory_space<vmem>>, vector<16x16x8xf32>
    tpu.vector_store %arg9[%c0_65, %c0_66, %c0_67], %60 {strides = array<i32>} : memref<16x16x8xf32, #tpu.memory_space<vmem>>, vector<16x16x8xf32>,
    %c0_68 = arith.constant 0 : index
    %c0_69 = arith.constant 0 : index
    %c0_70 = arith.constant 0 : index
    %62 = vector.load %arg9[%c0_68, %c0_69, %c0_70] : memref<16x16x8xf32, #tpu.memory_space<vmem>>, vector<16x16x8xf32>
    %63 = vector.extract_strided_slice %54 {offsets = [1, 0, 0], sizes = [16, 16, 8], strides = [1, 1, 1]} : vector<18x16x8xbf16> to vector<16x16x8xbf16>
    %64 = vector.extract_strided_slice %9 {offsets = [1, 2, 0, 0], sizes = [1, 1, 8, 8], strides = [1, 1, 1, 1]} : vector<3x3x8x8xbf16> to vector<1x1x8x8xbf16>
    %65 = vector.shape_cast %64 : vector<1x1x8x8xbf16> to vector<8x8xbf16>
    %cst_71 = arith.constant dense<0.000000e+00> : vector<16x16x8xf32>
    %66 = tpu.matmul %63, %65, %cst_71 {dimension_numbers = #tpu.dot_dimension_numbers<[2], [0], [0, 1], [1], [0, 0, 0, 1, 1, 1], [], []>} : vector<16x16x8xbf16>, vector<8x8xbf16>, vector<16x16x8xf32> -> vector<16x16x8xf32>
    %67 = arith.addf %62, %66 : vector<16x16x8xf32>
    %c0_72 = arith.constant 0 : index
    %c0_73 = arith.constant 0 : index
    %c0_74 = arith.constant 0 : index
    %68 = vector.load %arg9[%c0_72, %c0_73, %c0_74] : memref<16x16x8xf32, #tpu.memory_space<vmem>>, vector<16x16x8xf32>
    tpu.vector_store %arg9[%c0_72, %c0_73, %c0_74], %67 {strides = array<i32>} : memref<16x16x8xf32, #tpu.memory_space<vmem>>, vector<16x16x8xf32>,
    %c0_75 = arith.constant 0 : index
    %c0_76 = arith.constant 0 : index
    %c0_77 = arith.constant 0 : index
    %69 = vector.load %arg9[%c0_75, %c0_76, %c0_77] : memref<16x16x8xf32, #tpu.memory_space<vmem>>, vector<16x16x8xf32>
    %70 = vector.extract_strided_slice %54 {offsets = [2, 0, 0], sizes = [16, 16, 8], strides = [1, 1, 1]} : vector<18x16x8xbf16> to vector<16x16x8xbf16>
    %71 = vector.extract_strided_slice %9 {offsets = [2, 2, 0, 0], sizes = [1, 1, 8, 8], strides = [1, 1, 1, 1]} : vector<3x3x8x8xbf16> to vector<1x1x8x8xbf16>
    %72 = vector.shape_cast %71 : vector<1x1x8x8xbf16> to vector<8x8xbf16>
    %cst_78 = arith.constant dense<0.000000e+00> : vector<16x16x8xf32>
    %73 = tpu.matmul %70, %72, %cst_78 {dimension_numbers = #tpu.dot_dimension_numbers<[2], [0], [0, 1], [1], [0, 0, 0, 1, 1, 1], [], []>} : vector<16x16x8xbf16>, vector<8x8xbf16>, vector<16x16x8xf32> -> vector<16x16x8xf32>
    %74 = arith.addf %69, %73 : vector<16x16x8xf32>
    %c0_79 = arith.constant 0 : index
    %c0_80 = arith.constant 0 : index
    %c0_81 = arith.constant 0 : index
    %75 = vector.load %arg9[%c0_79, %c0_80, %c0_81] : memref<16x16x8xf32, #tpu.memory_space<vmem>>, vector<16x16x8xf32>
    tpu.vector_store %arg9[%c0_79, %c0_80, %c0_81], %74 {strides = array<i32>} : memref<16x16x8xf32, #tpu.memory_space<vmem>>, vector<16x16x8xf32>,
    %cst_82 = arith.constant 0.000000e+00 : bf16
    %76 = vector.broadcast %cst_82 : bf16 to vector<18x18x8xbf16>
    %c0_83 = arith.constant 0 : index
    %c0_84 = arith.constant 0 : index
    %c0_85 = arith.constant 0 : index
    %77 = vector.load %arg8[%c0_83, %c0_84, %c0_85] : memref<18x18x8xbf16, #tpu.memory_space<vmem>>, vector<18x18x8xbf16>
    tpu.vector_store %arg8[%c0_83, %c0_84, %c0_85], %76 {strides = array<i32>} : memref<18x18x8xbf16, #tpu.memory_space<vmem>>, vector<18x18x8xbf16>,
    %c0_86 = arith.constant 0 : index
    %c0_87 = arith.constant 0 : index
    %c0_88 = arith.constant 0 : index
    %c0_89 = arith.constant 0 : index
    %78 = vector.load %arg2[%c0_86, %c0_87, %c0_88, %c0_89] : memref<1x16x16x8xf32, #tpu.memory_space<vmem>>, vector<1x16x16x8xf32>
    %79 = vector.shape_cast %78 : vector<1x16x16x8xf32> to vector<16x16x8xf32>
    %80 = arith.truncf %79 : vector<16x16x8xf32> to vector<16x16x8xbf16>
    %c1_90 = arith.constant 1 : index
    %c1_91 = arith.constant 1 : index
    %c0_92 = arith.constant 0 : index
    %81 = vector.load %arg8[%c1_90, %c1_91, %c0_92] : memref<18x18x8xbf16, #tpu.memory_space<vmem>>, vector<16x16x8xbf16>
    tpu.vector_store %arg8[%c1_90, %c1_91, %c0_92], %80 {strides = array<i32>} : memref<18x18x8xbf16, #tpu.memory_space<vmem>>, vector<16x16x8xbf16>,
    %c0_93 = arith.constant 0 : index
    %c0_94 = arith.constant 0 : index
    %c0_95 = arith.constant 0 : index
    %82 = vector.load %arg8[%c0_93, %c0_94, %c0_95] : memref<18x18x8xbf16, #tpu.memory_space<vmem>>, vector<18x18x8xbf16>
    %c0_96 = arith.constant 0 : index
    %c0_97 = arith.constant 0 : index
    %c0_98 = arith.constant 0 : index
    %c0_99 = arith.constant 0 : index
    %83 = vector.load %arg4[%c0_96, %c0_97, %c0_98, %c0_99] : memref<3x3x8x8xbf16, #tpu.memory_space<vmem>>, vector<3x3x8x8xbf16>
    %84 = vector.extract_strided_slice %82 {offsets = [0, 0, 0], sizes = [18, 16, 8], strides = [1, 1, 1]} : vector<18x18x8xbf16> to vector<18x16x8xbf16>
    %c0_100 = arith.constant 0 : index
    %c0_101 = arith.constant 0 : index
    %c0_102 = arith.constant 0 : index
    %85 = vector.load %arg9[%c0_100, %c0_101, %c0_102] : memref<16x16x8xf32, #tpu.memory_space<vmem>>, vector<16x16x8xf32>
    %86 = vector.extract_strided_slice %84 {offsets = [0, 0, 0], sizes = [16, 16, 8], strides = [1, 1, 1]} : vector<18x16x8xbf16> to vector<16x16x8xbf16>
    %87 = vector.extract_strided_slice %83 {offsets = [0, 0, 0, 0], sizes = [1, 1, 8, 8], strides = [1, 1, 1, 1]} : vector<3x3x8x8xbf16> to vector<1x1x8x8xbf16>
    %88 = vector.shape_cast %87 : vector<1x1x8x8xbf16> to vector<8x8xbf16>
    %cst_103 = arith.constant dense<0.000000e+00> : vector<16x16x8xf32>
    %89 = tpu.matmul %86, %88, %cst_103 {dimension_numbers = #tpu.dot_dimension_numbers<[2], [0], [0, 1], [1], [0, 0, 0, 1, 1, 1], [], []>} : vector<16x16x8xbf16>, vector<8x8xbf16>, vector<16x16x8xf32> -> vector<16x16x8xf32>
    %90 = arith.addf %85, %89 : vector<16x16x8xf32>
    %c0_104 = arith.constant 0 : index
    %c0_105 = arith.constant 0 : index
    %c0_106 = arith.constant 0 : index
    %91 = vector.load %arg9[%c0_104, %c0_105, %c0_106] : memref<16x16x8xf32, #tpu.memory_space<vmem>>, vector<16x16x8xf32>
    tpu.vector_store %arg9[%c0_104, %c0_105, %c0_106], %90 {strides = array<i32>} : memref<16x16x8xf32, #tpu.memory_space<vmem>>, vector<16x16x8xf32>,
    %c0_107 = arith.constant 0 : index
    %c0_108 = arith.constant 0 : index
    %c0_109 = arith.constant 0 : index
    %92 = vector.load %arg9[%c0_107, %c0_108, %c0_109] : memref<16x16x8xf32, #tpu.memory_space<vmem>>, vector<16x16x8xf32>
    %93 = vector.extract_strided_slice %84 {offsets = [1, 0, 0], sizes = [16, 16, 8], strides = [1, 1, 1]} : vector<18x16x8xbf16> to vector<16x16x8xbf16>
    %94 = vector.extract_strided_slice %83 {offsets = [1, 0, 0, 0], sizes = [1, 1, 8, 8], strides = [1, 1, 1, 1]} : vector<3x3x8x8xbf16> to vector<1x1x8x8xbf16>
    %95 = vector.shape_cast %94 : vector<1x1x8x8xbf16> to vector<8x8xbf16>
    %cst_110 = arith.constant dense<0.000000e+00> : vector<16x16x8xf32>
    %96 = tpu.matmul %93, %95, %cst_110 {dimension_numbers = #tpu.dot_dimension_numbers<[2], [0], [0, 1], [1], [0, 0, 0, 1, 1, 1], [], []>} : vector<16x16x8xbf16>, vector<8x8xbf16>, vector<16x16x8xf32> -> vector<16x16x8xf32>
    %97 = arith.addf %92, %96 : vector<16x16x8xf32>
    %c0_111 = arith.constant 0 : index
    %c0_112 = arith.constant 0 : index
    %c0_113 = arith.constant 0 : index
    %98 = vector.load %arg9[%c0_111, %c0_112, %c0_113] : memref<16x16x8xf32, #tpu.memory_space<vmem>>, vector<16x16x8xf32>
    tpu.vector_store %arg9[%c0_111, %c0_112, %c0_113], %97 {strides = array<i32>} : memref<16x16x8xf32, #tpu.memory_space<vmem>>, vector<16x16x8xf32>,
    %c0_114 = arith.constant 0 : index
    %c0_115 = arith.constant 0 : index
    %c0_116 = arith.constant 0 : index
    %99 = vector.load %arg9[%c0_114, %c0_115, %c0_116] : memref<16x16x8xf32, #tpu.memory_space<vmem>>, vector<16x16x8xf32>
    %100 = vector.extract_strided_slice %84 {offsets = [2, 0, 0], sizes = [16, 16, 8], strides = [1, 1, 1]} : vector<18x16x8xbf16> to vector<16x16x8xbf16>
    %101 = vector.extract_strided_slice %83 {offsets = [2, 0, 0, 0], sizes = [1, 1, 8, 8], strides = [1, 1, 1, 1]} : vector<3x3x8x8xbf16> to vector<1x1x8x8xbf16>
    %102 = vector.shape_cast %101 : vector<1x1x8x8xbf16> to vector<8x8xbf16>
    %cst_117 = arith.constant dense<0.000000e+00> : vector<16x16x8xf32>
    %103 = tpu.matmul %100, %102, %cst_117 {dimension_numbers = #tpu.dot_dimension_numbers<[2], [0], [0, 1], [1], [0, 0, 0, 1, 1, 1], [], []>} : vector<16x16x8xbf16>, vector<8x8xbf16>, vector<16x16x8xf32> -> vector<16x16x8xf32>
    %104 = arith.addf %99, %103 : vector<16x16x8xf32>
    %c0_118 = arith.constant 0 : index
    %c0_119 = arith.constant 0 : index
    %c0_120 = arith.constant 0 : index
    %105 = vector.load %arg9[%c0_118, %c0_119, %c0_120] : memref<16x16x8xf32, #tpu.memory_space<vmem>>, vector<16x16x8xf32>
    tpu.vector_store %arg9[%c0_118, %c0_119, %c0_120], %104 {strides = array<i32>} : memref<16x16x8xf32, #tpu.memory_space<vmem>>, vector<16x16x8xf32>,
    %106 = vector.extract_strided_slice %82 {offsets = [0, 1, 0], sizes = [18, 16, 8], strides = [1, 1, 1]} : vector<18x18x8xbf16> to vector<18x16x8xbf16>
    %c0_121 = arith.constant 0 : index
    %c0_122 = arith.constant 0 : index
    %c0_123 = arith.constant 0 : index
    %107 = vector.load %arg9[%c0_121, %c0_122, %c0_123] : memref<16x16x8xf32, #tpu.memory_space<vmem>>, vector<16x16x8xf32>
    %108 = vector.extract_strided_slice %106 {offsets = [0, 0, 0], sizes = [16, 16, 8], strides = [1, 1, 1]} : vector<18x16x8xbf16> to vector<16x16x8xbf16>
    %109 = vector.extract_strided_slice %83 {offsets = [0, 1, 0, 0], sizes = [1, 1, 8, 8], strides = [1, 1, 1, 1]} : vector<3x3x8x8xbf16> to vector<1x1x8x8xbf16>
    %110 = vector.shape_cast %109 : vector<1x1x8x8xbf16> to vector<8x8xbf16>
    %cst_124 = arith.constant dense<0.000000e+00> : vector<16x16x8xf32>
    %111 = tpu.matmul %108, %110, %cst_124 {dimension_numbers = #tpu.dot_dimension_numbers<[2], [0], [0, 1], [1], [0, 0, 0, 1, 1, 1], [], []>} : vector<16x16x8xbf16>, vector<8x8xbf16>, vector<16x16x8xf32> -> vector<16x16x8xf32>
    %112 = arith.addf %107, %111 : vector<16x16x8xf32>
    %c0_125 = arith.constant 0 : index
    %c0_126 = arith.constant 0 : index
    %c0_127 = arith.constant 0 : index
    %113 = vector.load %arg9[%c0_125, %c0_126, %c0_127] : memref<16x16x8xf32, #tpu.memory_space<vmem>>, vector<16x16x8xf32>
    tpu.vector_store %arg9[%c0_125, %c0_126, %c0_127], %112 {strides = array<i32>} : memref<16x16x8xf32, #tpu.memory_space<vmem>>, vector<16x16x8xf32>,
    %c0_128 = arith.constant 0 : index
    %c0_129 = arith.constant 0 : index
    %c0_130 = arith.constant 0 : index
    %114 = vector.load %arg9[%c0_128, %c0_129, %c0_130] : memref<16x16x8xf32, #tpu.memory_space<vmem>>, vector<16x16x8xf32>
    %115 = vector.extract_strided_slice %106 {offsets = [1, 0, 0], sizes = [16, 16, 8], strides = [1, 1, 1]} : vector<18x16x8xbf16> to vector<16x16x8xbf16>
    %116 = vector.extract_strided_slice %83 {offsets = [1, 1, 0, 0], sizes = [1, 1, 8, 8], strides = [1, 1, 1, 1]} : vector<3x3x8x8xbf16> to vector<1x1x8x8xbf16>
    %117 = vector.shape_cast %116 : vector<1x1x8x8xbf16> to vector<8x8xbf16>
    %cst_131 = arith.constant dense<0.000000e+00> : vector<16x16x8xf32>
    %118 = tpu.matmul %115, %117, %cst_131 {dimension_numbers = #tpu.dot_dimension_numbers<[2], [0], [0, 1], [1], [0, 0, 0, 1, 1, 1], [], []>} : vector<16x16x8xbf16>, vector<8x8xbf16>, vector<16x16x8xf32> -> vector<16x16x8xf32>
    %119 = arith.addf %114, %118 : vector<16x16x8xf32>
    %c0_132 = arith.constant 0 : index
    %c0_133 = arith.constant 0 : index
    %c0_134 = arith.constant 0 : index
    %120 = vector.load %arg9[%c0_132, %c0_133, %c0_134] : memref<16x16x8xf32, #tpu.memory_space<vmem>>, vector<16x16x8xf32>
    tpu.vector_store %arg9[%c0_132, %c0_133, %c0_134], %119 {strides = array<i32>} : memref<16x16x8xf32, #tpu.memory_space<vmem>>, vector<16x16x8xf32>,
    %c0_135 = arith.constant 0 : index
    %c0_136 = arith.constant 0 : index
    %c0_137 = arith.constant 0 : index
    %121 = vector.load %arg9[%c0_135, %c0_136, %c0_137] : memref<16x16x8xf32, #tpu.memory_space<vmem>>, vector<16x16x8xf32>
    %122 = vector.extract_strided_slice %106 {offsets = [2, 0, 0], sizes = [16, 16, 8], strides = [1, 1, 1]} : vector<18x16x8xbf16> to vector<16x16x8xbf16>
    %123 = vector.extract_strided_slice %83 {offsets = [2, 1, 0, 0], sizes = [1, 1, 8, 8], strides = [1, 1, 1, 1]} : vector<3x3x8x8xbf16> to vector<1x1x8x8xbf16>
    %124 = vector.shape_cast %123 : vector<1x1x8x8xbf16> to vector<8x8xbf16>
    %cst_138 = arith.constant dense<0.000000e+00> : vector<16x16x8xf32>
    %125 = tpu.matmul %122, %124, %cst_138 {dimension_numbers = #tpu.dot_dimension_numbers<[2], [0], [0, 1], [1], [0, 0, 0, 1, 1, 1], [], []>} : vector<16x16x8xbf16>, vector<8x8xbf16>, vector<16x16x8xf32> -> vector<16x16x8xf32>
    %126 = arith.addf %121, %125 : vector<16x16x8xf32>
    %c0_139 = arith.constant 0 : index
    %c0_140 = arith.constant 0 : index
    %c0_141 = arith.constant 0 : index
    %127 = vector.load %arg9[%c0_139, %c0_140, %c0_141] : memref<16x16x8xf32, #tpu.memory_space<vmem>>, vector<16x16x8xf32>
    tpu.vector_store %arg9[%c0_139, %c0_140, %c0_141], %126 {strides = array<i32>} : memref<16x16x8xf32, #tpu.memory_space<vmem>>, vector<16x16x8xf32>,
    %128 = vector.extract_strided_slice %82 {offsets = [0, 2, 0], sizes = [18, 16, 8], strides = [1, 1, 1]} : vector<18x18x8xbf16> to vector<18x16x8xbf16>
    %c0_142 = arith.constant 0 : index
    %c0_143 = arith.constant 0 : index
    %c0_144 = arith.constant 0 : index
    %129 = vector.load %arg9[%c0_142, %c0_143, %c0_144] : memref<16x16x8xf32, #tpu.memory_space<vmem>>, vector<16x16x8xf32>
    %130 = vector.extract_strided_slice %128 {offsets = [0, 0, 0], sizes = [16, 16, 8], strides = [1, 1, 1]} : vector<18x16x8xbf16> to vector<16x16x8xbf16>
    %131 = vector.extract_strided_slice %83 {offsets = [0, 2, 0, 0], sizes = [1, 1, 8, 8], strides = [1, 1, 1, 1]} : vector<3x3x8x8xbf16> to vector<1x1x8x8xbf16>
    %132 = vector.shape_cast %131 : vector<1x1x8x8xbf16> to vector<8x8xbf16>
    %cst_145 = arith.constant dense<0.000000e+00> : vector<16x16x8xf32>
    %133 = tpu.matmul %130, %132, %cst_145 {dimension_numbers = #tpu.dot_dimension_numbers<[2], [0], [0, 1], [1], [0, 0, 0, 1, 1, 1], [], []>} : vector<16x16x8xbf16>, vector<8x8xbf16>, vector<16x16x8xf32> -> vector<16x16x8xf32>
    %134 = arith.addf %129, %133 : vector<16x16x8xf32>
    %c0_146 = arith.constant 0 : index
    %c0_147 = arith.constant 0 : index
    %c0_148 = arith.constant 0 : index
    %135 = vector.load %arg9[%c0_146, %c0_147, %c0_148] : memref<16x16x8xf32, #tpu.memory_space<vmem>>, vector<16x16x8xf32>
    tpu.vector_store %arg9[%c0_146, %c0_147, %c0_148], %134 {strides = array<i32>} : memref<16x16x8xf32, #tpu.memory_space<vmem>>, vector<16x16x8xf32>,
    %c0_149 = arith.constant 0 : index
    %c0_150 = arith.constant 0 : index
    %c0_151 = arith.constant 0 : index
    %136 = vector.load %arg9[%c0_149, %c0_150, %c0_151] : memref<16x16x8xf32, #tpu.memory_space<vmem>>, vector<16x16x8xf32>
    %137 = vector.extract_strided_slice %128 {offsets = [1, 0, 0], sizes = [16, 16, 8], strides = [1, 1, 1]} : vector<18x16x8xbf16> to vector<16x16x8xbf16>
    %138 = vector.extract_strided_slice %83 {offsets = [1, 2, 0, 0], sizes = [1, 1, 8, 8], strides = [1, 1, 1, 1]} : vector<3x3x8x8xbf16> to vector<1x1x8x8xbf16>
    %139 = vector.shape_cast %138 : vector<1x1x8x8xbf16> to vector<8x8xbf16>
    %cst_152 = arith.constant dense<0.000000e+00> : vector<16x16x8xf32>
    %140 = tpu.matmul %137, %139, %cst_152 {dimension_numbers = #tpu.dot_dimension_numbers<[2], [0], [0, 1], [1], [0, 0, 0, 1, 1, 1], [], []>} : vector<16x16x8xbf16>, vector<8x8xbf16>, vector<16x16x8xf32> -> vector<16x16x8xf32>
    %141 = arith.addf %136, %140 : vector<16x16x8xf32>
    %c0_153 = arith.constant 0 : index
    %c0_154 = arith.constant 0 : index
    %c0_155 = arith.constant 0 : index
    %142 = vector.load %arg9[%c0_153, %c0_154, %c0_155] : memref<16x16x8xf32, #tpu.memory_space<vmem>>, vector<16x16x8xf32>
    tpu.vector_store %arg9[%c0_153, %c0_154, %c0_155], %141 {strides = array<i32>} : memref<16x16x8xf32, #tpu.memory_space<vmem>>, vector<16x16x8xf32>,
    %c0_156 = arith.constant 0 : index
    %c0_157 = arith.constant 0 : index
    %c0_158 = arith.constant 0 : index
    %143 = vector.load %arg9[%c0_156, %c0_157, %c0_158] : memref<16x16x8xf32, #tpu.memory_space<vmem>>, vector<16x16x8xf32>
    %144 = vector.extract_strided_slice %128 {offsets = [2, 0, 0], sizes = [16, 16, 8], strides = [1, 1, 1]} : vector<18x16x8xbf16> to vector<16x16x8xbf16>
    %145 = vector.extract_strided_slice %83 {offsets = [2, 2, 0, 0], sizes = [1, 1, 8, 8], strides = [1, 1, 1, 1]} : vector<3x3x8x8xbf16> to vector<1x1x8x8xbf16>
    %146 = vector.shape_cast %145 : vector<1x1x8x8xbf16> to vector<8x8xbf16>
    %cst_159 = arith.constant dense<0.000000e+00> : vector<16x16x8xf32>
    %147 = tpu.matmul %144, %146, %cst_159 {dimension_numbers = #tpu.dot_dimension_numbers<[2], [0], [0, 1], [1], [0, 0, 0, 1, 1, 1], [], []>} : vector<16x16x8xbf16>, vector<8x8xbf16>, vector<16x16x8xf32> -> vector<16x16x8xf32>
    %148 = arith.addf %143, %147 : vector<16x16x8xf32>
    %c0_160 = arith.constant 0 : index
    %c0_161 = arith.constant 0 : index
    %c0_162 = arith.constant 0 : index
    %149 = vector.load %arg9[%c0_160, %c0_161, %c0_162] : memref<16x16x8xf32, #tpu.memory_space<vmem>>, vector<16x16x8xf32>
    tpu.vector_store %arg9[%c0_160, %c0_161, %c0_162], %148 {strides = array<i32>} : memref<16x16x8xf32, #tpu.memory_space<vmem>>, vector<16x16x8xf32>,
    %c0_163 = arith.constant 0 : index
    %c0_164 = arith.constant 0 : index
    %c0_165 = arith.constant 0 : index
    %150 = vector.load %arg9[%c0_163, %c0_164, %c0_165] : memref<16x16x8xf32, #tpu.memory_space<vmem>>, vector<16x16x8xf32>
    %c0_166 = arith.constant 0 : index
    %c0_167 = arith.constant 0 : index
    %151 = vector.load %arg5[%c0_166, %c0_167] : memref<1x8xf32, #tpu.memory_space<vmem>>, vector<1x8xf32>
    %152 = vector.shape_cast %151 : vector<1x8xf32> to vector<8xf32>
    %153 = vector.shape_cast %152 : vector<8xf32> to vector<1x1x8xf32>
    %154 = vector.broadcast %153 : vector<1x1x8xf32> to vector<16x16x8xf32>
    %155 = arith.addf %150, %154 : vector<16x16x8xf32>
    %cst_168 = arith.constant 0.000000e+00 : f32
    %156 = vector.broadcast %cst_168 : f32 to vector<16x16x8xf32>
    %157 = arith.maximumf %155, %156 : vector<16x16x8xf32>
    %c0_169 = arith.constant 0 : index
    %c0_170 = arith.constant 0 : index
    %c0_171 = arith.constant 0 : index
    %c0_172 = arith.constant 0 : index
    %158 = vector.load %arg6[%c0_169, %c0_170, %c0_171, %c0_172] : memref<1x16x16x8xf32, #tpu.memory_space<vmem>>, vector<1x16x16x8xf32>
    %159 = vector.shape_cast %158 : vector<1x16x16x8xf32> to vector<16x16x8xf32>
    %160 = vector.shape_cast %157 : vector<16x16x8xf32> to vector<1x16x16x8xf32>
    tpu.vector_store %arg6[%c0_169, %c0_170, %c0_171, %c0_172], %160 {strides = array<i32>} : memref<1x16x16x8xf32, #tpu.memory_space<vmem>>, vector<1x16x16x8xf32>,
    return
  }
  func.func @transform_0(%arg0: i32) -> (i32, i32, i32, i32) {
    %c0_i32 = arith.constant 0 : i32
    %c0_i32_0 = arith.constant 0 : i32
    %c0_i32_1 = arith.constant 0 : i32
    %c0_i32_2 = arith.constant 0 : i32
    return %arg0, %c0_i32, %c0_i32_0, %c0_i32_1 : i32, i32, i32, i32
  }
  func.func @transform_1(%arg0: i32) -> (i32, i32, i32, i32) {
    %c0_i32 = arith.constant 0 : i32
    %c0_i32_0 = arith.constant 0 : i32
    %c0_i32_1 = arith.constant 0 : i32
    %c0_i32_2 = arith.constant 0 : i32
    return %arg0, %c0_i32, %c0_i32_0, %c0_i32_1 : i32, i32, i32, i32
  }
  func.func @transform_2(%arg0: i32) -> (i32, i32, i32, i32) {
    %c0_i32 = arith.constant 0 : i32
    %c0_i32_0 = arith.constant 0 : i32
    %c0_i32_1 = arith.constant 0 : i32
    %c0_i32_2 = arith.constant 0 : i32
    %c0_i32_3 = arith.constant 0 : i32
    return %c0_i32, %c0_i32_0, %c0_i32_1, %c0_i32_2 : i32, i32, i32, i32
  }
  func.func @transform_3(%arg0: i32) -> (i32, i32, i32, i32) {
    %c0_i32 = arith.constant 0 : i32
    %c0_i32_0 = arith.constant 0 : i32
    %c0_i32_1 = arith.constant 0 : i32
    %c0_i32_2 = arith.constant 0 : i32
    %c0_i32_3 = arith.constant 0 : i32
    return %c0_i32, %c0_i32_0, %c0_i32_1, %c0_i32_2 : i32, i32, i32, i32
  }
  func.func @transform_4(%arg0: i32) -> (i32, i32) {
    %c0_i32 = arith.constant 0 : i32
    %c0_i32_0 = arith.constant 0 : i32
    %c0_i32_1 = arith.constant 0 : i32
    return %c0_i32, %c0_i32_0 : i32, i32
  }
  func.func @transform_5(%arg0: i32) -> (i32, i32, i32, i32) {
    %c0_i32 = arith.constant 0 : i32
    %c0_i32_0 = arith.constant 0 : i32
    %c0_i32_1 = arith.constant 0 : i32
    %c0_i32_2 = arith.constant 0 : i32
    return %arg0, %c0_i32, %c0_i32_0, %c0_i32_1 : i32, i32, i32, i32
  }
}

module attributes {stable_mosaic.version = 11 : i64} {
  func.func @kernel(%arg0: i32, %arg1: memref<1x16x16x8xf32, #tpu.memory_space<vmem>>, %arg2: memref<3x3x8x8xbf16, #tpu.memory_space<vmem>>, %arg3: memref<1x8xf32, #tpu.memory_space<vmem>>, %arg4: memref<1x16x16x8xf32, #tpu.memory_space<vmem>>, %arg5: memref<18x18x8xbf16, #tpu.memory_space<vmem>>, %arg6: memref<16x16x8xf32, #tpu.memory_space<vmem>>) attributes {dimension_semantics = [#tpu.dimension_semantics<parallel>], iteration_bounds = array<i64: 2>, scalar_prefetch = 0 : i64, scratch_operands = 2 : i64, tpu.core_type = #tpu.core_type<tc>, window_params = [{transform_indices = @transform_0, window_bounds = array<i64: 1, 16, 16, 8>}, {pipeline_mode = #tpu.pipeline_mode<synchronous>, transform_indices = @transform_1, window_bounds = array<i64: 3, 3, 8, 8>}, {pipeline_mode = #tpu.pipeline_mode<synchronous>, transform_indices = @transform_2, window_bounds = array<i64: 1, 8>}, {transform_indices = @transform_3, window_bounds = array<i64: 1, 16, 16, 8>}]} {
    %cst = arith.constant 0.000000e+00 : f32
    %0 = vector.broadcast %cst : f32 to vector<16x16x8xf32>
    %c0 = arith.constant 0 : index
    %c0_0 = arith.constant 0 : index
    %c0_1 = arith.constant 0 : index
    %1 = vector.load %arg6[%c0, %c0_0, %c0_1] : memref<16x16x8xf32, #tpu.memory_space<vmem>>, vector<16x16x8xf32>
    tpu.vector_store %arg6[%c0, %c0_0, %c0_1], %0 {strides = array<i32>} : memref<16x16x8xf32, #tpu.memory_space<vmem>>, vector<16x16x8xf32>,
    %cst_2 = arith.constant 0.000000e+00 : bf16
    %2 = vector.broadcast %cst_2 : bf16 to vector<18x18x8xbf16>
    %c0_3 = arith.constant 0 : index
    %c0_4 = arith.constant 0 : index
    %c0_5 = arith.constant 0 : index
    %3 = vector.load %arg5[%c0_3, %c0_4, %c0_5] : memref<18x18x8xbf16, #tpu.memory_space<vmem>>, vector<18x18x8xbf16>
    tpu.vector_store %arg5[%c0_3, %c0_4, %c0_5], %2 {strides = array<i32>} : memref<18x18x8xbf16, #tpu.memory_space<vmem>>, vector<18x18x8xbf16>,
    %c0_6 = arith.constant 0 : index
    %c0_7 = arith.constant 0 : index
    %c0_8 = arith.constant 0 : index
    %c0_9 = arith.constant 0 : index
    %4 = vector.load %arg1[%c0_6, %c0_7, %c0_8, %c0_9] : memref<1x16x16x8xf32, #tpu.memory_space<vmem>>, vector<1x16x16x8xf32>
    %5 = vector.shape_cast %4 : vector<1x16x16x8xf32> to vector<16x16x8xf32>
    %6 = arith.truncf %5 : vector<16x16x8xf32> to vector<16x16x8xbf16>
    %c1 = arith.constant 1 : index
    %c1_10 = arith.constant 1 : index
    %c0_11 = arith.constant 0 : index
    %7 = vector.load %arg5[%c1, %c1_10, %c0_11] : memref<18x18x8xbf16, #tpu.memory_space<vmem>>, vector<16x16x8xbf16>
    tpu.vector_store %arg5[%c1, %c1_10, %c0_11], %6 {strides = array<i32>} : memref<18x18x8xbf16, #tpu.memory_space<vmem>>, vector<16x16x8xbf16>,
    %c0_12 = arith.constant 0 : index
    %c0_13 = arith.constant 0 : index
    %c0_14 = arith.constant 0 : index
    %8 = vector.load %arg5[%c0_12, %c0_13, %c0_14] : memref<18x18x8xbf16, #tpu.memory_space<vmem>>, vector<18x18x8xbf16>
    %c0_15 = arith.constant 0 : index
    %c0_16 = arith.constant 0 : index
    %c0_17 = arith.constant 0 : index
    %c0_18 = arith.constant 0 : index
    %9 = vector.load %arg2[%c0_15, %c0_16, %c0_17, %c0_18] : memref<3x3x8x8xbf16, #tpu.memory_space<vmem>>, vector<3x3x8x8xbf16>
    %10 = vector.extract_strided_slice %8 {offsets = [0, 0, 0], sizes = [18, 16, 8], strides = [1, 1, 1]} : vector<18x18x8xbf16> to vector<18x16x8xbf16>
    %c0_19 = arith.constant 0 : index
    %c0_20 = arith.constant 0 : index
    %c0_21 = arith.constant 0 : index
    %11 = vector.load %arg6[%c0_19, %c0_20, %c0_21] : memref<16x16x8xf32, #tpu.memory_space<vmem>>, vector<16x16x8xf32>
    %12 = vector.extract_strided_slice %10 {offsets = [0, 0, 0], sizes = [16, 16, 8], strides = [1, 1, 1]} : vector<18x16x8xbf16> to vector<16x16x8xbf16>
    %13 = vector.extract_strided_slice %9 {offsets = [0, 0, 0, 0], sizes = [1, 1, 8, 8], strides = [1, 1, 1, 1]} : vector<3x3x8x8xbf16> to vector<1x1x8x8xbf16>
    %14 = vector.shape_cast %13 : vector<1x1x8x8xbf16> to vector<8x8xbf16>
    %cst_22 = arith.constant dense<0.000000e+00> : vector<16x16x8xf32>
    %15 = tpu.matmul %12, %14, %cst_22 {dimension_numbers = #tpu.dot_dimension_numbers<[2], [0], [0, 1], [1], [0, 0, 0, 1, 1, 1], [], []>} : vector<16x16x8xbf16>, vector<8x8xbf16>, vector<16x16x8xf32> -> vector<16x16x8xf32>
    %16 = arith.addf %11, %15 : vector<16x16x8xf32>
    %c0_23 = arith.constant 0 : index
    %c0_24 = arith.constant 0 : index
    %c0_25 = arith.constant 0 : index
    %17 = vector.load %arg6[%c0_23, %c0_24, %c0_25] : memref<16x16x8xf32, #tpu.memory_space<vmem>>, vector<16x16x8xf32>
    tpu.vector_store %arg6[%c0_23, %c0_24, %c0_25], %16 {strides = array<i32>} : memref<16x16x8xf32, #tpu.memory_space<vmem>>, vector<16x16x8xf32>,
    %c0_26 = arith.constant 0 : index
    %c0_27 = arith.constant 0 : index
    %c0_28 = arith.constant 0 : index
    %18 = vector.load %arg6[%c0_26, %c0_27, %c0_28] : memref<16x16x8xf32, #tpu.memory_space<vmem>>, vector<16x16x8xf32>
    %19 = vector.extract_strided_slice %10 {offsets = [1, 0, 0], sizes = [16, 16, 8], strides = [1, 1, 1]} : vector<18x16x8xbf16> to vector<16x16x8xbf16>
    %20 = vector.extract_strided_slice %9 {offsets = [1, 0, 0, 0], sizes = [1, 1, 8, 8], strides = [1, 1, 1, 1]} : vector<3x3x8x8xbf16> to vector<1x1x8x8xbf16>
    %21 = vector.shape_cast %20 : vector<1x1x8x8xbf16> to vector<8x8xbf16>
    %cst_29 = arith.constant dense<0.000000e+00> : vector<16x16x8xf32>
    %22 = tpu.matmul %19, %21, %cst_29 {dimension_numbers = #tpu.dot_dimension_numbers<[2], [0], [0, 1], [1], [0, 0, 0, 1, 1, 1], [], []>} : vector<16x16x8xbf16>, vector<8x8xbf16>, vector<16x16x8xf32> -> vector<16x16x8xf32>
    %23 = arith.addf %18, %22 : vector<16x16x8xf32>
    %c0_30 = arith.constant 0 : index
    %c0_31 = arith.constant 0 : index
    %c0_32 = arith.constant 0 : index
    %24 = vector.load %arg6[%c0_30, %c0_31, %c0_32] : memref<16x16x8xf32, #tpu.memory_space<vmem>>, vector<16x16x8xf32>
    tpu.vector_store %arg6[%c0_30, %c0_31, %c0_32], %23 {strides = array<i32>} : memref<16x16x8xf32, #tpu.memory_space<vmem>>, vector<16x16x8xf32>,
    %c0_33 = arith.constant 0 : index
    %c0_34 = arith.constant 0 : index
    %c0_35 = arith.constant 0 : index
    %25 = vector.load %arg6[%c0_33, %c0_34, %c0_35] : memref<16x16x8xf32, #tpu.memory_space<vmem>>, vector<16x16x8xf32>
    %26 = vector.extract_strided_slice %10 {offsets = [2, 0, 0], sizes = [16, 16, 8], strides = [1, 1, 1]} : vector<18x16x8xbf16> to vector<16x16x8xbf16>
    %27 = vector.extract_strided_slice %9 {offsets = [2, 0, 0, 0], sizes = [1, 1, 8, 8], strides = [1, 1, 1, 1]} : vector<3x3x8x8xbf16> to vector<1x1x8x8xbf16>
    %28 = vector.shape_cast %27 : vector<1x1x8x8xbf16> to vector<8x8xbf16>
    %cst_36 = arith.constant dense<0.000000e+00> : vector<16x16x8xf32>
    %29 = tpu.matmul %26, %28, %cst_36 {dimension_numbers = #tpu.dot_dimension_numbers<[2], [0], [0, 1], [1], [0, 0, 0, 1, 1, 1], [], []>} : vector<16x16x8xbf16>, vector<8x8xbf16>, vector<16x16x8xf32> -> vector<16x16x8xf32>
    %30 = arith.addf %25, %29 : vector<16x16x8xf32>
    %c0_37 = arith.constant 0 : index
    %c0_38 = arith.constant 0 : index
    %c0_39 = arith.constant 0 : index
    %31 = vector.load %arg6[%c0_37, %c0_38, %c0_39] : memref<16x16x8xf32, #tpu.memory_space<vmem>>, vector<16x16x8xf32>
    tpu.vector_store %arg6[%c0_37, %c0_38, %c0_39], %30 {strides = array<i32>} : memref<16x16x8xf32, #tpu.memory_space<vmem>>, vector<16x16x8xf32>,
    %32 = vector.extract_strided_slice %8 {offsets = [0, 1, 0], sizes = [18, 16, 8], strides = [1, 1, 1]} : vector<18x18x8xbf16> to vector<18x16x8xbf16>
    %c0_40 = arith.constant 0 : index
    %c0_41 = arith.constant 0 : index
    %c0_42 = arith.constant 0 : index
    %33 = vector.load %arg6[%c0_40, %c0_41, %c0_42] : memref<16x16x8xf32, #tpu.memory_space<vmem>>, vector<16x16x8xf32>
    %34 = vector.extract_strided_slice %32 {offsets = [0, 0, 0], sizes = [16, 16, 8], strides = [1, 1, 1]} : vector<18x16x8xbf16> to vector<16x16x8xbf16>
    %35 = vector.extract_strided_slice %9 {offsets = [0, 1, 0, 0], sizes = [1, 1, 8, 8], strides = [1, 1, 1, 1]} : vector<3x3x8x8xbf16> to vector<1x1x8x8xbf16>
    %36 = vector.shape_cast %35 : vector<1x1x8x8xbf16> to vector<8x8xbf16>
    %cst_43 = arith.constant dense<0.000000e+00> : vector<16x16x8xf32>
    %37 = tpu.matmul %34, %36, %cst_43 {dimension_numbers = #tpu.dot_dimension_numbers<[2], [0], [0, 1], [1], [0, 0, 0, 1, 1, 1], [], []>} : vector<16x16x8xbf16>, vector<8x8xbf16>, vector<16x16x8xf32> -> vector<16x16x8xf32>
    %38 = arith.addf %33, %37 : vector<16x16x8xf32>
    %c0_44 = arith.constant 0 : index
    %c0_45 = arith.constant 0 : index
    %c0_46 = arith.constant 0 : index
    %39 = vector.load %arg6[%c0_44, %c0_45, %c0_46] : memref<16x16x8xf32, #tpu.memory_space<vmem>>, vector<16x16x8xf32>
    tpu.vector_store %arg6[%c0_44, %c0_45, %c0_46], %38 {strides = array<i32>} : memref<16x16x8xf32, #tpu.memory_space<vmem>>, vector<16x16x8xf32>,
    %c0_47 = arith.constant 0 : index
    %c0_48 = arith.constant 0 : index
    %c0_49 = arith.constant 0 : index
    %40 = vector.load %arg6[%c0_47, %c0_48, %c0_49] : memref<16x16x8xf32, #tpu.memory_space<vmem>>, vector<16x16x8xf32>
    %41 = vector.extract_strided_slice %32 {offsets = [1, 0, 0], sizes = [16, 16, 8], strides = [1, 1, 1]} : vector<18x16x8xbf16> to vector<16x16x8xbf16>
    %42 = vector.extract_strided_slice %9 {offsets = [1, 1, 0, 0], sizes = [1, 1, 8, 8], strides = [1, 1, 1, 1]} : vector<3x3x8x8xbf16> to vector<1x1x8x8xbf16>
    %43 = vector.shape_cast %42 : vector<1x1x8x8xbf16> to vector<8x8xbf16>
    %cst_50 = arith.constant dense<0.000000e+00> : vector<16x16x8xf32>
    %44 = tpu.matmul %41, %43, %cst_50 {dimension_numbers = #tpu.dot_dimension_numbers<[2], [0], [0, 1], [1], [0, 0, 0, 1, 1, 1], [], []>} : vector<16x16x8xbf16>, vector<8x8xbf16>, vector<16x16x8xf32> -> vector<16x16x8xf32>
    %45 = arith.addf %40, %44 : vector<16x16x8xf32>
    %c0_51 = arith.constant 0 : index
    %c0_52 = arith.constant 0 : index
    %c0_53 = arith.constant 0 : index
    %46 = vector.load %arg6[%c0_51, %c0_52, %c0_53] : memref<16x16x8xf32, #tpu.memory_space<vmem>>, vector<16x16x8xf32>
    tpu.vector_store %arg6[%c0_51, %c0_52, %c0_53], %45 {strides = array<i32>} : memref<16x16x8xf32, #tpu.memory_space<vmem>>, vector<16x16x8xf32>,
    %c0_54 = arith.constant 0 : index
    %c0_55 = arith.constant 0 : index
    %c0_56 = arith.constant 0 : index
    %47 = vector.load %arg6[%c0_54, %c0_55, %c0_56] : memref<16x16x8xf32, #tpu.memory_space<vmem>>, vector<16x16x8xf32>
    %48 = vector.extract_strided_slice %32 {offsets = [2, 0, 0], sizes = [16, 16, 8], strides = [1, 1, 1]} : vector<18x16x8xbf16> to vector<16x16x8xbf16>
    %49 = vector.extract_strided_slice %9 {offsets = [2, 1, 0, 0], sizes = [1, 1, 8, 8], strides = [1, 1, 1, 1]} : vector<3x3x8x8xbf16> to vector<1x1x8x8xbf16>
    %50 = vector.shape_cast %49 : vector<1x1x8x8xbf16> to vector<8x8xbf16>
    %cst_57 = arith.constant dense<0.000000e+00> : vector<16x16x8xf32>
    %51 = tpu.matmul %48, %50, %cst_57 {dimension_numbers = #tpu.dot_dimension_numbers<[2], [0], [0, 1], [1], [0, 0, 0, 1, 1, 1], [], []>} : vector<16x16x8xbf16>, vector<8x8xbf16>, vector<16x16x8xf32> -> vector<16x16x8xf32>
    %52 = arith.addf %47, %51 : vector<16x16x8xf32>
    %c0_58 = arith.constant 0 : index
    %c0_59 = arith.constant 0 : index
    %c0_60 = arith.constant 0 : index
    %53 = vector.load %arg6[%c0_58, %c0_59, %c0_60] : memref<16x16x8xf32, #tpu.memory_space<vmem>>, vector<16x16x8xf32>
    tpu.vector_store %arg6[%c0_58, %c0_59, %c0_60], %52 {strides = array<i32>} : memref<16x16x8xf32, #tpu.memory_space<vmem>>, vector<16x16x8xf32>,
    %54 = vector.extract_strided_slice %8 {offsets = [0, 2, 0], sizes = [18, 16, 8], strides = [1, 1, 1]} : vector<18x18x8xbf16> to vector<18x16x8xbf16>
    %c0_61 = arith.constant 0 : index
    %c0_62 = arith.constant 0 : index
    %c0_63 = arith.constant 0 : index
    %55 = vector.load %arg6[%c0_61, %c0_62, %c0_63] : memref<16x16x8xf32, #tpu.memory_space<vmem>>, vector<16x16x8xf32>
    %56 = vector.extract_strided_slice %54 {offsets = [0, 0, 0], sizes = [16, 16, 8], strides = [1, 1, 1]} : vector<18x16x8xbf16> to vector<16x16x8xbf16>
    %57 = vector.extract_strided_slice %9 {offsets = [0, 2, 0, 0], sizes = [1, 1, 8, 8], strides = [1, 1, 1, 1]} : vector<3x3x8x8xbf16> to vector<1x1x8x8xbf16>
    %58 = vector.shape_cast %57 : vector<1x1x8x8xbf16> to vector<8x8xbf16>
    %cst_64 = arith.constant dense<0.000000e+00> : vector<16x16x8xf32>
    %59 = tpu.matmul %56, %58, %cst_64 {dimension_numbers = #tpu.dot_dimension_numbers<[2], [0], [0, 1], [1], [0, 0, 0, 1, 1, 1], [], []>} : vector<16x16x8xbf16>, vector<8x8xbf16>, vector<16x16x8xf32> -> vector<16x16x8xf32>
    %60 = arith.addf %55, %59 : vector<16x16x8xf32>
    %c0_65 = arith.constant 0 : index
    %c0_66 = arith.constant 0 : index
    %c0_67 = arith.constant 0 : index
    %61 = vector.load %arg6[%c0_65, %c0_66, %c0_67] : memref<16x16x8xf32, #tpu.memory_space<vmem>>, vector<16x16x8xf32>
    tpu.vector_store %arg6[%c0_65, %c0_66, %c0_67], %60 {strides = array<i32>} : memref<16x16x8xf32, #tpu.memory_space<vmem>>, vector<16x16x8xf32>,
    %c0_68 = arith.constant 0 : index
    %c0_69 = arith.constant 0 : index
    %c0_70 = arith.constant 0 : index
    %62 = vector.load %arg6[%c0_68, %c0_69, %c0_70] : memref<16x16x8xf32, #tpu.memory_space<vmem>>, vector<16x16x8xf32>
    %63 = vector.extract_strided_slice %54 {offsets = [1, 0, 0], sizes = [16, 16, 8], strides = [1, 1, 1]} : vector<18x16x8xbf16> to vector<16x16x8xbf16>
    %64 = vector.extract_strided_slice %9 {offsets = [1, 2, 0, 0], sizes = [1, 1, 8, 8], strides = [1, 1, 1, 1]} : vector<3x3x8x8xbf16> to vector<1x1x8x8xbf16>
    %65 = vector.shape_cast %64 : vector<1x1x8x8xbf16> to vector<8x8xbf16>
    %cst_71 = arith.constant dense<0.000000e+00> : vector<16x16x8xf32>
    %66 = tpu.matmul %63, %65, %cst_71 {dimension_numbers = #tpu.dot_dimension_numbers<[2], [0], [0, 1], [1], [0, 0, 0, 1, 1, 1], [], []>} : vector<16x16x8xbf16>, vector<8x8xbf16>, vector<16x16x8xf32> -> vector<16x16x8xf32>
    %67 = arith.addf %62, %66 : vector<16x16x8xf32>
    %c0_72 = arith.constant 0 : index
    %c0_73 = arith.constant 0 : index
    %c0_74 = arith.constant 0 : index
    %68 = vector.load %arg6[%c0_72, %c0_73, %c0_74] : memref<16x16x8xf32, #tpu.memory_space<vmem>>, vector<16x16x8xf32>
    tpu.vector_store %arg6[%c0_72, %c0_73, %c0_74], %67 {strides = array<i32>} : memref<16x16x8xf32, #tpu.memory_space<vmem>>, vector<16x16x8xf32>,
    %c0_75 = arith.constant 0 : index
    %c0_76 = arith.constant 0 : index
    %c0_77 = arith.constant 0 : index
    %69 = vector.load %arg6[%c0_75, %c0_76, %c0_77] : memref<16x16x8xf32, #tpu.memory_space<vmem>>, vector<16x16x8xf32>
    %70 = vector.extract_strided_slice %54 {offsets = [2, 0, 0], sizes = [16, 16, 8], strides = [1, 1, 1]} : vector<18x16x8xbf16> to vector<16x16x8xbf16>
    %71 = vector.extract_strided_slice %9 {offsets = [2, 2, 0, 0], sizes = [1, 1, 8, 8], strides = [1, 1, 1, 1]} : vector<3x3x8x8xbf16> to vector<1x1x8x8xbf16>
    %72 = vector.shape_cast %71 : vector<1x1x8x8xbf16> to vector<8x8xbf16>
    %cst_78 = arith.constant dense<0.000000e+00> : vector<16x16x8xf32>
    %73 = tpu.matmul %70, %72, %cst_78 {dimension_numbers = #tpu.dot_dimension_numbers<[2], [0], [0, 1], [1], [0, 0, 0, 1, 1, 1], [], []>} : vector<16x16x8xbf16>, vector<8x8xbf16>, vector<16x16x8xf32> -> vector<16x16x8xf32>
    %74 = arith.addf %69, %73 : vector<16x16x8xf32>
    %c0_79 = arith.constant 0 : index
    %c0_80 = arith.constant 0 : index
    %c0_81 = arith.constant 0 : index
    %75 = vector.load %arg6[%c0_79, %c0_80, %c0_81] : memref<16x16x8xf32, #tpu.memory_space<vmem>>, vector<16x16x8xf32>
    tpu.vector_store %arg6[%c0_79, %c0_80, %c0_81], %74 {strides = array<i32>} : memref<16x16x8xf32, #tpu.memory_space<vmem>>, vector<16x16x8xf32>,
    %c0_82 = arith.constant 0 : index
    %c0_83 = arith.constant 0 : index
    %c0_84 = arith.constant 0 : index
    %76 = vector.load %arg6[%c0_82, %c0_83, %c0_84] : memref<16x16x8xf32, #tpu.memory_space<vmem>>, vector<16x16x8xf32>
    %c0_85 = arith.constant 0 : index
    %c0_86 = arith.constant 0 : index
    %77 = vector.load %arg3[%c0_85, %c0_86] : memref<1x8xf32, #tpu.memory_space<vmem>>, vector<1x8xf32>
    %78 = vector.shape_cast %77 : vector<1x8xf32> to vector<8xf32>
    %79 = vector.shape_cast %78 : vector<8xf32> to vector<1x1x8xf32>
    %80 = vector.broadcast %79 : vector<1x1x8xf32> to vector<16x16x8xf32>
    %81 = arith.addf %76, %80 : vector<16x16x8xf32>
    %cst_87 = arith.constant 0.000000e+00 : f32
    %82 = vector.broadcast %cst_87 : f32 to vector<16x16x8xf32>
    %83 = arith.maximumf %81, %82 : vector<16x16x8xf32>
    %c0_88 = arith.constant 0 : index
    %c0_89 = arith.constant 0 : index
    %c0_90 = arith.constant 0 : index
    %c0_91 = arith.constant 0 : index
    %84 = vector.load %arg4[%c0_88, %c0_89, %c0_90, %c0_91] : memref<1x16x16x8xf32, #tpu.memory_space<vmem>>, vector<1x16x16x8xf32>
    %85 = vector.shape_cast %84 : vector<1x16x16x8xf32> to vector<16x16x8xf32>
    %86 = vector.shape_cast %83 : vector<16x16x8xf32> to vector<1x16x16x8xf32>
    tpu.vector_store %arg4[%c0_88, %c0_89, %c0_90, %c0_91], %86 {strides = array<i32>} : memref<1x16x16x8xf32, #tpu.memory_space<vmem>>, vector<1x16x16x8xf32>,
    return
  }
  func.func @transform_0(%arg0: i32) -> (i32, i32, i32, i32) {
    %c0_i32 = arith.constant 0 : i32
    %c0_i32_0 = arith.constant 0 : i32
    %c0_i32_1 = arith.constant 0 : i32
    %c0_i32_2 = arith.constant 0 : i32
    return %arg0, %c0_i32, %c0_i32_0, %c0_i32_1 : i32, i32, i32, i32
  }
  func.func @transform_1(%arg0: i32) -> (i32, i32, i32, i32) {
    %c0_i32 = arith.constant 0 : i32
    %c0_i32_0 = arith.constant 0 : i32
    %c0_i32_1 = arith.constant 0 : i32
    %c0_i32_2 = arith.constant 0 : i32
    %c0_i32_3 = arith.constant 0 : i32
    return %c0_i32, %c0_i32_0, %c0_i32_1, %c0_i32_2 : i32, i32, i32, i32
  }
  func.func @transform_2(%arg0: i32) -> (i32, i32) {
    %c0_i32 = arith.constant 0 : i32
    %c0_i32_0 = arith.constant 0 : i32
    %c0_i32_1 = arith.constant 0 : i32
    return %c0_i32, %c0_i32_0 : i32, i32
  }
  func.func @transform_3(%arg0: i32) -> (i32, i32, i32, i32) {
    %c0_i32 = arith.constant 0 : i32
    %c0_i32_0 = arith.constant 0 : i32
    %c0_i32_1 = arith.constant 0 : i32
    %c0_i32_2 = arith.constant 0 : i32
    return %arg0, %c0_i32, %c0_i32_0, %c0_i32_1 : i32, i32, i32, i32
  }
}

</mosaic_0001>

<llo_original>
// kernel: tile.8
$region0: #{tile.8}
  #allocation0 [shape = 's32[1]{0}', space=sflag, size = 0x4, scoped, tag = 'scoped memory for tile.8']
  %s0 = inlined_call_operand.vmem [shape: f32[8], index: 0, kind: input, shape index: {}]
  %s1 = inlined_call_operand.vmem [shape: f32[4,8], index: 1, kind: output, shape index: {}]
  // Predicated region
  $region2: #{tile.8} parent=0 // pred_check
    _
  $region3: #{tile.8} parent=0 // pred_check_branch
    %3 = sbr.rel (0) target = $region5
  $region4: #{tile.8} parent=0 // pred_region
    _
  $region5: #{tile.8} parent=0 // pred_fallthru
    _
  %v4 = vld [vmem:[%s0] ss:$0 sm:$0xff]
  %5 = vst [vmem:[%s1] sm:$0xf] %v4

// kernel: tile.9
$region0: #{tile.9}
  %s0 = inlined_call_operand.vmem [shape: f32[4,8], index: 0, kind: input, shape index: {}]
  %s1 = inlined_call_operand.vmem [shape: f32[1,32], index: 1, kind: output, shape index: {}]
  $region1: #{tile.9} parent=0
    #allocation0 [shape = 'u8[4096]{0}', space=vmem, size = 0x1000, scoped, tag = 'scoped mem for output reshape']
    #allocation1 [shape = 'u8[4096]{0}', space=vmem, size = 0x1000, scoped, tag = 'scoped mem for input reshape']
    %s3 = ssub.s32 16, 1
    %v4 = vld [vmem:[%s0] sm:%s3]
    %5 = vst [vmem:[#allocation1] sm:%s3] %v4
    %v6 = vld [vmem:[#allocation1] sm:$0x1]
    %vm7 = vcmask 64512
    %8 = vst.msk [vmem:[#allocation0] sm:$0x1] %vm7, %v6
    %s9 = scalar_lea.vmem [#allocation1], 3
    %v10 = vld [vmem:[%s9] sm:$0x1]
    %11 = vrot.lane.b32.xlu0 %v10, 24
    %v12 = vpop.permute.xlu0 %11
    %vm13 = vcmask 261312
    %14 = vst.msk [vmem:[#allocation0] sm:$0x1] %vm13, %v12
    %s15 = scalar_lea.vmem [#allocation1], 2
    %v16 = vld [vmem:[%s15] sm:$0x1]
    %17 = vrot.lane.b32.xlu0 %v16, 16
    %v18 = vpop.permute.xlu0 %17
    %vm19 = vcmask 195712
    %20 = vst.msk [vmem:[#allocation0] sm:$0x1] %vm19, %v18
    %s21 = scalar_lea.vmem [#allocation1], 1
    %v22 = vld [vmem:[%s21] sm:$0x1]
    %23 = vrot.lane.b32.xlu0 %v22, 8
    %v24 = vpop.permute.xlu0 %23
    %vm25 = vcmask 130112
    %26 = vst.msk [vmem:[#allocation0] sm:$0x1] %vm25, %v24
    %s28 = ssub.s32 2, 1
    %v29 = vld [vmem:[#allocation0] sm:%s28]
    %s31 = ssub.s32 2, 1
    %32 = vst [vmem:[%s1] sm:%s31] %v29

// kernel: decoder_block_forward.3
$region0: #{decoder_block_forward.3}
  #allocation0 [shape = 'u32[]', space=smem, size = 0x4, offset = 0x4, fixed_abs, tag = 'smem constant byte address 0x4 - core index']
  #allocation1 [shape = 'u32[72,128]{1,0:T(1,128)}', space=vmem, size = 0x9000, scoped, tag = 'internal scratch']
  %s0 = inlined_call_operand.vmem [shape: f32[128,16], index: 0, kind: input, shape index: {}]
  %s1 = inlined_call_operand.vmem [shape: bf16[16,32], index: 1, kind: input, shape index: {}]
  %s2 = inlined_call_operand.vmem [shape: f32[1,32], index: 2, kind: input, shape index: {}]
  %s3 = inlined_call_operand.vmem [shape: f32[128,32], index: 3, kind: output, shape index: {}]
  %s4 = sld [smem:[#allocation0]]
  $region22: #{decoder_block_forward.3} parent=0
    _
  %s6 = ssub.s32 1, %s4
  %s7 = scalar_select 0, %s6, %s4
  // Predicated region
  $region2: #{decoder_block_forward.3} parent=0 // pred_check
    _
  $region3: #{decoder_block_forward.3} parent=0 // pred_check_branch
    %9 = sbr.rel (0) target = $region5
  $region4: #{decoder_block_forward.3} parent=0 // pred_region
    _
  $region5: #{decoder_block_forward.3} parent=0 // pred_fallthru
    _
  // Predicated region
  $region6: #{decoder_block_forward.3} parent=0 // pred_check
    _
  $region7: #{decoder_block_forward.3} parent=0 // pred_check_branch
    %11 = sbr.rel (0) target = $region9
  $region8: #{decoder_block_forward.3} parent=0 // pred_region
    _
  $region9: #{decoder_block_forward.3} parent=0 // pred_fallthru
    _
  // Predicated region
  $region10: #{decoder_block_forward.3} parent=0 // pred_check
    _
  $region11: #{decoder_block_forward.3} parent=0 // pred_check_branch
    %13 = sbr.rel (0) target = $region13
  $region12: #{decoder_block_forward.3} parent=0 // pred_region
    _
  $region13: #{decoder_block_forward.3} parent=0 // pred_fallthru
    _
  %v15 = vld [vmem:[%s0] sm:$0xff]
  %v16 = vld [vmem:[%s0 + $0x8] sm:$0xff]
  %v17 = vld [vmem:[%s0 + $0x10] sm:$0xff]
  %v18 = vld [vmem:[%s0 + $0x18] sm:$0xff]
  %v19 = vld [vmem:[%s0 + $0x20] sm:$0xff]
  %v20 = vld [vmem:[%s0 + $0x28] sm:$0xff]
  %v21 = vld [vmem:[%s0 + $0x30] sm:$0xff]
  %v22 = vld [vmem:[%s0 + $0x38] sm:$0xff]
  %v23 = vld [vmem:[%s0 + $0x40] sm:$0xff]
  %v24 = vld [vmem:[%s0 + $0x48] sm:$0xff]
  %v25 = vld [vmem:[%s0 + $0x50] sm:$0xff]
  %v26 = vld [vmem:[%s0 + $0x58] sm:$0xff]
  %v27 = vld [vmem:[%s0 + $0x60] sm:$0xff]
  %v28 = vld [vmem:[%s0 + $0x68] sm:$0xff]
  %v29 = vld [vmem:[%s0 + $0x70] sm:$0xff]
  %v30 = vld [vmem:[%s0 + $0x78] sm:$0xff]
  %v31 = vpack.c.bf16 %v16, %v15
  %v32 = vpack.c.bf16 %v18, %v17
  %v33 = vpack.c.bf16 %v20, %v19
  %v34 = vpack.c.bf16 %v22, %v21
  %v35 = vpack.c.bf16 %v24, %v23
  %v36 = vpack.c.bf16 %v26, %v25
  %v37 = vpack.c.bf16 %v28, %v27
  %v38 = vpack.c.bf16 %v30, %v29
  %v39 = vld [vmem:[%s1] sm:$0xf]
  %v40 = vld [vmem:[%s1 + $0x4] sm:$0xf]
  %v41 = vld [vmem:[%s2] sm:$0x1]
  %v43 = vperm.slane %v41, 0
  %v47 = vunpack.c.l.b16 %v39
  %v48 = vunpack.c.l.b16 %v40
  %v49 = vpack.c.b16 %v48, %v47
  %vm51 = vcmask 130048
  %v53 = vsel %vm51, %v31, 0
  %v56 = vsel %vm51, %v32, 0
  %v59 = vsel %vm51, %v33, 0
  %v62 = vsel %vm51, %v34, 0
  %v65 = vsel %vm51, %v35, 0
  %v68 = vsel %vm51, %v36, 0
  %v71 = vsel %vm51, %v37, 0
  %v74 = vsel %vm51, %v38, 0
  %76 = vmatpush.bf16.msra.mxu0 0
  %77 = vmatpush.bf16.msra.mxu0 0
  %78 = vmatpush.bf16.msra.mxu0 0
  %79 = vmatpush.bf16.msra.mxu0 0
  %80 = vmatpush.bf16.msra.mxu0 0
  %81 = vmatpush.bf16.msra.mxu0 0
  %82 = vmatpush.bf16.msra.mxu0 0
  %83 = vmatpush.bf16.msra.mxu0 %v49
  %84 = vmatmul.bf16.gmra.mxu0 %v53
  %v85 = vpop.f32.mrf.mxu0
  %v86 = vadd.f32 %v43, %v85
  %v87 = vpop.f32.mrf.mxu0
  %v88 = vadd.f32 %v43, %v87
  %89 = vmatmul.bf16.gmra.mxu0 %v56
  %v90 = vpop.f32.mrf.mxu0
  %v91 = vadd.f32 %v43, %v90
  %v92 = vpop.f32.mrf.mxu0
  %v93 = vadd.f32 %v43, %v92
  %94 = vmatmul.bf16.gmra.mxu0 %v59
  %v95 = vpop.f32.mrf.mxu0
  %v96 = vadd.f32 %v43, %v95
  %v97 = vpop.f32.mrf.mxu0
  %v98 = vadd.f32 %v43, %v97
  %99 = vmatmul.bf16.gmra.mxu0 %v62
  %v100 = vpop.f32.mrf.mxu0
  %v101 = vadd.f32 %v43, %v100
  %v102 = vpop.f32.mrf.mxu0
  %v103 = vadd.f32 %v43, %v102
  %104 = vmatmul.bf16.gmra.mxu0 %v65
  %v105 = vpop.f32.mrf.mxu0
  %v106 = vadd.f32 %v43, %v105
  %v107 = vpop.f32.mrf.mxu0
  %v108 = vadd.f32 %v43, %v107
  %109 = vmatmul.bf16.gmra.mxu0 %v68
  %v110 = vpop.f32.mrf.mxu0
  %v111 = vadd.f32 %v43, %v110
  %v112 = vpop.f32.mrf.mxu0
  %v113 = vadd.f32 %v43, %v112
  %114 = vmatmul.bf16.gmra.mxu0 %v71
  %v115 = vpop.f32.mrf.mxu0
  %v116 = vadd.f32 %v43, %v115
  %v117 = vpop.f32.mrf.mxu0
  %v118 = vadd.f32 %v43, %v117
  %119 = vmatmul.bf16.gmra.mxu0 %v74
  %v120 = vpop.f32.mrf.mxu0
  %v121 = vadd.f32 %v43, %v120
  %v122 = vpop.f32.mrf.mxu0
  %v123 = vadd.f32 %v43, %v122
  %124 = vdwg.mxu0
  %vm125 = vcmask 261120
  %126 = vst.msk [vmem:[%s3] sm:$0xff] %vm125, %v86
  %127 = vst.msk [vmem:[%s3 + $0x8] sm:$0xff] %vm125, %v88
  %128 = vst.msk [vmem:[%s3 + $0x10] sm:$0xff] %vm125, %v91
  %129 = vst.msk [vmem:[%s3 + $0x18] sm:$0xff] %vm125, %v93
  %130 = vst.msk [vmem:[%s3 + $0x20] sm:$0xff] %vm125, %v96
  %131 = vst.msk [vmem:[%s3 + $0x28] sm:$0xff] %vm125, %v98
  %132 = vst.msk [vmem:[%s3 + $0x30] sm:$0xff] %vm125, %v101
  %133 = vst.msk [vmem:[%s3 + $0x38] sm:$0xff] %vm125, %v103
  %134 = vst.msk [vmem:[%s3 + $0x40] sm:$0xff] %vm125, %v106
  %135 = vst.msk [vmem:[%s3 + $0x48] sm:$0xff] %vm125, %v108
  %136 = vst.msk [vmem:[%s3 + $0x50] sm:$0xff] %vm125, %v111
  %137 = vst.msk [vmem:[%s3 + $0x58] sm:$0xff] %vm125, %v113
  %138 = vst.msk [vmem:[%s3 + $0x60] sm:$0xff] %vm125, %v116
  %139 = vst.msk [vmem:[%s3 + $0x68] sm:$0xff] %vm125, %v118
  %140 = vst.msk [vmem:[%s3 + $0x70] sm:$0xff] %vm125, %v121
  %141 = vst.msk [vmem:[%s3 + $0x78] sm:$0xff] %vm125, %v123
  // Predicated region
  $region14: #{decoder_block_forward.3} parent=0 // pred_check
    _
  $region15: #{decoder_block_forward.3} parent=0 // pred_check_branch
    %143 = sbr.rel (0) target = $region17
  $region16: #{decoder_block_forward.3} parent=0 // pred_region
    _
  $region17: #{decoder_block_forward.3} parent=0 // pred_fallthru
    _
  // Predicated region
  $region18: #{decoder_block_forward.3} parent=0 // pred_check
    _
  $region19: #{decoder_block_forward.3} parent=0 // pred_check_branch
    %145 = sbr.rel (0) target = $region21
  $region20: #{decoder_block_forward.3} parent=0 // pred_region
    _
  $region21: #{decoder_block_forward.3} parent=0 // pred_fallthru
    _

// kernel: decoder_block_forward.5
$region0: #{decoder_block_forward.5}
  #allocation0 [shape = 'u32[]', space=smem, size = 0x4, offset = 0x4, fixed_abs, tag = 'smem constant byte address 0x4 - core index']
  #allocation1 [shape = 'u32[72,128]{1,0:T(1,128)}', space=vmem, size = 0x9000, scoped, tag = 'internal scratch']
  #allocation2 [shape = 'bf16[18,18,8]{2,1,0:T(8,128)(2,1)}', space=vmem, size = 0x1b000, scoped, tag = 'scratch operand']
  #allocation3 [shape = 'f32[16,16,8]{2,1,0:T(8,128)}', space=vmem, size = 0x20000, scoped, tag = 'scratch operand']
  %s0 = inlined_call_operand.vmem [shape: f32[2,16,16,8], index: 0, kind: input, shape index: {}]
  %s1 = inlined_call_operand.vmem [shape: bf16[3,3,8,8], index: 1, kind: input, shape index: {}]
  %s2 = inlined_call_operand.vmem [shape: f32[1,8], index: 2, kind: input, shape index: {}]
  %s3 = inlined_call_operand.vmem [shape: f32[2,16,16,8], index: 3, kind: output, shape index: {}]
  %s4 = sld [smem:[#allocation0]]
  $region45: #{decoder_block_forward.5} parent=0
    _
  %s6 = ssub.s32 1, %s4
  %s7 = scalar_select 0, %s6, %s4
  loop: start=0, step=1, limit=4
  $region2: #{decoder_block_forward.5} parent=0 // loop_pre_header
    _
  $region3: #{decoder_block_forward.5} parent=0 // loop_header
    %s9 = sphi 0, %s13
    %p10 = scmp.ge.s32.totalorder %s9, 4
    %s19 = sphi 0, %s21
    %s22 = sphi 0, %s19
    %s23 = sphi 0, %s22
    %s39 = sphi 0, %s23
    %s43 = sphi 0, %s43
    %s45 = sphi 0, %s43
    %s46 = sphi 0, %s45
    %s60 = sphi 0, %s46
    %s64 = sphi 0, %s64
    %s66 = sphi 0, %s64
    %s67 = sphi 0, %s66
    %s81 = sphi 0, %s67
    %s87 = sphi 0, %s89
    %s90 = sphi 0, %s87
    %s91 = sphi 0, %s90
    %s107 = sphi 0, %s91
  $region4: #{decoder_block_forward.5} parent=0 // loop_header_branch
    %12 = sbr.rel (%p10) target = $region8
  $region5: #{decoder_block_forward.5} parent=0 // loop_body
    %s14 = ssub.s32 %s9, 1
    %s15 = ssub.s32 %s9, 2
    %s16 = sadd.s32 %s9, 1
    %s17 = ssub.s32 %s9, %s16
    %p18 = scmp.eq.s32.totalorder %s17, 0
    %s20 = sadd.s32 %s19, 1
    %s21 = scalar_select %p18, %s19, %s20
    %p24 = pneg %p18
    %p25 = scmp.eq.s32.totalorder %s9, 1
    %p26 = por %p24, %p25
    %p27 = scmp.ne.s32.totalorder %s19, %s22
    %p28 = scmp.eq.s32.totalorder %s9, 0
    %p29 = por %p27, %p28
    %p30 = scmp.ne.s32.totalorder %s19, %s22
    %p31 = scmp.eq.s32.totalorder %s14, 1
    %p32 = por %p30, %p31
    %p33 = scmp.ne.s32.totalorder %s22, %s23
    %p34 = scmp.eq.s32.totalorder %s14, 0
    %p35 = por %p33, %p34
    %p36 = scmp.ne.s32.totalorder %s22, %s23
    %p37 = scmp.eq.s32.totalorder %s15, 1
    %p38 = por %p36, %p37
    %p40 = scmp.ne.s32.totalorder %s23, %s39
    %p41 = scmp.eq.s32.totalorder %s15, 0
    %p42 = por %p40, %p41
    %s44 = sadd.s32 %s43, 1
    %p47 = scmp.eq.s32.totalorder %s9, 1
    %p48 = scmp.ne.s32.totalorder %s43, %s45
    %p49 = scmp.eq.s32.totalorder %s9, 0
    %p50 = por %p48, %p49
    %p51 = scmp.ne.s32.totalorder %s43, %s45
    %p52 = scmp.eq.s32.totalorder %s14, 1
    %p53 = por %p51, %p52
    %p54 = scmp.ne.s32.totalorder %s45, %s46
    %p55 = scmp.eq.s32.totalorder %s14, 0
    %p56 = por %p54, %p55
    %p57 = scmp.ne.s32.totalorder %s45, %s46
    %p58 = scmp.eq.s32.totalorder %s15, 1
    %p59 = por %p57, %p58
    %p61 = scmp.ne.s32.totalorder %s46, %s60
    %p62 = scmp.eq.s32.totalorder %s15, 0
    %p63 = por %p61, %p62
    %s65 = sadd.s32 %s64, 1
    %p68 = scmp.eq.s32.totalorder %s9, 1
    %p69 = scmp.ne.s32.totalorder %s64, %s66
    %p70 = scmp.eq.s32.totalorder %s9, 0
    %p71 = por %p69, %p70
    %p72 = scmp.ne.s32.totalorder %s64, %s66
    %p73 = scmp.eq.s32.totalorder %s14, 1
    %p74 = por %p72, %p73
    %p75 = scmp.ne.s32.totalorder %s66, %s67
    %p76 = scmp.eq.s32.totalorder %s14, 0
    %p77 = por %p75, %p76
    %p78 = scmp.ne.s32.totalorder %s66, %s67
    %p79 = scmp.eq.s32.totalorder %s15, 1
    %p80 = por %p78, %p79
    %p82 = scmp.ne.s32.totalorder %s67, %s81
    %p83 = scmp.eq.s32.totalorder %s15, 0
    %p84 = por %p82, %p83
    %s85 = ssub.s32 %s9, %s16
    %p86 = scmp.eq.s32.totalorder %s85, 0
    %s88 = sadd.s32 %s87, 1
    %s89 = scalar_select %p86, %s87, %s88
    %p92 = pneg %p86
    %p93 = scmp.eq.s32.totalorder %s9, 1
    %p94 = por %p92, %p93
    %p95 = scmp.ne.s32.totalorder %s87, %s90
    %p96 = scmp.eq.s32.totalorder %s9, 0
    %p97 = por %p95, %p96
    %p98 = scmp.ne.s32.totalorder %s87, %s90
    %p99 = scmp.eq.s32.totalorder %s14, 1
    %p100 = por %p98, %p99
    %p101 = scmp.ne.s32.totalorder %s90, %s91
    %p102 = scmp.eq.s32.totalorder %s14, 0
    %p103 = por %p101, %p102
    %p104 = scmp.ne.s32.totalorder %s90, %s91
    %p105 = scmp.eq.s32.totalorder %s15, 1
    %p106 = por %p104, %p105
    %p108 = scmp.ne.s32.totalorder %s91, %s107
    %p109 = scmp.eq.s32.totalorder %s15, 0
    %p110 = por %p108, %p109
    %p111 = scmp.le.s32.totalorder 1, %s9
    %p112 = scmp.lt.s32.totalorder %s9, 3
    %p113 = pnand %p111, %p112
    %p114 = pneg %p113
    // Predicated region
    $region9: #{decoder_block_forward.5} parent=5 // pred_check
      _
    $region10: #{decoder_block_forward.5} parent=5 // pred_check_branch
      %116 = sbr.rel (%p113) target = $region12
    $region11: #{decoder_block_forward.5} parent=5 // pred_region
      %s117 = ssub.s32 %s9, 1
      // Predicated region
      $region13: #{decoder_block_forward.5} parent=11 // pred_check
        %p118 = pneg %p56
      $region14: #{decoder_block_forward.5} parent=11 // pred_check_branch
        %120 = sbr.rel (%p118) target = $region16
      $region15: #{decoder_block_forward.5} parent=11 // pred_region
        _
      $region16: #{decoder_block_forward.5} parent=11 // pred_fallthru
        _
      // Predicated region
      $region17: #{decoder_block_forward.5} parent=11 // pred_check
        %p121 = pneg %p77
      $region18: #{decoder_block_forward.5} parent=11 // pred_check_branch
        %123 = sbr.rel (%p121) target = $region20
      $region19: #{decoder_block_forward.5} parent=11 // pred_region
        _
      $region20: #{decoder_block_forward.5} parent=11 // pred_fallthru
        _
    $region12: #{decoder_block_forward.5} parent=5 // pred_fallthru
      _
    %p124 = scmp.lt.s32.totalorder %s9, 2
    // Predicated region
    $region21: #{decoder_block_forward.5} parent=5 // pred_check
      %p125 = pneg %p124
    $region22: #{decoder_block_forward.5} parent=5 // pred_check_branch
      %127 = sbr.rel (%p125) target = $region24
    $region23: #{decoder_block_forward.5} parent=5 // pred_region
      // Predicated region
      $region25: #{decoder_block_forward.5} parent=23 // pred_check
        %p128 = pneg %p29
      $region26: #{decoder_block_forward.5} parent=23 // pred_check_branch
        %130 = sbr.rel (%p128) target = $region28
      $region27: #{decoder_block_forward.5} parent=23 // pred_region
        %p131 = scmp.lt.s32.totalorder %s9, 1
        %s132 = scalar_select %p131, %s9, 1
        %s133 = smul.addr %s132, 32
        %s134 = smul.addr %s133, 8
        %s135 = scalar_lea.vmem %s0, %s134
      $region28: #{decoder_block_forward.5} parent=23 // pred_fallthru
        _
    $region24: #{decoder_block_forward.5} parent=5 // pred_fallthru
      _
    %p136 = scmp.le.s32.totalorder 1, %s9
    %p137 = scmp.lt.s32.totalorder %s9, 3
    %p138 = pnand %p136, %p137
    %p139 = pneg %p138
    // Predicated region
    $region29: #{decoder_block_forward.5} parent=5 // pred_check
      _
    $region30: #{decoder_block_forward.5} parent=5 // pred_check_branch
      %141 = sbr.rel (%p138) target = $region32
    $region31: #{decoder_block_forward.5} parent=5 // pred_region
      %s142 = ssub.s32 %s9, 1
      %p143 = scmp.lt.s32.totalorder %s14, 1
      %s144 = scalar_select %p143, %s14, 1
      %s145 = smul.addr %s144, 32
      %s146 = smul.addr %s145, 8
      %s147 = scalar_lea.vmem %s0, %s146
      %p148 = pneg %p35
      %p149 = pneg %p32
      %p150 = pneg %p56
      %p151 = pneg %p53
      %p152 = pneg %p77
      %p153 = pneg %p74
      %p154 = pneg %p103
      %p155 = pneg %p100
      %p156 = scmp.lt.s32.totalorder %s14, 1
      %s157 = scalar_select %p156, %s14, 1
      %s158 = smul.addr %s157, 32
      %s159 = smul.addr %s158, 8
      %s160 = scalar_lea.vmem %s3, %s159
      %p161 = scmp.lt.s32.totalorder %s14, 1
      %s162 = scalar_select %p161, %s14, 1
      %s163 = smul.addr %s162, 32
      %s164 = smul.addr %s163, 8
      %s165 = scalar_lea.vmem %s0, %s164
      %p166 = scmp.lt.s32.totalorder %s14, 1
      %s167 = scalar_select %p166, %s14, 1
      %s168 = smul.addr %s167, 32
      %s169 = smul.addr %s168, 8
      %s170 = scalar_lea.vmem %s3, %s169
      %vm172 = vcmask 64512
      %173 = vst.msk [vmem:[#allocation3] sm:$0xff] %vm172, 0.0
      %174 = vst.msk [vmem:[#allocation3 + $0x8] sm:$0xff] %vm172, 0.0
      %175 = vst.msk [vmem:[#allocation3 + $0x10] sm:$0xff] %vm172, 0.0
      %176 = vst.msk [vmem:[#allocation3 + $0x18] sm:$0xff] %vm172, 0.0
      %177 = vst.msk [vmem:[#allocation3 + $0x20] sm:$0xff] %vm172, 0.0
      %178 = vst.msk [vmem:[#allocation3 + $0x28] sm:$0xff] %vm172, 0.0
      %179 = vst.msk [vmem:[#allocation3 + $0x30] sm:$0xff] %vm172, 0.0
      %180 = vst.msk [vmem:[#allocation3 + $0x38] sm:$0xff] %vm172, 0.0
      %181 = vst.msk [vmem:[#allocation3 + $0x40] sm:$0xff] %vm172, 0.0
      %182 = vst.msk [vmem:[#allocation3 + $0x48] sm:$0xff] %vm172, 0.0
      %183 = vst.msk [vmem:[#allocation3 + $0x50] sm:$0xff] %vm172, 0.0
      %184 = vst.msk [vmem:[#allocation3 + $0x58] sm:$0xff] %vm172, 0.0
      %185 = vst.msk [vmem:[#allocation3 + $0x60] sm:$0xff] %vm172, 0.0
      %186 = vst.msk [vmem:[#allocation3 + $0x68] sm:$0xff] %vm172, 0.0
      %187 = vst.msk [vmem:[#allocation3 + $0x70] sm:$0xff] %vm172, 0.0
      %188 = vst.msk [vmem:[#allocation3 + $0x78] sm:$0xff] %vm172, 0.0
      %189 = vst.msk [vmem:[#allocation3 + $0x80] sm:$0xff] %vm172, 0.0
      %190 = vst.msk [vmem:[#allocation3 + $0x88] sm:$0xff] %vm172, 0.0
      %191 = vst.msk [vmem:[#allocation3 + $0x90] sm:$0xff] %vm172, 0.0
      %192 = vst.msk [vmem:[#allocation3 + $0x98] sm:$0xff] %vm172, 0.0
      %193 = vst.msk [vmem:[#allocation3 + $0xa0] sm:$0xff] %vm172, 0.0
      %194 = vst.msk [vmem:[#allocation3 + $0xa8] sm:$0xff] %vm172, 0.0
      %195 = vst.msk [vmem:[#allocation3 + $0xb0] sm:$0xff] %vm172, 0.0
      %196 = vst.msk [vmem:[#allocation3 + $0xb8] sm:$0xff] %vm172, 0.0
      %197 = vst.msk [vmem:[#allocation3 + $0xc0] sm:$0xff] %vm172, 0.0
      %198 = vst.msk [vmem:[#allocation3 + $0xc8] sm:$0xff] %vm172, 0.0
      %199 = vst.msk [vmem:[#allocation3 + $0xd0] sm:$0xff] %vm172, 0.0
      %200 = vst.msk [vmem:[#allocation3 + $0xd8] sm:$0xff] %vm172, 0.0
      %201 = vst.msk [vmem:[#allocation3 + $0xe0] sm:$0xff] %vm172, 0.0
      %202 = vst.msk [vmem:[#allocation3 + $0xe8] sm:$0xff] %vm172, 0.0
      %203 = vst.msk [vmem:[#allocation3 + $0xf0] sm:$0xff] %vm172, 0.0
      %204 = vst.msk [vmem:[#allocation3 + $0xf8] sm:$0xff] %vm172, 0.0
      %vm205 = vcmask 60416
      %206 = vst.msk [vmem:[#allocation2] sm:$0xf] %vm205, 0
      %207 = vst.msk [vmem:[#allocation2 + $0x4] sm:$0xf] %vm205, 0
      %vm208 = vcmask 57344
      %209 = vst.msk [vmem:[#allocation2 + $0x8] sm:$0x1] %vm208, 0
      %210 = vst.msk [vmem:[#allocation2 + $0xc] sm:$0xf] %vm205, 0
      %211 = vst.msk [vmem:[#allocation2 + $0x10] sm:$0xf] %vm205, 0
      %212 = vst.msk [vmem:[#allocation2 + $0x14] sm:$0x1] %vm208, 0
      %213 = vst.msk [vmem:[#allocation2 + $0x18] sm:$0xf] %vm205, 0
      %214 = vst.msk [vmem:[#allocation2 + $0x1c] sm:$0xf] %vm205, 0
      %215 = vst.msk [vmem:[#allocation2 + $0x20] sm:$0x1] %vm208, 0
      %216 = vst.msk [vmem:[#allocation2 + $0x24] sm:$0xf] %vm205, 0
      %217 = vst.msk [vmem:[#allocation2 + $0x28] sm:$0xf] %vm205, 0
      %218 = vst.msk [vmem:[#allocation2 + $0x2c] sm:$0x1] %vm208, 0
      %219 = vst.msk [vmem:[#allocation2 + $0x30] sm:$0xf] %vm205, 0
      %220 = vst.msk [vmem:[#allocation2 + $0x34] sm:$0xf] %vm205, 0
      %221 = vst.msk [vmem:[#allocation2 + $0x38] sm:$0x1] %vm208, 0
      %222 = vst.msk [vmem:[#allocation2 + $0x3c] sm:$0xf] %vm205, 0
      %223 = vst.msk [vmem:[#allocation2 + $0x40] sm:$0xf] %vm205, 0
      %224 = vst.msk [vmem:[#allocation2 + $0x44] sm:$0x1] %vm208, 0
      %225 = vst.msk [vmem:[#allocation2 + $0x48] sm:$0xf] %vm205, 0
      %226 = vst.msk [vmem:[#allocation2 + $0x4c] sm:$0xf] %vm205, 0
      %227 = vst.msk [vmem:[#allocation2 + $0x50] sm:$0x1] %vm208, 0
      %228 = vst.msk [vmem:[#allocation2 + $0x54] sm:$0xf] %vm205, 0
      %229 = vst.msk [vmem:[#allocation2 + $0x58] sm:$0xf] %vm205, 0
      %230 = vst.msk [vmem:[#allocation2 + $0x5c] sm:$0x1] %vm208, 0
      %231 = vst.msk [vmem:[#allocation2 + $0x60] sm:$0xf] %vm205, 0
      %232 = vst.msk [vmem:[#allocation2 + $0x64] sm:$0xf] %vm205, 0
      %233 = vst.msk [vmem:[#allocation2 + $0x68] sm:$0x1] %vm208, 0
      %234 = vst.msk [vmem:[#allocation2 + $0x6c] sm:$0xf] %vm205, 0
      %235 = vst.msk [vmem:[#allocation2 + $0x70] sm:$0xf] %vm205, 0
      %236 = vst.msk [vmem:[#allocation2 + $0x74] sm:$0x1] %vm208, 0
      %237 = vst.msk [vmem:[#allocation2 + $0x78] sm:$0xf] %vm205, 0
      %238 = vst.msk [vmem:[#allocation2 + $0x7c] sm:$0xf] %vm205, 0
      %239 = vst.msk [vmem:[#allocation2 + $0x80] sm:$0x1] %vm208, 0
      %240 = vst.msk [vmem:[#allocation2 + $0x84] sm:$0xf] %vm205, 0
      %241 = vst.msk [vmem:[#allocation2 + $0x88] sm:$0xf] %vm205, 0
      %242 = vst.msk [vmem:[#allocation2 + $0x8c] sm:$0x1] %vm208, 0
      %243 = vst.msk [vmem:[#allocation2 + $0x90] sm:$0xf] %vm205, 0
      %244 = vst.msk [vmem:[#allocation2 + $0x94] sm:$0xf] %vm205, 0
      %245 = vst.msk [vmem:[#allocation2 + $0x98] sm:$0x1] %vm208, 0
      %246 = vst.msk [vmem:[#allocation2 + $0x9c] sm:$0xf] %vm205, 0
      %247 = vst.msk [vmem:[#allocation2 + $0xa0] sm:$0xf] %vm205, 0
      %248 = vst.msk [vmem:[#allocation2 + $0xa4] sm:$0x1] %vm208, 0
      %249 = vst.msk [vmem:[#allocation2 + $0xa8] sm:$0xf] %vm205, 0
      %250 = vst.msk [vmem:[#allocation2 + $0xac] sm:$0xf] %vm205, 0
      %251 = vst.msk [vmem:[#allocation2 + $0xb0] sm:$0x1] %vm208, 0
      %252 = vst.msk [vmem:[#allocation2 + $0xb4] sm:$0xf] %vm205, 0
      %253 = vst.msk [vmem:[#allocation2 + $0xb8] sm:$0xf] %vm205, 0
      %254 = vst.msk [vmem:[#allocation2 + $0xbc] sm:$0x1] %vm208, 0
      %255 = vst.msk [vmem:[#allocation2 + $0xc0] sm:$0xf] %vm205, 0
      %256 = vst.msk [vmem:[#allocation2 + $0xc4] sm:$0xf] %vm205, 0
      %257 = vst.msk [vmem:[#allocation2 + $0xc8] sm:$0x1] %vm208, 0
      %258 = vst.msk [vmem:[#allocation2 + $0xcc] sm:$0xf] %vm205, 0
      %259 = vst.msk [vmem:[#allocation2 + $0xd0] sm:$0xf] %vm205, 0
      %260 = vst.msk [vmem:[#allocation2 + $0xd4] sm:$0x1] %vm208, 0
      %v261 = vld [vmem:[%s165] sm:$0xff]
      %v262 = vld [vmem:[%s165 + $0x8] sm:$0xff]
      %v263 = vld [vmem:[%s165 + $0x10] sm:$0xff]
      %v264 = vld [vmem:[%s165 + $0x18] sm:$0xff]
      %v265 = vld [vmem:[%s165 + $0x20] sm:$0xff]
      %v266 = vld [vmem:[%s165 + $0x28] sm:$0xff]
      %v267 = vld [vmem:[%s165 + $0x30] sm:$0xff]
      %v268 = vld [vmem:[%s165 + $0x38] sm:$0xff]
      %v269 = vld [vmem:[%s165 + $0x40] sm:$0xff]
      %v270 = vld [vmem:[%s165 + $0x48] sm:$0xff]
      %v271 = vld [vmem:[%s165 + $0x50] sm:$0xff]
      %v272 = vld [vmem:[%s165 + $0x58] sm:$0xff]
      %v273 = vld [vmem:[%s165 + $0x60] sm:$0xff]
      %v274 = vld [vmem:[%s165 + $0x68] sm:$0xff]
      %v275 = vld [vmem:[%s165 + $0x70] sm:$0xff]
      %v276 = vld [vmem:[%s165 + $0x78] sm:$0xff]
      %v277 = vld [vmem:[%s165 + $0x80] sm:$0xff]
      %v278 = vld [vmem:[%s165 + $0x88] sm:$0xff]
      %v279 = vld [vmem:[%s165 + $0x90] sm:$0xff]
      %v280 = vld [vmem:[%s165 + $0x98] sm:$0xff]
      %v281 = vld [vmem:[%s165 + $0xa0] sm:$0xff]
      %v282 = vld [vmem:[%s165 + $0xa8] sm:$0xff]
      %v283 = vld [vmem:[%s165 + $0xb0] sm:$0xff]
      %v284 = vld [vmem:[%s165 + $0xb8] sm:$0xff]
      %v285 = vld [vmem:[%s165 + $0xc0] sm:$0xff]
      %v286 = vld [vmem:[%s165 + $0xc8] sm:$0xff]
      %v287 = vld [vmem:[%s165 + $0xd0] sm:$0xff]
      %v288 = vld [vmem:[%s165 + $0xd8] sm:$0xff]
      %v289 = vld [vmem:[%s165 + $0xe0] sm:$0xff]
      %v290 = vld [vmem:[%s165 + $0xe8] sm:$0xff]
      %v291 = vld [vmem:[%s165 + $0xf0] sm:$0xff]
      %v292 = vld [vmem:[%s165 + $0xf8] sm:$0xff]
      %v293 = vpack.c.bf16 %v261, %v261
      %v294 = vpack.c.bf16 %v262, %v262
      %v295 = vpack.c.bf16 %v263, %v263
      %v296 = vpack.c.bf16 %v264, %v264
      %v297 = vpack.c.bf16 %v265, %v265
      %v298 = vpack.c.bf16 %v266, %v266
      %v299 = vpack.c.bf16 %v267, %v267
      %v300 = vpack.c.bf16 %v268, %v268
      %v301 = vpack.c.bf16 %v269, %v269
      %v302 = vpack.c.bf16 %v270, %v270
      %v303 = vpack.c.bf16 %v271, %v271
      %v304 = vpack.c.bf16 %v272, %v272
      %v305 = vpack.c.bf16 %v273, %v273
      %v306 = vpack.c.bf16 %v274, %v274
      %v307 = vpack.c.bf16 %v275, %v275
      %v308 = vpack.c.bf16 %v276, %v276
      %v309 = vpack.c.bf16 %v277, %v277
      %v310 = vpack.c.bf16 %v278, %v278
      %v311 = vpack.c.bf16 %v279, %v279
      %v312 = vpack.c.bf16 %v280, %v280
      %v313 = vpack.c.bf16 %v281, %v281
      %v314 = vpack.c.bf16 %v282, %v282
      %v315 = vpack.c.bf16 %v283, %v283
      %v316 = vpack.c.bf16 %v284, %v284
      %v317 = vpack.c.bf16 %v285, %v285
      %v318 = vpack.c.bf16 %v286, %v286
      %v319 = vpack.c.bf16 %v287, %v287
      %v320 = vpack.c.bf16 %v288, %v288
      %v321 = vpack.c.bf16 %v289, %v289
      %v322 = vpack.c.bf16 %v290, %v290
      %v323 = vpack.c.bf16 %v291, %v291
      %v324 = vpack.c.bf16 %v292, %v292
      %vm325 = vsmask.f32 256
      %vm326 = vsmask.f32 4368
      %vm327 = vmor %vm325, %vm326
      %v329 = vshrl.u32 %v293, 16
      %v331 = vrot.slane %v329, 7
      %v332 = vshll.u32 %v293, 16
      %v334 = vor.u32 %v331, %v332
      %v335 = vrot.slane %v331, 4
      %v337 = vshrl.u32 %v294, 16
      %v339 = vrot.slane %v337, 7
      %v340 = vshll.u32 %v294, 16
      %v342 = vor.u32 %v339, %v340
      %v343 = vsel %vm327, %v335, %v342
      %v344 = vrot.slane %v339, 4
      %v346 = vshrl.u32 %v295, 16
      %v348 = vrot.slane %v346, 7
      %v349 = vshll.u32 %v295, 16
      %v351 = vor.u32 %v348, %v349
      %v352 = vrot.slane %v348, 4
      %v354 = vshrl.u32 %v296, 16
      %v356 = vrot.slane %v354, 7
      %v357 = vshll.u32 %v296, 16
      %v359 = vor.u32 %v356, %v357
      %v360 = vsel %vm327, %v352, %v359
      %v361 = vrot.slane %v356, 4
      %v363 = vshrl.u32 %v297, 16
      %v365 = vrot.slane %v363, 7
      %v366 = vshll.u32 %v297, 16
      %v368 = vor.u32 %v365, %v366
      %v369 = vrot.slane %v365, 4
      %v371 = vshrl.u32 %v298, 16
      %v373 = vrot.slane %v371, 7
      %v374 = vshll.u32 %v298, 16
      %v376 = vor.u32 %v373, %v374
      %v377 = vsel %vm327, %v369, %v376
      %v378 = vrot.slane %v373, 4
      %v380 = vshrl.u32 %v299, 16
      %v382 = vrot.slane %v380, 7
      %v383 = vshll.u32 %v299, 16
      %v385 = vor.u32 %v382, %v383
      %v386 = vrot.slane %v382, 4
      %v388 = vshrl.u32 %v300, 16
      %v390 = vrot.slane %v388, 7
      %v391 = vshll.u32 %v300, 16
      %v393 = vor.u32 %v390, %v391
      %v394 = vsel %vm327, %v386, %v393
      %v395 = vrot.slane %v390, 4
      %v397 = vshrl.u32 %v301, 16
      %v399 = vrot.slane %v397, 7
      %v400 = vshll.u32 %v301, 16
      %v402 = vor.u32 %v399, %v400
      %v403 = vrot.slane %v399, 4
      %v405 = vshrl.u32 %v302, 16
      %v407 = vrot.slane %v405, 7
      %v408 = vshll.u32 %v302, 16
      %v410 = vor.u32 %v407, %v408
      %v411 = vsel %vm327, %v403, %v410
      %v412 = vrot.slane %v407, 4
      %v414 = vshrl.u32 %v303, 16
      %v416 = vrot.slane %v414, 7
      %v417 = vshll.u32 %v303, 16
      %v419 = vor.u32 %v416, %v417
      %v420 = vrot.slane %v416, 4
      %v422 = vshrl.u32 %v304, 16
      %v424 = vrot.slane %v422, 7
      %v425 = vshll.u32 %v304, 16
      %v427 = vor.u32 %v424, %v425
      %v428 = vsel %vm327, %v420, %v427
      %v429 = vrot.slane %v424, 4
      %v431 = vshrl.u32 %v305, 16
      %v433 = vrot.slane %v431, 7
      %v434 = vshll.u32 %v305, 16
      %v436 = vor.u32 %v433, %v434
      %v437 = vrot.slane %v433, 4
      %v439 = vshrl.u32 %v306, 16
      %v441 = vrot.slane %v439, 7
      %v442 = vshll.u32 %v306, 16
      %v444 = vor.u32 %v441, %v442
      %v445 = vsel %vm327, %v437, %v444
      %v446 = vrot.slane %v441, 4
      %v448 = vshrl.u32 %v307, 16
      %v450 = vrot.slane %v448, 7
      %v451 = vshll.u32 %v307, 16
      %v453 = vor.u32 %v450, %v451
      %v454 = vrot.slane %v450, 4
      %v456 = vshrl.u32 %v308, 16
      %v458 = vrot.slane %v456, 7
      %v459 = vshll.u32 %v308, 16
      %v461 = vor.u32 %v458, %v459
      %v462 = vsel %vm327, %v454, %v461
      %v463 = vrot.slane %v458, 4
      %v465 = vshrl.u32 %v309, 16
      %v467 = vrot.slane %v465, 7
      %v468 = vshll.u32 %v309, 16
      %v470 = vor.u32 %v467, %v468
      %v471 = vrot.slane %v467, 4
      %v473 = vshrl.u32 %v310, 16
      %v475 = vrot.slane %v473, 7
      %v476 = vshll.u32 %v310, 16
      %v478 = vor.u32 %v475, %v476
      %v479 = vsel %vm327, %v471, %v478
      %v480 = vrot.slane %v475, 4
      %v482 = vshrl.u32 %v311, 16
      %v484 = vrot.slane %v482, 7
      %v485 = vshll.u32 %v311, 16
      %v487 = vor.u32 %v484, %v485
      %v488 = vrot.slane %v484, 4
      %v490 = vshrl.u32 %v312, 16
      %v492 = vrot.slane %v490, 7
      %v493 = vshll.u32 %v312, 16
      %v495 = vor.u32 %v492, %v493
      %v496 = vsel %vm327, %v488, %v495
      %v497 = vrot.slane %v492, 4
      %v499 = vshrl.u32 %v313, 16
      %v501 = vrot.slane %v499, 7
      %v502 = vshll.u32 %v313, 16
      %v504 = vor.u32 %v501, %v502
      %v505 = vrot.slane %v501, 4
      %v507 = vshrl.u32 %v314, 16
      %v509 = vrot.slane %v507, 7
      %v510 = vshll.u32 %v314, 16
      %v512 = vor.u32 %v509, %v510
      %v513 = vsel %vm327, %v505, %v512
      %v514 = vrot.slane %v509, 4
      %v516 = vshrl.u32 %v315, 16
      %v518 = vrot.slane %v516, 7
      %v519 = vshll.u32 %v315, 16
      %v521 = vor.u32 %v518, %v519
      %v522 = vrot.slane %v518, 4
      %v524 = vshrl.u32 %v316, 16
      %v526 = vrot.slane %v524, 7
      %v527 = vshll.u32 %v316, 16
      %v529 = vor.u32 %v526, %v527
      %v530 = vsel %vm327, %v522, %v529
      %v531 = vrot.slane %v526, 4
      %v533 = vshrl.u32 %v317, 16
      %v535 = vrot.slane %v533, 7
      %v536 = vshll.u32 %v317, 16
      %v538 = vor.u32 %v535, %v536
      %v539 = vrot.slane %v535, 4
      %v541 = vshrl.u32 %v318, 16
      %v543 = vrot.slane %v541, 7
      %v544 = vshll.u32 %v318, 16
      %v546 = vor.u32 %v543, %v544
      %v547 = vsel %vm327, %v539, %v546
      %v548 = vrot.slane %v543, 4
      %v550 = vshrl.u32 %v319, 16
      %v552 = vrot.slane %v550, 7
      %v553 = vshll.u32 %v319, 16
      %v555 = vor.u32 %v552, %v553
      %v556 = vrot.slane %v552, 4
      %v558 = vshrl.u32 %v320, 16
      %v560 = vrot.slane %v558, 7
      %v561 = vshll.u32 %v320, 16
      %v563 = vor.u32 %v560, %v561
      %v564 = vsel %vm327, %v556, %v563
      %v565 = vrot.slane %v560, 4
      %v567 = vshrl.u32 %v321, 16
      %v569 = vrot.slane %v567, 7
      %v570 = vshll.u32 %v321, 16
      %v572 = vor.u32 %v569, %v570
      %v573 = vrot.slane %v569, 4
      %v575 = vshrl.u32 %v322, 16
      %v577 = vrot.slane %v575, 7
      %v578 = vshll.u32 %v322, 16
      %v580 = vor.u32 %v577, %v578
      %v581 = vsel %vm327, %v573, %v580
      %v582 = vrot.slane %v577, 4
      %v584 = vshrl.u32 %v323, 16
      %v586 = vrot.slane %v584, 7
      %v587 = vshll.u32 %v323, 16
      %v589 = vor.u32 %v586, %v587
      %v590 = vrot.slane %v586, 4
      %v592 = vshrl.u32 %v324, 16
      %v594 = vrot.slane %v592, 7
      %v595 = vshll.u32 %v324, 16
      %v597 = vor.u32 %v594, %v595
      %v598 = vsel %vm327, %v590, %v597
      %v599 = vrot.slane %v594, 4
      %s648 = scalar_lea.vmem [#allocation2], 12
      %vm649 = vcmask 60416
      %vm650 = vsmask.f32 7938
      %vm651 = vmand %vm649, %vm650
      %v652 = vld [vmem:[%s648] sm:$0xf]
      %v653 = vsel %vm651, %v334, %v652
      %654 = vst [vmem:[%s648] sm:$0xf] %v653
      %655 = vst.msk [vmem:[%s648 + $0x4] sm:$0xf] %vm205, %v343
      %vm656 = vcmask 57344
      %vm657 = vmand %vm656, %vm325
      %v658 = vld [vmem:[%s648 + $0x8] sm:$0x1]
      %v659 = vsel %vm657, %v344, %v658
      %660 = vst [vmem:[%s648 + $0x8] sm:$0x1] %v659
      %v661 = vld [vmem:[%s648 + $0xc] sm:$0xf]
      %v662 = vsel %vm651, %v351, %v661
      %663 = vst [vmem:[%s648 + $0xc] sm:$0xf] %v662
      %664 = vst.msk [vmem:[%s648 + $0x10] sm:$0xf] %vm205, %v360
      %v665 = vld [vmem:[%s648 + $0x14] sm:$0x1]
      %v666 = vsel %vm657, %v361, %v665
      %667 = vst [vmem:[%s648 + $0x14] sm:$0x1] %v666
      %v668 = vld [vmem:[%s648 + $0x18] sm:$0xf]
      %v669 = vsel %vm651, %v368, %v668
      %670 = vst [vmem:[%s648 + $0x18] sm:$0xf] %v669
      %671 = vst.msk [vmem:[%s648 + $0x1c] sm:$0xf] %vm205, %v377
      %v672 = vld [vmem:[%s648 + $0x20] sm:$0x1]
      %v673 = vsel %vm657, %v378, %v672
      %674 = vst [vmem:[%s648 + $0x20] sm:$0x1] %v673
      %v675 = vld [vmem:[%s648 + $0x24] sm:$0xf]
      %v676 = vsel %vm651, %v385, %v675
      %677 = vst [vmem:[%s648 + $0x24] sm:$0xf] %v676
      %678 = vst.msk [vmem:[%s648 + $0x28] sm:$0xf] %vm205, %v394
      %v679 = vld [vmem:[%s648 + $0x2c] sm:$0x1]
      %v680 = vsel %vm657, %v395, %v679
      %681 = vst [vmem:[%s648 + $0x2c] sm:$0x1] %v680
      %v682 = vld [vmem:[%s648 + $0x30] sm:$0xf]
      %v683 = vsel %vm651, %v402, %v682
      %684 = vst [vmem:[%s648 + $0x30] sm:$0xf] %v683
      %685 = vst.msk [vmem:[%s648 + $0x34] sm:$0xf] %vm205, %v411
      %v686 = vld [vmem:[%s648 + $0x38] sm:$0x1]
      %v687 = vsel %vm657, %v412, %v686
      %688 = vst [vmem:[%s648 + $0x38] sm:$0x1] %v687
      %v689 = vld [vmem:[%s648 + $0x3c] sm:$0xf]
      %v690 = vsel %vm651, %v419, %v689
      %691 = vst [vmem:[%s648 + $0x3c] sm:$0xf] %v690
      %692 = vst.msk [vmem:[%s648 + $0x40] sm:$0xf] %vm205, %v428
      %v693 = vld [vmem:[%s648 + $0x44] sm:$0x1]
      %v694 = vsel %vm657, %v429, %v693
      %695 = vst [vmem:[%s648 + $0x44] sm:$0x1] %v694
      %v696 = vld [vmem:[%s648 + $0x48] sm:$0xf]
      %v697 = vsel %vm651, %v436, %v696
      %698 = vst [vmem:[%s648 + $0x48] sm:$0xf] %v697
      %699 = vst.msk [vmem:[%s648 + $0x4c] sm:$0xf] %vm205, %v445
      %v700 = vld [vmem:[%s648 + $0x50] sm:$0x1]
      %v701 = vsel %vm657, %v446, %v700
      %702 = vst [vmem:[%s648 + $0x50] sm:$0x1] %v701
      %v703 = vld [vmem:[%s648 + $0x54] sm:$0xf]
      %v704 = vsel %vm651, %v453, %v703
      %705 = vst [vmem:[%s648 + $0x54] sm:$0xf] %v704
      %706 = vst.msk [vmem:[%s648 + $0x58] sm:$0xf] %vm205, %v462
      %v707 = vld [vmem:[%s648 + $0x5c] sm:$0x1]
      %v708 = vsel %vm657, %v463, %v707
      %709 = vst [vmem:[%s648 + $0x5c] sm:$0x1] %v708
      %v710 = vld [vmem:[%s648 + $0x60] sm:$0xf]
      %v711 = vsel %vm651, %v470, %v710
      %712 = vst [vmem:[%s648 + $0x60] sm:$0xf] %v711
      %713 = vst.msk [vmem:[%s648 + $0x64] sm:$0xf] %vm205, %v479
      %v714 = vld [vmem:[%s648 + $0x68] sm:$0x1]
      %v715 = vsel %vm657, %v480, %v714
      %716 = vst [vmem:[%s648 + $0x68] sm:$0x1] %v715
      %v717 = vld [vmem:[%s648 + $0x6c] sm:$0xf]
      %v718 = vsel %vm651, %v487, %v717
      %719 = vst [vmem:[%s648 + $0x6c] sm:$0xf] %v718
      %720 = vst.msk [vmem:[%s648 + $0x70] sm:$0xf] %vm205, %v496
      %v721 = vld [vmem:[%s648 + $0x74] sm:$0x1]
      %v722 = vsel %vm657, %v497, %v721
      %723 = vst [vmem:[%s648 + $0x74] sm:$0x1] %v722
      %v724 = vld [vmem:[%s648 + $0x78] sm:$0xf]
      %v725 = vsel %vm651, %v504, %v724
      %726 = vst [vmem:[%s648 + $0x78] sm:$0xf] %v725
      %727 = vst.msk [vmem:[%s648 + $0x7c] sm:$0xf] %vm205, %v513
      %v728 = vld [vmem:[%s648 + $0x80] sm:$0x1]
      %v729 = vsel %vm657, %v514, %v728
      %730 = vst [vmem:[%s648 + $0x80] sm:$0x1] %v729
      %v731 = vld [vmem:[%s648 + $0x84] sm:$0xf]
      %v732 = vsel %vm651, %v521, %v731
      %733 = vst [vmem:[%s648 + $0x84] sm:$0xf] %v732
      %734 = vst.msk [vmem:[%s648 + $0x88] sm:$0xf] %vm205, %v530
      %v735 = vld [vmem:[%s648 + $0x8c] sm:$0x1]
      %v736 = vsel %vm657, %v531, %v735
      %737 = vst [vmem:[%s648 + $0x8c] sm:$0x1] %v736
      %v738 = vld [vmem:[%s648 + $0x90] sm:$0xf]
      %v739 = vsel %vm651, %v538, %v738
      %740 = vst [vmem:[%s648 + $0x90] sm:$0xf] %v739
      %741 = vst.msk [vmem:[%s648 + $0x94] sm:$0xf] %vm205, %v547
      %v742 = vld [vmem:[%s648 + $0x98] sm:$0x1]
      %v743 = vsel %vm657, %v548, %v742
      %744 = vst [vmem:[%s648 + $0x98] sm:$0x1] %v743
      %v745 = vld [vmem:[%s648 + $0x9c] sm:$0xf]
      %v746 = vsel %vm651, %v555, %v745
      %747 = vst [vmem:[%s648 + $0x9c] sm:$0xf] %v746
      %748 = vst.msk [vmem:[%s648 + $0xa0] sm:$0xf] %vm205, %v564
      %v749 = vld [vmem:[%s648 + $0xa4] sm:$0x1]
      %v750 = vsel %vm657, %v565, %v749
      %751 = vst [vmem:[%s648 + $0xa4] sm:$0x1] %v750
      %v752 = vld [vmem:[%s648 + $0xa8] sm:$0xf]
      %v753 = vsel %vm651, %v572, %v752
      %754 = vst [vmem:[%s648 + $0xa8] sm:$0xf] %v753
      %755 = vst.msk [vmem:[%s648 + $0xac] sm:$0xf] %vm205, %v581
      %v756 = vld [vmem:[%s648 + $0xb0] sm:$0x1]
      %v757 = vsel %vm657, %v582, %v756
      %758 = vst [vmem:[%s648 + $0xb0] sm:$0x1] %v757
      %v759 = vld [vmem:[%s648 + $0xb4] sm:$0xf]
      %v760 = vsel %vm651, %v589, %v759
      %761 = vst [vmem:[%s648 + $0xb4] sm:$0xf] %v760
      %762 = vst.msk [vmem:[%s648 + $0xb8] sm:$0xf] %vm205, %v598
      %v763 = vld [vmem:[%s648 + $0xbc] sm:$0x1]
      %v764 = vsel %vm657, %v599, %v763
      %765 = vst [vmem:[%s648 + $0xbc] sm:$0x1] %v764
      %v766 = vld [vmem:[#allocation2] sm:$0xf]
      %v767 = vld [vmem:[#allocation2 + $0x4] sm:$0xf]
      %v768 = vld [vmem:[#allocation2 + $0x8] sm:$0x1]
      %v769 = vld [vmem:[#allocation2 + $0xc] sm:$0xf]
      %v770 = vld [vmem:[#allocation2 + $0x10] sm:$0xf]
      %v771 = vld [vmem:[#allocation2 + $0x14] sm:$0x1]
      %v772 = vld [vmem:[#allocation2 + $0x18] sm:$0xf]
      %v773 = vld [vmem:[#allocation2 + $0x1c] sm:$0xf]
      %v774 = vld [vmem:[#allocation2 + $0x20] sm:$0x1]
      %v775 = vld [vmem:[#allocation2 + $0x24] sm:$0xf]
      %v776 = vld [vmem:[#allocation2 + $0x28] sm:$0xf]
      %v777 = vld [vmem:[#allocation2 + $0x2c] sm:$0x1]
      %v778 = vld [vmem:[#allocation2 + $0x30] sm:$0xf]
      %v779 = vld [vmem:[#allocation2 + $0x34] sm:$0xf]
      %v780 = vld [vmem:[#allocation2 + $0x38] sm:$0x1]
      %v781 = vld [vmem:[#allocation2 + $0x3c] sm:$0xf]
      %v782 = vld [vmem:[#allocation2 + $0x40] sm:$0xf]
      %v783 = vld [vmem:[#allocation2 + $0x44] sm:$0x1]
      %v784 = vld [vmem:[#allocation2 + $0x48] sm:$0xf]
      %v785 = vld [vmem:[#allocation2 + $0x4c] sm:$0xf]
      %v786 = vld [vmem:[#allocation2 + $0x50] sm:$0x1]
      %v787 = vld [vmem:[#allocation2 + $0x54] sm:$0xf]
      %v788 = vld [vmem:[#allocation2 + $0x58] sm:$0xf]
      %v789 = vld [vmem:[#allocation2 + $0x5c] sm:$0x1]
      %v790 = vld [vmem:[#allocation2 + $0x60] sm:$0xf]
      %v791 = vld [vmem:[#allocation2 + $0x64] sm:$0xf]
      %v792 = vld [vmem:[#allocation2 + $0x68] sm:$0x1]
      %v793 = vld [vmem:[#allocation2 + $0x6c] sm:$0xf]
      %v794 = vld [vmem:[#allocation2 + $0x70] sm:$0xf]
      %v795 = vld [vmem:[#allocation2 + $0x74] sm:$0x1]
      %v796 = vld [vmem:[#allocation2 + $0x78] sm:$0xf]
      %v797 = vld [vmem:[#allocation2 + $0x7c] sm:$0xf]
      %v798 = vld [vmem:[#allocation2 + $0x80] sm:$0x1]
      %v799 = vld [vmem:[#allocation2 + $0x84] sm:$0xf]
      %v800 = vld [vmem:[#allocation2 + $0x88] sm:$0xf]
      %v801 = vld [vmem:[#allocation2 + $0x8c] sm:$0x1]
      %v802 = vld [vmem:[#allocation2 + $0x90] sm:$0xf]
      %v803 = vld [vmem:[#allocation2 + $0x94] sm:$0xf]
      %v804 = vld [vmem:[#allocation2 + $0x98] sm:$0x1]
      %v805 = vld [vmem:[#allocation2 + $0x9c] sm:$0xf]
      %v806 = vld [vmem:[#allocation2 + $0xa0] sm:$0xf]
      %v807 = vld [vmem:[#allocation2 + $0xa4] sm:$0x1]
      %v808 = vld [vmem:[#allocation2 + $0xa8] sm:$0xf]
      %v809 = vld [vmem:[#allocation2 + $0xac] sm:$0xf]
      %v810 = vld [vmem:[#allocation2 + $0xb0] sm:$0x1]
      %v811 = vld [vmem:[#allocation2 + $0xb4] sm:$0xf]
      %v812 = vld [vmem:[#allocation2 + $0xb8] sm:$0xf]
      %v813 = vld [vmem:[#allocation2 + $0xbc] sm:$0x1]
      %v814 = vld [vmem:[#allocation2 + $0xc0] sm:$0xf]
      %v815 = vld [vmem:[#allocation2 + $0xc4] sm:$0xf]
      %v816 = vld [vmem:[#allocation2 + $0xc8] sm:$0x1]
      %v817 = vld [vmem:[#allocation2 + $0xcc] sm:$0xf]
      %v818 = vld [vmem:[#allocation2 + $0xd0] sm:$0xf]
      %v819 = vld [vmem:[#allocation2 + $0xd4] sm:$0x1]
      %v820 = vld [vmem:[%s1] sm:$0xf]
      %v821 = vld [vmem:[%s1 + $0x4] sm:$0xf]
      %v822 = vld [vmem:[%s1 + $0x8] sm:$0xf]
      %v823 = vld [vmem:[%s1 + $0xc] sm:$0xf]
      %v824 = vld [vmem:[%s1 + $0x10] sm:$0xf]
      %v825 = vld [vmem:[%s1 + $0x14] sm:$0xf]
      %v826 = vld [vmem:[%s1 + $0x18] sm:$0xf]
      %v827 = vld [vmem:[%s1 + $0x1c] sm:$0xf]
      %v828 = vld [vmem:[%s1 + $0x20] sm:$0xf]
      %v829 = vld [vmem:[#allocation3] sm:$0xff]
      %v830 = vld [vmem:[#allocation3 + $0x8] sm:$0xff]
      %v831 = vld [vmem:[#allocation3 + $0x10] sm:$0xff]
      %v832 = vld [vmem:[#allocation3 + $0x18] sm:$0xff]
      %v833 = vld [vmem:[#allocation3 + $0x20] sm:$0xff]
      %v834 = vld [vmem:[#allocation3 + $0x28] sm:$0xff]
      %v835 = vld [vmem:[#allocation3 + $0x30] sm:$0xff]
      %v836 = vld [vmem:[#allocation3 + $0x38] sm:$0xff]
      %v837 = vld [vmem:[#allocation3 + $0x40] sm:$0xff]
      %v838 = vld [vmem:[#allocation3 + $0x48] sm:$0xff]
      %v839 = vld [vmem:[#allocation3 + $0x50] sm:$0xff]
      %v840 = vld [vmem:[#allocation3 + $0x58] sm:$0xff]
      %v841 = vld [vmem:[#allocation3 + $0x60] sm:$0xff]
      %v842 = vld [vmem:[#allocation3 + $0x68] sm:$0xff]
      %v843 = vld [vmem:[#allocation3 + $0x70] sm:$0xff]
      %v844 = vld [vmem:[#allocation3 + $0x78] sm:$0xff]
      %v845 = vld [vmem:[#allocation3 + $0x80] sm:$0xff]
      %v846 = vld [vmem:[#allocation3 + $0x88] sm:$0xff]
      %v847 = vld [vmem:[#allocation3 + $0x90] sm:$0xff]
      %v848 = vld [vmem:[#allocation3 + $0x98] sm:$0xff]
      %v849 = vld [vmem:[#allocation3 + $0xa0] sm:$0xff]
      %v850 = vld [vmem:[#allocation3 + $0xa8] sm:$0xff]
      %v851 = vld [vmem:[#allocation3 + $0xb0] sm:$0xff]
      %v852 = vld [vmem:[#allocation3 + $0xb8] sm:$0xff]
      %v853 = vld [vmem:[#allocation3 + $0xc0] sm:$0xff]
      %v854 = vld [vmem:[#allocation3 + $0xc8] sm:$0xff]
      %v855 = vld [vmem:[#allocation3 + $0xd0] sm:$0xff]
      %v856 = vld [vmem:[#allocation3 + $0xd8] sm:$0xff]
      %v857 = vld [vmem:[#allocation3 + $0xe0] sm:$0xff]
      %v858 = vld [vmem:[#allocation3 + $0xe8] sm:$0xff]
      %v859 = vld [vmem:[#allocation3 + $0xf0] sm:$0xff]
      %v860 = vld [vmem:[#allocation3 + $0xf8] sm:$0xff]
      %v893 = vunpack.c.l.b16 %v766
      %v894 = vunpack.c.l.b16 %v767
      %v895 = vunpack.c.l.b16 %v769
      %v896 = vunpack.c.l.b16 %v770
      %v897 = vunpack.c.l.b16 %v772
      %v898 = vunpack.c.l.b16 %v773
      %v899 = vunpack.c.l.b16 %v775
      %v900 = vunpack.c.l.b16 %v776
      %v901 = vunpack.c.l.b16 %v778
      %v902 = vunpack.c.l.b16 %v779
      %v903 = vunpack.c.l.b16 %v781
      %v904 = vunpack.c.l.b16 %v782
      %v905 = vunpack.c.l.b16 %v784
      %v906 = vunpack.c.l.b16 %v785
      %v907 = vunpack.c.l.b16 %v787
      %v908 = vunpack.c.l.b16 %v788
      %v909 = vunpack.c.l.b16 %v790
      %v910 = vunpack.c.l.b16 %v791
      %v911 = vunpack.c.l.b16 %v793
      %v912 = vunpack.c.l.b16 %v794
      %v913 = vunpack.c.l.b16 %v796
      %v914 = vunpack.c.l.b16 %v797
      %v915 = vunpack.c.l.b16 %v799
      %v916 = vunpack.c.l.b16 %v800
      %v917 = vunpack.c.l.b16 %v802
      %v918 = vunpack.c.l.b16 %v803
      %v919 = vunpack.c.l.b16 %v805
      %v920 = vunpack.c.l.b16 %v806
      %v921 = vunpack.c.l.b16 %v808
      %v922 = vunpack.c.l.b16 %v809
      %v923 = vunpack.c.l.b16 %v811
      %v924 = vunpack.c.l.b16 %v812
      %v925 = vpack.c.b16 %v894, %v893
      %v926 = vpack.c.b16 %v896, %v895
      %v927 = vpack.c.b16 %v898, %v897
      %v928 = vpack.c.b16 %v900, %v899
      %v929 = vpack.c.b16 %v902, %v901
      %v930 = vpack.c.b16 %v904, %v903
      %v931 = vpack.c.b16 %v906, %v905
      %v932 = vpack.c.b16 %v908, %v907
      %v933 = vpack.c.b16 %v910, %v909
      %v934 = vpack.c.b16 %v912, %v911
      %v935 = vpack.c.b16 %v914, %v913
      %v936 = vpack.c.b16 %v916, %v915
      %v937 = vpack.c.b16 %v918, %v917
      %v938 = vpack.c.b16 %v920, %v919
      %v939 = vpack.c.b16 %v922, %v921
      %v940 = vpack.c.b16 %v924, %v923
      %v942 = vsel %vm172, %v925, 0
      %v945 = vsel %vm172, %v926, 0
      %v948 = vsel %vm172, %v927, 0
      %v951 = vsel %vm172, %v928, 0
      %v954 = vsel %vm172, %v929, 0
      %v957 = vsel %vm172, %v930, 0
      %v960 = vsel %vm172, %v931, 0
      %v963 = vsel %vm172, %v932, 0
      %v966 = vsel %vm172, %v933, 0
      %v969 = vsel %vm172, %v934, 0
      %v972 = vsel %vm172, %v935, 0
      %v975 = vsel %vm172, %v936, 0
      %v978 = vsel %vm172, %v937, 0
      %v981 = vsel %vm172, %v938, 0
      %v984 = vsel %vm172, %v939, 0
      %v987 = vsel %vm172, %v940, 0
      %vm989 = vcmask 1043456
      %v991 = vsel %vm989, %v820, 0
      %993 = vmatpush.bf16.msra.mxu0 0
      %994 = vmatpush.bf16.msra.mxu0 0
      %995 = vmatpush.bf16.msra.mxu0 0
      %996 = vmatpush.bf16.msra.mxu0 0
      %997 = vmatpush.bf16.msra.mxu0 0
      %998 = vmatpush.bf16.msra.mxu0 0
      %999 = vmatpush.bf16.msra.mxu0 0
      %1000 = vmatpush.bf16.msra.mxu0 %v991
      %1001 = vmatmul.bf16.gmra.mxu0 %v942
      %v1002 = vpop.f32.mrf.mxu0
      %v1003 = vadd.f32 0.0, %v1002
      %v1004 = vpop.f32.mrf.mxu0
      %v1005 = vadd.f32 0.0, %v1004
      %1006 = vmatmul.bf16.gmra.mxu0 %v945
      %v1007 = vpop.f32.mrf.mxu0
      %v1008 = vadd.f32 0.0, %v1007
      %v1009 = vpop.f32.mrf.mxu0
      %v1010 = vadd.f32 0.0, %v1009
      %1011 = vmatmul.bf16.gmra.mxu0 %v948
      %v1012 = vpop.f32.mrf.mxu0
      %v1013 = vadd.f32 0.0, %v1012
      %v1014 = vpop.f32.mrf.mxu0
      %v1015 = vadd.f32 0.0, %v1014
      %1016 = vmatmul.bf16.gmra.mxu0 %v951
      %v1017 = vpop.f32.mrf.mxu0
      %v1018 = vadd.f32 0.0, %v1017
      %v1019 = vpop.f32.mrf.mxu0
      %v1020 = vadd.f32 0.0, %v1019
      %1021 = vmatmul.bf16.gmra.mxu0 %v954
      %v1022 = vpop.f32.mrf.mxu0
      %v1023 = vadd.f32 0.0, %v1022
      %v1024 = vpop.f32.mrf.mxu0
      %v1025 = vadd.f32 0.0, %v1024
      %1026 = vmatmul.bf16.gmra.mxu0 %v957
      %v1027 = vpop.f32.mrf.mxu0
      %v1028 = vadd.f32 0.0, %v1027
      %v1029 = vpop.f32.mrf.mxu0
      %v1030 = vadd.f32 0.0, %v1029
      %1031 = vmatmul.bf16.gmra.mxu0 %v960
      %v1032 = vpop.f32.mrf.mxu0
      %v1033 = vadd.f32 0.0, %v1032
      %v1034 = vpop.f32.mrf.mxu0
      %v1035 = vadd.f32 0.0, %v1034
      %1036 = vmatmul.bf16.gmra.mxu0 %v963
      %v1037 = vpop.f32.mrf.mxu0
      %v1038 = vadd.f32 0.0, %v1037
      %v1039 = vpop.f32.mrf.mxu0
      %v1040 = vadd.f32 0.0, %v1039
      %1041 = vmatmul.bf16.gmra.mxu0 %v966
      %v1042 = vpop.f32.mrf.mxu0
      %v1043 = vadd.f32 0.0, %v1042
      %v1044 = vpop.f32.mrf.mxu0
      %v1045 = vadd.f32 0.0, %v1044
      %1046 = vmatmul.bf16.gmra.mxu0 %v969
      %v1047 = vpop.f32.mrf.mxu0
      %v1048 = vadd.f32 0.0, %v1047
      %v1049 = vpop.f32.mrf.mxu0
      %v1050 = vadd.f32 0.0, %v1049
      %1051 = vmatmul.bf16.gmra.mxu0 %v972
      %v1052 = vpop.f32.mrf.mxu0
      %v1053 = vadd.f32 0.0, %v1052
      %v1054 = vpop.f32.mrf.mxu0
      %v1055 = vadd.f32 0.0, %v1054
      %1056 = vmatmul.bf16.gmra.mxu0 %v975
      %v1057 = vpop.f32.mrf.mxu0
      %v1058 = vadd.f32 0.0, %v1057
      %v1059 = vpop.f32.mrf.mxu0
      %v1060 = vadd.f32 0.0, %v1059
      %1061 = vmatmul.bf16.gmra.mxu0 %v978
      %v1062 = vpop.f32.mrf.mxu0
      %v1063 = vadd.f32 0.0, %v1062
      %v1064 = vpop.f32.mrf.mxu0
      %v1065 = vadd.f32 0.0, %v1064
      %1066 = vmatmul.bf16.gmra.mxu0 %v981
      %v1067 = vpop.f32.mrf.mxu0
      %v1068 = vadd.f32 0.0, %v1067
      %v1069 = vpop.f32.mrf.mxu0
      %v1070 = vadd.f32 0.0, %v1069
      %1071 = vmatmul.bf16.gmra.mxu0 %v984
      %v1072 = vpop.f32.mrf.mxu0
      %v1073 = vadd.f32 0.0, %v1072
      %v1074 = vpop.f32.mrf.mxu0
      %v1075 = vadd.f32 0.0, %v1074
      %1076 = vmatmul.bf16.gmra.mxu0 %v987
      %v1077 = vpop.f32.mrf.mxu0
      %v1078 = vadd.f32 0.0, %v1077
      %v1079 = vpop.f32.mrf.mxu0
      %v1080 = vadd.f32 0.0, %v1079
      %1081 = vdwg.mxu0
      %v1082 = vadd.f32 %v829, %v1003
      %v1083 = vadd.f32 %v830, %v1005
      %v1084 = vadd.f32 %v831, %v1008
      %v1085 = vadd.f32 %v832, %v1010
      %v1086 = vadd.f32 %v833, %v1013
      %v1087 = vadd.f32 %v834, %v1015
      %v1088 = vadd.f32 %v835, %v1018
      %v1089 = vadd.f32 %v836, %v1020
      %v1090 = vadd.f32 %v837, %v1023
      %v1091 = vadd.f32 %v838, %v1025
      %v1092 = vadd.f32 %v839, %v1028
      %v1093 = vadd.f32 %v840, %v1030
      %v1094 = vadd.f32 %v841, %v1033
      %v1095 = vadd.f32 %v842, %v1035
      %v1096 = vadd.f32 %v843, %v1038
      %v1097 = vadd.f32 %v844, %v1040
      %v1098 = vadd.f32 %v845, %v1043
      %v1099 = vadd.f32 %v846, %v1045
      %v1100 = vadd.f32 %v847, %v1048
      %v1101 = vadd.f32 %v848, %v1050
      %v1102 = vadd.f32 %v849, %v1053
      %v1103 = vadd.f32 %v850, %v1055
      %v1104 = vadd.f32 %v851, %v1058
      %v1105 = vadd.f32 %v852, %v1060
      %v1106 = vadd.f32 %v853, %v1063
      %v1107 = vadd.f32 %v854, %v1065
      %v1108 = vadd.f32 %v855, %v1068
      %v1109 = vadd.f32 %v856, %v1070
      %v1110 = vadd.f32 %v857, %v1073
      %v1111 = vadd.f32 %v858, %v1075
      %v1112 = vadd.f32 %v859, %v1078
      %v1113 = vadd.f32 %v860, %v1080
      %1114 = vst.msk [vmem:[#allocation3] sm:$0xff] %vm172, %v1082
      %1115 = vst.msk [vmem:[#allocation3 + $0x8] sm:$0xff] %vm172, %v1083
      %1116 = vst.msk [vmem:[#allocation3 + $0x10] sm:$0xff] %vm172, %v1084
      %1117 = vst.msk [vmem:[#allocation3 + $0x18] sm:$0xff] %vm172, %v1085
      %1118 = vst.msk [vmem:[#allocation3 + $0x20] sm:$0xff] %vm172, %v1086
      %1119 = vst.msk [vmem:[#allocation3 + $0x28] sm:$0xff] %vm172, %v1087
      %1120 = vst.msk [vmem:[#allocation3 + $0x30] sm:$0xff] %vm172, %v1088
      %1121 = vst.msk [vmem:[#allocation3 + $0x38] sm:$0xff] %vm172, %v1089
      %1122 = vst.msk [vmem:[#allocation3 + $0x40] sm:$0xff] %vm172, %v1090
      %1123 = vst.msk [vmem:[#allocation3 + $0x48] sm:$0xff] %vm172, %v1091
      %1124 = vst.msk [vmem:[#allocation3 + $0x50] sm:$0xff] %vm172, %v1092
      %1125 = vst.msk [vmem:[#allocation3 + $0x58] sm:$0xff] %vm172, %v1093
      %1126 = vst.msk [vmem:[#allocation3 + $0x60] sm:$0xff] %vm172, %v1094
      %1127 = vst.msk [vmem:[#allocation3 + $0x68] sm:$0xff] %vm172, %v1095
      %1128 = vst.msk [vmem:[#allocation3 + $0x70] sm:$0xff] %vm172, %v1096
      %1129 = vst.msk [vmem:[#allocation3 + $0x78] sm:$0xff] %vm172, %v1097
      %1130 = vst.msk [vmem:[#allocation3 + $0x80] sm:$0xff] %vm172, %v1098
      %1131 = vst.msk [vmem:[#allocation3 + $0x88] sm:$0xff] %vm172, %v1099
      %1132 = vst.msk [vmem:[#allocation3 + $0x90] sm:$0xff] %vm172, %v1100
      %1133 = vst.msk [vmem:[#allocation3 + $0x98] sm:$0xff] %vm172, %v1101
      %1134 = vst.msk [vmem:[#allocation3 + $0xa0] sm:$0xff] %vm172, %v1102
      %1135 = vst.msk [vmem:[#allocation3 + $0xa8] sm:$0xff] %vm172, %v1103
      %1136 = vst.msk [vmem:[#allocation3 + $0xb0] sm:$0xff] %vm172, %v1104
      %1137 = vst.msk [vmem:[#allocation3 + $0xb8] sm:$0xff] %vm172, %v1105
      %1138 = vst.msk [vmem:[#allocation3 + $0xc0] sm:$0xff] %vm172, %v1106
      %1139 = vst.msk [vmem:[#allocation3 + $0xc8] sm:$0xff] %vm172, %v1107
      %1140 = vst.msk [vmem:[#allocation3 + $0xd0] sm:$0xff] %vm172, %v1108
      %1141 = vst.msk [vmem:[#allocation3 + $0xd8] sm:$0xff] %vm172, %v1109
      %1142 = vst.msk [vmem:[#allocation3 + $0xe0] sm:$0xff] %vm172, %v1110
      %1143 = vst.msk [vmem:[#allocation3 + $0xe8] sm:$0xff] %vm172, %v1111
      %1144 = vst.msk [vmem:[#allocation3 + $0xf0] sm:$0xff] %vm172, %v1112
      %1145 = vst.msk [vmem:[#allocation3 + $0xf8] sm:$0xff] %vm172, %v1113
      %v1146 = vld [vmem:[#allocation3] sm:$0xff]
      %v1147 = vld [vmem:[#allocation3 + $0x8] sm:$0xff]
      %v1148 = vld [vmem:[#allocation3 + $0x10] sm:$0xff]
      %v1149 = vld [vmem:[#allocation3 + $0x18] sm:$0xff]
      %v1150 = vld [vmem:[#allocation3 + $0x20] sm:$0xff]
      %v1151 = vld [vmem:[#allocation3 + $0x28] sm:$0xff]
      %v1152 = vld [vmem:[#allocation3 + $0x30] sm:$0xff]
      %v1153 = vld [vmem:[#allocation3 + $0x38] sm:$0xff]
      %v1154 = vld [vmem:[#allocation3 + $0x40] sm:$0xff]
      %v1155 = vld [vmem:[#allocation3 + $0x48] sm:$0xff]
      %v1156 = vld [vmem:[#allocation3 + $0x50] sm:$0xff]
      %v1157 = vld [vmem:[#allocation3 + $0x58] sm:$0xff]
      %v1158 = vld [vmem:[#allocation3 + $0x60] sm:$0xff]
      %v1159 = vld [vmem:[#allocation3 + $0x68] sm:$0xff]
      %v1160 = vld [vmem:[#allocation3 + $0x70] sm:$0xff]
      %v1161 = vld [vmem:[#allocation3 + $0x78] sm:$0xff]
      %v1162 = vld [vmem:[#allocation3 + $0x80] sm:$0xff]
      %v1163 = vld [vmem:[#allocation3 + $0x88] sm:$0xff]
      %v1164 = vld [vmem:[#allocation3 + $0x90] sm:$0xff]
      %v1165 = vld [vmem:[#allocation3 + $0x98] sm:$0xff]
      %v1166 = vld [vmem:[#allocation3 + $0xa0] sm:$0xff]
      %v1167 = vld [vmem:[#allocation3 + $0xa8] sm:$0xff]
      %v1168 = vld [vmem:[#allocation3 + $0xb0] sm:$0xff]
      %v1169 = vld [vmem:[#allocation3 + $0xb8] sm:$0xff]
      %v1170 = vld [vmem:[#allocation3 + $0xc0] sm:$0xff]
      %v1171 = vld [vmem:[#allocation3 + $0xc8] sm:$0xff]
      %v1172 = vld [vmem:[#allocation3 + $0xd0] sm:$0xff]
      %v1173 = vld [vmem:[#allocation3 + $0xd8] sm:$0xff]
      %v1174 = vld [vmem:[#allocation3 + $0xe0] sm:$0xff]
      %v1175 = vld [vmem:[#allocation3 + $0xe8] sm:$0xff]
      %v1176 = vld [vmem:[#allocation3 + $0xf0] sm:$0xff]
      %v1177 = vld [vmem:[#allocation3 + $0xf8] sm:$0xff]
      %v1180 = vunpack.c.l.b16 %v814
      %v1181 = vunpack.c.l.b16 %v815
      %v1182 = vpack.c.b16 %v1181, %v1180
      %v1184 = vsel %vm172, %v1182, 0
      %v1187 = vsel %vm989, %v823, 0
      %1189 = vmatpush.bf16.msra.mxu0 0
      %1190 = vmatpush.bf16.msra.mxu0 0
      %1191 = vmatpush.bf16.msra.mxu0 0
      %1192 = vmatpush.bf16.msra.mxu0 0
      %1193 = vmatpush.bf16.msra.mxu0 0
      %1194 = vmatpush.bf16.msra.mxu0 0
      %1195 = vmatpush.bf16.msra.mxu0 0
      %1196 = vmatpush.bf16.msra.mxu0 %v1187
      %1197 = vmatmul.bf16.gmra.mxu0 %v945
      %v1198 = vpop.f32.mrf.mxu0
      %v1199 = vadd.f32 0.0, %v1198
      %v1200 = vpop.f32.mrf.mxu0
      %v1201 = vadd.f32 0.0, %v1200
      %1202 = vmatmul.bf16.gmra.mxu0 %v948
      %v1203 = vpop.f32.mrf.mxu0
      %v1204 = vadd.f32 0.0, %v1203
      %v1205 = vpop.f32.mrf.mxu0
      %v1206 = vadd.f32 0.0, %v1205
      %1207 = vmatmul.bf16.gmra.mxu0 %v951
      %v1208 = vpop.f32.mrf.mxu0
      %v1209 = vadd.f32 0.0, %v1208
      %v1210 = vpop.f32.mrf.mxu0
      %v1211 = vadd.f32 0.0, %v1210
      %1212 = vmatmul.bf16.gmra.mxu0 %v954
      %v1213 = vpop.f32.mrf.mxu0
      %v1214 = vadd.f32 0.0, %v1213
      %v1215 = vpop.f32.mrf.mxu0
      %v1216 = vadd.f32 0.0, %v1215
      %1217 = vmatmul.bf16.gmra.mxu0 %v957
      %v1218 = vpop.f32.mrf.mxu0
      %v1219 = vadd.f32 0.0, %v1218
      %v1220 = vpop.f32.mrf.mxu0
      %v1221 = vadd.f32 0.0, %v1220
      %1222 = vmatmul.bf16.gmra.mxu0 %v960
      %v1223 = vpop.f32.mrf.mxu0
      %v1224 = vadd.f32 0.0, %v1223
      %v1225 = vpop.f32.mrf.mxu0
      %v1226 = vadd.f32 0.0, %v1225
      %1227 = vmatmul.bf16.gmra.mxu0 %v963
      %v1228 = vpop.f32.mrf.mxu0
      %v1229 = vadd.f32 0.0, %v1228
      %v1230 = vpop.f32.mrf.mxu0
      %v1231 = vadd.f32 0.0, %v1230
      %1232 = vmatmul.bf16.gmra.mxu0 %v966
      %v1233 = vpop.f32.mrf.mxu0
      %v1234 = vadd.f32 0.0, %v1233
      %v1235 = vpop.f32.mrf.mxu0
      %v1236 = vadd.f32 0.0, %v1235
      %1237 = vmatmul.bf16.gmra.mxu0 %v969
      %v1238 = vpop.f32.mrf.mxu0
      %v1239 = vadd.f32 0.0, %v1238
      %v1240 = vpop.f32.mrf.mxu0
      %v1241 = vadd.f32 0.0, %v1240
      %1242 = vmatmul.bf16.gmra.mxu0 %v972
      %v1243 = vpop.f32.mrf.mxu0
      %v1244 = vadd.f32 0.0, %v1243
      %v1245 = vpop.f32.mrf.mxu0
      %v1246 = vadd.f32 0.0, %v1245
      %1247 = vmatmul.bf16.gmra.mxu0 %v975
      %v1248 = vpop.f32.mrf.mxu0
      %v1249 = vadd.f32 0.0, %v1248
      %v1250 = vpop.f32.mrf.mxu0
      %v1251 = vadd.f32 0.0, %v1250
      %1252 = vmatmul.bf16.gmra.mxu0 %v978
      %v1253 = vpop.f32.mrf.mxu0
      %v1254 = vadd.f32 0.0, %v1253
      %v1255 = vpop.f32.mrf.mxu0
      %v1256 = vadd.f32 0.0, %v1255
      %1257 = vmatmul.bf16.gmra.mxu0 %v981
      %v1258 = vpop.f32.mrf.mxu0
      %v1259 = vadd.f32 0.0, %v1258
      %v1260 = vpop.f32.mrf.mxu0
      %v1261 = vadd.f32 0.0, %v1260
      %1262 = vmatmul.bf16.gmra.mxu0 %v984
      %v1263 = vpop.f32.mrf.mxu0
      %v1264 = vadd.f32 0.0, %v1263
      %v1265 = vpop.f32.mrf.mxu0
      %v1266 = vadd.f32 0.0, %v1265
      %1267 = vmatmul.bf16.gmra.mxu0 %v987
      %v1268 = vpop.f32.mrf.mxu0
      %v1269 = vadd.f32 0.0, %v1268
      %v1270 = vpop.f32.mrf.mxu0
      %v1271 = vadd.f32 0.0, %v1270
      %1272 = vmatmul.bf16.gmra.mxu0 %v1184
      %v1273 = vpop.f32.mrf.mxu0
      %v1274 = vadd.f32 0.0, %v1273
      %v1275 = vpop.f32.mrf.mxu0
      %v1276 = vadd.f32 0.0, %v1275
      %1277 = vdwg.mxu0
      %v1278 = vadd.f32 %v1146, %v1199
      %v1279 = vadd.f32 %v1147, %v1201
      %v1280 = vadd.f32 %v1148, %v1204
      %v1281 = vadd.f32 %v1149, %v1206
      %v1282 = vadd.f32 %v1150, %v1209
      %v1283 = vadd.f32 %v1151, %v1211
      %v1284 = vadd.f32 %v1152, %v1214
      %v1285 = vadd.f32 %v1153, %v1216
      %v1286 = vadd.f32 %v1154, %v1219
      %v1287 = vadd.f32 %v1155, %v1221
      %v1288 = vadd.f32 %v1156, %v1224
      %v1289 = vadd.f32 %v1157, %v1226
      %v1290 = vadd.f32 %v1158, %v1229
      %v1291 = vadd.f32 %v1159, %v1231
      %v1292 = vadd.f32 %v1160, %v1234
      %v1293 = vadd.f32 %v1161, %v1236
      %v1294 = vadd.f32 %v1162, %v1239
      %v1295 = vadd.f32 %v1163, %v1241
      %v1296 = vadd.f32 %v1164, %v1244
      %v1297 = vadd.f32 %v1165, %v1246
      %v1298 = vadd.f32 %v1166, %v1249
      %v1299 = vadd.f32 %v1167, %v1251
      %v1300 = vadd.f32 %v1168, %v1254
      %v1301 = vadd.f32 %v1169, %v1256
      %v1302 = vadd.f32 %v1170, %v1259
      %v1303 = vadd.f32 %v1171, %v1261
      %v1304 = vadd.f32 %v1172, %v1264
      %v1305 = vadd.f32 %v1173, %v1266
      %v1306 = vadd.f32 %v1174, %v1269
      %v1307 = vadd.f32 %v1175, %v1271
      %v1308 = vadd.f32 %v1176, %v1274
      %v1309 = vadd.f32 %v1177, %v1276
      %1310 = vst.msk [vmem:[#allocation3] sm:$0xff] %vm172, %v1278
      %1311 = vst.msk [vmem:[#allocation3 + $0x8] sm:$0xff] %vm172, %v1279
      %1312 = vst.msk [vmem:[#allocation3 + $0x10] sm:$0xff] %vm172, %v1280
      %1313 = vst.msk [vmem:[#allocation3 + $0x18] sm:$0xff] %vm172, %v1281
      %1314 = vst.msk [vmem:[#allocation3 + $0x20] sm:$0xff] %vm172, %v1282
      %1315 = vst.msk [vmem:[#allocation3 + $0x28] sm:$0xff] %vm172, %v1283
      %1316 = vst.msk [vmem:[#allocation3 + $0x30] sm:$0xff] %vm172, %v1284
      %1317 = vst.msk [vmem:[#allocation3 + $0x38] sm:$0xff] %vm172, %v1285
      %1318 = vst.msk [vmem:[#allocation3 + $0x40] sm:$0xff] %vm172, %v1286
      %1319 = vst.msk [vmem:[#allocation3 + $0x48] sm:$0xff] %vm172, %v1287
      %1320 = vst.msk [vmem:[#allocation3 + $0x50] sm:$0xff] %vm172, %v1288
      %1321 = vst.msk [vmem:[#allocation3 + $0x58] sm:$0xff] %vm172, %v1289
      %1322 = vst.msk [vmem:[#allocation3 + $0x60] sm:$0xff] %vm172, %v1290
      %1323 = vst.msk [vmem:[#allocation3 + $0x68] sm:$0xff] %vm172, %v1291
      %1324 = vst.msk [vmem:[#allocation3 + $0x70] sm:$0xff] %vm172, %v1292
      %1325 = vst.msk [vmem:[#allocation3 + $0x78] sm:$0xff] %vm172, %v1293
      %1326 = vst.msk [vmem:[#allocation3 + $0x80] sm:$0xff] %vm172, %v1294
      %1327 = vst.msk [vmem:[#allocation3 + $0x88] sm:$0xff] %vm172, %v1295
      %1328 = vst.msk [vmem:[#allocation3 + $0x90] sm:$0xff] %vm172, %v1296
      %1329 = vst.msk [vmem:[#allocation3 + $0x98] sm:$0xff] %vm172, %v1297
      %1330 = vst.msk [vmem:[#allocation3 + $0xa0] sm:$0xff] %vm172, %v1298
      %1331 = vst.msk [vmem:[#allocation3 + $0xa8] sm:$0xff] %vm172, %v1299
      %1332 = vst.msk [vmem:[#allocation3 + $0xb0] sm:$0xff] %vm172, %v1300
      %1333 = vst.msk [vmem:[#allocation3 + $0xb8] sm:$0xff] %vm172, %v1301
      %1334 = vst.msk [vmem:[#allocation3 + $0xc0] sm:$0xff] %vm172, %v1302
      %1335 = vst.msk [vmem:[#allocation3 + $0xc8] sm:$0xff] %vm172, %v1303
      %1336 = vst.msk [vmem:[#allocation3 + $0xd0] sm:$0xff] %vm172, %v1304
      %1337 = vst.msk [vmem:[#allocation3 + $0xd8] sm:$0xff] %vm172, %v1305
      %1338 = vst.msk [vmem:[#allocation3 + $0xe0] sm:$0xff] %vm172, %v1306
      %1339 = vst.msk [vmem:[#allocation3 + $0xe8] sm:$0xff] %vm172, %v1307
      %1340 = vst.msk [vmem:[#allocation3 + $0xf0] sm:$0xff] %vm172, %v1308
      %1341 = vst.msk [vmem:[#allocation3 + $0xf8] sm:$0xff] %vm172, %v1309
      %v1342 = vld [vmem:[#allocation3] sm:$0xff]
      %v1343 = vld [vmem:[#allocation3 + $0x8] sm:$0xff]
      %v1344 = vld [vmem:[#allocation3 + $0x10] sm:$0xff]
      %v1345 = vld [vmem:[#allocation3 + $0x18] sm:$0xff]
      %v1346 = vld [vmem:[#allocation3 + $0x20] sm:$0xff]
      %v1347 = vld [vmem:[#allocation3 + $0x28] sm:$0xff]
      %v1348 = vld [vmem:[#allocation3 + $0x30] sm:$0xff]
      %v1349 = vld [vmem:[#allocation3 + $0x38] sm:$0xff]
      %v1350 = vld [vmem:[#allocation3 + $0x40] sm:$0xff]
      %v1351 = vld [vmem:[#allocation3 + $0x48] sm:$0xff]
      %v1352 = vld [vmem:[#allocation3 + $0x50] sm:$0xff]
      %v1353 = vld [vmem:[#allocation3 + $0x58] sm:$0xff]
      %v1354 = vld [vmem:[#allocation3 + $0x60] sm:$0xff]
      %v1355 = vld [vmem:[#allocation3 + $0x68] sm:$0xff]
      %v1356 = vld [vmem:[#allocation3 + $0x70] sm:$0xff]
      %v1357 = vld [vmem:[#allocation3 + $0x78] sm:$0xff]
      %v1358 = vld [vmem:[#allocation3 + $0x80] sm:$0xff]
      %v1359 = vld [vmem:[#allocation3 + $0x88] sm:$0xff]
      %v1360 = vld [vmem:[#allocation3 + $0x90] sm:$0xff]
      %v1361 = vld [vmem:[#allocation3 + $0x98] sm:$0xff]
      %v1362 = vld [vmem:[#allocation3 + $0xa0] sm:$0xff]
      %v1363 = vld [vmem:[#allocation3 + $0xa8] sm:$0xff]
      %v1364 = vld [vmem:[#allocation3 + $0xb0] sm:$0xff]
      %v1365 = vld [vmem:[#allocation3 + $0xb8] sm:$0xff]
      %v1366 = vld [vmem:[#allocation3 + $0xc0] sm:$0xff]
      %v1367 = vld [vmem:[#allocation3 + $0xc8] sm:$0xff]
      %v1368 = vld [vmem:[#allocation3 + $0xd0] sm:$0xff]
      %v1369 = vld [vmem:[#allocation3 + $0xd8] sm:$0xff]
      %v1370 = vld [vmem:[#allocation3 + $0xe0] sm:$0xff]
      %v1371 = vld [vmem:[#allocation3 + $0xe8] sm:$0xff]
      %v1372 = vld [vmem:[#allocation3 + $0xf0] sm:$0xff]
      %v1373 = vld [vmem:[#allocation3 + $0xf8] sm:$0xff]
      %v1376 = vunpack.c.l.b16 %v817
      %v1377 = vunpack.c.l.b16 %v818
      %v1378 = vpack.c.b16 %v1377, %v1376
      %v1380 = vsel %vm172, %v1378, 0
      %v1383 = vsel %vm989, %v826, 0
      %1385 = vmatpush.bf16.msra.mxu0 0
      %1386 = vmatpush.bf16.msra.mxu0 0
      %1387 = vmatpush.bf16.msra.mxu0 0
      %1388 = vmatpush.bf16.msra.mxu0 0
      %1389 = vmatpush.bf16.msra.mxu0 0
      %1390 = vmatpush.bf16.msra.mxu0 0
      %1391 = vmatpush.bf16.msra.mxu0 0
      %1392 = vmatpush.bf16.msra.mxu0 %v1383
      %1393 = vmatmul.bf16.gmra.mxu0 %v948
      %v1394 = vpop.f32.mrf.mxu0
      %v1395 = vadd.f32 0.0, %v1394
      %v1396 = vpop.f32.mrf.mxu0
      %v1397 = vadd.f32 0.0, %v1396
      %1398 = vmatmul.bf16.gmra.mxu0 %v951
      %v1399 = vpop.f32.mrf.mxu0
      %v1400 = vadd.f32 0.0, %v1399
      %v1401 = vpop.f32.mrf.mxu0
      %v1402 = vadd.f32 0.0, %v1401
      %1403 = vmatmul.bf16.gmra.mxu0 %v954
      %v1404 = vpop.f32.mrf.mxu0
      %v1405 = vadd.f32 0.0, %v1404
      %v1406 = vpop.f32.mrf.mxu0
      %v1407 = vadd.f32 0.0, %v1406
      %1408 = vmatmul.bf16.gmra.mxu0 %v957
      %v1409 = vpop.f32.mrf.mxu0
      %v1410 = vadd.f32 0.0, %v1409
      %v1411 = vpop.f32.mrf.mxu0
      %v1412 = vadd.f32 0.0, %v1411
      %1413 = vmatmul.bf16.gmra.mxu0 %v960
      %v1414 = vpop.f32.mrf.mxu0
      %v1415 = vadd.f32 0.0, %v1414
      %v1416 = vpop.f32.mrf.mxu0
      %v1417 = vadd.f32 0.0, %v1416
      %1418 = vmatmul.bf16.gmra.mxu0 %v963
      %v1419 = vpop.f32.mrf.mxu0
      %v1420 = vadd.f32 0.0, %v1419
      %v1421 = vpop.f32.mrf.mxu0
      %v1422 = vadd.f32 0.0, %v1421
      %1423 = vmatmul.bf16.gmra.mxu0 %v966
      %v1424 = vpop.f32.mrf.mxu0
      %v1425 = vadd.f32 0.0, %v1424
      %v1426 = vpop.f32.mrf.mxu0
      %v1427 = vadd.f32 0.0, %v1426
      %1428 = vmatmul.bf16.gmra.mxu0 %v969
      %v1429 = vpop.f32.mrf.mxu0
      %v1430 = vadd.f32 0.0, %v1429
      %v1431 = vpop.f32.mrf.mxu0
      %v1432 = vadd.f32 0.0, %v1431
      %1433 = vmatmul.bf16.gmra.mxu0 %v972
      %v1434 = vpop.f32.mrf.mxu0
      %v1435 = vadd.f32 0.0, %v1434
      %v1436 = vpop.f32.mrf.mxu0
      %v1437 = vadd.f32 0.0, %v1436
      %1438 = vmatmul.bf16.gmra.mxu0 %v975
      %v1439 = vpop.f32.mrf.mxu0
      %v1440 = vadd.f32 0.0, %v1439
      %v1441 = vpop.f32.mrf.mxu0
      %v1442 = vadd.f32 0.0, %v1441
      %1443 = vmatmul.bf16.gmra.mxu0 %v978
      %v1444 = vpop.f32.mrf.mxu0
      %v1445 = vadd.f32 0.0, %v1444
      %v1446 = vpop.f32.mrf.mxu0
      %v1447 = vadd.f32 0.0, %v1446
      %1448 = vmatmul.bf16.gmra.mxu0 %v981
      %v1449 = vpop.f32.mrf.mxu0
      %v1450 = vadd.f32 0.0, %v1449
      %v1451 = vpop.f32.mrf.mxu0
      %v1452 = vadd.f32 0.0, %v1451
      %1453 = vmatmul.bf16.gmra.mxu0 %v984
      %v1454 = vpop.f32.mrf.mxu0
      %v1455 = vadd.f32 0.0, %v1454
      %v1456 = vpop.f32.mrf.mxu0
      %v1457 = vadd.f32 0.0, %v1456
      %1458 = vmatmul.bf16.gmra.mxu0 %v987
      %v1459 = vpop.f32.mrf.mxu0
      %v1460 = vadd.f32 0.0, %v1459
      %v1461 = vpop.f32.mrf.mxu0
      %v1462 = vadd.f32 0.0, %v1461
      %1463 = vmatmul.bf16.gmra.mxu0 %v1184
      %v1464 = vpop.f32.mrf.mxu0
      %v1465 = vadd.f32 0.0, %v1464
      %v1466 = vpop.f32.mrf.mxu0
      %v1467 = vadd.f32 0.0, %v1466
      %1468 = vmatmul.bf16.gmra.mxu0 %v1380
      %v1469 = vpop.f32.mrf.mxu0
      %v1470 = vadd.f32 0.0, %v1469
      %v1471 = vpop.f32.mrf.mxu0
      %v1472 = vadd.f32 0.0, %v1471
      %1473 = vdwg.mxu0
      %v1474 = vadd.f32 %v1342, %v1395
      %v1475 = vadd.f32 %v1343, %v1397
      %v1476 = vadd.f32 %v1344, %v1400
      %v1477 = vadd.f32 %v1345, %v1402
      %v1478 = vadd.f32 %v1346, %v1405
      %v1479 = vadd.f32 %v1347, %v1407
      %v1480 = vadd.f32 %v1348, %v1410
      %v1481 = vadd.f32 %v1349, %v1412
      %v1482 = vadd.f32 %v1350, %v1415
      %v1483 = vadd.f32 %v1351, %v1417
      %v1484 = vadd.f32 %v1352, %v1420
      %v1485 = vadd.f32 %v1353, %v1422
      %v1486 = vadd.f32 %v1354, %v1425
      %v1487 = vadd.f32 %v1355, %v1427
      %v1488 = vadd.f32 %v1356, %v1430
      %v1489 = vadd.f32 %v1357, %v1432
      %v1490 = vadd.f32 %v1358, %v1435
      %v1491 = vadd.f32 %v1359, %v1437
      %v1492 = vadd.f32 %v1360, %v1440
      %v1493 = vadd.f32 %v1361, %v1442
      %v1494 = vadd.f32 %v1362, %v1445
      %v1495 = vadd.f32 %v1363, %v1447
      %v1496 = vadd.f32 %v1364, %v1450
      %v1497 = vadd.f32 %v1365, %v1452
      %v1498 = vadd.f32 %v1366, %v1455
      %v1499 = vadd.f32 %v1367, %v1457
      %v1500 = vadd.f32 %v1368, %v1460
      %v1501 = vadd.f32 %v1369, %v1462
      %v1502 = vadd.f32 %v1370, %v1465
      %v1503 = vadd.f32 %v1371, %v1467
      %v1504 = vadd.f32 %v1372, %v1470
      %v1505 = vadd.f32 %v1373, %v1472
      %1506 = vst.msk [vmem:[#allocation3] sm:$0xff] %vm172, %v1474
      %1507 = vst.msk [vmem:[#allocation3 + $0x8] sm:$0xff] %vm172, %v1475
      %1508 = vst.msk [vmem:[#allocation3 + $0x10] sm:$0xff] %vm172, %v1476
      %1509 = vst.msk [vmem:[#allocation3 + $0x18] sm:$0xff] %vm172, %v1477
      %1510 = vst.msk [vmem:[#allocation3 + $0x20] sm:$0xff] %vm172, %v1478
      %1511 = vst.msk [vmem:[#allocation3 + $0x28] sm:$0xff] %vm172, %v1479
      %1512 = vst.msk [vmem:[#allocation3 + $0x30] sm:$0xff] %vm172, %v1480
      %1513 = vst.msk [vmem:[#allocation3 + $0x38] sm:$0xff] %vm172, %v1481
      %1514 = vst.msk [vmem:[#allocation3 + $0x40] sm:$0xff] %vm172, %v1482
      %1515 = vst.msk [vmem:[#allocation3 + $0x48] sm:$0xff] %vm172, %v1483
      %1516 = vst.msk [vmem:[#allocation3 + $0x50] sm:$0xff] %vm172, %v1484
      %1517 = vst.msk [vmem:[#allocation3 + $0x58] sm:$0xff] %vm172, %v1485
      %1518 = vst.msk [vmem:[#allocation3 + $0x60] sm:$0xff] %vm172, %v1486
      %1519 = vst.msk [vmem:[#allocation3 + $0x68] sm:$0xff] %vm172, %v1487
      %1520 = vst.msk [vmem:[#allocation3 + $0x70] sm:$0xff] %vm172, %v1488
      %1521 = vst.msk [vmem:[#allocation3 + $0x78] sm:$0xff] %vm172, %v1489
      %1522 = vst.msk [vmem:[#allocation3 + $0x80] sm:$0xff] %vm172, %v1490
      %1523 = vst.msk [vmem:[#allocation3 + $0x88] sm:$0xff] %vm172, %v1491
      %1524 = vst.msk [vmem:[#allocation3 + $0x90] sm:$0xff] %vm172, %v1492
      %1525 = vst.msk [vmem:[#allocation3 + $0x98] sm:$0xff] %vm172, %v1493
      %1526 = vst.msk [vmem:[#allocation3 + $0xa0] sm:$0xff] %vm172, %v1494
      %1527 = vst.msk [vmem:[#allocation3 + $0xa8] sm:$0xff] %vm172, %v1495
      %1528 = vst.msk [vmem:[#allocation3 + $0xb0] sm:$0xff] %vm172, %v1496
      %1529 = vst.msk [vmem:[#allocation3 + $0xb8] sm:$0xff] %vm172, %v1497
      %1530 = vst.msk [vmem:[#allocation3 + $0xc0] sm:$0xff] %vm172, %v1498
      %1531 = vst.msk [vmem:[#allocation3 + $0xc8] sm:$0xff] %vm172, %v1499
      %1532 = vst.msk [vmem:[#allocation3 + $0xd0] sm:$0xff] %vm172, %v1500
      %1533 = vst.msk [vmem:[#allocation3 + $0xd8] sm:$0xff] %vm172, %v1501
      %1534 = vst.msk [vmem:[#allocation3 + $0xe0] sm:$0xff] %vm172, %v1502
      %1535 = vst.msk [vmem:[#allocation3 + $0xe8] sm:$0xff] %vm172, %v1503
      %1536 = vst.msk [vmem:[#allocation3 + $0xf0] sm:$0xff] %vm172, %v1504
      %1537 = vst.msk [vmem:[#allocation3 + $0xf8] sm:$0xff] %vm172, %v1505
      %v1538 = vld [vmem:[#allocation3] sm:$0xff]
      %v1539 = vld [vmem:[#allocation3 + $0x8] sm:$0xff]
      %v1540 = vld [vmem:[#allocation3 + $0x10] sm:$0xff]
      %v1541 = vld [vmem:[#allocation3 + $0x18] sm:$0xff]
      %v1542 = vld [vmem:[#allocation3 + $0x20] sm:$0xff]
      %v1543 = vld [vmem:[#allocation3 + $0x28] sm:$0xff]
      %v1544 = vld [vmem:[#allocation3 + $0x30] sm:$0xff]
      %v1545 = vld [vmem:[#allocation3 + $0x38] sm:$0xff]
      %v1546 = vld [vmem:[#allocation3 + $0x40] sm:$0xff]
      %v1547 = vld [vmem:[#allocation3 + $0x48] sm:$0xff]
      %v1548 = vld [vmem:[#allocation3 + $0x50] sm:$0xff]
      %v1549 = vld [vmem:[#allocation3 + $0x58] sm:$0xff]
      %v1550 = vld [vmem:[#allocation3 + $0x60] sm:$0xff]
      %v1551 = vld [vmem:[#allocation3 + $0x68] sm:$0xff]
      %v1552 = vld [vmem:[#allocation3 + $0x70] sm:$0xff]
      %v1553 = vld [vmem:[#allocation3 + $0x78] sm:$0xff]
      %v1554 = vld [vmem:[#allocation3 + $0x80] sm:$0xff]
      %v1555 = vld [vmem:[#allocation3 + $0x88] sm:$0xff]
      %v1556 = vld [vmem:[#allocation3 + $0x90] sm:$0xff]
      %v1557 = vld [vmem:[#allocation3 + $0x98] sm:$0xff]
      %v1558 = vld [vmem:[#allocation3 + $0xa0] sm:$0xff]
      %v1559 = vld [vmem:[#allocation3 + $0xa8] sm:$0xff]
      %v1560 = vld [vmem:[#allocation3 + $0xb0] sm:$0xff]
      %v1561 = vld [vmem:[#allocation3 + $0xb8] sm:$0xff]
      %v1562 = vld [vmem:[#allocation3 + $0xc0] sm:$0xff]
      %v1563 = vld [vmem:[#allocation3 + $0xc8] sm:$0xff]
      %v1564 = vld [vmem:[#allocation3 + $0xd0] sm:$0xff]
      %v1565 = vld [vmem:[#allocation3 + $0xd8] sm:$0xff]
      %v1566 = vld [vmem:[#allocation3 + $0xe0] sm:$0xff]
      %v1567 = vld [vmem:[#allocation3 + $0xe8] sm:$0xff]
      %v1568 = vld [vmem:[#allocation3 + $0xf0] sm:$0xff]
      %v1569 = vld [vmem:[#allocation3 + $0xf8] sm:$0xff]
      %vm1570 = vsmask.f32 3328
      %vm1571 = vsmask.f32 7440
      %vm1572 = vmor %vm1570, %vm1571
      %v1574 = vshrl.u32 %v766, 16
      %v1576 = vrot.slane %v1574, 4
      %v1577 = vshll.u32 %v766, 16
      %v1579 = vrot.slane %v1577, 5
      %v1580 = vor.u32 %v1576, %v1579
      %v1581 = vrot.slane %v1580, 4
      %v1583 = vshll.u32 %v767, 16
      %v1585 = vrot.slane %v1583, 5
      %v1586 = vsel %vm1572, %v1581, %v1585
      %v1587 = vshrl.u32 %v767, 16
      %v1589 = vrot.slane %v1587, 4
      %v1590 = vor.u32 %v1589, %v1585
      %v1591 = vrot.slane %v1590, 4
      %v1593 = vshll.u32 %v768, 16
      %v1595 = vrot.slane %v1593, 5
      %v1596 = vsel %vm1572, %v1591, %v1595
      %v1598 = vshrl.u32 %v769, 16
      %v1600 = vrot.slane %v1598, 4
      %v1601 = vshll.u32 %v769, 16
      %v1603 = vrot.slane %v1601, 5
      %v1604 = vor.u32 %v1600, %v1603
      %v1605 = vrot.slane %v1604, 4
      %v1607 = vshll.u32 %v770, 16
      %v1609 = vrot.slane %v1607, 5
      %v1610 = vsel %vm1572, %v1605, %v1609
      %v1611 = vshrl.u32 %v770, 16
      %v1613 = vrot.slane %v1611, 4
      %v1614 = vor.u32 %v1613, %v1609
      %v1615 = vrot.slane %v1614, 4
      %v1617 = vshll.u32 %v771, 16
      %v1619 = vrot.slane %v1617, 5
      %v1620 = vsel %vm1572, %v1615, %v1619
      %v1622 = vshrl.u32 %v772, 16
      %v1624 = vrot.slane %v1622, 4
      %v1625 = vshll.u32 %v772, 16
      %v1627 = vrot.slane %v1625, 5
      %v1628 = vor.u32 %v1624, %v1627
      %v1629 = vrot.slane %v1628, 4
      %v1631 = vshll.u32 %v773, 16
      %v1633 = vrot.slane %v1631, 5
      %v1634 = vsel %vm1572, %v1629, %v1633
      %v1635 = vshrl.u32 %v773, 16
      %v1637 = vrot.slane %v1635, 4
      %v1638 = vor.u32 %v1637, %v1633
      %v1639 = vrot.slane %v1638, 4
      %v1641 = vshll.u32 %v774, 16
      %v1643 = vrot.slane %v1641, 5
      %v1644 = vsel %vm1572, %v1639, %v1643
      %v1646 = vshrl.u32 %v775, 16
      %v1648 = vrot.slane %v1646, 4
      %v1649 = vshll.u32 %v775, 16
      %v1651 = vrot.slane %v1649, 5
      %v1652 = vor.u32 %v1648, %v1651
      %v1653 = vrot.slane %v1652, 4
      %v1655 = vshll.u32 %v776, 16
      %v1657 = vrot.slane %v1655, 5
      %v1658 = vsel %vm1572, %v1653, %v1657
      %v1659 = vshrl.u32 %v776, 16
      %v1661 = vrot.slane %v1659, 4
      %v1662 = vor.u32 %v1661, %v1657
      %v1663 = vrot.slane %v1662, 4
      %v1665 = vshll.u32 %v777, 16
      %v1667 = vrot.slane %v1665, 5
      %v1668 = vsel %vm1572, %v1663, %v1667
      %v1670 = vshrl.u32 %v778, 16
      %v1672 = vrot.slane %v1670, 4
      %v1673 = vshll.u32 %v778, 16
      %v1675 = vrot.slane %v1673, 5
      %v1676 = vor.u32 %v1672, %v1675
      %v1677 = vrot.slane %v1676, 4
      %v1679 = vshll.u32 %v779, 16
      %v1681 = vrot.slane %v1679, 5
      %v1682 = vsel %vm1572, %v1677, %v1681
      %v1683 = vshrl.u32 %v779, 16
      %v1685 = vrot.slane %v1683, 4
      %v1686 = vor.u32 %v1685, %v1681
      %v1687 = vrot.slane %v1686, 4
      %v1689 = vshll.u32 %v780, 16
      %v1691 = vrot.slane %v1689, 5
      %v1692 = vsel %vm1572, %v1687, %v1691
      %v1694 = vshrl.u32 %v781, 16
      %v1696 = vrot.slane %v1694, 4
      %v1697 = vshll.u32 %v781, 16
      %v1699 = vrot.slane %v1697, 5
      %v1700 = vor.u32 %v1696, %v1699
      %v1701 = vrot.slane %v1700, 4
      %v1703 = vshll.u32 %v782, 16
      %v1705 = vrot.slane %v1703, 5
      %v1706 = vsel %vm1572, %v1701, %v1705
      %v1707 = vshrl.u32 %v782, 16
      %v1709 = vrot.slane %v1707, 4
      %v1710 = vor.u32 %v1709, %v1705
      %v1711 = vrot.slane %v1710, 4
      %v1713 = vshll.u32 %v783, 16
      %v1715 = vrot.slane %v1713, 5
      %v1716 = vsel %vm1572, %v1711, %v1715
      %v1718 = vshrl.u32 %v784, 16
      %v1720 = vrot.slane %v1718, 4
      %v1721 = vshll.u32 %v784, 16
      %v1723 = vrot.slane %v1721, 5
      %v1724 = vor.u32 %v1720, %v1723
      %v1725 = vrot.slane %v1724, 4
      %v1727 = vshll.u32 %v785, 16
      %v1729 = vrot.slane %v1727, 5
      %v1730 = vsel %vm1572, %v1725, %v1729
      %v1731 = vshrl.u32 %v785, 16
      %v1733 = vrot.slane %v1731, 4
      %v1734 = vor.u32 %v1733, %v1729
      %v1735 = vrot.slane %v1734, 4
      %v1737 = vshll.u32 %v786, 16
      %v1739 = vrot.slane %v1737, 5
      %v1740 = vsel %vm1572, %v1735, %v1739
      %v1742 = vshrl.u32 %v787, 16
      %v1744 = vrot.slane %v1742, 4
      %v1745 = vshll.u32 %v787, 16
      %v1747 = vrot.slane %v1745, 5
      %v1748 = vor.u32 %v1744, %v1747
      %v1749 = vrot.slane %v1748, 4
      %v1751 = vshll.u32 %v788, 16
      %v1753 = vrot.slane %v1751, 5
      %v1754 = vsel %vm1572, %v1749, %v1753
      %v1755 = vshrl.u32 %v788, 16
      %v1757 = vrot.slane %v1755, 4
      %v1758 = vor.u32 %v1757, %v1753
      %v1759 = vrot.slane %v1758, 4
      %v1761 = vshll.u32 %v789, 16
      %v1763 = vrot.slane %v1761, 5
      %v1764 = vsel %vm1572, %v1759, %v1763
      %v1766 = vshrl.u32 %v790, 16
      %v1768 = vrot.slane %v1766, 4
      %v1769 = vshll.u32 %v790, 16
      %v1771 = vrot.slane %v1769, 5
      %v1772 = vor.u32 %v1768, %v1771
      %v1773 = vrot.slane %v1772, 4
      %v1775 = vshll.u32 %v791, 16
      %v1777 = vrot.slane %v1775, 5
      %v1778 = vsel %vm1572, %v1773, %v1777
      %v1779 = vshrl.u32 %v791, 16
      %v1781 = vrot.slane %v1779, 4
      %v1782 = vor.u32 %v1781, %v1777
      %v1783 = vrot.slane %v1782, 4
      %v1785 = vshll.u32 %v792, 16
      %v1787 = vrot.slane %v1785, 5
      %v1788 = vsel %vm1572, %v1783, %v1787
      %v1790 = vshrl.u32 %v793, 16
      %v1792 = vrot.slane %v1790, 4
      %v1793 = vshll.u32 %v793, 16
      %v1795 = vrot.slane %v1793, 5
      %v1796 = vor.u32 %v1792, %v1795
      %v1797 = vrot.slane %v1796, 4
      %v1799 = vshll.u32 %v794, 16
      %v1801 = vrot.slane %v1799, 5
      %v1802 = vsel %vm1572, %v1797, %v1801
      %v1803 = vshrl.u32 %v794, 16
      %v1805 = vrot.slane %v1803, 4
      %v1806 = vor.u32 %v1805, %v1801
      %v1807 = vrot.slane %v1806, 4
      %v1809 = vshll.u32 %v795, 16
      %v1811 = vrot.slane %v1809, 5
      %v1812 = vsel %vm1572, %v1807, %v1811
      %v1814 = vshrl.u32 %v796, 16
      %v1816 = vrot.slane %v1814, 4
      %v1817 = vshll.u32 %v796, 16
      %v1819 = vrot.slane %v1817, 5
      %v1820 = vor.u32 %v1816, %v1819
      %v1821 = vrot.slane %v1820, 4
      %v1823 = vshll.u32 %v797, 16
      %v1825 = vrot.slane %v1823, 5
      %v1826 = vsel %vm1572, %v1821, %v1825
      %v1827 = vshrl.u32 %v797, 16
      %v1829 = vrot.slane %v1827, 4
      %v1830 = vor.u32 %v1829, %v1825
      %v1831 = vrot.slane %v1830, 4
      %v1833 = vshll.u32 %v798, 16
      %v1835 = vrot.slane %v1833, 5
      %v1836 = vsel %vm1572, %v1831, %v1835
      %v1838 = vshrl.u32 %v799, 16
      %v1840 = vrot.slane %v1838, 4
      %v1841 = vshll.u32 %v799, 16
      %v1843 = vrot.slane %v1841, 5
      %v1844 = vor.u32 %v1840, %v1843
      %v1845 = vrot.slane %v1844, 4
      %v1847 = vshll.u32 %v800, 16
      %v1849 = vrot.slane %v1847, 5
      %v1850 = vsel %vm1572, %v1845, %v1849
      %v1851 = vshrl.u32 %v800, 16
      %v1853 = vrot.slane %v1851, 4
      %v1854 = vor.u32 %v1853, %v1849
      %v1855 = vrot.slane %v1854, 4
      %v1857 = vshll.u32 %v801, 16
      %v1859 = vrot.slane %v1857, 5
      %v1860 = vsel %vm1572, %v1855, %v1859
      %v1862 = vshrl.u32 %v802, 16
      %v1864 = vrot.slane %v1862, 4
      %v1865 = vshll.u32 %v802, 16
      %v1867 = vrot.slane %v1865, 5
      %v1868 = vor.u32 %v1864, %v1867
      %v1869 = vrot.slane %v1868, 4
      %v1871 = vshll.u32 %v803, 16
      %v1873 = vrot.slane %v1871, 5
      %v1874 = vsel %vm1572, %v1869, %v1873
      %v1875 = vshrl.u32 %v803, 16
      %v1877 = vrot.slane %v1875, 4
      %v1878 = vor.u32 %v1877, %v1873
      %v1879 = vrot.slane %v1878, 4
      %v1881 = vshll.u32 %v804, 16
      %v1883 = vrot.slane %v1881, 5
      %v1884 = vsel %vm1572, %v1879, %v1883
      %v1886 = vshrl.u32 %v805, 16
      %v1888 = vrot.slane %v1886, 4
      %v1889 = vshll.u32 %v805, 16
      %v1891 = vrot.slane %v1889, 5
      %v1892 = vor.u32 %v1888, %v1891
      %v1893 = vrot.slane %v1892, 4
      %v1895 = vshll.u32 %v806, 16
      %v1897 = vrot.slane %v1895, 5
      %v1898 = vsel %vm1572, %v1893, %v1897
      %v1899 = vshrl.u32 %v806, 16
      %v1901 = vrot.slane %v1899, 4
      %v1902 = vor.u32 %v1901, %v1897
      %v1903 = vrot.slane %v1902, 4
      %v1905 = vshll.u32 %v807, 16
      %v1907 = vrot.slane %v1905, 5
      %v1908 = vsel %vm1572, %v1903, %v1907
      %v1910 = vshrl.u32 %v808, 16
      %v1912 = vrot.slane %v1910, 4
      %v1913 = vshll.u32 %v808, 16
      %v1915 = vrot.slane %v1913, 5
      %v1916 = vor.u32 %v1912, %v1915
      %v1917 = vrot.slane %v1916, 4
      %v1919 = vshll.u32 %v809, 16
      %v1921 = vrot.slane %v1919, 5
      %v1922 = vsel %vm1572, %v1917, %v1921
      %v1923 = vshrl.u32 %v809, 16
      %v1925 = vrot.slane %v1923, 4
      %v1926 = vor.u32 %v1925, %v1921
      %v1927 = vrot.slane %v1926, 4
      %v1929 = vshll.u32 %v810, 16
      %v1931 = vrot.slane %v1929, 5
      %v1932 = vsel %vm1572, %v1927, %v1931
      %v1934 = vshrl.u32 %v811, 16
      %v1936 = vrot.slane %v1934, 4
      %v1937 = vshll.u32 %v811, 16
      %v1939 = vrot.slane %v1937, 5
      %v1940 = vor.u32 %v1936, %v1939
      %v1941 = vrot.slane %v1940, 4
      %v1943 = vshll.u32 %v812, 16
      %v1945 = vrot.slane %v1943, 5
      %v1946 = vsel %vm1572, %v1941, %v1945
      %v1947 = vshrl.u32 %v812, 16
      %v1949 = vrot.slane %v1947, 4
      %v1950 = vor.u32 %v1949, %v1945
      %v1951 = vrot.slane %v1950, 4
      %v1953 = vshll.u32 %v813, 16
      %v1955 = vrot.slane %v1953, 5
      %v1956 = vsel %vm1572, %v1951, %v1955
      %v1957 = vunpack.c.l.b16 %v1586
      %v1958 = vunpack.c.l.b16 %v1596
      %v1959 = vunpack.c.l.b16 %v1610
      %v1960 = vunpack.c.l.b16 %v1620
      %v1961 = vunpack.c.l.b16 %v1634
      %v1962 = vunpack.c.l.b16 %v1644
      %v1963 = vunpack.c.l.b16 %v1658
      %v1964 = vunpack.c.l.b16 %v1668
      %v1965 = vunpack.c.l.b16 %v1682
      %v1966 = vunpack.c.l.b16 %v1692
      %v1967 = vunpack.c.l.b16 %v1706
      %v1968 = vunpack.c.l.b16 %v1716
      %v1969 = vunpack.c.l.b16 %v1730
      %v1970 = vunpack.c.l.b16 %v1740
      %v1971 = vunpack.c.l.b16 %v1754
      %v1972 = vunpack.c.l.b16 %v1764
      %v1973 = vunpack.c.l.b16 %v1778
      %v1974 = vunpack.c.l.b16 %v1788
      %v1975 = vunpack.c.l.b16 %v1802
      %v1976 = vunpack.c.l.b16 %v1812
      %v1977 = vunpack.c.l.b16 %v1826
      %v1978 = vunpack.c.l.b16 %v1836
      %v1979 = vunpack.c.l.b16 %v1850
      %v1980 = vunpack.c.l.b16 %v1860
      %v1981 = vunpack.c.l.b16 %v1874
      %v1982 = vunpack.c.l.b16 %v1884
      %v1983 = vunpack.c.l.b16 %v1898
      %v1984 = vunpack.c.l.b16 %v1908
      %v1985 = vunpack.c.l.b16 %v1922
      %v1986 = vunpack.c.l.b16 %v1932
      %v1987 = vunpack.c.l.b16 %v1946
      %v1988 = vunpack.c.l.b16 %v1956
      %v1989 = vpack.c.b16 %v1958, %v1957
      %v1990 = vpack.c.b16 %v1960, %v1959
      %v1991 = vpack.c.b16 %v1962, %v1961
      %v1992 = vpack.c.b16 %v1964, %v1963
      %v1993 = vpack.c.b16 %v1966, %v1965
      %v1994 = vpack.c.b16 %v1968, %v1967
      %v1995 = vpack.c.b16 %v1970, %v1969
      %v1996 = vpack.c.b16 %v1972, %v1971
      %v1997 = vpack.c.b16 %v1974, %v1973
      %v1998 = vpack.c.b16 %v1976, %v1975
      %v1999 = vpack.c.b16 %v1978, %v1977
      %v2000 = vpack.c.b16 %v1980, %v1979
      %v2001 = vpack.c.b16 %v1982, %v1981
      %v2002 = vpack.c.b16 %v1984, %v1983
      %v2003 = vpack.c.b16 %v1986, %v1985
      %v2004 = vpack.c.b16 %v1988, %v1987
      %v2006 = vsel %vm172, %v1989, 0
      %v2009 = vsel %vm172, %v1990, 0
      %v2012 = vsel %vm172, %v1991, 0
      %v2015 = vsel %vm172, %v1992, 0
      %v2018 = vsel %vm172, %v1993, 0
      %v2021 = vsel %vm172, %v1994, 0
      %v2024 = vsel %vm172, %v1995, 0
      %v2027 = vsel %vm172, %v1996, 0
      %v2030 = vsel %vm172, %v1997, 0
      %v2033 = vsel %vm172, %v1998, 0
      %v2036 = vsel %vm172, %v1999, 0
      %v2039 = vsel %vm172, %v2000, 0
      %v2042 = vsel %vm172, %v2001, 0
      %v2045 = vsel %vm172, %v2002, 0
      %v2048 = vsel %vm172, %v2003, 0
      %v2051 = vsel %vm172, %v2004, 0
      %v2054 = vsel %vm989, %v821, 0
      %2056 = vmatpush.bf16.msra.mxu0 0
      %2057 = vmatpush.bf16.msra.mxu0 0
      %2058 = vmatpush.bf16.msra.mxu0 0
      %2059 = vmatpush.bf16.msra.mxu0 0
      %2060 = vmatpush.bf16.msra.mxu0 0
      %2061 = vmatpush.bf16.msra.mxu0 0
      %2062 = vmatpush.bf16.msra.mxu0 0
      %2063 = vmatpush.bf16.msra.mxu0 %v2054
      %2064 = vmatmul.bf16.gmra.mxu0 %v2006
      %v2065 = vpop.f32.mrf.mxu0
      %v2066 = vadd.f32 0.0, %v2065
      %v2067 = vpop.f32.mrf.mxu0
      %v2068 = vadd.f32 0.0, %v2067
      %2069 = vmatmul.bf16.gmra.mxu0 %v2009
      %v2070 = vpop.f32.mrf.mxu0
      %v2071 = vadd.f32 0.0, %v2070
      %v2072 = vpop.f32.mrf.mxu0
      %v2073 = vadd.f32 0.0, %v2072
      %2074 = vmatmul.bf16.gmra.mxu0 %v2012
      %v2075 = vpop.f32.mrf.mxu0
      %v2076 = vadd.f32 0.0, %v2075
      %v2077 = vpop.f32.mrf.mxu0
      %v2078 = vadd.f32 0.0, %v2077
      %2079 = vmatmul.bf16.gmra.mxu0 %v2015
      %v2080 = vpop.f32.mrf.mxu0
      %v2081 = vadd.f32 0.0, %v2080
      %v2082 = vpop.f32.mrf.mxu0
      %v2083 = vadd.f32 0.0, %v2082
      %2084 = vmatmul.bf16.gmra.mxu0 %v2018
      %v2085 = vpop.f32.mrf.mxu0
      %v2086 = vadd.f32 0.0, %v2085
      %v2087 = vpop.f32.mrf.mxu0
      %v2088 = vadd.f32 0.0, %v2087
      %2089 = vmatmul.bf16.gmra.mxu0 %v2021
      %v2090 = vpop.f32.mrf.mxu0
      %v2091 = vadd.f32 0.0, %v2090
      %v2092 = vpop.f32.mrf.mxu0
      %v2093 = vadd.f32 0.0, %v2092
      %2094 = vmatmul.bf16.gmra.mxu0 %v2024
      %v2095 = vpop.f32.mrf.mxu0
      %v2096 = vadd.f32 0.0, %v2095
      %v2097 = vpop.f32.mrf.mxu0
      %v2098 = vadd.f32 0.0, %v2097
      %2099 = vmatmul.bf16.gmra.mxu0 %v2027
      %v2100 = vpop.f32.mrf.mxu0
      %v2101 = vadd.f32 0.0, %v2100
      %v2102 = vpop.f32.mrf.mxu0
      %v2103 = vadd.f32 0.0, %v2102
      %2104 = vmatmul.bf16.gmra.mxu0 %v2030
      %v2105 = vpop.f32.mrf.mxu0
      %v2106 = vadd.f32 0.0, %v2105
      %v2107 = vpop.f32.mrf.mxu0
      %v2108 = vadd.f32 0.0, %v2107
      %2109 = vmatmul.bf16.gmra.mxu0 %v2033
      %v2110 = vpop.f32.mrf.mxu0
      %v2111 = vadd.f32 0.0, %v2110
      %v2112 = vpop.f32.mrf.mxu0
      %v2113 = vadd.f32 0.0, %v2112
      %2114 = vmatmul.bf16.gmra.mxu0 %v2036
      %v2115 = vpop.f32.mrf.mxu0
      %v2116 = vadd.f32 0.0, %v2115
      %v2117 = vpop.f32.mrf.mxu0
      %v2118 = vadd.f32 0.0, %v2117
      %2119 = vmatmul.bf16.gmra.mxu0 %v2039
      %v2120 = vpop.f32.mrf.mxu0
      %v2121 = vadd.f32 0.0, %v2120
      %v2122 = vpop.f32.mrf.mxu0
      %v2123 = vadd.f32 0.0, %v2122
      %2124 = vmatmul.bf16.gmra.mxu0 %v2042
      %v2125 = vpop.f32.mrf.mxu0
      %v2126 = vadd.f32 0.0, %v2125
      %v2127 = vpop.f32.mrf.mxu0
      %v2128 = vadd.f32 0.0, %v2127
      %2129 = vmatmul.bf16.gmra.mxu0 %v2045
      %v2130 = vpop.f32.mrf.mxu0
      %v2131 = vadd.f32 0.0, %v2130
      %v2132 = vpop.f32.mrf.mxu0
      %v2133 = vadd.f32 0.0, %v2132
      %2134 = vmatmul.bf16.gmra.mxu0 %v2048
      %v2135 = vpop.f32.mrf.mxu0
      %v2136 = vadd.f32 0.0, %v2135
      %v2137 = vpop.f32.mrf.mxu0
      %v2138 = vadd.f32 0.0, %v2137
      %2139 = vmatmul.bf16.gmra.mxu0 %v2051
      %v2140 = vpop.f32.mrf.mxu0
      %v2141 = vadd.f32 0.0, %v2140
      %v2142 = vpop.f32.mrf.mxu0
      %v2143 = vadd.f32 0.0, %v2142
      %2144 = vdwg.mxu0
      %v2145 = vadd.f32 %v1538, %v2066
      %v2146 = vadd.f32 %v1539, %v2068
      %v2147 = vadd.f32 %v1540, %v2071
      %v2148 = vadd.f32 %v1541, %v2073
      %v2149 = vadd.f32 %v1542, %v2076
      %v2150 = vadd.f32 %v1543, %v2078
      %v2151 = vadd.f32 %v1544, %v2081
      %v2152 = vadd.f32 %v1545, %v2083
      %v2153 = vadd.f32 %v1546, %v2086
      %v2154 = vadd.f32 %v1547, %v2088
      %v2155 = vadd.f32 %v1548, %v2091
      %v2156 = vadd.f32 %v1549, %v2093
      %v2157 = vadd.f32 %v1550, %v2096
      %v2158 = vadd.f32 %v1551, %v2098
      %v2159 = vadd.f32 %v1552, %v2101
      %v2160 = vadd.f32 %v1553, %v2103
      %v2161 = vadd.f32 %v1554, %v2106
      %v2162 = vadd.f32 %v1555, %v2108
      %v2163 = vadd.f32 %v1556, %v2111
      %v2164 = vadd.f32 %v1557, %v2113
      %v2165 = vadd.f32 %v1558, %v2116
      %v2166 = vadd.f32 %v1559, %v2118
      %v2167 = vadd.f32 %v1560, %v2121
      %v2168 = vadd.f32 %v1561, %v2123
      %v2169 = vadd.f32 %v1562, %v2126
      %v2170 = vadd.f32 %v1563, %v2128
      %v2171 = vadd.f32 %v1564, %v2131
      %v2172 = vadd.f32 %v1565, %v2133
      %v2173 = vadd.f32 %v1566, %v2136
      %v2174 = vadd.f32 %v1567, %v2138
      %v2175 = vadd.f32 %v1568, %v2141
      %v2176 = vadd.f32 %v1569, %v2143
      %2177 = vst.msk [vmem:[#allocation3] sm:$0xff] %vm172, %v2145
      %2178 = vst.msk [vmem:[#allocation3 + $0x8] sm:$0xff] %vm172, %v2146
      %2179 = vst.msk [vmem:[#allocation3 + $0x10] sm:$0xff] %vm172, %v2147
      %2180 = vst.msk [vmem:[#allocation3 + $0x18] sm:$0xff] %vm172, %v2148
      %2181 = vst.msk [vmem:[#allocation3 + $0x20] sm:$0xff] %vm172, %v2149
      %2182 = vst.msk [vmem:[#allocation3 + $0x28] sm:$0xff] %vm172, %v2150
      %2183 = vst.msk [vmem:[#allocation3 + $0x30] sm:$0xff] %vm172, %v2151
      %2184 = vst.msk [vmem:[#allocation3 + $0x38] sm:$0xff] %vm172, %v2152
      %2185 = vst.msk [vmem:[#allocation3 + $0x40] sm:$0xff] %vm172, %v2153
      %2186 = vst.msk [vmem:[#allocation3 + $0x48] sm:$0xff] %vm172, %v2154
      %2187 = vst.msk [vmem:[#allocation3 + $0x50] sm:$0xff] %vm172, %v2155
      %2188 = vst.msk [vmem:[#allocation3 + $0x58] sm:$0xff] %vm172, %v2156
      %2189 = vst.msk [vmem:[#allocation3 + $0x60] sm:$0xff] %vm172, %v2157
      %2190 = vst.msk [vmem:[#allocation3 + $0x68] sm:$0xff] %vm172, %v2158
      %2191 = vst.msk [vmem:[#allocation3 + $0x70] sm:$0xff] %vm172, %v2159
      %2192 = vst.msk [vmem:[#allocation3 + $0x78] sm:$0xff] %vm172, %v2160
      %2193 = vst.msk [vmem:[#allocation3 + $0x80] sm:$0xff] %vm172, %v2161
      %2194 = vst.msk [vmem:[#allocation3 + $0x88] sm:$0xff] %vm172, %v2162
      %2195 = vst.msk [vmem:[#allocation3 + $0x90] sm:$0xff] %vm172, %v2163
      %2196 = vst.msk [vmem:[#allocation3 + $0x98] sm:$0xff] %vm172, %v2164
      %2197 = vst.msk [vmem:[#allocation3 + $0xa0] sm:$0xff] %vm172, %v2165
      %2198 = vst.msk [vmem:[#allocation3 + $0xa8] sm:$0xff] %vm172, %v2166
      %2199 = vst.msk [vmem:[#allocation3 + $0xb0] sm:$0xff] %vm172, %v2167
      %2200 = vst.msk [vmem:[#allocation3 + $0xb8] sm:$0xff] %vm172, %v2168
      %2201 = vst.msk [vmem:[#allocation3 + $0xc0] sm:$0xff] %vm172, %v2169
      %2202 = vst.msk [vmem:[#allocation3 + $0xc8] sm:$0xff] %vm172, %v2170
      %2203 = vst.msk [vmem:[#allocation3 + $0xd0] sm:$0xff] %vm172, %v2171
      %2204 = vst.msk [vmem:[#allocation3 + $0xd8] sm:$0xff] %vm172, %v2172
      %2205 = vst.msk [vmem:[#allocation3 + $0xe0] sm:$0xff] %vm172, %v2173
      %2206 = vst.msk [vmem:[#allocation3 + $0xe8] sm:$0xff] %vm172, %v2174
      %2207 = vst.msk [vmem:[#allocation3 + $0xf0] sm:$0xff] %vm172, %v2175
      %2208 = vst.msk [vmem:[#allocation3 + $0xf8] sm:$0xff] %vm172, %v2176
      %v2209 = vld [vmem:[#allocation3] sm:$0xff]
      %v2210 = vld [vmem:[#allocation3 + $0x8] sm:$0xff]
      %v2211 = vld [vmem:[#allocation3 + $0x10] sm:$0xff]
      %v2212 = vld [vmem:[#allocation3 + $0x18] sm:$0xff]
      %v2213 = vld [vmem:[#allocation3 + $0x20] sm:$0xff]
      %v2214 = vld [vmem:[#allocation3 + $0x28] sm:$0xff]
      %v2215 = vld [vmem:[#allocation3 + $0x30] sm:$0xff]
      %v2216 = vld [vmem:[#allocation3 + $0x38] sm:$0xff]
      %v2217 = vld [vmem:[#allocation3 + $0x40] sm:$0xff]
      %v2218 = vld [vmem:[#allocation3 + $0x48] sm:$0xff]
      %v2219 = vld [vmem:[#allocation3 + $0x50] sm:$0xff]
      %v2220 = vld [vmem:[#allocation3 + $0x58] sm:$0xff]
      %v2221 = vld [vmem:[#allocation3 + $0x60] sm:$0xff]
      %v2222 = vld [vmem:[#allocation3 + $0x68] sm:$0xff]
      %v2223 = vld [vmem:[#allocation3 + $0x70] sm:$0xff]
      %v2224 = vld [vmem:[#allocation3 + $0x78] sm:$0xff]
      %v2225 = vld [vmem:[#allocation3 + $0x80] sm:$0xff]
      %v2226 = vld [vmem:[#allocation3 + $0x88] sm:$0xff]
      %v2227 = vld [vmem:[#allocation3 + $0x90] sm:$0xff]
      %v2228 = vld [vmem:[#allocation3 + $0x98] sm:$0xff]
      %v2229 = vld [vmem:[#allocation3 + $0xa0] sm:$0xff]
      %v2230 = vld [vmem:[#allocation3 + $0xa8] sm:$0xff]
      %v2231 = vld [vmem:[#allocation3 + $0xb0] sm:$0xff]
      %v2232 = vld [vmem:[#allocation3 + $0xb8] sm:$0xff]
      %v2233 = vld [vmem:[#allocation3 + $0xc0] sm:$0xff]
      %v2234 = vld [vmem:[#allocation3 + $0xc8] sm:$0xff]
      %v2235 = vld [vmem:[#allocation3 + $0xd0] sm:$0xff]
      %v2236 = vld [vmem:[#allocation3 + $0xd8] sm:$0xff]
      %v2237 = vld [vmem:[#allocation3 + $0xe0] sm:$0xff]
      %v2238 = vld [vmem:[#allocation3 + $0xe8] sm:$0xff]
      %v2239 = vld [vmem:[#allocation3 + $0xf0] sm:$0xff]
      %v2240 = vld [vmem:[#allocation3 + $0xf8] sm:$0xff]
      %v2242 = vshrl.u32 %v814, 16
      %v2244 = vrot.slane %v2242, 4
      %v2245 = vshll.u32 %v814, 16
      %v2247 = vrot.slane %v2245, 5
      %v2248 = vor.u32 %v2244, %v2247
      %v2249 = vrot.slane %v2248, 4
      %v2251 = vshll.u32 %v815, 16
      %v2253 = vrot.slane %v2251, 5
      %v2254 = vsel %vm1572, %v2249, %v2253
      %v2255 = vshrl.u32 %v815, 16
      %v2257 = vrot.slane %v2255, 4
      %v2258 = vor.u32 %v2257, %v2253
      %v2259 = vrot.slane %v2258, 4
      %v2261 = vshll.u32 %v816, 16
      %v2263 = vrot.slane %v2261, 5
      %v2264 = vsel %vm1572, %v2259, %v2263
      %v2265 = vunpack.c.l.b16 %v2254
      %v2266 = vunpack.c.l.b16 %v2264
      %v2267 = vpack.c.b16 %v2266, %v2265
      %v2269 = vsel %vm172, %v2267, 0
      %v2272 = vsel %vm989, %v824, 0
      %2274 = vmatpush.bf16.msra.mxu0 0
      %2275 = vmatpush.bf16.msra.mxu0 0
      %2276 = vmatpush.bf16.msra.mxu0 0
      %2277 = vmatpush.bf16.msra.mxu0 0
      %2278 = vmatpush.bf16.msra.mxu0 0
      %2279 = vmatpush.bf16.msra.mxu0 0
      %2280 = vmatpush.bf16.msra.mxu0 0
      %2281 = vmatpush.bf16.msra.mxu0 %v2272
      %2282 = vmatmul.bf16.gmra.mxu0 %v2009
      %v2283 = vpop.f32.mrf.mxu0
      %v2284 = vadd.f32 0.0, %v2283
      %v2285 = vpop.f32.mrf.mxu0
      %v2286 = vadd.f32 0.0, %v2285
      %2287 = vmatmul.bf16.gmra.mxu0 %v2012
      %v2288 = vpop.f32.mrf.mxu0
      %v2289 = vadd.f32 0.0, %v2288
      %v2290 = vpop.f32.mrf.mxu0
      %v2291 = vadd.f32 0.0, %v2290
      %2292 = vmatmul.bf16.gmra.mxu0 %v2015
      %v2293 = vpop.f32.mrf.mxu0
      %v2294 = vadd.f32 0.0, %v2293
      %v2295 = vpop.f32.mrf.mxu0
      %v2296 = vadd.f32 0.0, %v2295
      %2297 = vmatmul.bf16.gmra.mxu0 %v2018
      %v2298 = vpop.f32.mrf.mxu0
      %v2299 = vadd.f32 0.0, %v2298
      %v2300 = vpop.f32.mrf.mxu0
      %v2301 = vadd.f32 0.0, %v2300
      %2302 = vmatmul.bf16.gmra.mxu0 %v2021
      %v2303 = vpop.f32.mrf.mxu0
      %v2304 = vadd.f32 0.0, %v2303
      %v2305 = vpop.f32.mrf.mxu0
      %v2306 = vadd.f32 0.0, %v2305
      %2307 = vmatmul.bf16.gmra.mxu0 %v2024
      %v2308 = vpop.f32.mrf.mxu0
      %v2309 = vadd.f32 0.0, %v2308
      %v2310 = vpop.f32.mrf.mxu0
      %v2311 = vadd.f32 0.0, %v2310
      %2312 = vmatmul.bf16.gmra.mxu0 %v2027
      %v2313 = vpop.f32.mrf.mxu0
      %v2314 = vadd.f32 0.0, %v2313
      %v2315 = vpop.f32.mrf.mxu0
      %v2316 = vadd.f32 0.0, %v2315
      %2317 = vmatmul.bf16.gmra.mxu0 %v2030
      %v2318 = vpop.f32.mrf.mxu0
      %v2319 = vadd.f32 0.0, %v2318
      %v2320 = vpop.f32.mrf.mxu0
      %v2321 = vadd.f32 0.0, %v2320
      %2322 = vmatmul.bf16.gmra.mxu0 %v2033
      %v2323 = vpop.f32.mrf.mxu0
      %v2324 = vadd.f32 0.0, %v2323
      %v2325 = vpop.f32.mrf.mxu0
      %v2326 = vadd.f32 0.0, %v2325
      %2327 = vmatmul.bf16.gmra.mxu0 %v2036
      %v2328 = vpop.f32.mrf.mxu0
      %v2329 = vadd.f32 0.0, %v2328
      %v2330 = vpop.f32.mrf.mxu0
      %v2331 = vadd.f32 0.0, %v2330
      %2332 = vmatmul.bf16.gmra.mxu0 %v2039
      %v2333 = vpop.f32.mrf.mxu0
      %v2334 = vadd.f32 0.0, %v2333
      %v2335 = vpop.f32.mrf.mxu0
      %v2336 = vadd.f32 0.0, %v2335
      %2337 = vmatmul.bf16.gmra.mxu0 %v2042
      %v2338 = vpop.f32.mrf.mxu0
      %v2339 = vadd.f32 0.0, %v2338
      %v2340 = vpop.f32.mrf.mxu0
      %v2341 = vadd.f32 0.0, %v2340
      %2342 = vmatmul.bf16.gmra.mxu0 %v2045
      %v2343 = vpop.f32.mrf.mxu0
      %v2344 = vadd.f32 0.0, %v2343
      %v2345 = vpop.f32.mrf.mxu0
      %v2346 = vadd.f32 0.0, %v2345
      %2347 = vmatmul.bf16.gmra.mxu0 %v2048
      %v2348 = vpop.f32.mrf.mxu0
      %v2349 = vadd.f32 0.0, %v2348
      %v2350 = vpop.f32.mrf.mxu0
      %v2351 = vadd.f32 0.0, %v2350
      %2352 = vmatmul.bf16.gmra.mxu0 %v2051
      %v2353 = vpop.f32.mrf.mxu0
      %v2354 = vadd.f32 0.0, %v2353
      %v2355 = vpop.f32.mrf.mxu0
      %v2356 = vadd.f32 0.0, %v2355
      %2357 = vmatmul.bf16.gmra.mxu0 %v2269
      %v2358 = vpop.f32.mrf.mxu0
      %v2359 = vadd.f32 0.0, %v2358
      %v2360 = vpop.f32.mrf.mxu0
      %v2361 = vadd.f32 0.0, %v2360
      %2362 = vdwg.mxu0
      %v2363 = vadd.f32 %v2209, %v2284
      %v2364 = vadd.f32 %v2210, %v2286
      %v2365 = vadd.f32 %v2211, %v2289
      %v2366 = vadd.f32 %v2212, %v2291
      %v2367 = vadd.f32 %v2213, %v2294
      %v2368 = vadd.f32 %v2214, %v2296
      %v2369 = vadd.f32 %v2215, %v2299
      %v2370 = vadd.f32 %v2216, %v2301
      %v2371 = vadd.f32 %v2217, %v2304
      %v2372 = vadd.f32 %v2218, %v2306
      %v2373 = vadd.f32 %v2219, %v2309
      %v2374 = vadd.f32 %v2220, %v2311
      %v2375 = vadd.f32 %v2221, %v2314
      %v2376 = vadd.f32 %v2222, %v2316
      %v2377 = vadd.f32 %v2223, %v2319
      %v2378 = vadd.f32 %v2224, %v2321
      %v2379 = vadd.f32 %v2225, %v2324
      %v2380 = vadd.f32 %v2226, %v2326
      %v2381 = vadd.f32 %v2227, %v2329
      %v2382 = vadd.f32 %v2228, %v2331
      %v2383 = vadd.f32 %v2229, %v2334
      %v2384 = vadd.f32 %v2230, %v2336
      %v2385 = vadd.f32 %v2231, %v2339
      %v2386 = vadd.f32 %v2232, %v2341
      %v2387 = vadd.f32 %v2233, %v2344
      %v2388 = vadd.f32 %v2234, %v2346
      %v2389 = vadd.f32 %v2235, %v2349
      %v2390 = vadd.f32 %v2236, %v2351
      %v2391 = vadd.f32 %v2237, %v2354
      %v2392 = vadd.f32 %v2238, %v2356
      %v2393 = vadd.f32 %v2239, %v2359
      %v2394 = vadd.f32 %v2240, %v2361
      %2395 = vst.msk [vmem:[#allocation3] sm:$0xff] %vm172, %v2363
      %2396 = vst.msk [vmem:[#allocation3 + $0x8] sm:$0xff] %vm172, %v2364
      %2397 = vst.msk [vmem:[#allocation3 + $0x10] sm:$0xff] %vm172, %v2365
      %2398 = vst.msk [vmem:[#allocation3 + $0x18] sm:$0xff] %vm172, %v2366
      %2399 = vst.msk [vmem:[#allocation3 + $0x20] sm:$0xff] %vm172, %v2367
      %2400 = vst.msk [vmem:[#allocation3 + $0x28] sm:$0xff] %vm172, %v2368
      %2401 = vst.msk [vmem:[#allocation3 + $0x30] sm:$0xff] %vm172, %v2369
      %2402 = vst.msk [vmem:[#allocation3 + $0x38] sm:$0xff] %vm172, %v2370
      %2403 = vst.msk [vmem:[#allocation3 + $0x40] sm:$0xff] %vm172, %v2371
      %2404 = vst.msk [vmem:[#allocation3 + $0x48] sm:$0xff] %vm172, %v2372
      %2405 = vst.msk [vmem:[#allocation3 + $0x50] sm:$0xff] %vm172, %v2373
      %2406 = vst.msk [vmem:[#allocation3 + $0x58] sm:$0xff] %vm172, %v2374
      %2407 = vst.msk [vmem:[#allocation3 + $0x60] sm:$0xff] %vm172, %v2375
      %2408 = vst.msk [vmem:[#allocation3 + $0x68] sm:$0xff] %vm172, %v2376
      %2409 = vst.msk [vmem:[#allocation3 + $0x70] sm:$0xff] %vm172, %v2377
      %2410 = vst.msk [vmem:[#allocation3 + $0x78] sm:$0xff] %vm172, %v2378
      %2411 = vst.msk [vmem:[#allocation3 + $0x80] sm:$0xff] %vm172, %v2379
      %2412 = vst.msk [vmem:[#allocation3 + $0x88] sm:$0xff] %vm172, %v2380
      %2413 = vst.msk [vmem:[#allocation3 + $0x90] sm:$0xff] %vm172, %v2381
      %2414 = vst.msk [vmem:[#allocation3 + $0x98] sm:$0xff] %vm172, %v2382
      %2415 = vst.msk [vmem:[#allocation3 + $0xa0] sm:$0xff] %vm172, %v2383
      %2416 = vst.msk [vmem:[#allocation3 + $0xa8] sm:$0xff] %vm172, %v2384
      %2417 = vst.msk [vmem:[#allocation3 + $0xb0] sm:$0xff] %vm172, %v2385
      %2418 = vst.msk [vmem:[#allocation3 + $0xb8] sm:$0xff] %vm172, %v2386
      %2419 = vst.msk [vmem:[#allocation3 + $0xc0] sm:$0xff] %vm172, %v2387
      %2420 = vst.msk [vmem:[#allocation3 + $0xc8] sm:$0xff] %vm172, %v2388
      %2421 = vst.msk [vmem:[#allocation3 + $0xd0] sm:$0xff] %vm172, %v2389
      %2422 = vst.msk [vmem:[#allocation3 + $0xd8] sm:$0xff] %vm172, %v2390
      %2423 = vst.msk [vmem:[#allocation3 + $0xe0] sm:$0xff] %vm172, %v2391
      %2424 = vst.msk [vmem:[#allocation3 + $0xe8] sm:$0xff] %vm172, %v2392
      %2425 = vst.msk [vmem:[#allocation3 + $0xf0] sm:$0xff] %vm172, %v2393
      %2426 = vst.msk [vmem:[#allocation3 + $0xf8] sm:$0xff] %vm172, %v2394
      %v2427 = vld [vmem:[#allocation3] sm:$0xff]
      %v2428 = vld [vmem:[#allocation3 + $0x8] sm:$0xff]
      %v2429 = vld [vmem:[#allocation3 + $0x10] sm:$0xff]
      %v2430 = vld [vmem:[#allocation3 + $0x18] sm:$0xff]
      %v2431 = vld [vmem:[#allocation3 + $0x20] sm:$0xff]
      %v2432 = vld [vmem:[#allocation3 + $0x28] sm:$0xff]
      %v2433 = vld [vmem:[#allocation3 + $0x30] sm:$0xff]
      %v2434 = vld [vmem:[#allocation3 + $0x38] sm:$0xff]
      %v2435 = vld [vmem:[#allocation3 + $0x40] sm:$0xff]
      %v2436 = vld [vmem:[#allocation3 + $0x48] sm:$0xff]
      %v2437 = vld [vmem:[#allocation3 + $0x50] sm:$0xff]
      %v2438 = vld [vmem:[#allocation3 + $0x58] sm:$0xff]
      %v2439 = vld [vmem:[#allocation3 + $0x60] sm:$0xff]
      %v2440 = vld [vmem:[#allocation3 + $0x68] sm:$0xff]
      %v2441 = vld [vmem:[#allocation3 + $0x70] sm:$0xff]
      %v2442 = vld [vmem:[#allocation3 + $0x78] sm:$0xff]
      %v2443 = vld [vmem:[#allocation3 + $0x80] sm:$0xff]
      %v2444 = vld [vmem:[#allocation3 + $0x88] sm:$0xff]
      %v2445 = vld [vmem:[#allocation3 + $0x90] sm:$0xff]
      %v2446 = vld [vmem:[#allocation3 + $0x98] sm:$0xff]
      %v2447 = vld [vmem:[#allocation3 + $0xa0] sm:$0xff]
      %v2448 = vld [vmem:[#allocation3 + $0xa8] sm:$0xff]
      %v2449 = vld [vmem:[#allocation3 + $0xb0] sm:$0xff]
      %v2450 = vld [vmem:[#allocation3 + $0xb8] sm:$0xff]
      %v2451 = vld [vmem:[#allocation3 + $0xc0] sm:$0xff]
      %v2452 = vld [vmem:[#allocation3 + $0xc8] sm:$0xff]
      %v2453 = vld [vmem:[#allocation3 + $0xd0] sm:$0xff]
      %v2454 = vld [vmem:[#allocation3 + $0xd8] sm:$0xff]
      %v2455 = vld [vmem:[#allocation3 + $0xe0] sm:$0xff]
      %v2456 = vld [vmem:[#allocation3 + $0xe8] sm:$0xff]
      %v2457 = vld [vmem:[#allocation3 + $0xf0] sm:$0xff]
      %v2458 = vld [vmem:[#allocation3 + $0xf8] sm:$0xff]
      %v2460 = vshrl.u32 %v817, 16
      %v2462 = vrot.slane %v2460, 4
      %v2463 = vshll.u32 %v817, 16
      %v2465 = vrot.slane %v2463, 5
      %v2466 = vor.u32 %v2462, %v2465
      %v2467 = vrot.slane %v2466, 4
      %v2469 = vshll.u32 %v818, 16
      %v2471 = vrot.slane %v2469, 5
      %v2472 = vsel %vm1572, %v2467, %v2471
      %v2473 = vshrl.u32 %v818, 16
      %v2475 = vrot.slane %v2473, 4
      %v2476 = vor.u32 %v2475, %v2471
      %v2477 = vrot.slane %v2476, 4
      %v2479 = vshll.u32 %v819, 16
      %v2481 = vrot.slane %v2479, 5
      %v2482 = vsel %vm1572, %v2477, %v2481
      %v2483 = vunpack.c.l.b16 %v2472
      %v2484 = vunpack.c.l.b16 %v2482
      %v2485 = vpack.c.b16 %v2484, %v2483
      %v2487 = vsel %vm172, %v2485, 0
      %v2490 = vsel %vm989, %v827, 0
      %2492 = vmatpush.bf16.msra.mxu0 0
      %2493 = vmatpush.bf16.msra.mxu0 0
      %2494 = vmatpush.bf16.msra.mxu0 0
      %2495 = vmatpush.bf16.msra.mxu0 0
      %2496 = vmatpush.bf16.msra.mxu0 0
      %2497 = vmatpush.bf16.msra.mxu0 0
      %2498 = vmatpush.bf16.msra.mxu0 0
      %2499 = vmatpush.bf16.msra.mxu0 %v2490
      %2500 = vmatmul.bf16.gmra.mxu0 %v2012
      %v2501 = vpop.f32.mrf.mxu0
      %v2502 = vadd.f32 0.0, %v2501
      %v2503 = vpop.f32.mrf.mxu0
      %v2504 = vadd.f32 0.0, %v2503
      %2505 = vmatmul.bf16.gmra.mxu0 %v2015
      %v2506 = vpop.f32.mrf.mxu0
      %v2507 = vadd.f32 0.0, %v2506
      %v2508 = vpop.f32.mrf.mxu0
      %v2509 = vadd.f32 0.0, %v2508
      %2510 = vmatmul.bf16.gmra.mxu0 %v2018
      %v2511 = vpop.f32.mrf.mxu0
      %v2512 = vadd.f32 0.0, %v2511
      %v2513 = vpop.f32.mrf.mxu0
      %v2514 = vadd.f32 0.0, %v2513
      %2515 = vmatmul.bf16.gmra.mxu0 %v2021
      %v2516 = vpop.f32.mrf.mxu0
      %v2517 = vadd.f32 0.0, %v2516
      %v2518 = vpop.f32.mrf.mxu0
      %v2519 = vadd.f32 0.0, %v2518
      %2520 = vmatmul.bf16.gmra.mxu0 %v2024
      %v2521 = vpop.f32.mrf.mxu0
      %v2522 = vadd.f32 0.0, %v2521
      %v2523 = vpop.f32.mrf.mxu0
      %v2524 = vadd.f32 0.0, %v2523
      %2525 = vmatmul.bf16.gmra.mxu0 %v2027
      %v2526 = vpop.f32.mrf.mxu0
      %v2527 = vadd.f32 0.0, %v2526
      %v2528 = vpop.f32.mrf.mxu0
      %v2529 = vadd.f32 0.0, %v2528
      %2530 = vmatmul.bf16.gmra.mxu0 %v2030
      %v2531 = vpop.f32.mrf.mxu0
      %v2532 = vadd.f32 0.0, %v2531
      %v2533 = vpop.f32.mrf.mxu0
      %v2534 = vadd.f32 0.0, %v2533
      %2535 = vmatmul.bf16.gmra.mxu0 %v2033
      %v2536 = vpop.f32.mrf.mxu0
      %v2537 = vadd.f32 0.0, %v2536
      %v2538 = vpop.f32.mrf.mxu0
      %v2539 = vadd.f32 0.0, %v2538
      %2540 = vmatmul.bf16.gmra.mxu0 %v2036
      %v2541 = vpop.f32.mrf.mxu0
      %v2542 = vadd.f32 0.0, %v2541
      %v2543 = vpop.f32.mrf.mxu0
      %v2544 = vadd.f32 0.0, %v2543
      %2545 = vmatmul.bf16.gmra.mxu0 %v2039
      %v2546 = vpop.f32.mrf.mxu0
      %v2547 = vadd.f32 0.0, %v2546
      %v2548 = vpop.f32.mrf.mxu0
      %v2549 = vadd.f32 0.0, %v2548
      %2550 = vmatmul.bf16.gmra.mxu0 %v2042
      %v2551 = vpop.f32.mrf.mxu0
      %v2552 = vadd.f32 0.0, %v2551
      %v2553 = vpop.f32.mrf.mxu0
      %v2554 = vadd.f32 0.0, %v2553
      %2555 = vmatmul.bf16.gmra.mxu0 %v2045
      %v2556 = vpop.f32.mrf.mxu0
      %v2557 = vadd.f32 0.0, %v2556
      %v2558 = vpop.f32.mrf.mxu0
      %v2559 = vadd.f32 0.0, %v2558
      %2560 = vmatmul.bf16.gmra.mxu0 %v2048
      %v2561 = vpop.f32.mrf.mxu0
      %v2562 = vadd.f32 0.0, %v2561
      %v2563 = vpop.f32.mrf.mxu0
      %v2564 = vadd.f32 0.0, %v2563
      %2565 = vmatmul.bf16.gmra.mxu0 %v2051
      %v2566 = vpop.f32.mrf.mxu0
      %v2567 = vadd.f32 0.0, %v2566
      %v2568 = vpop.f32.mrf.mxu0
      %v2569 = vadd.f32 0.0, %v2568
      %2570 = vmatmul.bf16.gmra.mxu0 %v2269
      %v2571 = vpop.f32.mrf.mxu0
      %v2572 = vadd.f32 0.0, %v2571
      %v2573 = vpop.f32.mrf.mxu0
      %v2574 = vadd.f32 0.0, %v2573
      %2575 = vmatmul.bf16.gmra.mxu0 %v2487
      %v2576 = vpop.f32.mrf.mxu0
      %v2577 = vadd.f32 0.0, %v2576
      %v2578 = vpop.f32.mrf.mxu0
      %v2579 = vadd.f32 0.0, %v2578
      %2580 = vdwg.mxu0
      %v2581 = vadd.f32 %v2427, %v2502
      %v2582 = vadd.f32 %v2428, %v2504
      %v2583 = vadd.f32 %v2429, %v2507
      %v2584 = vadd.f32 %v2430, %v2509
      %v2585 = vadd.f32 %v2431, %v2512
      %v2586 = vadd.f32 %v2432, %v2514
      %v2587 = vadd.f32 %v2433, %v2517
      %v2588 = vadd.f32 %v2434, %v2519
      %v2589 = vadd.f32 %v2435, %v2522
      %v2590 = vadd.f32 %v2436, %v2524
      %v2591 = vadd.f32 %v2437, %v2527
      %v2592 = vadd.f32 %v2438, %v2529
      %v2593 = vadd.f32 %v2439, %v2532
      %v2594 = vadd.f32 %v2440, %v2534
      %v2595 = vadd.f32 %v2441, %v2537
      %v2596 = vadd.f32 %v2442, %v2539
      %v2597 = vadd.f32 %v2443, %v2542
      %v2598 = vadd.f32 %v2444, %v2544
      %v2599 = vadd.f32 %v2445, %v2547
      %v2600 = vadd.f32 %v2446, %v2549
      %v2601 = vadd.f32 %v2447, %v2552
      %v2602 = vadd.f32 %v2448, %v2554
      %v2603 = vadd.f32 %v2449, %v2557
      %v2604 = vadd.f32 %v2450, %v2559
      %v2605 = vadd.f32 %v2451, %v2562
      %v2606 = vadd.f32 %v2452, %v2564
      %v2607 = vadd.f32 %v2453, %v2567
      %v2608 = vadd.f32 %v2454, %v2569
      %v2609 = vadd.f32 %v2455, %v2572
      %v2610 = vadd.f32 %v2456, %v2574
      %v2611 = vadd.f32 %v2457, %v2577
      %v2612 = vadd.f32 %v2458, %v2579
      %2613 = vst.msk [vmem:[#allocation3] sm:$0xff] %vm172, %v2581
      %2614 = vst.msk [vmem:[#allocation3 + $0x8] sm:$0xff] %vm172, %v2582
      %2615 = vst.msk [vmem:[#allocation3 + $0x10] sm:$0xff] %vm172, %v2583
      %2616 = vst.msk [vmem:[#allocation3 + $0x18] sm:$0xff] %vm172, %v2584
      %2617 = vst.msk [vmem:[#allocation3 + $0x20] sm:$0xff] %vm172, %v2585
      %2618 = vst.msk [vmem:[#allocation3 + $0x28] sm:$0xff] %vm172, %v2586
      %2619 = vst.msk [vmem:[#allocation3 + $0x30] sm:$0xff] %vm172, %v2587
      %2620 = vst.msk [vmem:[#allocation3 + $0x38] sm:$0xff] %vm172, %v2588
      %2621 = vst.msk [vmem:[#allocation3 + $0x40] sm:$0xff] %vm172, %v2589
      %2622 = vst.msk [vmem:[#allocation3 + $0x48] sm:$0xff] %vm172, %v2590
      %2623 = vst.msk [vmem:[#allocation3 + $0x50] sm:$0xff] %vm172, %v2591
      %2624 = vst.msk [vmem:[#allocation3 + $0x58] sm:$0xff] %vm172, %v2592
      %2625 = vst.msk [vmem:[#allocation3 + $0x60] sm:$0xff] %vm172, %v2593
      %2626 = vst.msk [vmem:[#allocation3 + $0x68] sm:$0xff] %vm172, %v2594
      %2627 = vst.msk [vmem:[#allocation3 + $0x70] sm:$0xff] %vm172, %v2595
      %2628 = vst.msk [vmem:[#allocation3 + $0x78] sm:$0xff] %vm172, %v2596
      %2629 = vst.msk [vmem:[#allocation3 + $0x80] sm:$0xff] %vm172, %v2597
      %2630 = vst.msk [vmem:[#allocation3 + $0x88] sm:$0xff] %vm172, %v2598
      %2631 = vst.msk [vmem:[#allocation3 + $0x90] sm:$0xff] %vm172, %v2599
      %2632 = vst.msk [vmem:[#allocation3 + $0x98] sm:$0xff] %vm172, %v2600
      %2633 = vst.msk [vmem:[#allocation3 + $0xa0] sm:$0xff] %vm172, %v2601
      %2634 = vst.msk [vmem:[#allocation3 + $0xa8] sm:$0xff] %vm172, %v2602
      %2635 = vst.msk [vmem:[#allocation3 + $0xb0] sm:$0xff] %vm172, %v2603
      %2636 = vst.msk [vmem:[#allocation3 + $0xb8] sm:$0xff] %vm172, %v2604
      %2637 = vst.msk [vmem:[#allocation3 + $0xc0] sm:$0xff] %vm172, %v2605
      %2638 = vst.msk [vmem:[#allocation3 + $0xc8] sm:$0xff] %vm172, %v2606
      %2639 = vst.msk [vmem:[#allocation3 + $0xd0] sm:$0xff] %vm172, %v2607
      %2640 = vst.msk [vmem:[#allocation3 + $0xd8] sm:$0xff] %vm172, %v2608
      %2641 = vst.msk [vmem:[#allocation3 + $0xe0] sm:$0xff] %vm172, %v2609
      %2642 = vst.msk [vmem:[#allocation3 + $0xe8] sm:$0xff] %vm172, %v2610
      %2643 = vst.msk [vmem:[#allocation3 + $0xf0] sm:$0xff] %vm172, %v2611
      %2644 = vst.msk [vmem:[#allocation3 + $0xf8] sm:$0xff] %vm172, %v2612
      %v2645 = vld [vmem:[#allocation3] sm:$0xff]
      %v2646 = vld [vmem:[#allocation3 + $0x8] sm:$0xff]
      %v2647 = vld [vmem:[#allocation3 + $0x10] sm:$0xff]
      %v2648 = vld [vmem:[#allocation3 + $0x18] sm:$0xff]
      %v2649 = vld [vmem:[#allocation3 + $0x20] sm:$0xff]
      %v2650 = vld [vmem:[#allocation3 + $0x28] sm:$0xff]
      %v2651 = vld [vmem:[#allocation3 + $0x30] sm:$0xff]
      %v2652 = vld [vmem:[#allocation3 + $0x38] sm:$0xff]
      %v2653 = vld [vmem:[#allocation3 + $0x40] sm:$0xff]
      %v2654 = vld [vmem:[#allocation3 + $0x48] sm:$0xff]
      %v2655 = vld [vmem:[#allocation3 + $0x50] sm:$0xff]
      %v2656 = vld [vmem:[#allocation3 + $0x58] sm:$0xff]
      %v2657 = vld [vmem:[#allocation3 + $0x60] sm:$0xff]
      %v2658 = vld [vmem:[#allocation3 + $0x68] sm:$0xff]
      %v2659 = vld [vmem:[#allocation3 + $0x70] sm:$0xff]
      %v2660 = vld [vmem:[#allocation3 + $0x78] sm:$0xff]
      %v2661 = vld [vmem:[#allocation3 + $0x80] sm:$0xff]
      %v2662 = vld [vmem:[#allocation3 + $0x88] sm:$0xff]
      %v2663 = vld [vmem:[#allocation3 + $0x90] sm:$0xff]
      %v2664 = vld [vmem:[#allocation3 + $0x98] sm:$0xff]
      %v2665 = vld [vmem:[#allocation3 + $0xa0] sm:$0xff]
      %v2666 = vld [vmem:[#allocation3 + $0xa8] sm:$0xff]
      %v2667 = vld [vmem:[#allocation3 + $0xb0] sm:$0xff]
      %v2668 = vld [vmem:[#allocation3 + $0xb8] sm:$0xff]
      %v2669 = vld [vmem:[#allocation3 + $0xc0] sm:$0xff]
      %v2670 = vld [vmem:[#allocation3 + $0xc8] sm:$0xff]
      %v2671 = vld [vmem:[#allocation3 + $0xd0] sm:$0xff]
      %v2672 = vld [vmem:[#allocation3 + $0xd8] sm:$0xff]
      %v2673 = vld [vmem:[#allocation3 + $0xe0] sm:$0xff]
      %v2674 = vld [vmem:[#allocation3 + $0xe8] sm:$0xff]
      %v2675 = vld [vmem:[#allocation3 + $0xf0] sm:$0xff]
      %v2676 = vld [vmem:[#allocation3 + $0xf8] sm:$0xff]
      %vm2693 = vcmask 1042432
      %vm2694 = vcmask 1046532
      %vm2695 = vmor %vm2693, %vm2694
      %v2696 = vrot.slane %v766, 5
      %v2697 = vrot.slane %v2696, 4
      %v2698 = vrot.slane %v767, 5
      %v2699 = vsel %vm2695, %v2697, %v2698
      %v2700 = vrot.slane %v2698, 4
      %v2701 = vrot.slane %v768, 5
      %v2702 = vsel %vm2695, %v2700, %v2701
      %v2703 = vrot.slane %v769, 5
      %v2704 = vrot.slane %v2703, 4
      %v2705 = vrot.slane %v770, 5
      %v2706 = vsel %vm2695, %v2704, %v2705
      %v2707 = vrot.slane %v2705, 4
      %v2708 = vrot.slane %v771, 5
      %v2709 = vsel %vm2695, %v2707, %v2708
      %v2710 = vrot.slane %v772, 5
      %v2711 = vrot.slane %v2710, 4
      %v2712 = vrot.slane %v773, 5
      %v2713 = vsel %vm2695, %v2711, %v2712
      %v2714 = vrot.slane %v2712, 4
      %v2715 = vrot.slane %v774, 5
      %v2716 = vsel %vm2695, %v2714, %v2715
      %v2717 = vrot.slane %v775, 5
      %v2718 = vrot.slane %v2717, 4
      %v2719 = vrot.slane %v776, 5
      %v2720 = vsel %vm2695, %v2718, %v2719
      %v2721 = vrot.slane %v2719, 4
      %v2722 = vrot.slane %v777, 5
      %v2723 = vsel %vm2695, %v2721, %v2722
      %v2724 = vrot.slane %v778, 5
      %v2725 = vrot.slane %v2724, 4
      %v2726 = vrot.slane %v779, 5
      %v2727 = vsel %vm2695, %v2725, %v2726
      %v2728 = vrot.slane %v2726, 4
      %v2729 = vrot.slane %v780, 5
      %v2730 = vsel %vm2695, %v2728, %v2729
      %v2731 = vrot.slane %v781, 5
      %v2732 = vrot.slane %v2731, 4
      %v2733 = vrot.slane %v782, 5
      %v2734 = vsel %vm2695, %v2732, %v2733
      %v2735 = vrot.slane %v2733, 4
      %v2736 = vrot.slane %v783, 5
      %v2737 = vsel %vm2695, %v2735, %v2736
      %v2738 = vrot.slane %v784, 5
      %v2739 = vrot.slane %v2738, 4
      %v2740 = vrot.slane %v785, 5
      %v2741 = vsel %vm2695, %v2739, %v2740
      %v2742 = vrot.slane %v2740, 4
      %v2743 = vrot.slane %v786, 5
      %v2744 = vsel %vm2695, %v2742, %v2743
      %v2745 = vrot.slane %v787, 5
      %v2746 = vrot.slane %v2745, 4
      %v2747 = vrot.slane %v788, 5
      %v2748 = vsel %vm2695, %v2746, %v2747
      %v2749 = vrot.slane %v2747, 4
      %v2750 = vrot.slane %v789, 5
      %v2751 = vsel %vm2695, %v2749, %v2750
      %v2752 = vrot.slane %v790, 5
      %v2753 = vrot.slane %v2752, 4
      %v2754 = vrot.slane %v791, 5
      %v2755 = vsel %vm2695, %v2753, %v2754
      %v2756 = vrot.slane %v2754, 4
      %v2757 = vrot.slane %v792, 5
      %v2758 = vsel %vm2695, %v2756, %v2757
      %v2759 = vrot.slane %v793, 5
      %v2760 = vrot.slane %v2759, 4
      %v2761 = vrot.slane %v794, 5
      %v2762 = vsel %vm2695, %v2760, %v2761
      %v2763 = vrot.slane %v2761, 4
      %v2764 = vrot.slane %v795, 5
      %v2765 = vsel %vm2695, %v2763, %v2764
      %v2766 = vrot.slane %v796, 5
      %v2767 = vrot.slane %v2766, 4
      %v2768 = vrot.slane %v797, 5
      %v2769 = vsel %vm2695, %v2767, %v2768
      %v2770 = vrot.slane %v2768, 4
      %v2771 = vrot.slane %v798, 5
      %v2772 = vsel %vm2695, %v2770, %v2771
      %v2773 = vrot.slane %v799, 5
      %v2774 = vrot.slane %v2773, 4
      %v2775 = vrot.slane %v800, 5
      %v2776 = vsel %vm2695, %v2774, %v2775
      %v2777 = vrot.slane %v2775, 4
      %v2778 = vrot.slane %v801, 5
      %v2779 = vsel %vm2695, %v2777, %v2778
      %v2780 = vrot.slane %v802, 5
      %v2781 = vrot.slane %v2780, 4
      %v2782 = vrot.slane %v803, 5
      %v2783 = vsel %vm2695, %v2781, %v2782
      %v2784 = vrot.slane %v2782, 4
      %v2785 = vrot.slane %v804, 5
      %v2786 = vsel %vm2695, %v2784, %v2785
      %v2787 = vrot.slane %v805, 5
      %v2788 = vrot.slane %v2787, 4
      %v2789 = vrot.slane %v806, 5
      %v2790 = vsel %vm2695, %v2788, %v2789
      %v2791 = vrot.slane %v2789, 4
      %v2792 = vrot.slane %v807, 5
      %v2793 = vsel %vm2695, %v2791, %v2792
      %v2794 = vrot.slane %v808, 5
      %v2795 = vrot.slane %v2794, 4
      %v2796 = vrot.slane %v809, 5
      %v2797 = vsel %vm2695, %v2795, %v2796
      %v2798 = vrot.slane %v2796, 4
      %v2799 = vrot.slane %v810, 5
      %v2800 = vsel %vm2695, %v2798, %v2799
      %v2801 = vrot.slane %v811, 5
      %v2802 = vrot.slane %v2801, 4
      %v2803 = vrot.slane %v812, 5
      %v2804 = vsel %vm2695, %v2802, %v2803
      %v2805 = vrot.slane %v2803, 4
      %v2806 = vrot.slane %v813, 5
      %v2807 = vsel %vm2695, %v2805, %v2806
      %v2808 = vunpack.c.l.b16 %v2699
      %v2809 = vunpack.c.l.b16 %v2702
      %v2810 = vunpack.c.l.b16 %v2706
      %v2811 = vunpack.c.l.b16 %v2709
      %v2812 = vunpack.c.l.b16 %v2713
      %v2813 = vunpack.c.l.b16 %v2716
      %v2814 = vunpack.c.l.b16 %v2720
      %v2815 = vunpack.c.l.b16 %v2723
      %v2816 = vunpack.c.l.b16 %v2727
      %v2817 = vunpack.c.l.b16 %v2730
      %v2818 = vunpack.c.l.b16 %v2734
      %v2819 = vunpack.c.l.b16 %v2737
      %v2820 = vunpack.c.l.b16 %v2741
      %v2821 = vunpack.c.l.b16 %v2744
      %v2822 = vunpack.c.l.b16 %v2748
      %v2823 = vunpack.c.l.b16 %v2751
      %v2824 = vunpack.c.l.b16 %v2755
      %v2825 = vunpack.c.l.b16 %v2758
      %v2826 = vunpack.c.l.b16 %v2762
      %v2827 = vunpack.c.l.b16 %v2765
      %v2828 = vunpack.c.l.b16 %v2769
      %v2829 = vunpack.c.l.b16 %v2772
      %v2830 = vunpack.c.l.b16 %v2776
      %v2831 = vunpack.c.l.b16 %v2779
      %v2832 = vunpack.c.l.b16 %v2783
      %v2833 = vunpack.c.l.b16 %v2786
      %v2834 = vunpack.c.l.b16 %v2790
      %v2835 = vunpack.c.l.b16 %v2793
      %v2836 = vunpack.c.l.b16 %v2797
      %v2837 = vunpack.c.l.b16 %v2800
      %v2838 = vunpack.c.l.b16 %v2804
      %v2839 = vunpack.c.l.b16 %v2807
      %v2840 = vpack.c.b16 %v2809, %v2808
      %v2841 = vpack.c.b16 %v2811, %v2810
      %v2842 = vpack.c.b16 %v2813, %v2812
      %v2843 = vpack.c.b16 %v2815, %v2814
      %v2844 = vpack.c.b16 %v2817, %v2816
      %v2845 = vpack.c.b16 %v2819, %v2818
      %v2846 = vpack.c.b16 %v2821, %v2820
      %v2847 = vpack.c.b16 %v2823, %v2822
      %v2848 = vpack.c.b16 %v2825, %v2824
      %v2849 = vpack.c.b16 %v2827, %v2826
      %v2850 = vpack.c.b16 %v2829, %v2828
      %v2851 = vpack.c.b16 %v2831, %v2830
      %v2852 = vpack.c.b16 %v2833, %v2832
      %v2853 = vpack.c.b16 %v2835, %v2834
      %v2854 = vpack.c.b16 %v2837, %v2836
      %v2855 = vpack.c.b16 %v2839, %v2838
      %v2857 = vsel %vm172, %v2840, 0
      %v2860 = vsel %vm172, %v2841, 0
      %v2863 = vsel %vm172, %v2842, 0
      %v2866 = vsel %vm172, %v2843, 0
      %v2869 = vsel %vm172, %v2844, 0
      %v2872 = vsel %vm172, %v2845, 0
      %v2875 = vsel %vm172, %v2846, 0
      %v2878 = vsel %vm172, %v2847, 0
      %v2881 = vsel %vm172, %v2848, 0
      %v2884 = vsel %vm172, %v2849, 0
      %v2887 = vsel %vm172, %v2850, 0
      %v2890 = vsel %vm172, %v2851, 0
      %v2893 = vsel %vm172, %v2852, 0
      %v2896 = vsel %vm172, %v2853, 0
      %v2899 = vsel %vm172, %v2854, 0
      %v2902 = vsel %vm172, %v2855, 0
      %v2905 = vsel %vm989, %v822, 0
      %2907 = vmatpush.bf16.msra.mxu0 0
      %2908 = vmatpush.bf16.msra.mxu0 0
      %2909 = vmatpush.bf16.msra.mxu0 0
      %2910 = vmatpush.bf16.msra.mxu0 0
      %2911 = vmatpush.bf16.msra.mxu0 0
      %2912 = vmatpush.bf16.msra.mxu0 0
      %2913 = vmatpush.bf16.msra.mxu0 0
      %2914 = vmatpush.bf16.msra.mxu0 %v2905
      %2915 = vmatmul.bf16.gmra.mxu0 %v2857
      %v2916 = vpop.f32.mrf.mxu0
      %v2917 = vadd.f32 0.0, %v2916
      %v2918 = vpop.f32.mrf.mxu0
      %v2919 = vadd.f32 0.0, %v2918
      %2920 = vmatmul.bf16.gmra.mxu0 %v2860
      %v2921 = vpop.f32.mrf.mxu0
      %v2922 = vadd.f32 0.0, %v2921
      %v2923 = vpop.f32.mrf.mxu0
      %v2924 = vadd.f32 0.0, %v2923
      %2925 = vmatmul.bf16.gmra.mxu0 %v2863
      %v2926 = vpop.f32.mrf.mxu0
      %v2927 = vadd.f32 0.0, %v2926
      %v2928 = vpop.f32.mrf.mxu0
      %v2929 = vadd.f32 0.0, %v2928
      %2930 = vmatmul.bf16.gmra.mxu0 %v2866
      %v2931 = vpop.f32.mrf.mxu0
      %v2932 = vadd.f32 0.0, %v2931
      %v2933 = vpop.f32.mrf.mxu0
      %v2934 = vadd.f32 0.0, %v2933
      %2935 = vmatmul.bf16.gmra.mxu0 %v2869
      %v2936 = vpop.f32.mrf.mxu0
      %v2937 = vadd.f32 0.0, %v2936
      %v2938 = vpop.f32.mrf.mxu0
      %v2939 = vadd.f32 0.0, %v2938
      %2940 = vmatmul.bf16.gmra.mxu0 %v2872
      %v2941 = vpop.f32.mrf.mxu0
      %v2942 = vadd.f32 0.0, %v2941
      %v2943 = vpop.f32.mrf.mxu0
      %v2944 = vadd.f32 0.0, %v2943
      %2945 = vmatmul.bf16.gmra.mxu0 %v2875
      %v2946 = vpop.f32.mrf.mxu0
      %v2947 = vadd.f32 0.0, %v2946
      %v2948 = vpop.f32.mrf.mxu0
      %v2949 = vadd.f32 0.0, %v2948
      %2950 = vmatmul.bf16.gmra.mxu0 %v2878
      %v2951 = vpop.f32.mrf.mxu0
      %v2952 = vadd.f32 0.0, %v2951
      %v2953 = vpop.f32.mrf.mxu0
      %v2954 = vadd.f32 0.0, %v2953
      %2955 = vmatmul.bf16.gmra.mxu0 %v2881
      %v2956 = vpop.f32.mrf.mxu0
      %v2957 = vadd.f32 0.0, %v2956
      %v2958 = vpop.f32.mrf.mxu0
      %v2959 = vadd.f32 0.0, %v2958
      %2960 = vmatmul.bf16.gmra.mxu0 %v2884
      %v2961 = vpop.f32.mrf.mxu0
      %v2962 = vadd.f32 0.0, %v2961
      %v2963 = vpop.f32.mrf.mxu0
      %v2964 = vadd.f32 0.0, %v2963
      %2965 = vmatmul.bf16.gmra.mxu0 %v2887
      %v2966 = vpop.f32.mrf.mxu0
      %v2967 = vadd.f32 0.0, %v2966
      %v2968 = vpop.f32.mrf.mxu0
      %v2969 = vadd.f32 0.0, %v2968
      %2970 = vmatmul.bf16.gmra.mxu0 %v2890
      %v2971 = vpop.f32.mrf.mxu0
      %v2972 = vadd.f32 0.0, %v2971
      %v2973 = vpop.f32.mrf.mxu0
      %v2974 = vadd.f32 0.0, %v2973
      %2975 = vmatmul.bf16.gmra.mxu0 %v2893
      %v2976 = vpop.f32.mrf.mxu0
      %v2977 = vadd.f32 0.0, %v2976
      %v2978 = vpop.f32.mrf.mxu0
      %v2979 = vadd.f32 0.0, %v2978
      %2980 = vmatmul.bf16.gmra.mxu0 %v2896
      %v2981 = vpop.f32.mrf.mxu0
      %v2982 = vadd.f32 0.0, %v2981
      %v2983 = vpop.f32.mrf.mxu0
      %v2984 = vadd.f32 0.0, %v2983
      %2985 = vmatmul.bf16.gmra.mxu0 %v2899
      %v2986 = vpop.f32.mrf.mxu0
      %v2987 = vadd.f32 0.0, %v2986
      %v2988 = vpop.f32.mrf.mxu0
      %v2989 = vadd.f32 0.0, %v2988
      %2990 = vmatmul.bf16.gmra.mxu0 %v2902
      %v2991 = vpop.f32.mrf.mxu0
      %v2992 = vadd.f32 0.0, %v2991
      %v2993 = vpop.f32.mrf.mxu0
      %v2994 = vadd.f32 0.0, %v2993
      %2995 = vdwg.mxu0
      %v2996 = vadd.f32 %v2645, %v2917
      %v2997 = vadd.f32 %v2646, %v2919
      %v2998 = vadd.f32 %v2647, %v2922
      %v2999 = vadd.f32 %v2648, %v2924
      %v3000 = vadd.f32 %v2649, %v2927
      %v3001 = vadd.f32 %v2650, %v2929
      %v3002 = vadd.f32 %v2651, %v2932
      %v3003 = vadd.f32 %v2652, %v2934
      %v3004 = vadd.f32 %v2653, %v2937
      %v3005 = vadd.f32 %v2654, %v2939
      %v3006 = vadd.f32 %v2655, %v2942
      %v3007 = vadd.f32 %v2656, %v2944
      %v3008 = vadd.f32 %v2657, %v2947
      %v3009 = vadd.f32 %v2658, %v2949
      %v3010 = vadd.f32 %v2659, %v2952
      %v3011 = vadd.f32 %v2660, %v2954
      %v3012 = vadd.f32 %v2661, %v2957
      %v3013 = vadd.f32 %v2662, %v2959
      %v3014 = vadd.f32 %v2663, %v2962
      %v3015 = vadd.f32 %v2664, %v2964
      %v3016 = vadd.f32 %v2665, %v2967
      %v3017 = vadd.f32 %v2666, %v2969
      %v3018 = vadd.f32 %v2667, %v2972
      %v3019 = vadd.f32 %v2668, %v2974
      %v3020 = vadd.f32 %v2669, %v2977
      %v3021 = vadd.f32 %v2670, %v2979
      %v3022 = vadd.f32 %v2671, %v2982
      %v3023 = vadd.f32 %v2672, %v2984
      %v3024 = vadd.f32 %v2673, %v2987
      %v3025 = vadd.f32 %v2674, %v2989
      %v3026 = vadd.f32 %v2675, %v2992
      %v3027 = vadd.f32 %v2676, %v2994
      %3028 = vst.msk [vmem:[#allocation3] sm:$0xff] %vm172, %v2996
      %3029 = vst.msk [vmem:[#allocation3 + $0x8] sm:$0xff] %vm172, %v2997
      %3030 = vst.msk [vmem:[#allocation3 + $0x10] sm:$0xff] %vm172, %v2998
      %3031 = vst.msk [vmem:[#allocation3 + $0x18] sm:$0xff] %vm172, %v2999
      %3032 = vst.msk [vmem:[#allocation3 + $0x20] sm:$0xff] %vm172, %v3000
      %3033 = vst.msk [vmem:[#allocation3 + $0x28] sm:$0xff] %vm172, %v3001
      %3034 = vst.msk [vmem:[#allocation3 + $0x30] sm:$0xff] %vm172, %v3002
      %3035 = vst.msk [vmem:[#allocation3 + $0x38] sm:$0xff] %vm172, %v3003
      %3036 = vst.msk [vmem:[#allocation3 + $0x40] sm:$0xff] %vm172, %v3004
      %3037 = vst.msk [vmem:[#allocation3 + $0x48] sm:$0xff] %vm172, %v3005
      %3038 = vst.msk [vmem:[#allocation3 + $0x50] sm:$0xff] %vm172, %v3006
      %3039 = vst.msk [vmem:[#allocation3 + $0x58] sm:$0xff] %vm172, %v3007
      %3040 = vst.msk [vmem:[#allocation3 + $0x60] sm:$0xff] %vm172, %v3008
      %3041 = vst.msk [vmem:[#allocation3 + $0x68] sm:$0xff] %vm172, %v3009
      %3042 = vst.msk [vmem:[#allocation3 + $0x70] sm:$0xff] %vm172, %v3010
      %3043 = vst.msk [vmem:[#allocation3 + $0x78] sm:$0xff] %vm172, %v3011
      %3044 = vst.msk [vmem:[#allocation3 + $0x80] sm:$0xff] %vm172, %v3012
      %3045 = vst.msk [vmem:[#allocation3 + $0x88] sm:$0xff] %vm172, %v3013
      %3046 = vst.msk [vmem:[#allocation3 + $0x90] sm:$0xff] %vm172, %v3014
      %3047 = vst.msk [vmem:[#allocation3 + $0x98] sm:$0xff] %vm172, %v3015
      %3048 = vst.msk [vmem:[#allocation3 + $0xa0] sm:$0xff] %vm172, %v3016
      %3049 = vst.msk [vmem:[#allocation3 + $0xa8] sm:$0xff] %vm172, %v3017
      %3050 = vst.msk [vmem:[#allocation3 + $0xb0] sm:$0xff] %vm172, %v3018
      %3051 = vst.msk [vmem:[#allocation3 + $0xb8] sm:$0xff] %vm172, %v3019
      %3052 = vst.msk [vmem:[#allocation3 + $0xc0] sm:$0xff] %vm172, %v3020
      %3053 = vst.msk [vmem:[#allocation3 + $0xc8] sm:$0xff] %vm172, %v3021
      %3054 = vst.msk [vmem:[#allocation3 + $0xd0] sm:$0xff] %vm172, %v3022
      %3055 = vst.msk [vmem:[#allocation3 + $0xd8] sm:$0xff] %vm172, %v3023
      %3056 = vst.msk [vmem:[#allocation3 + $0xe0] sm:$0xff] %vm172, %v3024
      %3057 = vst.msk [vmem:[#allocation3 + $0xe8] sm:$0xff] %vm172, %v3025
      %3058 = vst.msk [vmem:[#allocation3 + $0xf0] sm:$0xff] %vm172, %v3026
      %3059 = vst.msk [vmem:[#allocation3 + $0xf8] sm:$0xff] %vm172, %v3027
      %v3060 = vld [vmem:[#allocation3] sm:$0xff]
      %v3061 = vld [vmem:[#allocation3 + $0x8] sm:$0xff]
      %v3062 = vld [vmem:[#allocation3 + $0x10] sm:$0xff]
      %v3063 = vld [vmem:[#allocation3 + $0x18] sm:$0xff]
      %v3064 = vld [vmem:[#allocation3 + $0x20] sm:$0xff]
      %v3065 = vld [vmem:[#allocation3 + $0x28] sm:$0xff]
      %v3066 = vld [vmem:[#allocation3 + $0x30] sm:$0xff]
      %v3067 = vld [vmem:[#allocation3 + $0x38] sm:$0xff]
      %v3068 = vld [vmem:[#allocation3 + $0x40] sm:$0xff]
      %v3069 = vld [vmem:[#allocation3 + $0x48] sm:$0xff]
      %v3070 = vld [vmem:[#allocation3 + $0x50] sm:$0xff]
      %v3071 = vld [vmem:[#allocation3 + $0x58] sm:$0xff]
      %v3072 = vld [vmem:[#allocation3 + $0x60] sm:$0xff]
      %v3073 = vld [vmem:[#allocation3 + $0x68] sm:$0xff]
      %v3074 = vld [vmem:[#allocation3 + $0x70] sm:$0xff]
      %v3075 = vld [vmem:[#allocation3 + $0x78] sm:$0xff]
      %v3076 = vld [vmem:[#allocation3 + $0x80] sm:$0xff]
      %v3077 = vld [vmem:[#allocation3 + $0x88] sm:$0xff]
      %v3078 = vld [vmem:[#allocation3 + $0x90] sm:$0xff]
      %v3079 = vld [vmem:[#allocation3 + $0x98] sm:$0xff]
      %v3080 = vld [vmem:[#allocation3 + $0xa0] sm:$0xff]
      %v3081 = vld [vmem:[#allocation3 + $0xa8] sm:$0xff]
      %v3082 = vld [vmem:[#allocation3 + $0xb0] sm:$0xff]
      %v3083 = vld [vmem:[#allocation3 + $0xb8] sm:$0xff]
      %v3084 = vld [vmem:[#allocation3 + $0xc0] sm:$0xff]
      %v3085 = vld [vmem:[#allocation3 + $0xc8] sm:$0xff]
      %v3086 = vld [vmem:[#allocation3 + $0xd0] sm:$0xff]
      %v3087 = vld [vmem:[#allocation3 + $0xd8] sm:$0xff]
      %v3088 = vld [vmem:[#allocation3 + $0xe0] sm:$0xff]
      %v3089 = vld [vmem:[#allocation3 + $0xe8] sm:$0xff]
      %v3090 = vld [vmem:[#allocation3 + $0xf0] sm:$0xff]
      %v3091 = vld [vmem:[#allocation3 + $0xf8] sm:$0xff]
      %v3093 = vrot.slane %v814, 5
      %v3094 = vrot.slane %v3093, 4
      %v3095 = vrot.slane %v815, 5
      %v3096 = vsel %vm2695, %v3094, %v3095
      %v3097 = vrot.slane %v3095, 4
      %v3098 = vrot.slane %v816, 5
      %v3099 = vsel %vm2695, %v3097, %v3098
      %v3100 = vunpack.c.l.b16 %v3096
      %v3101 = vunpack.c.l.b16 %v3099
      %v3102 = vpack.c.b16 %v3101, %v3100
      %v3104 = vsel %vm172, %v3102, 0
      %v3107 = vsel %vm989, %v825, 0
      %3109 = vmatpush.bf16.msra.mxu0 0
      %3110 = vmatpush.bf16.msra.mxu0 0
      %3111 = vmatpush.bf16.msra.mxu0 0
      %3112 = vmatpush.bf16.msra.mxu0 0
      %3113 = vmatpush.bf16.msra.mxu0 0
      %3114 = vmatpush.bf16.msra.mxu0 0
      %3115 = vmatpush.bf16.msra.mxu0 0
      %3116 = vmatpush.bf16.msra.mxu0 %v3107
      %3117 = vmatmul.bf16.gmra.mxu0 %v2860
      %v3118 = vpop.f32.mrf.mxu0
      %v3119 = vadd.f32 0.0, %v3118
      %v3120 = vpop.f32.mrf.mxu0
      %v3121 = vadd.f32 0.0, %v3120
      %3122 = vmatmul.bf16.gmra.mxu0 %v2863
      %v3123 = vpop.f32.mrf.mxu0
      %v3124 = vadd.f32 0.0, %v3123
      %v3125 = vpop.f32.mrf.mxu0
      %v3126 = vadd.f32 0.0, %v3125
      %3127 = vmatmul.bf16.gmra.mxu0 %v2866
      %v3128 = vpop.f32.mrf.mxu0
      %v3129 = vadd.f32 0.0, %v3128
      %v3130 = vpop.f32.mrf.mxu0
      %v3131 = vadd.f32 0.0, %v3130
      %3132 = vmatmul.bf16.gmra.mxu0 %v2869
      %v3133 = vpop.f32.mrf.mxu0
      %v3134 = vadd.f32 0.0, %v3133
      %v3135 = vpop.f32.mrf.mxu0
      %v3136 = vadd.f32 0.0, %v3135
      %3137 = vmatmul.bf16.gmra.mxu0 %v2872
      %v3138 = vpop.f32.mrf.mxu0
      %v3139 = vadd.f32 0.0, %v3138
      %v3140 = vpop.f32.mrf.mxu0
      %v3141 = vadd.f32 0.0, %v3140
      %3142 = vmatmul.bf16.gmra.mxu0 %v2875
      %v3143 = vpop.f32.mrf.mxu0
      %v3144 = vadd.f32 0.0, %v3143
      %v3145 = vpop.f32.mrf.mxu0
      %v3146 = vadd.f32 0.0, %v3145
      %3147 = vmatmul.bf16.gmra.mxu0 %v2878
      %v3148 = vpop.f32.mrf.mxu0
      %v3149 = vadd.f32 0.0, %v3148
      %v3150 = vpop.f32.mrf.mxu0
      %v3151 = vadd.f32 0.0, %v3150
      %3152 = vmatmul.bf16.gmra.mxu0 %v2881
      %v3153 = vpop.f32.mrf.mxu0
      %v3154 = vadd.f32 0.0, %v3153
      %v3155 = vpop.f32.mrf.mxu0
      %v3156 = vadd.f32 0.0, %v3155
      %3157 = vmatmul.bf16.gmra.mxu0 %v2884
      %v3158 = vpop.f32.mrf.mxu0
      %v3159 = vadd.f32 0.0, %v3158
      %v3160 = vpop.f32.mrf.mxu0
      %v3161 = vadd.f32 0.0, %v3160
      %3162 = vmatmul.bf16.gmra.mxu0 %v2887
      %v3163 = vpop.f32.mrf.mxu0
      %v3164 = vadd.f32 0.0, %v3163
      %v3165 = vpop.f32.mrf.mxu0
      %v3166 = vadd.f32 0.0, %v3165
      %3167 = vmatmul.bf16.gmra.mxu0 %v2890
      %v3168 = vpop.f32.mrf.mxu0
      %v3169 = vadd.f32 0.0, %v3168
      %v3170 = vpop.f32.mrf.mxu0
      %v3171 = vadd.f32 0.0, %v3170
      %3172 = vmatmul.bf16.gmra.mxu0 %v2893
      %v3173 = vpop.f32.mrf.mxu0
      %v3174 = vadd.f32 0.0, %v3173
      %v3175 = vpop.f32.mrf.mxu0
      %v3176 = vadd.f32 0.0, %v3175
      %3177 = vmatmul.bf16.gmra.mxu0 %v2896
      %v3178 = vpop.f32.mrf.mxu0
      %v3179 = vadd.f32 0.0, %v3178
      %v3180 = vpop.f32.mrf.mxu0
      %v3181 = vadd.f32 0.0, %v3180
      %3182 = vmatmul.bf16.gmra.mxu0 %v2899
      %v3183 = vpop.f32.mrf.mxu0
      %v3184 = vadd.f32 0.0, %v3183
      %v3185 = vpop.f32.mrf.mxu0
      %v3186 = vadd.f32 0.0, %v3185
      %3187 = vmatmul.bf16.gmra.mxu0 %v2902
      %v3188 = vpop.f32.mrf.mxu0
      %v3189 = vadd.f32 0.0, %v3188
      %v3190 = vpop.f32.mrf.mxu0
      %v3191 = vadd.f32 0.0, %v3190
      %3192 = vmatmul.bf16.gmra.mxu0 %v3104
      %v3193 = vpop.f32.mrf.mxu0
      %v3194 = vadd.f32 0.0, %v3193
      %v3195 = vpop.f32.mrf.mxu0
      %v3196 = vadd.f32 0.0, %v3195
      %3197 = vdwg.mxu0
      %v3198 = vadd.f32 %v3060, %v3119
      %v3199 = vadd.f32 %v3061, %v3121
      %v3200 = vadd.f32 %v3062, %v3124
      %v3201 = vadd.f32 %v3063, %v3126
      %v3202 = vadd.f32 %v3064, %v3129
      %v3203 = vadd.f32 %v3065, %v3131
      %v3204 = vadd.f32 %v3066, %v3134
      %v3205 = vadd.f32 %v3067, %v3136
      %v3206 = vadd.f32 %v3068, %v3139
      %v3207 = vadd.f32 %v3069, %v3141
      %v3208 = vadd.f32 %v3070, %v3144
      %v3209 = vadd.f32 %v3071, %v3146
      %v3210 = vadd.f32 %v3072, %v3149
      %v3211 = vadd.f32 %v3073, %v3151
      %v3212 = vadd.f32 %v3074, %v3154
      %v3213 = vadd.f32 %v3075, %v3156
      %v3214 = vadd.f32 %v3076, %v3159
      %v3215 = vadd.f32 %v3077, %v3161
      %v3216 = vadd.f32 %v3078, %v3164
      %v3217 = vadd.f32 %v3079, %v3166
      %v3218 = vadd.f32 %v3080, %v3169
      %v3219 = vadd.f32 %v3081, %v3171
      %v3220 = vadd.f32 %v3082, %v3174
      %v3221 = vadd.f32 %v3083, %v3176
      %v3222 = vadd.f32 %v3084, %v3179
      %v3223 = vadd.f32 %v3085, %v3181
      %v3224 = vadd.f32 %v3086, %v3184
      %v3225 = vadd.f32 %v3087, %v3186
      %v3226 = vadd.f32 %v3088, %v3189
      %v3227 = vadd.f32 %v3089, %v3191
      %v3228 = vadd.f32 %v3090, %v3194
      %v3229 = vadd.f32 %v3091, %v3196
      %3230 = vst.msk [vmem:[#allocation3] sm:$0xff] %vm172, %v3198
      %3231 = vst.msk [vmem:[#allocation3 + $0x8] sm:$0xff] %vm172, %v3199
      %3232 = vst.msk [vmem:[#allocation3 + $0x10] sm:$0xff] %vm172, %v3200
      %3233 = vst.msk [vmem:[#allocation3 + $0x18] sm:$0xff] %vm172, %v3201
      %3234 = vst.msk [vmem:[#allocation3 + $0x20] sm:$0xff] %vm172, %v3202
      %3235 = vst.msk [vmem:[#allocation3 + $0x28] sm:$0xff] %vm172, %v3203
      %3236 = vst.msk [vmem:[#allocation3 + $0x30] sm:$0xff] %vm172, %v3204
      %3237 = vst.msk [vmem:[#allocation3 + $0x38] sm:$0xff] %vm172, %v3205
      %3238 = vst.msk [vmem:[#allocation3 + $0x40] sm:$0xff] %vm172, %v3206
      %3239 = vst.msk [vmem:[#allocation3 + $0x48] sm:$0xff] %vm172, %v3207
      %3240 = vst.msk [vmem:[#allocation3 + $0x50] sm:$0xff] %vm172, %v3208
      %3241 = vst.msk [vmem:[#allocation3 + $0x58] sm:$0xff] %vm172, %v3209
      %3242 = vst.msk [vmem:[#allocation3 + $0x60] sm:$0xff] %vm172, %v3210
      %3243 = vst.msk [vmem:[#allocation3 + $0x68] sm:$0xff] %vm172, %v3211
      %3244 = vst.msk [vmem:[#allocation3 + $0x70] sm:$0xff] %vm172, %v3212
      %3245 = vst.msk [vmem:[#allocation3 + $0x78] sm:$0xff] %vm172, %v3213
      %3246 = vst.msk [vmem:[#allocation3 + $0x80] sm:$0xff] %vm172, %v3214
      %3247 = vst.msk [vmem:[#allocation3 + $0x88] sm:$0xff] %vm172, %v3215
      %3248 = vst.msk [vmem:[#allocation3 + $0x90] sm:$0xff] %vm172, %v3216
      %3249 = vst.msk [vmem:[#allocation3 + $0x98] sm:$0xff] %vm172, %v3217
      %3250 = vst.msk [vmem:[#allocation3 + $0xa0] sm:$0xff] %vm172, %v3218
      %3251 = vst.msk [vmem:[#allocation3 + $0xa8] sm:$0xff] %vm172, %v3219
      %3252 = vst.msk [vmem:[#allocation3 + $0xb0] sm:$0xff] %vm172, %v3220
      %3253 = vst.msk [vmem:[#allocation3 + $0xb8] sm:$0xff] %vm172, %v3221
      %3254 = vst.msk [vmem:[#allocation3 + $0xc0] sm:$0xff] %vm172, %v3222
      %3255 = vst.msk [vmem:[#allocation3 + $0xc8] sm:$0xff] %vm172, %v3223
      %3256 = vst.msk [vmem:[#allocation3 + $0xd0] sm:$0xff] %vm172, %v3224
      %3257 = vst.msk [vmem:[#allocation3 + $0xd8] sm:$0xff] %vm172, %v3225
      %3258 = vst.msk [vmem:[#allocation3 + $0xe0] sm:$0xff] %vm172, %v3226
      %3259 = vst.msk [vmem:[#allocation3 + $0xe8] sm:$0xff] %vm172, %v3227
      %3260 = vst.msk [vmem:[#allocation3 + $0xf0] sm:$0xff] %vm172, %v3228
      %3261 = vst.msk [vmem:[#allocation3 + $0xf8] sm:$0xff] %vm172, %v3229
      %v3262 = vld [vmem:[#allocation3] sm:$0xff]
      %v3263 = vld [vmem:[#allocation3 + $0x8] sm:$0xff]
      %v3264 = vld [vmem:[#allocation3 + $0x10] sm:$0xff]
      %v3265 = vld [vmem:[#allocation3 + $0x18] sm:$0xff]
      %v3266 = vld [vmem:[#allocation3 + $0x20] sm:$0xff]
      %v3267 = vld [vmem:[#allocation3 + $0x28] sm:$0xff]
      %v3268 = vld [vmem:[#allocation3 + $0x30] sm:$0xff]
      %v3269 = vld [vmem:[#allocation3 + $0x38] sm:$0xff]
      %v3270 = vld [vmem:[#allocation3 + $0x40] sm:$0xff]
      %v3271 = vld [vmem:[#allocation3 + $0x48] sm:$0xff]
      %v3272 = vld [vmem:[#allocation3 + $0x50] sm:$0xff]
      %v3273 = vld [vmem:[#allocation3 + $0x58] sm:$0xff]
      %v3274 = vld [vmem:[#allocation3 + $0x60] sm:$0xff]
      %v3275 = vld [vmem:[#allocation3 + $0x68] sm:$0xff]
      %v3276 = vld [vmem:[#allocation3 + $0x70] sm:$0xff]
      %v3277 = vld [vmem:[#allocation3 + $0x78] sm:$0xff]
      %v3278 = vld [vmem:[#allocation3 + $0x80] sm:$0xff]
      %v3279 = vld [vmem:[#allocation3 + $0x88] sm:$0xff]
      %v3280 = vld [vmem:[#allocation3 + $0x90] sm:$0xff]
      %v3281 = vld [vmem:[#allocation3 + $0x98] sm:$0xff]
      %v3282 = vld [vmem:[#allocation3 + $0xa0] sm:$0xff]
      %v3283 = vld [vmem:[#allocation3 + $0xa8] sm:$0xff]
      %v3284 = vld [vmem:[#allocation3 + $0xb0] sm:$0xff]
      %v3285 = vld [vmem:[#allocation3 + $0xb8] sm:$0xff]
      %v3286 = vld [vmem:[#allocation3 + $0xc0] sm:$0xff]
      %v3287 = vld [vmem:[#allocation3 + $0xc8] sm:$0xff]
      %v3288 = vld [vmem:[#allocation3 + $0xd0] sm:$0xff]
      %v3289 = vld [vmem:[#allocation3 + $0xd8] sm:$0xff]
      %v3290 = vld [vmem:[#allocation3 + $0xe0] sm:$0xff]
      %v3291 = vld [vmem:[#allocation3 + $0xe8] sm:$0xff]
      %v3292 = vld [vmem:[#allocation3 + $0xf0] sm:$0xff]
      %v3293 = vld [vmem:[#allocation3 + $0xf8] sm:$0xff]
      %v3295 = vrot.slane %v817, 5
      %v3296 = vrot.slane %v3295, 4
      %v3297 = vrot.slane %v818, 5
      %v3298 = vsel %vm2695, %v3296, %v3297
      %v3299 = vrot.slane %v3297, 4
      %v3300 = vrot.slane %v819, 5
      %v3301 = vsel %vm2695, %v3299, %v3300
      %v3302 = vunpack.c.l.b16 %v3298
      %v3303 = vunpack.c.l.b16 %v3301
      %v3304 = vpack.c.b16 %v3303, %v3302
      %v3306 = vsel %vm172, %v3304, 0
      %v3309 = vsel %vm989, %v828, 0
      %3311 = vmatpush.bf16.msra.mxu0 0
      %3312 = vmatpush.bf16.msra.mxu0 0
      %3313 = vmatpush.bf16.msra.mxu0 0
      %3314 = vmatpush.bf16.msra.mxu0 0
      %3315 = vmatpush.bf16.msra.mxu0 0
      %3316 = vmatpush.bf16.msra.mxu0 0
      %3317 = vmatpush.bf16.msra.mxu0 0
      %3318 = vmatpush.bf16.msra.mxu0 %v3309
      %3319 = vmatmul.bf16.gmra.mxu0 %v2863
      %v3320 = vpop.f32.mrf.mxu0
      %v3321 = vadd.f32 0.0, %v3320
      %v3322 = vpop.f32.mrf.mxu0
      %v3323 = vadd.f32 0.0, %v3322
      %3324 = vmatmul.bf16.gmra.mxu0 %v2866
      %v3325 = vpop.f32.mrf.mxu0
      %v3326 = vadd.f32 0.0, %v3325
      %v3327 = vpop.f32.mrf.mxu0
      %v3328 = vadd.f32 0.0, %v3327
      %3329 = vmatmul.bf16.gmra.mxu0 %v2869
      %v3330 = vpop.f32.mrf.mxu0
      %v3331 = vadd.f32 0.0, %v3330
      %v3332 = vpop.f32.mrf.mxu0
      %v3333 = vadd.f32 0.0, %v3332
      %3334 = vmatmul.bf16.gmra.mxu0 %v2872
      %v3335 = vpop.f32.mrf.mxu0
      %v3336 = vadd.f32 0.0, %v3335
      %v3337 = vpop.f32.mrf.mxu0
      %v3338 = vadd.f32 0.0, %v3337
      %3339 = vmatmul.bf16.gmra.mxu0 %v2875
      %v3340 = vpop.f32.mrf.mxu0
      %v3341 = vadd.f32 0.0, %v3340
      %v3342 = vpop.f32.mrf.mxu0
      %v3343 = vadd.f32 0.0, %v3342
      %3344 = vmatmul.bf16.gmra.mxu0 %v2878
      %v3345 = vpop.f32.mrf.mxu0
      %v3346 = vadd.f32 0.0, %v3345
      %v3347 = vpop.f32.mrf.mxu0
      %v3348 = vadd.f32 0.0, %v3347
      %3349 = vmatmul.bf16.gmra.mxu0 %v2881
      %v3350 = vpop.f32.mrf.mxu0
      %v3351 = vadd.f32 0.0, %v3350
      %v3352 = vpop.f32.mrf.mxu0
      %v3353 = vadd.f32 0.0, %v3352
      %3354 = vmatmul.bf16.gmra.mxu0 %v2884
      %v3355 = vpop.f32.mrf.mxu0
      %v3356 = vadd.f32 0.0, %v3355
      %v3357 = vpop.f32.mrf.mxu0
      %v3358 = vadd.f32 0.0, %v3357
      %3359 = vmatmul.bf16.gmra.mxu0 %v2887
      %v3360 = vpop.f32.mrf.mxu0
      %v3361 = vadd.f32 0.0, %v3360
      %v3362 = vpop.f32.mrf.mxu0
      %v3363 = vadd.f32 0.0, %v3362
      %3364 = vmatmul.bf16.gmra.mxu0 %v2890
      %v3365 = vpop.f32.mrf.mxu0
      %v3366 = vadd.f32 0.0, %v3365
      %v3367 = vpop.f32.mrf.mxu0
      %v3368 = vadd.f32 0.0, %v3367
      %3369 = vmatmul.bf16.gmra.mxu0 %v2893
      %v3370 = vpop.f32.mrf.mxu0
      %v3371 = vadd.f32 0.0, %v3370
      %v3372 = vpop.f32.mrf.mxu0
      %v3373 = vadd.f32 0.0, %v3372
      %3374 = vmatmul.bf16.gmra.mxu0 %v2896
      %v3375 = vpop.f32.mrf.mxu0
      %v3376 = vadd.f32 0.0, %v3375
      %v3377 = vpop.f32.mrf.mxu0
      %v3378 = vadd.f32 0.0, %v3377
      %3379 = vmatmul.bf16.gmra.mxu0 %v2899
      %v3380 = vpop.f32.mrf.mxu0
      %v3381 = vadd.f32 0.0, %v3380
      %v3382 = vpop.f32.mrf.mxu0
      %v3383 = vadd.f32 0.0, %v3382
      %3384 = vmatmul.bf16.gmra.mxu0 %v2902
      %v3385 = vpop.f32.mrf.mxu0
      %v3386 = vadd.f32 0.0, %v3385
      %v3387 = vpop.f32.mrf.mxu0
      %v3388 = vadd.f32 0.0, %v3387
      %3389 = vmatmul.bf16.gmra.mxu0 %v3104
      %v3390 = vpop.f32.mrf.mxu0
      %v3391 = vadd.f32 0.0, %v3390
      %v3392 = vpop.f32.mrf.mxu0
      %v3393 = vadd.f32 0.0, %v3392
      %3394 = vmatmul.bf16.gmra.mxu0 %v3306
      %v3395 = vpop.f32.mrf.mxu0
      %v3396 = vadd.f32 0.0, %v3395
      %v3397 = vpop.f32.mrf.mxu0
      %v3398 = vadd.f32 0.0, %v3397
      %3399 = vdwg.mxu0
      %v3400 = vadd.f32 %v3262, %v3321
      %v3401 = vadd.f32 %v3263, %v3323
      %v3402 = vadd.f32 %v3264, %v3326
      %v3403 = vadd.f32 %v3265, %v3328
      %v3404 = vadd.f32 %v3266, %v3331
      %v3405 = vadd.f32 %v3267, %v3333
      %v3406 = vadd.f32 %v3268, %v3336
      %v3407 = vadd.f32 %v3269, %v3338
      %v3408 = vadd.f32 %v3270, %v3341
      %v3409 = vadd.f32 %v3271, %v3343
      %v3410 = vadd.f32 %v3272, %v3346
      %v3411 = vadd.f32 %v3273, %v3348
      %v3412 = vadd.f32 %v3274, %v3351
      %v3413 = vadd.f32 %v3275, %v3353
      %v3414 = vadd.f32 %v3276, %v3356
      %v3415 = vadd.f32 %v3277, %v3358
      %v3416 = vadd.f32 %v3278, %v3361
      %v3417 = vadd.f32 %v3279, %v3363
      %v3418 = vadd.f32 %v3280, %v3366
      %v3419 = vadd.f32 %v3281, %v3368
      %v3420 = vadd.f32 %v3282, %v3371
      %v3421 = vadd.f32 %v3283, %v3373
      %v3422 = vadd.f32 %v3284, %v3376
      %v3423 = vadd.f32 %v3285, %v3378
      %v3424 = vadd.f32 %v3286, %v3381
      %v3425 = vadd.f32 %v3287, %v3383
      %v3426 = vadd.f32 %v3288, %v3386
      %v3427 = vadd.f32 %v3289, %v3388
      %v3428 = vadd.f32 %v3290, %v3391
      %v3429 = vadd.f32 %v3291, %v3393
      %v3430 = vadd.f32 %v3292, %v3396
      %v3431 = vadd.f32 %v3293, %v3398
      %3432 = vst.msk [vmem:[#allocation3] sm:$0xff] %vm172, %v3400
      %3433 = vst.msk [vmem:[#allocation3 + $0x8] sm:$0xff] %vm172, %v3401
      %3434 = vst.msk [vmem:[#allocation3 + $0x10] sm:$0xff] %vm172, %v3402
      %3435 = vst.msk [vmem:[#allocation3 + $0x18] sm:$0xff] %vm172, %v3403
      %3436 = vst.msk [vmem:[#allocation3 + $0x20] sm:$0xff] %vm172, %v3404
      %3437 = vst.msk [vmem:[#allocation3 + $0x28] sm:$0xff] %vm172, %v3405
      %3438 = vst.msk [vmem:[#allocation3 + $0x30] sm:$0xff] %vm172, %v3406
      %3439 = vst.msk [vmem:[#allocation3 + $0x38] sm:$0xff] %vm172, %v3407
      %3440 = vst.msk [vmem:[#allocation3 + $0x40] sm:$0xff] %vm172, %v3408
      %3441 = vst.msk [vmem:[#allocation3 + $0x48] sm:$0xff] %vm172, %v3409
      %3442 = vst.msk [vmem:[#allocation3 + $0x50] sm:$0xff] %vm172, %v3410
      %3443 = vst.msk [vmem:[#allocation3 + $0x58] sm:$0xff] %vm172, %v3411
      %3444 = vst.msk [vmem:[#allocation3 + $0x60] sm:$0xff] %vm172, %v3412
      %3445 = vst.msk [vmem:[#allocation3 + $0x68] sm:$0xff] %vm172, %v3413
      %3446 = vst.msk [vmem:[#allocation3 + $0x70] sm:$0xff] %vm172, %v3414
      %3447 = vst.msk [vmem:[#allocation3 + $0x78] sm:$0xff] %vm172, %v3415
      %3448 = vst.msk [vmem:[#allocation3 + $0x80] sm:$0xff] %vm172, %v3416
      %3449 = vst.msk [vmem:[#allocation3 + $0x88] sm:$0xff] %vm172, %v3417
      %3450 = vst.msk [vmem:[#allocation3 + $0x90] sm:$0xff] %vm172, %v3418
      %3451 = vst.msk [vmem:[#allocation3 + $0x98] sm:$0xff] %vm172, %v3419
      %3452 = vst.msk [vmem:[#allocation3 + $0xa0] sm:$0xff] %vm172, %v3420
      %3453 = vst.msk [vmem:[#allocation3 + $0xa8] sm:$0xff] %vm172, %v3421
      %3454 = vst.msk [vmem:[#allocation3 + $0xb0] sm:$0xff] %vm172, %v3422
      %3455 = vst.msk [vmem:[#allocation3 + $0xb8] sm:$0xff] %vm172, %v3423
      %3456 = vst.msk [vmem:[#allocation3 + $0xc0] sm:$0xff] %vm172, %v3424
      %3457 = vst.msk [vmem:[#allocation3 + $0xc8] sm:$0xff] %vm172, %v3425
      %3458 = vst.msk [vmem:[#allocation3 + $0xd0] sm:$0xff] %vm172, %v3426
      %3459 = vst.msk [vmem:[#allocation3 + $0xd8] sm:$0xff] %vm172, %v3427
      %3460 = vst.msk [vmem:[#allocation3 + $0xe0] sm:$0xff] %vm172, %v3428
      %3461 = vst.msk [vmem:[#allocation3 + $0xe8] sm:$0xff] %vm172, %v3429
      %3462 = vst.msk [vmem:[#allocation3 + $0xf0] sm:$0xff] %vm172, %v3430
      %3463 = vst.msk [vmem:[#allocation3 + $0xf8] sm:$0xff] %vm172, %v3431
      %v3464 = vld [vmem:[#allocation3] sm:$0xff]
      %v3465 = vld [vmem:[#allocation3 + $0x8] sm:$0xff]
      %v3466 = vld [vmem:[#allocation3 + $0x10] sm:$0xff]
      %v3467 = vld [vmem:[#allocation3 + $0x18] sm:$0xff]
      %v3468 = vld [vmem:[#allocation3 + $0x20] sm:$0xff]
      %v3469 = vld [vmem:[#allocation3 + $0x28] sm:$0xff]
      %v3470 = vld [vmem:[#allocation3 + $0x30] sm:$0xff]
      %v3471 = vld [vmem:[#allocation3 + $0x38] sm:$0xff]
      %v3472 = vld [vmem:[#allocation3 + $0x40] sm:$0xff]
      %v3473 = vld [vmem:[#allocation3 + $0x48] sm:$0xff]
      %v3474 = vld [vmem:[#allocation3 + $0x50] sm:$0xff]
      %v3475 = vld [vmem:[#allocation3 + $0x58] sm:$0xff]
      %v3476 = vld [vmem:[#allocation3 + $0x60] sm:$0xff]
      %v3477 = vld [vmem:[#allocation3 + $0x68] sm:$0xff]
      %v3478 = vld [vmem:[#allocation3 + $0x70] sm:$0xff]
      %v3479 = vld [vmem:[#allocation3 + $0x78] sm:$0xff]
      %v3480 = vld [vmem:[#allocation3 + $0x80] sm:$0xff]
      %v3481 = vld [vmem:[#allocation3 + $0x88] sm:$0xff]
      %v3482 = vld [vmem:[#allocation3 + $0x90] sm:$0xff]
      %v3483 = vld [vmem:[#allocation3 + $0x98] sm:$0xff]
      %v3484 = vld [vmem:[#allocation3 + $0xa0] sm:$0xff]
      %v3485 = vld [vmem:[#allocation3 + $0xa8] sm:$0xff]
      %v3486 = vld [vmem:[#allocation3 + $0xb0] sm:$0xff]
      %v3487 = vld [vmem:[#allocation3 + $0xb8] sm:$0xff]
      %v3488 = vld [vmem:[#allocation3 + $0xc0] sm:$0xff]
      %v3489 = vld [vmem:[#allocation3 + $0xc8] sm:$0xff]
      %v3490 = vld [vmem:[#allocation3 + $0xd0] sm:$0xff]
      %v3491 = vld [vmem:[#allocation3 + $0xd8] sm:$0xff]
      %v3492 = vld [vmem:[#allocation3 + $0xe0] sm:$0xff]
      %v3493 = vld [vmem:[#allocation3 + $0xe8] sm:$0xff]
      %v3494 = vld [vmem:[#allocation3 + $0xf0] sm:$0xff]
      %v3495 = vld [vmem:[#allocation3 + $0xf8] sm:$0xff]
      %v3496 = vld [vmem:[%s2] sm:$0x1]
      %v3498 = vperm.slane %v3496, 0
      %v3500 = vadd.f32 %v3464, %v3498
      %v3501 = vadd.f32 %v3465, %v3498
      %v3502 = vadd.f32 %v3466, %v3498
      %v3503 = vadd.f32 %v3467, %v3498
      %v3504 = vadd.f32 %v3468, %v3498
      %v3505 = vadd.f32 %v3469, %v3498
      %v3506 = vadd.f32 %v3470, %v3498
      %v3507 = vadd.f32 %v3471, %v3498
      %v3508 = vadd.f32 %v3472, %v3498
      %v3509 = vadd.f32 %v3473, %v3498
      %v3510 = vadd.f32 %v3474, %v3498
      %v3511 = vadd.f32 %v3475, %v3498
      %v3512 = vadd.f32 %v3476, %v3498
      %v3513 = vadd.f32 %v3477, %v3498
      %v3514 = vadd.f32 %v3478, %v3498
      %v3515 = vadd.f32 %v3479, %v3498
      %v3516 = vadd.f32 %v3480, %v3498
      %v3517 = vadd.f32 %v3481, %v3498
      %v3518 = vadd.f32 %v3482, %v3498
      %v3519 = vadd.f32 %v3483, %v3498
      %v3520 = vadd.f32 %v3484, %v3498
      %v3521 = vadd.f32 %v3485, %v3498
      %v3522 = vadd.f32 %v3486, %v3498
      %v3523 = vadd.f32 %v3487, %v3498
      %v3524 = vadd.f32 %v3488, %v3498
      %v3525 = vadd.f32 %v3489, %v3498
      %v3526 = vadd.f32 %v3490, %v3498
      %v3527 = vadd.f32 %v3491, %v3498
      %v3528 = vadd.f32 %v3492, %v3498
      %v3529 = vadd.f32 %v3493, %v3498
      %v3530 = vadd.f32 %v3494, %v3498
      %v3531 = vadd.f32 %v3495, %v3498
      %v3532 = vmax.f32 %v3500, 0.0
      %v3533 = vmax.f32 %v3501, 0.0
      %v3534 = vmax.f32 %v3502, 0.0
      %v3535 = vmax.f32 %v3503, 0.0
      %v3536 = vmax.f32 %v3504, 0.0
      %v3537 = vmax.f32 %v3505, 0.0
      %v3538 = vmax.f32 %v3506, 0.0
      %v3539 = vmax.f32 %v3507, 0.0
      %v3540 = vmax.f32 %v3508, 0.0
      %v3541 = vmax.f32 %v3509, 0.0
      %v3542 = vmax.f32 %v3510, 0.0
      %v3543 = vmax.f32 %v3511, 0.0
      %v3544 = vmax.f32 %v3512, 0.0
      %v3545 = vmax.f32 %v3513, 0.0
      %v3546 = vmax.f32 %v3514, 0.0
      %v3547 = vmax.f32 %v3515, 0.0
      %v3548 = vmax.f32 %v3516, 0.0
      %v3549 = vmax.f32 %v3517, 0.0
      %v3550 = vmax.f32 %v3518, 0.0
      %v3551 = vmax.f32 %v3519, 0.0
      %v3552 = vmax.f32 %v3520, 0.0
      %v3553 = vmax.f32 %v3521, 0.0
      %v3554 = vmax.f32 %v3522, 0.0
      %v3555 = vmax.f32 %v3523, 0.0
      %v3556 = vmax.f32 %v3524, 0.0
      %v3557 = vmax.f32 %v3525, 0.0
      %v3558 = vmax.f32 %v3526, 0.0
      %v3559 = vmax.f32 %v3527, 0.0
      %v3560 = vmax.f32 %v3528, 0.0
      %v3561 = vmax.f32 %v3529, 0.0
      %v3562 = vmax.f32 %v3530, 0.0
      %v3563 = vmax.f32 %v3531, 0.0
      %3564 = vst.msk [vmem:[%s170] sm:$0xff] %vm172, %v3532
      %3565 = vst.msk [vmem:[%s170 + $0x8] sm:$0xff] %vm172, %v3533
      %3566 = vst.msk [vmem:[%s170 + $0x10] sm:$0xff] %vm172, %v3534
      %3567 = vst.msk [vmem:[%s170 + $0x18] sm:$0xff] %vm172, %v3535
      %3568 = vst.msk [vmem:[%s170 + $0x20] sm:$0xff] %vm172, %v3536
      %3569 = vst.msk [vmem:[%s170 + $0x28] sm:$0xff] %vm172, %v3537
      %3570 = vst.msk [vmem:[%s170 + $0x30] sm:$0xff] %vm172, %v3538
      %3571 = vst.msk [vmem:[%s170 + $0x38] sm:$0xff] %vm172, %v3539
      %3572 = vst.msk [vmem:[%s170 + $0x40] sm:$0xff] %vm172, %v3540
      %3573 = vst.msk [vmem:[%s170 + $0x48] sm:$0xff] %vm172, %v3541
      %3574 = vst.msk [vmem:[%s170 + $0x50] sm:$0xff] %vm172, %v3542
      %3575 = vst.msk [vmem:[%s170 + $0x58] sm:$0xff] %vm172, %v3543
      %3576 = vst.msk [vmem:[%s170 + $0x60] sm:$0xff] %vm172, %v3544
      %3577 = vst.msk [vmem:[%s170 + $0x68] sm:$0xff] %vm172, %v3545
      %3578 = vst.msk [vmem:[%s170 + $0x70] sm:$0xff] %vm172, %v3546
      %3579 = vst.msk [vmem:[%s170 + $0x78] sm:$0xff] %vm172, %v3547
      %3580 = vst.msk [vmem:[%s170 + $0x80] sm:$0xff] %vm172, %v3548
      %3581 = vst.msk [vmem:[%s170 + $0x88] sm:$0xff] %vm172, %v3549
      %3582 = vst.msk [vmem:[%s170 + $0x90] sm:$0xff] %vm172, %v3550
      %3583 = vst.msk [vmem:[%s170 + $0x98] sm:$0xff] %vm172, %v3551
      %3584 = vst.msk [vmem:[%s170 + $0xa0] sm:$0xff] %vm172, %v3552
      %3585 = vst.msk [vmem:[%s170 + $0xa8] sm:$0xff] %vm172, %v3553
      %3586 = vst.msk [vmem:[%s170 + $0xb0] sm:$0xff] %vm172, %v3554
      %3587 = vst.msk [vmem:[%s170 + $0xb8] sm:$0xff] %vm172, %v3555
      %3588 = vst.msk [vmem:[%s170 + $0xc0] sm:$0xff] %vm172, %v3556
      %3589 = vst.msk [vmem:[%s170 + $0xc8] sm:$0xff] %vm172, %v3557
      %3590 = vst.msk [vmem:[%s170 + $0xd0] sm:$0xff] %vm172, %v3558
      %3591 = vst.msk [vmem:[%s170 + $0xd8] sm:$0xff] %vm172, %v3559
      %3592 = vst.msk [vmem:[%s170 + $0xe0] sm:$0xff] %vm172, %v3560
      %3593 = vst.msk [vmem:[%s170 + $0xe8] sm:$0xff] %vm172, %v3561
      %3594 = vst.msk [vmem:[%s170 + $0xf0] sm:$0xff] %vm172, %v3562
      %3595 = vst.msk [vmem:[%s170 + $0xf8] sm:$0xff] %vm172, %v3563
      %p3596 = scmp.lt.s32.totalorder %s14, 1
      %s3597 = scalar_select %p3596, %s14, 1
      %s3598 = smul.addr %s3597, 32
      %s3599 = smul.addr %s3598, 8
      %s3600 = scalar_lea.vmem %s3, %s3599
      // Predicated region
      $region33: #{decoder_block_forward.5} parent=31 // pred_check
        %p3601 = pneg %p100
      $region34: #{decoder_block_forward.5} parent=31 // pred_check_branch
        %3603 = sbr.rel (%p3601) target = $region36
      $region35: #{decoder_block_forward.5} parent=31 // pred_region
        _
      $region36: #{decoder_block_forward.5} parent=31 // pred_fallthru
        _
    $region32: #{decoder_block_forward.5} parent=5 // pred_fallthru
      _
    %p3604 = scmp.le.s32.totalorder 2, %s9
    // Predicated region
    $region37: #{decoder_block_forward.5} parent=5 // pred_check
      %p3605 = pneg %p3604
    $region38: #{decoder_block_forward.5} parent=5 // pred_check_branch
      %3607 = sbr.rel (%p3605) target = $region40
    $region39: #{decoder_block_forward.5} parent=5 // pred_region
      %s3608 = ssub.s32 %s9, 2
      // Predicated region
      $region41: #{decoder_block_forward.5} parent=39 // pred_check
        %p3609 = pneg %p106
      $region42: #{decoder_block_forward.5} parent=39 // pred_check_branch
        %3611 = sbr.rel (%p3609) target = $region44
      $region43: #{decoder_block_forward.5} parent=39 // pred_region
        %p3612 = scmp.lt.s32.totalorder %s15, 1
        %s3613 = scalar_select %p3612, %s15, 1
        %s3614 = smul.addr %s3613, 32
        %s3615 = smul.addr %s3614, 8
        %s3616 = scalar_lea.vmem %s3, %s3615
      $region44: #{decoder_block_forward.5} parent=39 // pred_fallthru
        _
    $region40: #{decoder_block_forward.5} parent=5 // pred_fallthru
      _
  $region6: #{decoder_block_forward.5} parent=0 // loop_footer
    %s13 = sadd.s32 1, %s9
  $region7: #{decoder_block_forward.5} parent=0 // loop_footer_branch
    %8 = sbr.rel target = $region3
  $region8: #{decoder_block_forward.5} parent=0 // loop_exit
    _

// kernel: decoder_block_forward.4
$region0: #{decoder_block_forward.4}
  #allocation0 [shape = 'u32[]', space=smem, size = 0x4, offset = 0x4, fixed_abs, tag = 'smem constant byte address 0x4 - core index']
  #allocation1 [shape = 'u32[72,128]{1,0:T(1,128)}', space=vmem, size = 0x9000, scoped, tag = 'internal scratch']
  #allocation2 [shape = 'bf16[18,18,8]{2,1,0:T(8,128)(2,1)}', space=vmem, size = 0x1b000, scoped, tag = 'scratch operand']
  #allocation3 [shape = 'bf16[18,18,8]{2,1,0:T(8,128)(2,1)}', space=vmem, size = 0x1b000, scoped, tag = 'scratch operand']
  #allocation4 [shape = 'f32[16,16,8]{2,1,0:T(8,128)}', space=vmem, size = 0x20000, scoped, tag = 'scratch operand']
  %s0 = inlined_call_operand.vmem [shape: f32[2,16,16,8], index: 0, kind: input, shape index: {}]
  %s1 = inlined_call_operand.vmem [shape: f32[2,16,16,8], index: 1, kind: input, shape index: {}]
  %s2 = inlined_call_operand.vmem [shape: bf16[3,3,8,8], index: 2, kind: input, shape index: {}]
  %s3 = inlined_call_operand.vmem [shape: bf16[3,3,8,8], index: 3, kind: input, shape index: {}]
  %s4 = inlined_call_operand.vmem [shape: f32[1,8], index: 4, kind: input, shape index: {}]
  %s5 = inlined_call_operand.vmem [shape: f32[2,16,16,8], index: 5, kind: output, shape index: {}]
  %s6 = sld [smem:[#allocation0]]
  $region53: #{decoder_block_forward.4} parent=0
    _
  %s8 = ssub.s32 1, %s6
  %s9 = scalar_select 0, %s8, %s6
  loop: start=0, step=1, limit=4
  $region2: #{decoder_block_forward.4} parent=0 // loop_pre_header
    _
  $region3: #{decoder_block_forward.4} parent=0 // loop_header
    %s11 = sphi 0, %s15
    %p12 = scmp.ge.s32.totalorder %s11, 4
    %s21 = sphi 0, %s23
    %s24 = sphi 0, %s21
    %s25 = sphi 0, %s24
    %s41 = sphi 0, %s25
    %s47 = sphi 0, %s49
    %s50 = sphi 0, %s47
    %s51 = sphi 0, %s50
    %s67 = sphi 0, %s51
    %s71 = sphi 0, %s71
    %s73 = sphi 0, %s71
    %s74 = sphi 0, %s73
    %s88 = sphi 0, %s74
    %s92 = sphi 0, %s92
    %s94 = sphi 0, %s92
    %s95 = sphi 0, %s94
    %s109 = sphi 0, %s95
    %s113 = sphi 0, %s113
    %s115 = sphi 0, %s113
    %s116 = sphi 0, %s115
    %s130 = sphi 0, %s116
    %s136 = sphi 0, %s138
    %s139 = sphi 0, %s136
    %s140 = sphi 0, %s139
    %s156 = sphi 0, %s140
  $region4: #{decoder_block_forward.4} parent=0 // loop_header_branch
    %14 = sbr.rel (%p12) target = $region8
  $region5: #{decoder_block_forward.4} parent=0 // loop_body
    %s16 = ssub.s32 %s11, 1
    %s17 = ssub.s32 %s11, 2
    %s18 = sadd.s32 %s11, 1
    %s19 = ssub.s32 %s11, %s18
    %p20 = scmp.eq.s32.totalorder %s19, 0
    %s22 = sadd.s32 %s21, 1
    %s23 = scalar_select %p20, %s21, %s22
    %p26 = pneg %p20
    %p27 = scmp.eq.s32.totalorder %s11, 1
    %p28 = por %p26, %p27
    %p29 = scmp.ne.s32.totalorder %s21, %s24
    %p30 = scmp.eq.s32.totalorder %s11, 0
    %p31 = por %p29, %p30
    %p32 = scmp.ne.s32.totalorder %s21, %s24
    %p33 = scmp.eq.s32.totalorder %s16, 1
    %p34 = por %p32, %p33
    %p35 = scmp.ne.s32.totalorder %s24, %s25
    %p36 = scmp.eq.s32.totalorder %s16, 0
    %p37 = por %p35, %p36
    %p38 = scmp.ne.s32.totalorder %s24, %s25
    %p39 = scmp.eq.s32.totalorder %s17, 1
    %p40 = por %p38, %p39
    %p42 = scmp.ne.s32.totalorder %s25, %s41
    %p43 = scmp.eq.s32.totalorder %s17, 0
    %p44 = por %p42, %p43
    %s45 = ssub.s32 %s11, %s18
    %p46 = scmp.eq.s32.totalorder %s45, 0
    %s48 = sadd.s32 %s47, 1
    %s49 = scalar_select %p46, %s47, %s48
    %p52 = pneg %p46
    %p53 = scmp.eq.s32.totalorder %s11, 1
    %p54 = por %p52, %p53
    %p55 = scmp.ne.s32.totalorder %s47, %s50
    %p56 = scmp.eq.s32.totalorder %s11, 0
    %p57 = por %p55, %p56
    %p58 = scmp.ne.s32.totalorder %s47, %s50
    %p59 = scmp.eq.s32.totalorder %s16, 1
    %p60 = por %p58, %p59
    %p61 = scmp.ne.s32.totalorder %s50, %s51
    %p62 = scmp.eq.s32.totalorder %s16, 0
    %p63 = por %p61, %p62
    %p64 = scmp.ne.s32.totalorder %s50, %s51
    %p65 = scmp.eq.s32.totalorder %s17, 1
    %p66 = por %p64, %p65
    %p68 = scmp.ne.s32.totalorder %s51, %s67
    %p69 = scmp.eq.s32.totalorder %s17, 0
    %p70 = por %p68, %p69
    %s72 = sadd.s32 %s71, 1
    %p75 = scmp.eq.s32.totalorder %s11, 1
    %p76 = scmp.ne.s32.totalorder %s71, %s73
    %p77 = scmp.eq.s32.totalorder %s11, 0
    %p78 = por %p76, %p77
    %p79 = scmp.ne.s32.totalorder %s71, %s73
    %p80 = scmp.eq.s32.totalorder %s16, 1
    %p81 = por %p79, %p80
    %p82 = scmp.ne.s32.totalorder %s73, %s74
    %p83 = scmp.eq.s32.totalorder %s16, 0
    %p84 = por %p82, %p83
    %p85 = scmp.ne.s32.totalorder %s73, %s74
    %p86 = scmp.eq.s32.totalorder %s17, 1
    %p87 = por %p85, %p86
    %p89 = scmp.ne.s32.totalorder %s74, %s88
    %p90 = scmp.eq.s32.totalorder %s17, 0
    %p91 = por %p89, %p90
    %s93 = sadd.s32 %s92, 1
    %p96 = scmp.eq.s32.totalorder %s11, 1
    %p97 = scmp.ne.s32.totalorder %s92, %s94
    %p98 = scmp.eq.s32.totalorder %s11, 0
    %p99 = por %p97, %p98
    %p100 = scmp.ne.s32.totalorder %s92, %s94
    %p101 = scmp.eq.s32.totalorder %s16, 1
    %p102 = por %p100, %p101
    %p103 = scmp.ne.s32.totalorder %s94, %s95
    %p104 = scmp.eq.s32.totalorder %s16, 0
    %p105 = por %p103, %p104
    %p106 = scmp.ne.s32.totalorder %s94, %s95
    %p107 = scmp.eq.s32.totalorder %s17, 1
    %p108 = por %p106, %p107
    %p110 = scmp.ne.s32.totalorder %s95, %s109
    %p111 = scmp.eq.s32.totalorder %s17, 0
    %p112 = por %p110, %p111
    %s114 = sadd.s32 %s113, 1
    %p117 = scmp.eq.s32.totalorder %s11, 1
    %p118 = scmp.ne.s32.totalorder %s113, %s115
    %p119 = scmp.eq.s32.totalorder %s11, 0
    %p120 = por %p118, %p119
    %p121 = scmp.ne.s32.totalorder %s113, %s115
    %p122 = scmp.eq.s32.totalorder %s16, 1
    %p123 = por %p121, %p122
    %p124 = scmp.ne.s32.totalorder %s115, %s116
    %p125 = scmp.eq.s32.totalorder %s16, 0
    %p126 = por %p124, %p125
    %p127 = scmp.ne.s32.totalorder %s115, %s116
    %p128 = scmp.eq.s32.totalorder %s17, 1
    %p129 = por %p127, %p128
    %p131 = scmp.ne.s32.totalorder %s116, %s130
    %p132 = scmp.eq.s32.totalorder %s17, 0
    %p133 = por %p131, %p132
    %s134 = ssub.s32 %s11, %s18
    %p135 = scmp.eq.s32.totalorder %s134, 0
    %s137 = sadd.s32 %s136, 1
    %s138 = scalar_select %p135, %s136, %s137
    %p141 = pneg %p135
    %p142 = scmp.eq.s32.totalorder %s11, 1
    %p143 = por %p141, %p142
    %p144 = scmp.ne.s32.totalorder %s136, %s139
    %p145 = scmp.eq.s32.totalorder %s11, 0
    %p146 = por %p144, %p145
    %p147 = scmp.ne.s32.totalorder %s136, %s139
    %p148 = scmp.eq.s32.totalorder %s16, 1
    %p149 = por %p147, %p148
    %p150 = scmp.ne.s32.totalorder %s139, %s140
    %p151 = scmp.eq.s32.totalorder %s16, 0
    %p152 = por %p150, %p151
    %p153 = scmp.ne.s32.totalorder %s139, %s140
    %p154 = scmp.eq.s32.totalorder %s17, 1
    %p155 = por %p153, %p154
    %p157 = scmp.ne.s32.totalorder %s140, %s156
    %p158 = scmp.eq.s32.totalorder %s17, 0
    %p159 = por %p157, %p158
    %p160 = scmp.le.s32.totalorder 1, %s11
    %p161 = scmp.lt.s32.totalorder %s11, 3
    %p162 = pnand %p160, %p161
    %p163 = pneg %p162
    // Predicated region
    $region9: #{decoder_block_forward.4} parent=5 // pred_check
      _
    $region10: #{decoder_block_forward.4} parent=5 // pred_check_branch
      %165 = sbr.rel (%p162) target = $region12
    $region11: #{decoder_block_forward.4} parent=5 // pred_region
      %s166 = ssub.s32 %s11, 1
      // Predicated region
      $region13: #{decoder_block_forward.4} parent=11 // pred_check
        %p167 = pneg %p84
      $region14: #{decoder_block_forward.4} parent=11 // pred_check_branch
        %169 = sbr.rel (%p167) target = $region16
      $region15: #{decoder_block_forward.4} parent=11 // pred_region
        _
      $region16: #{decoder_block_forward.4} parent=11 // pred_fallthru
        _
      // Predicated region
      $region17: #{decoder_block_forward.4} parent=11 // pred_check
        %p170 = pneg %p105
      $region18: #{decoder_block_forward.4} parent=11 // pred_check_branch
        %172 = sbr.rel (%p170) target = $region20
      $region19: #{decoder_block_forward.4} parent=11 // pred_region
        _
      $region20: #{decoder_block_forward.4} parent=11 // pred_fallthru
        _
      // Predicated region
      $region21: #{decoder_block_forward.4} parent=11 // pred_check
        %p173 = pneg %p126
      $region22: #{decoder_block_forward.4} parent=11 // pred_check_branch
        %175 = sbr.rel (%p173) target = $region24
      $region23: #{decoder_block_forward.4} parent=11 // pred_region
        _
      $region24: #{decoder_block_forward.4} parent=11 // pred_fallthru
        _
    $region12: #{decoder_block_forward.4} parent=5 // pred_fallthru
      _
    %p176 = scmp.lt.s32.totalorder %s11, 2
    // Predicated region
    $region25: #{decoder_block_forward.4} parent=5 // pred_check
      %p177 = pneg %p176
    $region26: #{decoder_block_forward.4} parent=5 // pred_check_branch
      %179 = sbr.rel (%p177) target = $region28
    $region27: #{decoder_block_forward.4} parent=5 // pred_region
      // Predicated region
      $region29: #{decoder_block_forward.4} parent=27 // pred_check
        %p180 = pneg %p31
      $region30: #{decoder_block_forward.4} parent=27 // pred_check_branch
        %182 = sbr.rel (%p180) target = $region32
      $region31: #{decoder_block_forward.4} parent=27 // pred_region
        %p183 = scmp.lt.s32.totalorder %s11, 1
        %s184 = scalar_select %p183, %s11, 1
        %s185 = smul.addr %s184, 32
        %s186 = smul.addr %s185, 8
        %s187 = scalar_lea.vmem %s0, %s186
      $region32: #{decoder_block_forward.4} parent=27 // pred_fallthru
        _
      // Predicated region
      $region33: #{decoder_block_forward.4} parent=27 // pred_check
        %p188 = pneg %p57
      $region34: #{decoder_block_forward.4} parent=27 // pred_check_branch
        %190 = sbr.rel (%p188) target = $region36
      $region35: #{decoder_block_forward.4} parent=27 // pred_region
        %p191 = scmp.lt.s32.totalorder %s11, 1
        %s192 = scalar_select %p191, %s11, 1
        %s193 = smul.addr %s192, 32
        %s194 = smul.addr %s193, 8
        %s195 = scalar_lea.vmem %s1, %s194
      $region36: #{decoder_block_forward.4} parent=27 // pred_fallthru
        _
    $region28: #{decoder_block_forward.4} parent=5 // pred_fallthru
      _
    %p196 = scmp.le.s32.totalorder 1, %s11
    %p197 = scmp.lt.s32.totalorder %s11, 3
    %p198 = pnand %p196, %p197
    %p199 = pneg %p198
    // Predicated region
    $region37: #{decoder_block_forward.4} parent=5 // pred_check
      _
    $region38: #{decoder_block_forward.4} parent=5 // pred_check_branch
      %201 = sbr.rel (%p198) target = $region40
    $region39: #{decoder_block_forward.4} parent=5 // pred_region
      %s202 = ssub.s32 %s11, 1
      %p203 = scmp.lt.s32.totalorder %s16, 1
      %s204 = scalar_select %p203, %s16, 1
      %s205 = smul.addr %s204, 32
      %s206 = smul.addr %s205, 8
      %s207 = scalar_lea.vmem %s0, %s206
      %p208 = pneg %p37
      %p209 = pneg %p34
      %p210 = scmp.lt.s32.totalorder %s16, 1
      %s211 = scalar_select %p210, %s16, 1
      %s212 = smul.addr %s211, 32
      %s213 = smul.addr %s212, 8
      %s214 = scalar_lea.vmem %s1, %s213
      %p215 = pneg %p63
      %p216 = pneg %p60
      %p217 = pneg %p84
      %p218 = pneg %p81
      %p219 = pneg %p105
      %p220 = pneg %p102
      %p221 = pneg %p126
      %p222 = pneg %p123
      %p223 = pneg %p152
      %p224 = pneg %p149
      %p225 = scmp.lt.s32.totalorder %s16, 1
      %s226 = scalar_select %p225, %s16, 1
      %s227 = smul.addr %s226, 32
      %s228 = smul.addr %s227, 8
      %s229 = scalar_lea.vmem %s5, %s228
      %p230 = scmp.lt.s32.totalorder %s16, 1
      %s231 = scalar_select %p230, %s16, 1
      %s232 = smul.addr %s231, 32
      %s233 = smul.addr %s232, 8
      %s234 = scalar_lea.vmem %s0, %s233
      %p235 = scmp.lt.s32.totalorder %s16, 1
      %s236 = scalar_select %p235, %s16, 1
      %s237 = smul.addr %s236, 32
      %s238 = smul.addr %s237, 8
      %s239 = scalar_lea.vmem %s1, %s238
      %p240 = scmp.lt.s32.totalorder %s16, 1
      %s241 = scalar_select %p240, %s16, 1
      %s242 = smul.addr %s241, 32
      %s243 = smul.addr %s242, 8
      %s244 = scalar_lea.vmem %s5, %s243
      %vm246 = vcmask 64512
      %247 = vst.msk [vmem:[#allocation4] sm:$0xff] %vm246, 0.0
      %248 = vst.msk [vmem:[#allocation4 + $0x8] sm:$0xff] %vm246, 0.0
      %249 = vst.msk [vmem:[#allocation4 + $0x10] sm:$0xff] %vm246, 0.0
      %250 = vst.msk [vmem:[#allocation4 + $0x18] sm:$0xff] %vm246, 0.0
      %251 = vst.msk [vmem:[#allocation4 + $0x20] sm:$0xff] %vm246, 0.0
      %252 = vst.msk [vmem:[#allocation4 + $0x28] sm:$0xff] %vm246, 0.0
      %253 = vst.msk [vmem:[#allocation4 + $0x30] sm:$0xff] %vm246, 0.0
      %254 = vst.msk [vmem:[#allocation4 + $0x38] sm:$0xff] %vm246, 0.0
      %255 = vst.msk [vmem:[#allocation4 + $0x40] sm:$0xff] %vm246, 0.0
      %256 = vst.msk [vmem:[#allocation4 + $0x48] sm:$0xff] %vm246, 0.0
      %257 = vst.msk [vmem:[#allocation4 + $0x50] sm:$0xff] %vm246, 0.0
      %258 = vst.msk [vmem:[#allocation4 + $0x58] sm:$0xff] %vm246, 0.0
      %259 = vst.msk [vmem:[#allocation4 + $0x60] sm:$0xff] %vm246, 0.0
      %260 = vst.msk [vmem:[#allocation4 + $0x68] sm:$0xff] %vm246, 0.0
      %261 = vst.msk [vmem:[#allocation4 + $0x70] sm:$0xff] %vm246, 0.0
      %262 = vst.msk [vmem:[#allocation4 + $0x78] sm:$0xff] %vm246, 0.0
      %263 = vst.msk [vmem:[#allocation4 + $0x80] sm:$0xff] %vm246, 0.0
      %264 = vst.msk [vmem:[#allocation4 + $0x88] sm:$0xff] %vm246, 0.0
      %265 = vst.msk [vmem:[#allocation4 + $0x90] sm:$0xff] %vm246, 0.0
      %266 = vst.msk [vmem:[#allocation4 + $0x98] sm:$0xff] %vm246, 0.0
      %267 = vst.msk [vmem:[#allocation4 + $0xa0] sm:$0xff] %vm246, 0.0
      %268 = vst.msk [vmem:[#allocation4 + $0xa8] sm:$0xff] %vm246, 0.0
      %269 = vst.msk [vmem:[#allocation4 + $0xb0] sm:$0xff] %vm246, 0.0
      %270 = vst.msk [vmem:[#allocation4 + $0xb8] sm:$0xff] %vm246, 0.0
      %271 = vst.msk [vmem:[#allocation4 + $0xc0] sm:$0xff] %vm246, 0.0
      %272 = vst.msk [vmem:[#allocation4 + $0xc8] sm:$0xff] %vm246, 0.0
      %273 = vst.msk [vmem:[#allocation4 + $0xd0] sm:$0xff] %vm246, 0.0
      %274 = vst.msk [vmem:[#allocation4 + $0xd8] sm:$0xff] %vm246, 0.0
      %275 = vst.msk [vmem:[#allocation4 + $0xe0] sm:$0xff] %vm246, 0.0
      %276 = vst.msk [vmem:[#allocation4 + $0xe8] sm:$0xff] %vm246, 0.0
      %277 = vst.msk [vmem:[#allocation4 + $0xf0] sm:$0xff] %vm246, 0.0
      %278 = vst.msk [vmem:[#allocation4 + $0xf8] sm:$0xff] %vm246, 0.0
      %vm279 = vcmask 60416
      %280 = vst.msk [vmem:[#allocation2] sm:$0xf] %vm279, 0
      %281 = vst.msk [vmem:[#allocation2 + $0x4] sm:$0xf] %vm279, 0
      %vm282 = vcmask 57344
      %283 = vst.msk [vmem:[#allocation2 + $0x8] sm:$0x1] %vm282, 0
      %284 = vst.msk [vmem:[#allocation2 + $0xc] sm:$0xf] %vm279, 0
      %285 = vst.msk [vmem:[#allocation2 + $0x10] sm:$0xf] %vm279, 0
      %286 = vst.msk [vmem:[#allocation2 + $0x14] sm:$0x1] %vm282, 0
      %287 = vst.msk [vmem:[#allocation2 + $0x18] sm:$0xf] %vm279, 0
      %288 = vst.msk [vmem:[#allocation2 + $0x1c] sm:$0xf] %vm279, 0
      %289 = vst.msk [vmem:[#allocation2 + $0x20] sm:$0x1] %vm282, 0
      %290 = vst.msk [vmem:[#allocation2 + $0x24] sm:$0xf] %vm279, 0
      %291 = vst.msk [vmem:[#allocation2 + $0x28] sm:$0xf] %vm279, 0
      %292 = vst.msk [vmem:[#allocation2 + $0x2c] sm:$0x1] %vm282, 0
      %293 = vst.msk [vmem:[#allocation2 + $0x30] sm:$0xf] %vm279, 0
      %294 = vst.msk [vmem:[#allocation2 + $0x34] sm:$0xf] %vm279, 0
      %295 = vst.msk [vmem:[#allocation2 + $0x38] sm:$0x1] %vm282, 0
      %296 = vst.msk [vmem:[#allocation2 + $0x3c] sm:$0xf] %vm279, 0
      %297 = vst.msk [vmem:[#allocation2 + $0x40] sm:$0xf] %vm279, 0
      %298 = vst.msk [vmem:[#allocation2 + $0x44] sm:$0x1] %vm282, 0
      %299 = vst.msk [vmem:[#allocation2 + $0x48] sm:$0xf] %vm279, 0
      %300 = vst.msk [vmem:[#allocation2 + $0x4c] sm:$0xf] %vm279, 0
      %301 = vst.msk [vmem:[#allocation2 + $0x50] sm:$0x1] %vm282, 0
      %302 = vst.msk [vmem:[#allocation2 + $0x54] sm:$0xf] %vm279, 0
      %303 = vst.msk [vmem:[#allocation2 + $0x58] sm:$0xf] %vm279, 0
      %304 = vst.msk [vmem:[#allocation2 + $0x5c] sm:$0x1] %vm282, 0
      %305 = vst.msk [vmem:[#allocation2 + $0x60] sm:$0xf] %vm279, 0
      %306 = vst.msk [vmem:[#allocation2 + $0x64] sm:$0xf] %vm279, 0
      %307 = vst.msk [vmem:[#allocation2 + $0x68] sm:$0x1] %vm282, 0
      %308 = vst.msk [vmem:[#allocation2 + $0x6c] sm:$0xf] %vm279, 0
      %309 = vst.msk [vmem:[#allocation2 + $0x70] sm:$0xf] %vm279, 0
      %310 = vst.msk [vmem:[#allocation2 + $0x74] sm:$0x1] %vm282, 0
      %311 = vst.msk [vmem:[#allocation2 + $0x78] sm:$0xf] %vm279, 0
      %312 = vst.msk [vmem:[#allocation2 + $0x7c] sm:$0xf] %vm279, 0
      %313 = vst.msk [vmem:[#allocation2 + $0x80] sm:$0x1] %vm282, 0
      %314 = vst.msk [vmem:[#allocation2 + $0x84] sm:$0xf] %vm279, 0
      %315 = vst.msk [vmem:[#allocation2 + $0x88] sm:$0xf] %vm279, 0
      %316 = vst.msk [vmem:[#allocation2 + $0x8c] sm:$0x1] %vm282, 0
      %317 = vst.msk [vmem:[#allocation2 + $0x90] sm:$0xf] %vm279, 0
      %318 = vst.msk [vmem:[#allocation2 + $0x94] sm:$0xf] %vm279, 0
      %319 = vst.msk [vmem:[#allocation2 + $0x98] sm:$0x1] %vm282, 0
      %320 = vst.msk [vmem:[#allocation2 + $0x9c] sm:$0xf] %vm279, 0
      %321 = vst.msk [vmem:[#allocation2 + $0xa0] sm:$0xf] %vm279, 0
      %322 = vst.msk [vmem:[#allocation2 + $0xa4] sm:$0x1] %vm282, 0
      %323 = vst.msk [vmem:[#allocation2 + $0xa8] sm:$0xf] %vm279, 0
      %324 = vst.msk [vmem:[#allocation2 + $0xac] sm:$0xf] %vm279, 0
      %325 = vst.msk [vmem:[#allocation2 + $0xb0] sm:$0x1] %vm282, 0
      %326 = vst.msk [vmem:[#allocation2 + $0xb4] sm:$0xf] %vm279, 0
      %327 = vst.msk [vmem:[#allocation2 + $0xb8] sm:$0xf] %vm279, 0
      %328 = vst.msk [vmem:[#allocation2 + $0xbc] sm:$0x1] %vm282, 0
      %329 = vst.msk [vmem:[#allocation2 + $0xc0] sm:$0xf] %vm279, 0
      %330 = vst.msk [vmem:[#allocation2 + $0xc4] sm:$0xf] %vm279, 0
      %331 = vst.msk [vmem:[#allocation2 + $0xc8] sm:$0x1] %vm282, 0
      %332 = vst.msk [vmem:[#allocation2 + $0xcc] sm:$0xf] %vm279, 0
      %333 = vst.msk [vmem:[#allocation2 + $0xd0] sm:$0xf] %vm279, 0
      %334 = vst.msk [vmem:[#allocation2 + $0xd4] sm:$0x1] %vm282, 0
      %v335 = vld [vmem:[%s234] sm:$0xff]
      %v336 = vld [vmem:[%s234 + $0x8] sm:$0xff]
      %v337 = vld [vmem:[%s234 + $0x10] sm:$0xff]
      %v338 = vld [vmem:[%s234 + $0x18] sm:$0xff]
      %v339 = vld [vmem:[%s234 + $0x20] sm:$0xff]
      %v340 = vld [vmem:[%s234 + $0x28] sm:$0xff]
      %v341 = vld [vmem:[%s234 + $0x30] sm:$0xff]
      %v342 = vld [vmem:[%s234 + $0x38] sm:$0xff]
      %v343 = vld [vmem:[%s234 + $0x40] sm:$0xff]
      %v344 = vld [vmem:[%s234 + $0x48] sm:$0xff]
      %v345 = vld [vmem:[%s234 + $0x50] sm:$0xff]
      %v346 = vld [vmem:[%s234 + $0x58] sm:$0xff]
      %v347 = vld [vmem:[%s234 + $0x60] sm:$0xff]
      %v348 = vld [vmem:[%s234 + $0x68] sm:$0xff]
      %v349 = vld [vmem:[%s234 + $0x70] sm:$0xff]
      %v350 = vld [vmem:[%s234 + $0x78] sm:$0xff]
      %v351 = vld [vmem:[%s234 + $0x80] sm:$0xff]
      %v352 = vld [vmem:[%s234 + $0x88] sm:$0xff]
      %v353 = vld [vmem:[%s234 + $0x90] sm:$0xff]
      %v354 = vld [vmem:[%s234 + $0x98] sm:$0xff]
      %v355 = vld [vmem:[%s234 + $0xa0] sm:$0xff]
      %v356 = vld [vmem:[%s234 + $0xa8] sm:$0xff]
      %v357 = vld [vmem:[%s234 + $0xb0] sm:$0xff]
      %v358 = vld [vmem:[%s234 + $0xb8] sm:$0xff]
      %v359 = vld [vmem:[%s234 + $0xc0] sm:$0xff]
      %v360 = vld [vmem:[%s234 + $0xc8] sm:$0xff]
      %v361 = vld [vmem:[%s234 + $0xd0] sm:$0xff]
      %v362 = vld [vmem:[%s234 + $0xd8] sm:$0xff]
      %v363 = vld [vmem:[%s234 + $0xe0] sm:$0xff]
      %v364 = vld [vmem:[%s234 + $0xe8] sm:$0xff]
      %v365 = vld [vmem:[%s234 + $0xf0] sm:$0xff]
      %v366 = vld [vmem:[%s234 + $0xf8] sm:$0xff]
      %v367 = vpack.c.bf16 %v335, %v335
      %v368 = vpack.c.bf16 %v336, %v336
      %v369 = vpack.c.bf16 %v337, %v337
      %v370 = vpack.c.bf16 %v338, %v338
      %v371 = vpack.c.bf16 %v339, %v339
      %v372 = vpack.c.bf16 %v340, %v340
      %v373 = vpack.c.bf16 %v341, %v341
      %v374 = vpack.c.bf16 %v342, %v342
      %v375 = vpack.c.bf16 %v343, %v343
      %v376 = vpack.c.bf16 %v344, %v344
      %v377 = vpack.c.bf16 %v345, %v345
      %v378 = vpack.c.bf16 %v346, %v346
      %v379 = vpack.c.bf16 %v347, %v347
      %v380 = vpack.c.bf16 %v348, %v348
      %v381 = vpack.c.bf16 %v349, %v349
      %v382 = vpack.c.bf16 %v350, %v350
      %v383 = vpack.c.bf16 %v351, %v351
      %v384 = vpack.c.bf16 %v352, %v352
      %v385 = vpack.c.bf16 %v353, %v353
      %v386 = vpack.c.bf16 %v354, %v354
      %v387 = vpack.c.bf16 %v355, %v355
      %v388 = vpack.c.bf16 %v356, %v356
      %v389 = vpack.c.bf16 %v357, %v357
      %v390 = vpack.c.bf16 %v358, %v358
      %v391 = vpack.c.bf16 %v359, %v359
      %v392 = vpack.c.bf16 %v360, %v360
      %v393 = vpack.c.bf16 %v361, %v361
      %v394 = vpack.c.bf16 %v362, %v362
      %v395 = vpack.c.bf16 %v363, %v363
      %v396 = vpack.c.bf16 %v364, %v364
      %v397 = vpack.c.bf16 %v365, %v365
      %v398 = vpack.c.bf16 %v366, %v366
      %vm399 = vsmask.f32 256
      %vm400 = vsmask.f32 4368
      %vm401 = vmor %vm399, %vm400
      %v403 = vshrl.u32 %v367, 16
      %v405 = vrot.slane %v403, 7
      %v406 = vshll.u32 %v367, 16
      %v408 = vor.u32 %v405, %v406
      %v409 = vrot.slane %v405, 4
      %v411 = vshrl.u32 %v368, 16
      %v413 = vrot.slane %v411, 7
      %v414 = vshll.u32 %v368, 16
      %v416 = vor.u32 %v413, %v414
      %v417 = vsel %vm401, %v409, %v416
      %v418 = vrot.slane %v413, 4
      %v420 = vshrl.u32 %v369, 16
      %v422 = vrot.slane %v420, 7
      %v423 = vshll.u32 %v369, 16
      %v425 = vor.u32 %v422, %v423
      %v426 = vrot.slane %v422, 4
      %v428 = vshrl.u32 %v370, 16
      %v430 = vrot.slane %v428, 7
      %v431 = vshll.u32 %v370, 16
      %v433 = vor.u32 %v430, %v431
      %v434 = vsel %vm401, %v426, %v433
      %v435 = vrot.slane %v430, 4
      %v437 = vshrl.u32 %v371, 16
      %v439 = vrot.slane %v437, 7
      %v440 = vshll.u32 %v371, 16
      %v442 = vor.u32 %v439, %v440
      %v443 = vrot.slane %v439, 4
      %v445 = vshrl.u32 %v372, 16
      %v447 = vrot.slane %v445, 7
      %v448 = vshll.u32 %v372, 16
      %v450 = vor.u32 %v447, %v448
      %v451 = vsel %vm401, %v443, %v450
      %v452 = vrot.slane %v447, 4
      %v454 = vshrl.u32 %v373, 16
      %v456 = vrot.slane %v454, 7
      %v457 = vshll.u32 %v373, 16
      %v459 = vor.u32 %v456, %v457
      %v460 = vrot.slane %v456, 4
      %v462 = vshrl.u32 %v374, 16
      %v464 = vrot.slane %v462, 7
      %v465 = vshll.u32 %v374, 16
      %v467 = vor.u32 %v464, %v465
      %v468 = vsel %vm401, %v460, %v467
      %v469 = vrot.slane %v464, 4
      %v471 = vshrl.u32 %v375, 16
      %v473 = vrot.slane %v471, 7
      %v474 = vshll.u32 %v375, 16
      %v476 = vor.u32 %v473, %v474
      %v477 = vrot.slane %v473, 4
      %v479 = vshrl.u32 %v376, 16
      %v481 = vrot.slane %v479, 7
      %v482 = vshll.u32 %v376, 16
      %v484 = vor.u32 %v481, %v482
      %v485 = vsel %vm401, %v477, %v484
      %v486 = vrot.slane %v481, 4
      %v488 = vshrl.u32 %v377, 16
      %v490 = vrot.slane %v488, 7
      %v491 = vshll.u32 %v377, 16
      %v493 = vor.u32 %v490, %v491
      %v494 = vrot.slane %v490, 4
      %v496 = vshrl.u32 %v378, 16
      %v498 = vrot.slane %v496, 7
      %v499 = vshll.u32 %v378, 16
      %v501 = vor.u32 %v498, %v499
      %v502 = vsel %vm401, %v494, %v501
      %v503 = vrot.slane %v498, 4
      %v505 = vshrl.u32 %v379, 16
      %v507 = vrot.slane %v505, 7
      %v508 = vshll.u32 %v379, 16
      %v510 = vor.u32 %v507, %v508
      %v511 = vrot.slane %v507, 4
      %v513 = vshrl.u32 %v380, 16
      %v515 = vrot.slane %v513, 7
      %v516 = vshll.u32 %v380, 16
      %v518 = vor.u32 %v515, %v516
      %v519 = vsel %vm401, %v511, %v518
      %v520 = vrot.slane %v515, 4
      %v522 = vshrl.u32 %v381, 16
      %v524 = vrot.slane %v522, 7
      %v525 = vshll.u32 %v381, 16
      %v527 = vor.u32 %v524, %v525
      %v528 = vrot.slane %v524, 4
      %v530 = vshrl.u32 %v382, 16
      %v532 = vrot.slane %v530, 7
      %v533 = vshll.u32 %v382, 16
      %v535 = vor.u32 %v532, %v533
      %v536 = vsel %vm401, %v528, %v535
      %v537 = vrot.slane %v532, 4
      %v539 = vshrl.u32 %v383, 16
      %v541 = vrot.slane %v539, 7
      %v542 = vshll.u32 %v383, 16
      %v544 = vor.u32 %v541, %v542
      %v545 = vrot.slane %v541, 4
      %v547 = vshrl.u32 %v384, 16
      %v549 = vrot.slane %v547, 7
      %v550 = vshll.u32 %v384, 16
      %v552 = vor.u32 %v549, %v550
      %v553 = vsel %vm401, %v545, %v552
      %v554 = vrot.slane %v549, 4
      %v556 = vshrl.u32 %v385, 16
      %v558 = vrot.slane %v556, 7
      %v559 = vshll.u32 %v385, 16
      %v561 = vor.u32 %v558, %v559
      %v562 = vrot.slane %v558, 4
      %v564 = vshrl.u32 %v386, 16
      %v566 = vrot.slane %v564, 7
      %v567 = vshll.u32 %v386, 16
      %v569 = vor.u32 %v566, %v567
      %v570 = vsel %vm401, %v562, %v569
      %v571 = vrot.slane %v566, 4
      %v573 = vshrl.u32 %v387, 16
      %v575 = vrot.slane %v573, 7
      %v576 = vshll.u32 %v387, 16
      %v578 = vor.u32 %v575, %v576
      %v579 = vrot.slane %v575, 4
      %v581 = vshrl.u32 %v388, 16
      %v583 = vrot.slane %v581, 7
      %v584 = vshll.u32 %v388, 16
      %v586 = vor.u32 %v583, %v584
      %v587 = vsel %vm401, %v579, %v586
      %v588 = vrot.slane %v583, 4
      %v590 = vshrl.u32 %v389, 16
      %v592 = vrot.slane %v590, 7
      %v593 = vshll.u32 %v389, 16
      %v595 = vor.u32 %v592, %v593
      %v596 = vrot.slane %v592, 4
      %v598 = vshrl.u32 %v390, 16
      %v600 = vrot.slane %v598, 7
      %v601 = vshll.u32 %v390, 16
      %v603 = vor.u32 %v600, %v601
      %v604 = vsel %vm401, %v596, %v603
      %v605 = vrot.slane %v600, 4
      %v607 = vshrl.u32 %v391, 16
      %v609 = vrot.slane %v607, 7
      %v610 = vshll.u32 %v391, 16
      %v612 = vor.u32 %v609, %v610
      %v613 = vrot.slane %v609, 4
      %v615 = vshrl.u32 %v392, 16
      %v617 = vrot.slane %v615, 7
      %v618 = vshll.u32 %v392, 16
      %v620 = vor.u32 %v617, %v618
      %v621 = vsel %vm401, %v613, %v620
      %v622 = vrot.slane %v617, 4
      %v624 = vshrl.u32 %v393, 16
      %v626 = vrot.slane %v624, 7
      %v627 = vshll.u32 %v393, 16
      %v629 = vor.u32 %v626, %v627
      %v630 = vrot.slane %v626, 4
      %v632 = vshrl.u32 %v394, 16
      %v634 = vrot.slane %v632, 7
      %v635 = vshll.u32 %v394, 16
      %v637 = vor.u32 %v634, %v635
      %v638 = vsel %vm401, %v630, %v637
      %v639 = vrot.slane %v634, 4
      %v641 = vshrl.u32 %v395, 16
      %v643 = vrot.slane %v641, 7
      %v644 = vshll.u32 %v395, 16
      %v646 = vor.u32 %v643, %v644
      %v647 = vrot.slane %v643, 4
      %v649 = vshrl.u32 %v396, 16
      %v651 = vrot.slane %v649, 7
      %v652 = vshll.u32 %v396, 16
      %v654 = vor.u32 %v651, %v652
      %v655 = vsel %vm401, %v647, %v654
      %v656 = vrot.slane %v651, 4
      %v658 = vshrl.u32 %v397, 16
      %v660 = vrot.slane %v658, 7
      %v661 = vshll.u32 %v397, 16
      %v663 = vor.u32 %v660, %v661
      %v664 = vrot.slane %v660, 4
      %v666 = vshrl.u32 %v398, 16
      %v668 = vrot.slane %v666, 7
      %v669 = vshll.u32 %v398, 16
      %v671 = vor.u32 %v668, %v669
      %v672 = vsel %vm401, %v664, %v671
      %v673 = vrot.slane %v668, 4
      %s722 = scalar_lea.vmem [#allocation2], 12
      %vm723 = vcmask 60416
      %vm724 = vsmask.f32 7938
      %vm725 = vmand %vm723, %vm724
      %v726 = vld [vmem:[%s722] sm:$0xf]
      %v727 = vsel %vm725, %v408, %v726
      %728 = vst [vmem:[%s722] sm:$0xf] %v727
      %729 = vst.msk [vmem:[%s722 + $0x4] sm:$0xf] %vm279, %v417
      %vm730 = vcmask 57344
      %vm731 = vmand %vm730, %vm399
      %v732 = vld [vmem:[%s722 + $0x8] sm:$0x1]
      %v733 = vsel %vm731, %v418, %v732
      %734 = vst [vmem:[%s722 + $0x8] sm:$0x1] %v733
      %v735 = vld [vmem:[%s722 + $0xc] sm:$0xf]
      %v736 = vsel %vm725, %v425, %v735
      %737 = vst [vmem:[%s722 + $0xc] sm:$0xf] %v736
      %738 = vst.msk [vmem:[%s722 + $0x10] sm:$0xf] %vm279, %v434
      %v739 = vld [vmem:[%s722 + $0x14] sm:$0x1]
      %v740 = vsel %vm731, %v435, %v739
      %741 = vst [vmem:[%s722 + $0x14] sm:$0x1] %v740
      %v742 = vld [vmem:[%s722 + $0x18] sm:$0xf]
      %v743 = vsel %vm725, %v442, %v742
      %744 = vst [vmem:[%s722 + $0x18] sm:$0xf] %v743
      %745 = vst.msk [vmem:[%s722 + $0x1c] sm:$0xf] %vm279, %v451
      %v746 = vld [vmem:[%s722 + $0x20] sm:$0x1]
      %v747 = vsel %vm731, %v452, %v746
      %748 = vst [vmem:[%s722 + $0x20] sm:$0x1] %v747
      %v749 = vld [vmem:[%s722 + $0x24] sm:$0xf]
      %v750 = vsel %vm725, %v459, %v749
      %751 = vst [vmem:[%s722 + $0x24] sm:$0xf] %v750
      %752 = vst.msk [vmem:[%s722 + $0x28] sm:$0xf] %vm279, %v468
      %v753 = vld [vmem:[%s722 + $0x2c] sm:$0x1]
      %v754 = vsel %vm731, %v469, %v753
      %755 = vst [vmem:[%s722 + $0x2c] sm:$0x1] %v754
      %v756 = vld [vmem:[%s722 + $0x30] sm:$0xf]
      %v757 = vsel %vm725, %v476, %v756
      %758 = vst [vmem:[%s722 + $0x30] sm:$0xf] %v757
      %759 = vst.msk [vmem:[%s722 + $0x34] sm:$0xf] %vm279, %v485
      %v760 = vld [vmem:[%s722 + $0x38] sm:$0x1]
      %v761 = vsel %vm731, %v486, %v760
      %762 = vst [vmem:[%s722 + $0x38] sm:$0x1] %v761
      %v763 = vld [vmem:[%s722 + $0x3c] sm:$0xf]
      %v764 = vsel %vm725, %v493, %v763
      %765 = vst [vmem:[%s722 + $0x3c] sm:$0xf] %v764
      %766 = vst.msk [vmem:[%s722 + $0x40] sm:$0xf] %vm279, %v502
      %v767 = vld [vmem:[%s722 + $0x44] sm:$0x1]
      %v768 = vsel %vm731, %v503, %v767
      %769 = vst [vmem:[%s722 + $0x44] sm:$0x1] %v768
      %v770 = vld [vmem:[%s722 + $0x48] sm:$0xf]
      %v771 = vsel %vm725, %v510, %v770
      %772 = vst [vmem:[%s722 + $0x48] sm:$0xf] %v771
      %773 = vst.msk [vmem:[%s722 + $0x4c] sm:$0xf] %vm279, %v519
      %v774 = vld [vmem:[%s722 + $0x50] sm:$0x1]
      %v775 = vsel %vm731, %v520, %v774
      %776 = vst [vmem:[%s722 + $0x50] sm:$0x1] %v775
      %v777 = vld [vmem:[%s722 + $0x54] sm:$0xf]
      %v778 = vsel %vm725, %v527, %v777
      %779 = vst [vmem:[%s722 + $0x54] sm:$0xf] %v778
      %780 = vst.msk [vmem:[%s722 + $0x58] sm:$0xf] %vm279, %v536
      %v781 = vld [vmem:[%s722 + $0x5c] sm:$0x1]
      %v782 = vsel %vm731, %v537, %v781
      %783 = vst [vmem:[%s722 + $0x5c] sm:$0x1] %v782
      %v784 = vld [vmem:[%s722 + $0x60] sm:$0xf]
      %v785 = vsel %vm725, %v544, %v784
      %786 = vst [vmem:[%s722 + $0x60] sm:$0xf] %v785
      %787 = vst.msk [vmem:[%s722 + $0x64] sm:$0xf] %vm279, %v553
      %v788 = vld [vmem:[%s722 + $0x68] sm:$0x1]
      %v789 = vsel %vm731, %v554, %v788
      %790 = vst [vmem:[%s722 + $0x68] sm:$0x1] %v789
      %v791 = vld [vmem:[%s722 + $0x6c] sm:$0xf]
      %v792 = vsel %vm725, %v561, %v791
      %793 = vst [vmem:[%s722 + $0x6c] sm:$0xf] %v792
      %794 = vst.msk [vmem:[%s722 + $0x70] sm:$0xf] %vm279, %v570
      %v795 = vld [vmem:[%s722 + $0x74] sm:$0x1]
      %v796 = vsel %vm731, %v571, %v795
      %797 = vst [vmem:[%s722 + $0x74] sm:$0x1] %v796
      %v798 = vld [vmem:[%s722 + $0x78] sm:$0xf]
      %v799 = vsel %vm725, %v578, %v798
      %800 = vst [vmem:[%s722 + $0x78] sm:$0xf] %v799
      %801 = vst.msk [vmem:[%s722 + $0x7c] sm:$0xf] %vm279, %v587
      %v802 = vld [vmem:[%s722 + $0x80] sm:$0x1]
      %v803 = vsel %vm731, %v588, %v802
      %804 = vst [vmem:[%s722 + $0x80] sm:$0x1] %v803
      %v805 = vld [vmem:[%s722 + $0x84] sm:$0xf]
      %v806 = vsel %vm725, %v595, %v805
      %807 = vst [vmem:[%s722 + $0x84] sm:$0xf] %v806
      %808 = vst.msk [vmem:[%s722 + $0x88] sm:$0xf] %vm279, %v604
      %v809 = vld [vmem:[%s722 + $0x8c] sm:$0x1]
      %v810 = vsel %vm731, %v605, %v809
      %811 = vst [vmem:[%s722 + $0x8c] sm:$0x1] %v810
      %v812 = vld [vmem:[%s722 + $0x90] sm:$0xf]
      %v813 = vsel %vm725, %v612, %v812
      %814 = vst [vmem:[%s722 + $0x90] sm:$0xf] %v813
      %815 = vst.msk [vmem:[%s722 + $0x94] sm:$0xf] %vm279, %v621
      %v816 = vld [vmem:[%s722 + $0x98] sm:$0x1]
      %v817 = vsel %vm731, %v622, %v816
      %818 = vst [vmem:[%s722 + $0x98] sm:$0x1] %v817
      %v819 = vld [vmem:[%s722 + $0x9c] sm:$0xf]
      %v820 = vsel %vm725, %v629, %v819
      %821 = vst [vmem:[%s722 + $0x9c] sm:$0xf] %v820
      %822 = vst.msk [vmem:[%s722 + $0xa0] sm:$0xf] %vm279, %v638
      %v823 = vld [vmem:[%s722 + $0xa4] sm:$0x1]
      %v824 = vsel %vm731, %v639, %v823
      %825 = vst [vmem:[%s722 + $0xa4] sm:$0x1] %v824
      %v826 = vld [vmem:[%s722 + $0xa8] sm:$0xf]
      %v827 = vsel %vm725, %v646, %v826
      %828 = vst [vmem:[%s722 + $0xa8] sm:$0xf] %v827
      %829 = vst.msk [vmem:[%s722 + $0xac] sm:$0xf] %vm279, %v655
      %v830 = vld [vmem:[%s722 + $0xb0] sm:$0x1]
      %v831 = vsel %vm731, %v656, %v830
      %832 = vst [vmem:[%s722 + $0xb0] sm:$0x1] %v831
      %v833 = vld [vmem:[%s722 + $0xb4] sm:$0xf]
      %v834 = vsel %vm725, %v663, %v833
      %835 = vst [vmem:[%s722 + $0xb4] sm:$0xf] %v834
      %836 = vst.msk [vmem:[%s722 + $0xb8] sm:$0xf] %vm279, %v672
      %v837 = vld [vmem:[%s722 + $0xbc] sm:$0x1]
      %v838 = vsel %vm731, %v673, %v837
      %839 = vst [vmem:[%s722 + $0xbc] sm:$0x1] %v838
      %v840 = vld [vmem:[#allocation2] sm:$0xf]
      %v841 = vld [vmem:[#allocation2 + $0x4] sm:$0xf]
      %v842 = vld [vmem:[#allocation2 + $0x8] sm:$0x1]
      %v843 = vld [vmem:[#allocation2 + $0xc] sm:$0xf]
      %v844 = vld [vmem:[#allocation2 + $0x10] sm:$0xf]
      %v845 = vld [vmem:[#allocation2 + $0x14] sm:$0x1]
      %v846 = vld [vmem:[#allocation2 + $0x18] sm:$0xf]
      %v847 = vld [vmem:[#allocation2 + $0x1c] sm:$0xf]
      %v848 = vld [vmem:[#allocation2 + $0x20] sm:$0x1]
      %v849 = vld [vmem:[#allocation2 + $0x24] sm:$0xf]
      %v850 = vld [vmem:[#allocation2 + $0x28] sm:$0xf]
      %v851 = vld [vmem:[#allocation2 + $0x2c] sm:$0x1]
      %v852 = vld [vmem:[#allocation2 + $0x30] sm:$0xf]
      %v853 = vld [vmem:[#allocation2 + $0x34] sm:$0xf]
      %v854 = vld [vmem:[#allocation2 + $0x38] sm:$0x1]
      %v855 = vld [vmem:[#allocation2 + $0x3c] sm:$0xf]
      %v856 = vld [vmem:[#allocation2 + $0x40] sm:$0xf]
      %v857 = vld [vmem:[#allocation2 + $0x44] sm:$0x1]
      %v858 = vld [vmem:[#allocation2 + $0x48] sm:$0xf]
      %v859 = vld [vmem:[#allocation2 + $0x4c] sm:$0xf]
      %v860 = vld [vmem:[#allocation2 + $0x50] sm:$0x1]
      %v861 = vld [vmem:[#allocation2 + $0x54] sm:$0xf]
      %v862 = vld [vmem:[#allocation2 + $0x58] sm:$0xf]
      %v863 = vld [vmem:[#allocation2 + $0x5c] sm:$0x1]
      %v864 = vld [vmem:[#allocation2 + $0x60] sm:$0xf]
      %v865 = vld [vmem:[#allocation2 + $0x64] sm:$0xf]
      %v866 = vld [vmem:[#allocation2 + $0x68] sm:$0x1]
      %v867 = vld [vmem:[#allocation2 + $0x6c] sm:$0xf]
      %v868 = vld [vmem:[#allocation2 + $0x70] sm:$0xf]
      %v869 = vld [vmem:[#allocation2 + $0x74] sm:$0x1]
      %v870 = vld [vmem:[#allocation2 + $0x78] sm:$0xf]
      %v871 = vld [vmem:[#allocation2 + $0x7c] sm:$0xf]
      %v872 = vld [vmem:[#allocation2 + $0x80] sm:$0x1]
      %v873 = vld [vmem:[#allocation2 + $0x84] sm:$0xf]
      %v874 = vld [vmem:[#allocation2 + $0x88] sm:$0xf]
      %v875 = vld [vmem:[#allocation2 + $0x8c] sm:$0x1]
      %v876 = vld [vmem:[#allocation2 + $0x90] sm:$0xf]
      %v877 = vld [vmem:[#allocation2 + $0x94] sm:$0xf]
      %v878 = vld [vmem:[#allocation2 + $0x98] sm:$0x1]
      %v879 = vld [vmem:[#allocation2 + $0x9c] sm:$0xf]
      %v880 = vld [vmem:[#allocation2 + $0xa0] sm:$0xf]
      %v881 = vld [vmem:[#allocation2 + $0xa4] sm:$0x1]
      %v882 = vld [vmem:[#allocation2 + $0xa8] sm:$0xf]
      %v883 = vld [vmem:[#allocation2 + $0xac] sm:$0xf]
      %v884 = vld [vmem:[#allocation2 + $0xb0] sm:$0x1]
      %v885 = vld [vmem:[#allocation2 + $0xb4] sm:$0xf]
      %v886 = vld [vmem:[#allocation2 + $0xb8] sm:$0xf]
      %v887 = vld [vmem:[#allocation2 + $0xbc] sm:$0x1]
      %v888 = vld [vmem:[#allocation2 + $0xc0] sm:$0xf]
      %v889 = vld [vmem:[#allocation2 + $0xc4] sm:$0xf]
      %v890 = vld [vmem:[#allocation2 + $0xc8] sm:$0x1]
      %v891 = vld [vmem:[#allocation2 + $0xcc] sm:$0xf]
      %v892 = vld [vmem:[#allocation2 + $0xd0] sm:$0xf]
      %v893 = vld [vmem:[#allocation2 + $0xd4] sm:$0x1]
      %v894 = vld [vmem:[%s2] sm:$0xf]
      %v895 = vld [vmem:[%s2 + $0x4] sm:$0xf]
      %v896 = vld [vmem:[%s2 + $0x8] sm:$0xf]
      %v897 = vld [vmem:[%s2 + $0xc] sm:$0xf]
      %v898 = vld [vmem:[%s2 + $0x10] sm:$0xf]
      %v899 = vld [vmem:[%s2 + $0x14] sm:$0xf]
      %v900 = vld [vmem:[%s2 + $0x18] sm:$0xf]
      %v901 = vld [vmem:[%s2 + $0x1c] sm:$0xf]
      %v902 = vld [vmem:[%s2 + $0x20] sm:$0xf]
      %v903 = vld [vmem:[#allocation4] sm:$0xff]
      %v904 = vld [vmem:[#allocation4 + $0x8] sm:$0xff]
      %v905 = vld [vmem:[#allocation4 + $0x10] sm:$0xff]
      %v906 = vld [vmem:[#allocation4 + $0x18] sm:$0xff]
      %v907 = vld [vmem:[#allocation4 + $0x20] sm:$0xff]
      %v908 = vld [vmem:[#allocation4 + $0x28] sm:$0xff]
      %v909 = vld [vmem:[#allocation4 + $0x30] sm:$0xff]
      %v910 = vld [vmem:[#allocation4 + $0x38] sm:$0xff]
      %v911 = vld [vmem:[#allocation4 + $0x40] sm:$0xff]
      %v912 = vld [vmem:[#allocation4 + $0x48] sm:$0xff]
      %v913 = vld [vmem:[#allocation4 + $0x50] sm:$0xff]
      %v914 = vld [vmem:[#allocation4 + $0x58] sm:$0xff]
      %v915 = vld [vmem:[#allocation4 + $0x60] sm:$0xff]
      %v916 = vld [vmem:[#allocation4 + $0x68] sm:$0xff]
      %v917 = vld [vmem:[#allocation4 + $0x70] sm:$0xff]
      %v918 = vld [vmem:[#allocation4 + $0x78] sm:$0xff]
      %v919 = vld [vmem:[#allocation4 + $0x80] sm:$0xff]
      %v920 = vld [vmem:[#allocation4 + $0x88] sm:$0xff]
      %v921 = vld [vmem:[#allocation4 + $0x90] sm:$0xff]
      %v922 = vld [vmem:[#allocation4 + $0x98] sm:$0xff]
      %v923 = vld [vmem:[#allocation4 + $0xa0] sm:$0xff]
      %v924 = vld [vmem:[#allocation4 + $0xa8] sm:$0xff]
      %v925 = vld [vmem:[#allocation4 + $0xb0] sm:$0xff]
      %v926 = vld [vmem:[#allocation4 + $0xb8] sm:$0xff]
      %v927 = vld [vmem:[#allocation4 + $0xc0] sm:$0xff]
      %v928 = vld [vmem:[#allocation4 + $0xc8] sm:$0xff]
      %v929 = vld [vmem:[#allocation4 + $0xd0] sm:$0xff]
      %v930 = vld [vmem:[#allocation4 + $0xd8] sm:$0xff]
      %v931 = vld [vmem:[#allocation4 + $0xe0] sm:$0xff]
      %v932 = vld [vmem:[#allocation4 + $0xe8] sm:$0xff]
      %v933 = vld [vmem:[#allocation4 + $0xf0] sm:$0xff]
      %v934 = vld [vmem:[#allocation4 + $0xf8] sm:$0xff]
      %v967 = vunpack.c.l.b16 %v840
      %v968 = vunpack.c.l.b16 %v841
      %v969 = vunpack.c.l.b16 %v843
      %v970 = vunpack.c.l.b16 %v844
      %v971 = vunpack.c.l.b16 %v846
      %v972 = vunpack.c.l.b16 %v847
      %v973 = vunpack.c.l.b16 %v849
      %v974 = vunpack.c.l.b16 %v850
      %v975 = vunpack.c.l.b16 %v852
      %v976 = vunpack.c.l.b16 %v853
      %v977 = vunpack.c.l.b16 %v855
      %v978 = vunpack.c.l.b16 %v856
      %v979 = vunpack.c.l.b16 %v858
      %v980 = vunpack.c.l.b16 %v859
      %v981 = vunpack.c.l.b16 %v861
      %v982 = vunpack.c.l.b16 %v862
      %v983 = vunpack.c.l.b16 %v864
      %v984 = vunpack.c.l.b16 %v865
      %v985 = vunpack.c.l.b16 %v867
      %v986 = vunpack.c.l.b16 %v868
      %v987 = vunpack.c.l.b16 %v870
      %v988 = vunpack.c.l.b16 %v871
      %v989 = vunpack.c.l.b16 %v873
      %v990 = vunpack.c.l.b16 %v874
      %v991 = vunpack.c.l.b16 %v876
      %v992 = vunpack.c.l.b16 %v877
      %v993 = vunpack.c.l.b16 %v879
      %v994 = vunpack.c.l.b16 %v880
      %v995 = vunpack.c.l.b16 %v882
      %v996 = vunpack.c.l.b16 %v883
      %v997 = vunpack.c.l.b16 %v885
      %v998 = vunpack.c.l.b16 %v886
      %v999 = vpack.c.b16 %v968, %v967
      %v1000 = vpack.c.b16 %v970, %v969
      %v1001 = vpack.c.b16 %v972, %v971
      %v1002 = vpack.c.b16 %v974, %v973
      %v1003 = vpack.c.b16 %v976, %v975
      %v1004 = vpack.c.b16 %v978, %v977
      %v1005 = vpack.c.b16 %v980, %v979
      %v1006 = vpack.c.b16 %v982, %v981
      %v1007 = vpack.c.b16 %v984, %v983
      %v1008 = vpack.c.b16 %v986, %v985
      %v1009 = vpack.c.b16 %v988, %v987
      %v1010 = vpack.c.b16 %v990, %v989
      %v1011 = vpack.c.b16 %v992, %v991
      %v1012 = vpack.c.b16 %v994, %v993
      %v1013 = vpack.c.b16 %v996, %v995
      %v1014 = vpack.c.b16 %v998, %v997
      %v1016 = vsel %vm246, %v999, 0
      %v1019 = vsel %vm246, %v1000, 0
      %v1022 = vsel %vm246, %v1001, 0
      %v1025 = vsel %vm246, %v1002, 0
      %v1028 = vsel %vm246, %v1003, 0
      %v1031 = vsel %vm246, %v1004, 0
      %v1034 = vsel %vm246, %v1005, 0
      %v1037 = vsel %vm246, %v1006, 0
      %v1040 = vsel %vm246, %v1007, 0
      %v1043 = vsel %vm246, %v1008, 0
      %v1046 = vsel %vm246, %v1009, 0
      %v1049 = vsel %vm246, %v1010, 0
      %v1052 = vsel %vm246, %v1011, 0
      %v1055 = vsel %vm246, %v1012, 0
      %v1058 = vsel %vm246, %v1013, 0
      %v1061 = vsel %vm246, %v1014, 0
      %vm1063 = vcmask 1043456
      %v1065 = vsel %vm1063, %v894, 0
      %1067 = vmatpush.bf16.msra.mxu0 0
      %1068 = vmatpush.bf16.msra.mxu0 0
      %1069 = vmatpush.bf16.msra.mxu0 0
      %1070 = vmatpush.bf16.msra.mxu0 0
      %1071 = vmatpush.bf16.msra.mxu0 0
      %1072 = vmatpush.bf16.msra.mxu0 0
      %1073 = vmatpush.bf16.msra.mxu0 0
      %1074 = vmatpush.bf16.msra.mxu0 %v1065
      %1075 = vmatmul.bf16.gmra.mxu0 %v1016
      %v1076 = vpop.f32.mrf.mxu0
      %v1077 = vadd.f32 0.0, %v1076
      %v1078 = vpop.f32.mrf.mxu0
      %v1079 = vadd.f32 0.0, %v1078
      %1080 = vmatmul.bf16.gmra.mxu0 %v1019
      %v1081 = vpop.f32.mrf.mxu0
      %v1082 = vadd.f32 0.0, %v1081
      %v1083 = vpop.f32.mrf.mxu0
      %v1084 = vadd.f32 0.0, %v1083
      %1085 = vmatmul.bf16.gmra.mxu0 %v1022
      %v1086 = vpop.f32.mrf.mxu0
      %v1087 = vadd.f32 0.0, %v1086
      %v1088 = vpop.f32.mrf.mxu0
      %v1089 = vadd.f32 0.0, %v1088
      %1090 = vmatmul.bf16.gmra.mxu0 %v1025
      %v1091 = vpop.f32.mrf.mxu0
      %v1092 = vadd.f32 0.0, %v1091
      %v1093 = vpop.f32.mrf.mxu0
      %v1094 = vadd.f32 0.0, %v1093
      %1095 = vmatmul.bf16.gmra.mxu0 %v1028
      %v1096 = vpop.f32.mrf.mxu0
      %v1097 = vadd.f32 0.0, %v1096
      %v1098 = vpop.f32.mrf.mxu0
      %v1099 = vadd.f32 0.0, %v1098
      %1100 = vmatmul.bf16.gmra.mxu0 %v1031
      %v1101 = vpop.f32.mrf.mxu0
      %v1102 = vadd.f32 0.0, %v1101
      %v1103 = vpop.f32.mrf.mxu0
      %v1104 = vadd.f32 0.0, %v1103
      %1105 = vmatmul.bf16.gmra.mxu0 %v1034
      %v1106 = vpop.f32.mrf.mxu0
      %v1107 = vadd.f32 0.0, %v1106
      %v1108 = vpop.f32.mrf.mxu0
      %v1109 = vadd.f32 0.0, %v1108
      %1110 = vmatmul.bf16.gmra.mxu0 %v1037
      %v1111 = vpop.f32.mrf.mxu0
      %v1112 = vadd.f32 0.0, %v1111
      %v1113 = vpop.f32.mrf.mxu0
      %v1114 = vadd.f32 0.0, %v1113
      %1115 = vmatmul.bf16.gmra.mxu0 %v1040
      %v1116 = vpop.f32.mrf.mxu0
      %v1117 = vadd.f32 0.0, %v1116
      %v1118 = vpop.f32.mrf.mxu0
      %v1119 = vadd.f32 0.0, %v1118
      %1120 = vmatmul.bf16.gmra.mxu0 %v1043
      %v1121 = vpop.f32.mrf.mxu0
      %v1122 = vadd.f32 0.0, %v1121
      %v1123 = vpop.f32.mrf.mxu0
      %v1124 = vadd.f32 0.0, %v1123
      %1125 = vmatmul.bf16.gmra.mxu0 %v1046
      %v1126 = vpop.f32.mrf.mxu0
      %v1127 = vadd.f32 0.0, %v1126
      %v1128 = vpop.f32.mrf.mxu0
      %v1129 = vadd.f32 0.0, %v1128
      %1130 = vmatmul.bf16.gmra.mxu0 %v1049
      %v1131 = vpop.f32.mrf.mxu0
      %v1132 = vadd.f32 0.0, %v1131
      %v1133 = vpop.f32.mrf.mxu0
      %v1134 = vadd.f32 0.0, %v1133
      %1135 = vmatmul.bf16.gmra.mxu0 %v1052
      %v1136 = vpop.f32.mrf.mxu0
      %v1137 = vadd.f32 0.0, %v1136
      %v1138 = vpop.f32.mrf.mxu0
      %v1139 = vadd.f32 0.0, %v1138
      %1140 = vmatmul.bf16.gmra.mxu0 %v1055
      %v1141 = vpop.f32.mrf.mxu0
      %v1142 = vadd.f32 0.0, %v1141
      %v1143 = vpop.f32.mrf.mxu0
      %v1144 = vadd.f32 0.0, %v1143
      %1145 = vmatmul.bf16.gmra.mxu0 %v1058
      %v1146 = vpop.f32.mrf.mxu0
      %v1147 = vadd.f32 0.0, %v1146
      %v1148 = vpop.f32.mrf.mxu0
      %v1149 = vadd.f32 0.0, %v1148
      %1150 = vmatmul.bf16.gmra.mxu0 %v1061
      %v1151 = vpop.f32.mrf.mxu0
      %v1152 = vadd.f32 0.0, %v1151
      %v1153 = vpop.f32.mrf.mxu0
      %v1154 = vadd.f32 0.0, %v1153
      %1155 = vdwg.mxu0
      %v1156 = vadd.f32 %v903, %v1077
      %v1157 = vadd.f32 %v904, %v1079
      %v1158 = vadd.f32 %v905, %v1082
      %v1159 = vadd.f32 %v906, %v1084
      %v1160 = vadd.f32 %v907, %v1087
      %v1161 = vadd.f32 %v908, %v1089
      %v1162 = vadd.f32 %v909, %v1092
      %v1163 = vadd.f32 %v910, %v1094
      %v1164 = vadd.f32 %v911, %v1097
      %v1165 = vadd.f32 %v912, %v1099
      %v1166 = vadd.f32 %v913, %v1102
      %v1167 = vadd.f32 %v914, %v1104
      %v1168 = vadd.f32 %v915, %v1107
      %v1169 = vadd.f32 %v916, %v1109
      %v1170 = vadd.f32 %v917, %v1112
      %v1171 = vadd.f32 %v918, %v1114
      %v1172 = vadd.f32 %v919, %v1117
      %v1173 = vadd.f32 %v920, %v1119
      %v1174 = vadd.f32 %v921, %v1122
      %v1175 = vadd.f32 %v922, %v1124
      %v1176 = vadd.f32 %v923, %v1127
      %v1177 = vadd.f32 %v924, %v1129
      %v1178 = vadd.f32 %v925, %v1132
      %v1179 = vadd.f32 %v926, %v1134
      %v1180 = vadd.f32 %v927, %v1137
      %v1181 = vadd.f32 %v928, %v1139
      %v1182 = vadd.f32 %v929, %v1142
      %v1183 = vadd.f32 %v930, %v1144
      %v1184 = vadd.f32 %v931, %v1147
      %v1185 = vadd.f32 %v932, %v1149
      %v1186 = vadd.f32 %v933, %v1152
      %v1187 = vadd.f32 %v934, %v1154
      %1188 = vst.msk [vmem:[#allocation4] sm:$0xff] %vm246, %v1156
      %1189 = vst.msk [vmem:[#allocation4 + $0x8] sm:$0xff] %vm246, %v1157
      %1190 = vst.msk [vmem:[#allocation4 + $0x10] sm:$0xff] %vm246, %v1158
      %1191 = vst.msk [vmem:[#allocation4 + $0x18] sm:$0xff] %vm246, %v1159
      %1192 = vst.msk [vmem:[#allocation4 + $0x20] sm:$0xff] %vm246, %v1160
      %1193 = vst.msk [vmem:[#allocation4 + $0x28] sm:$0xff] %vm246, %v1161
      %1194 = vst.msk [vmem:[#allocation4 + $0x30] sm:$0xff] %vm246, %v1162
      %1195 = vst.msk [vmem:[#allocation4 + $0x38] sm:$0xff] %vm246, %v1163
      %1196 = vst.msk [vmem:[#allocation4 + $0x40] sm:$0xff] %vm246, %v1164
      %1197 = vst.msk [vmem:[#allocation4 + $0x48] sm:$0xff] %vm246, %v1165
      %1198 = vst.msk [vmem:[#allocation4 + $0x50] sm:$0xff] %vm246, %v1166
      %1199 = vst.msk [vmem:[#allocation4 + $0x58] sm:$0xff] %vm246, %v1167
      %1200 = vst.msk [vmem:[#allocation4 + $0x60] sm:$0xff] %vm246, %v1168
      %1201 = vst.msk [vmem:[#allocation4 + $0x68] sm:$0xff] %vm246, %v1169
      %1202 = vst.msk [vmem:[#allocation4 + $0x70] sm:$0xff] %vm246, %v1170
      %1203 = vst.msk [vmem:[#allocation4 + $0x78] sm:$0xff] %vm246, %v1171
      %1204 = vst.msk [vmem:[#allocation4 + $0x80] sm:$0xff] %vm246, %v1172
      %1205 = vst.msk [vmem:[#allocation4 + $0x88] sm:$0xff] %vm246, %v1173
      %1206 = vst.msk [vmem:[#allocation4 + $0x90] sm:$0xff] %vm246, %v1174
      %1207 = vst.msk [vmem:[#allocation4 + $0x98] sm:$0xff] %vm246, %v1175
      %1208 = vst.msk [vmem:[#allocation4 + $0xa0] sm:$0xff] %vm246, %v1176
      %1209 = vst.msk [vmem:[#allocation4 + $0xa8] sm:$0xff] %vm246, %v1177
      %1210 = vst.msk [vmem:[#allocation4 + $0xb0] sm:$0xff] %vm246, %v1178
      %1211 = vst.msk [vmem:[#allocation4 + $0xb8] sm:$0xff] %vm246, %v1179
      %1212 = vst.msk [vmem:[#allocation4 + $0xc0] sm:$0xff] %vm246, %v1180
      %1213 = vst.msk [vmem:[#allocation4 + $0xc8] sm:$0xff] %vm246, %v1181
      %1214 = vst.msk [vmem:[#allocation4 + $0xd0] sm:$0xff] %vm246, %v1182
      %1215 = vst.msk [vmem:[#allocation4 + $0xd8] sm:$0xff] %vm246, %v1183
      %1216 = vst.msk [vmem:[#allocation4 + $0xe0] sm:$0xff] %vm246, %v1184
      %1217 = vst.msk [vmem:[#allocation4 + $0xe8] sm:$0xff] %vm246, %v1185
      %1218 = vst.msk [vmem:[#allocation4 + $0xf0] sm:$0xff] %vm246, %v1186
      %1219 = vst.msk [vmem:[#allocation4 + $0xf8] sm:$0xff] %vm246, %v1187
      %v1220 = vld [vmem:[#allocation4] sm:$0xff]
      %v1221 = vld [vmem:[#allocation4 + $0x8] sm:$0xff]
      %v1222 = vld [vmem:[#allocation4 + $0x10] sm:$0xff]
      %v1223 = vld [vmem:[#allocation4 + $0x18] sm:$0xff]
      %v1224 = vld [vmem:[#allocation4 + $0x20] sm:$0xff]
      %v1225 = vld [vmem:[#allocation4 + $0x28] sm:$0xff]
      %v1226 = vld [vmem:[#allocation4 + $0x30] sm:$0xff]
      %v1227 = vld [vmem:[#allocation4 + $0x38] sm:$0xff]
      %v1228 = vld [vmem:[#allocation4 + $0x40] sm:$0xff]
      %v1229 = vld [vmem:[#allocation4 + $0x48] sm:$0xff]
      %v1230 = vld [vmem:[#allocation4 + $0x50] sm:$0xff]
      %v1231 = vld [vmem:[#allocation4 + $0x58] sm:$0xff]
      %v1232 = vld [vmem:[#allocation4 + $0x60] sm:$0xff]
      %v1233 = vld [vmem:[#allocation4 + $0x68] sm:$0xff]
      %v1234 = vld [vmem:[#allocation4 + $0x70] sm:$0xff]
      %v1235 = vld [vmem:[#allocation4 + $0x78] sm:$0xff]
      %v1236 = vld [vmem:[#allocation4 + $0x80] sm:$0xff]
      %v1237 = vld [vmem:[#allocation4 + $0x88] sm:$0xff]
      %v1238 = vld [vmem:[#allocation4 + $0x90] sm:$0xff]
      %v1239 = vld [vmem:[#allocation4 + $0x98] sm:$0xff]
      %v1240 = vld [vmem:[#allocation4 + $0xa0] sm:$0xff]
      %v1241 = vld [vmem:[#allocation4 + $0xa8] sm:$0xff]
      %v1242 = vld [vmem:[#allocation4 + $0xb0] sm:$0xff]
      %v1243 = vld [vmem:[#allocation4 + $0xb8] sm:$0xff]
      %v1244 = vld [vmem:[#allocation4 + $0xc0] sm:$0xff]
      %v1245 = vld [vmem:[#allocation4 + $0xc8] sm:$0xff]
      %v1246 = vld [vmem:[#allocation4 + $0xd0] sm:$0xff]
      %v1247 = vld [vmem:[#allocation4 + $0xd8] sm:$0xff]
      %v1248 = vld [vmem:[#allocation4 + $0xe0] sm:$0xff]
      %v1249 = vld [vmem:[#allocation4 + $0xe8] sm:$0xff]
      %v1250 = vld [vmem:[#allocation4 + $0xf0] sm:$0xff]
      %v1251 = vld [vmem:[#allocation4 + $0xf8] sm:$0xff]
      %v1254 = vunpack.c.l.b16 %v888
      %v1255 = vunpack.c.l.b16 %v889
      %v1256 = vpack.c.b16 %v1255, %v1254
      %v1258 = vsel %vm246, %v1256, 0
      %v1261 = vsel %vm1063, %v897, 0
      %1263 = vmatpush.bf16.msra.mxu0 0
      %1264 = vmatpush.bf16.msra.mxu0 0
      %1265 = vmatpush.bf16.msra.mxu0 0
      %1266 = vmatpush.bf16.msra.mxu0 0
      %1267 = vmatpush.bf16.msra.mxu0 0
      %1268 = vmatpush.bf16.msra.mxu0 0
      %1269 = vmatpush.bf16.msra.mxu0 0
      %1270 = vmatpush.bf16.msra.mxu0 %v1261
      %1271 = vmatmul.bf16.gmra.mxu0 %v1019
      %v1272 = vpop.f32.mrf.mxu0
      %v1273 = vadd.f32 0.0, %v1272
      %v1274 = vpop.f32.mrf.mxu0
      %v1275 = vadd.f32 0.0, %v1274
      %1276 = vmatmul.bf16.gmra.mxu0 %v1022
      %v1277 = vpop.f32.mrf.mxu0
      %v1278 = vadd.f32 0.0, %v1277
      %v1279 = vpop.f32.mrf.mxu0
      %v1280 = vadd.f32 0.0, %v1279
      %1281 = vmatmul.bf16.gmra.mxu0 %v1025
      %v1282 = vpop.f32.mrf.mxu0
      %v1283 = vadd.f32 0.0, %v1282
      %v1284 = vpop.f32.mrf.mxu0
      %v1285 = vadd.f32 0.0, %v1284
      %1286 = vmatmul.bf16.gmra.mxu0 %v1028
      %v1287 = vpop.f32.mrf.mxu0
      %v1288 = vadd.f32 0.0, %v1287
      %v1289 = vpop.f32.mrf.mxu0
      %v1290 = vadd.f32 0.0, %v1289
      %1291 = vmatmul.bf16.gmra.mxu0 %v1031
      %v1292 = vpop.f32.mrf.mxu0
      %v1293 = vadd.f32 0.0, %v1292
      %v1294 = vpop.f32.mrf.mxu0
      %v1295 = vadd.f32 0.0, %v1294
      %1296 = vmatmul.bf16.gmra.mxu0 %v1034
      %v1297 = vpop.f32.mrf.mxu0
      %v1298 = vadd.f32 0.0, %v1297
      %v1299 = vpop.f32.mrf.mxu0
      %v1300 = vadd.f32 0.0, %v1299
      %1301 = vmatmul.bf16.gmra.mxu0 %v1037
      %v1302 = vpop.f32.mrf.mxu0
      %v1303 = vadd.f32 0.0, %v1302
      %v1304 = vpop.f32.mrf.mxu0
      %v1305 = vadd.f32 0.0, %v1304
      %1306 = vmatmul.bf16.gmra.mxu0 %v1040
      %v1307 = vpop.f32.mrf.mxu0
      %v1308 = vadd.f32 0.0, %v1307
      %v1309 = vpop.f32.mrf.mxu0
      %v1310 = vadd.f32 0.0, %v1309
      %1311 = vmatmul.bf16.gmra.mxu0 %v1043
      %v1312 = vpop.f32.mrf.mxu0
      %v1313 = vadd.f32 0.0, %v1312
      %v1314 = vpop.f32.mrf.mxu0
      %v1315 = vadd.f32 0.0, %v1314
      %1316 = vmatmul.bf16.gmra.mxu0 %v1046
      %v1317 = vpop.f32.mrf.mxu0
      %v1318 = vadd.f32 0.0, %v1317
      %v1319 = vpop.f32.mrf.mxu0
      %v1320 = vadd.f32 0.0, %v1319
      %1321 = vmatmul.bf16.gmra.mxu0 %v1049
      %v1322 = vpop.f32.mrf.mxu0
      %v1323 = vadd.f32 0.0, %v1322
      %v1324 = vpop.f32.mrf.mxu0
      %v1325 = vadd.f32 0.0, %v1324
      %1326 = vmatmul.bf16.gmra.mxu0 %v1052
      %v1327 = vpop.f32.mrf.mxu0
      %v1328 = vadd.f32 0.0, %v1327
      %v1329 = vpop.f32.mrf.mxu0
      %v1330 = vadd.f32 0.0, %v1329
      %1331 = vmatmul.bf16.gmra.mxu0 %v1055
      %v1332 = vpop.f32.mrf.mxu0
      %v1333 = vadd.f32 0.0, %v1332
      %v1334 = vpop.f32.mrf.mxu0
      %v1335 = vadd.f32 0.0, %v1334
      %1336 = vmatmul.bf16.gmra.mxu0 %v1058
      %v1337 = vpop.f32.mrf.mxu0
      %v1338 = vadd.f32 0.0, %v1337
      %v1339 = vpop.f32.mrf.mxu0
      %v1340 = vadd.f32 0.0, %v1339
      %1341 = vmatmul.bf16.gmra.mxu0 %v1061
      %v1342 = vpop.f32.mrf.mxu0
      %v1343 = vadd.f32 0.0, %v1342
      %v1344 = vpop.f32.mrf.mxu0
      %v1345 = vadd.f32 0.0, %v1344
      %1346 = vmatmul.bf16.gmra.mxu0 %v1258
      %v1347 = vpop.f32.mrf.mxu0
      %v1348 = vadd.f32 0.0, %v1347
      %v1349 = vpop.f32.mrf.mxu0
      %v1350 = vadd.f32 0.0, %v1349
      %1351 = vdwg.mxu0
      %v1352 = vadd.f32 %v1220, %v1273
      %v1353 = vadd.f32 %v1221, %v1275
      %v1354 = vadd.f32 %v1222, %v1278
      %v1355 = vadd.f32 %v1223, %v1280
      %v1356 = vadd.f32 %v1224, %v1283
      %v1357 = vadd.f32 %v1225, %v1285
      %v1358 = vadd.f32 %v1226, %v1288
      %v1359 = vadd.f32 %v1227, %v1290
      %v1360 = vadd.f32 %v1228, %v1293
      %v1361 = vadd.f32 %v1229, %v1295
      %v1362 = vadd.f32 %v1230, %v1298
      %v1363 = vadd.f32 %v1231, %v1300
      %v1364 = vadd.f32 %v1232, %v1303
      %v1365 = vadd.f32 %v1233, %v1305
      %v1366 = vadd.f32 %v1234, %v1308
      %v1367 = vadd.f32 %v1235, %v1310
      %v1368 = vadd.f32 %v1236, %v1313
      %v1369 = vadd.f32 %v1237, %v1315
      %v1370 = vadd.f32 %v1238, %v1318
      %v1371 = vadd.f32 %v1239, %v1320
      %v1372 = vadd.f32 %v1240, %v1323
      %v1373 = vadd.f32 %v1241, %v1325
      %v1374 = vadd.f32 %v1242, %v1328
      %v1375 = vadd.f32 %v1243, %v1330
      %v1376 = vadd.f32 %v1244, %v1333
      %v1377 = vadd.f32 %v1245, %v1335
      %v1378 = vadd.f32 %v1246, %v1338
      %v1379 = vadd.f32 %v1247, %v1340
      %v1380 = vadd.f32 %v1248, %v1343
      %v1381 = vadd.f32 %v1249, %v1345
      %v1382 = vadd.f32 %v1250, %v1348
      %v1383 = vadd.f32 %v1251, %v1350
      %1384 = vst.msk [vmem:[#allocation4] sm:$0xff] %vm246, %v1352
      %1385 = vst.msk [vmem:[#allocation4 + $0x8] sm:$0xff] %vm246, %v1353
      %1386 = vst.msk [vmem:[#allocation4 + $0x10] sm:$0xff] %vm246, %v1354
      %1387 = vst.msk [vmem:[#allocation4 + $0x18] sm:$0xff] %vm246, %v1355
      %1388 = vst.msk [vmem:[#allocation4 + $0x20] sm:$0xff] %vm246, %v1356
      %1389 = vst.msk [vmem:[#allocation4 + $0x28] sm:$0xff] %vm246, %v1357
      %1390 = vst.msk [vmem:[#allocation4 + $0x30] sm:$0xff] %vm246, %v1358
      %1391 = vst.msk [vmem:[#allocation4 + $0x38] sm:$0xff] %vm246, %v1359
      %1392 = vst.msk [vmem:[#allocation4 + $0x40] sm:$0xff] %vm246, %v1360
      %1393 = vst.msk [vmem:[#allocation4 + $0x48] sm:$0xff] %vm246, %v1361
      %1394 = vst.msk [vmem:[#allocation4 + $0x50] sm:$0xff] %vm246, %v1362
      %1395 = vst.msk [vmem:[#allocation4 + $0x58] sm:$0xff] %vm246, %v1363
      %1396 = vst.msk [vmem:[#allocation4 + $0x60] sm:$0xff] %vm246, %v1364
      %1397 = vst.msk [vmem:[#allocation4 + $0x68] sm:$0xff] %vm246, %v1365
      %1398 = vst.msk [vmem:[#allocation4 + $0x70] sm:$0xff] %vm246, %v1366
      %1399 = vst.msk [vmem:[#allocation4 + $0x78] sm:$0xff] %vm246, %v1367
      %1400 = vst.msk [vmem:[#allocation4 + $0x80] sm:$0xff] %vm246, %v1368
      %1401 = vst.msk [vmem:[#allocation4 + $0x88] sm:$0xff] %vm246, %v1369
      %1402 = vst.msk [vmem:[#allocation4 + $0x90] sm:$0xff] %vm246, %v1370
      %1403 = vst.msk [vmem:[#allocation4 + $0x98] sm:$0xff] %vm246, %v1371
      %1404 = vst.msk [vmem:[#allocation4 + $0xa0] sm:$0xff] %vm246, %v1372
      %1405 = vst.msk [vmem:[#allocation4 + $0xa8] sm:$0xff] %vm246, %v1373
      %1406 = vst.msk [vmem:[#allocation4 + $0xb0] sm:$0xff] %vm246, %v1374
      %1407 = vst.msk [vmem:[#allocation4 + $0xb8] sm:$0xff] %vm246, %v1375
      %1408 = vst.msk [vmem:[#allocation4 + $0xc0] sm:$0xff] %vm246, %v1376
      %1409 = vst.msk [vmem:[#allocation4 + $0xc8] sm:$0xff] %vm246, %v1377
      %1410 = vst.msk [vmem:[#allocation4 + $0xd0] sm:$0xff] %vm246, %v1378
      %1411 = vst.msk [vmem:[#allocation4 + $0xd8] sm:$0xff] %vm246, %v1379
      %1412 = vst.msk [vmem:[#allocation4 + $0xe0] sm:$0xff] %vm246, %v1380
      %1413 = vst.msk [vmem:[#allocation4 + $0xe8] sm:$0xff] %vm246, %v1381
      %1414 = vst.msk [vmem:[#allocation4 + $0xf0] sm:$0xff] %vm246, %v1382
      %1415 = vst.msk [vmem:[#allocation4 + $0xf8] sm:$0xff] %vm246, %v1383
      %v1416 = vld [vmem:[#allocation4] sm:$0xff]
      %v1417 = vld [vmem:[#allocation4 + $0x8] sm:$0xff]
      %v1418 = vld [vmem:[#allocation4 + $0x10] sm:$0xff]
      %v1419 = vld [vmem:[#allocation4 + $0x18] sm:$0xff]
      %v1420 = vld [vmem:[#allocation4 + $0x20] sm:$0xff]
      %v1421 = vld [vmem:[#allocation4 + $0x28] sm:$0xff]
      %v1422 = vld [vmem:[#allocation4 + $0x30] sm:$0xff]
      %v1423 = vld [vmem:[#allocation4 + $0x38] sm:$0xff]
      %v1424 = vld [vmem:[#allocation4 + $0x40] sm:$0xff]
      %v1425 = vld [vmem:[#allocation4 + $0x48] sm:$0xff]
      %v1426 = vld [vmem:[#allocation4 + $0x50] sm:$0xff]
      %v1427 = vld [vmem:[#allocation4 + $0x58] sm:$0xff]
      %v1428 = vld [vmem:[#allocation4 + $0x60] sm:$0xff]
      %v1429 = vld [vmem:[#allocation4 + $0x68] sm:$0xff]
      %v1430 = vld [vmem:[#allocation4 + $0x70] sm:$0xff]
      %v1431 = vld [vmem:[#allocation4 + $0x78] sm:$0xff]
      %v1432 = vld [vmem:[#allocation4 + $0x80] sm:$0xff]
      %v1433 = vld [vmem:[#allocation4 + $0x88] sm:$0xff]
      %v1434 = vld [vmem:[#allocation4 + $0x90] sm:$0xff]
      %v1435 = vld [vmem:[#allocation4 + $0x98] sm:$0xff]
      %v1436 = vld [vmem:[#allocation4 + $0xa0] sm:$0xff]
      %v1437 = vld [vmem:[#allocation4 + $0xa8] sm:$0xff]
      %v1438 = vld [vmem:[#allocation4 + $0xb0] sm:$0xff]
      %v1439 = vld [vmem:[#allocation4 + $0xb8] sm:$0xff]
      %v1440 = vld [vmem:[#allocation4 + $0xc0] sm:$0xff]
      %v1441 = vld [vmem:[#allocation4 + $0xc8] sm:$0xff]
      %v1442 = vld [vmem:[#allocation4 + $0xd0] sm:$0xff]
      %v1443 = vld [vmem:[#allocation4 + $0xd8] sm:$0xff]
      %v1444 = vld [vmem:[#allocation4 + $0xe0] sm:$0xff]
      %v1445 = vld [vmem:[#allocation4 + $0xe8] sm:$0xff]
      %v1446 = vld [vmem:[#allocation4 + $0xf0] sm:$0xff]
      %v1447 = vld [vmem:[#allocation4 + $0xf8] sm:$0xff]
      %v1450 = vunpack.c.l.b16 %v891
      %v1451 = vunpack.c.l.b16 %v892
      %v1452 = vpack.c.b16 %v1451, %v1450
      %v1454 = vsel %vm246, %v1452, 0
      %v1457 = vsel %vm1063, %v900, 0
      %1459 = vmatpush.bf16.msra.mxu0 0
      %1460 = vmatpush.bf16.msra.mxu0 0
      %1461 = vmatpush.bf16.msra.mxu0 0
      %1462 = vmatpush.bf16.msra.mxu0 0
      %1463 = vmatpush.bf16.msra.mxu0 0
      %1464 = vmatpush.bf16.msra.mxu0 0
      %1465 = vmatpush.bf16.msra.mxu0 0
      %1466 = vmatpush.bf16.msra.mxu0 %v1457
      %1467 = vmatmul.bf16.gmra.mxu0 %v1022
      %v1468 = vpop.f32.mrf.mxu0
      %v1469 = vadd.f32 0.0, %v1468
      %v1470 = vpop.f32.mrf.mxu0
      %v1471 = vadd.f32 0.0, %v1470
      %1472 = vmatmul.bf16.gmra.mxu0 %v1025
      %v1473 = vpop.f32.mrf.mxu0
      %v1474 = vadd.f32 0.0, %v1473
      %v1475 = vpop.f32.mrf.mxu0
      %v1476 = vadd.f32 0.0, %v1475
      %1477 = vmatmul.bf16.gmra.mxu0 %v1028
      %v1478 = vpop.f32.mrf.mxu0
      %v1479 = vadd.f32 0.0, %v1478
      %v1480 = vpop.f32.mrf.mxu0
      %v1481 = vadd.f32 0.0, %v1480
      %1482 = vmatmul.bf16.gmra.mxu0 %v1031
      %v1483 = vpop.f32.mrf.mxu0
      %v1484 = vadd.f32 0.0, %v1483
      %v1485 = vpop.f32.mrf.mxu0
      %v1486 = vadd.f32 0.0, %v1485
      %1487 = vmatmul.bf16.gmra.mxu0 %v1034
      %v1488 = vpop.f32.mrf.mxu0
      %v1489 = vadd.f32 0.0, %v1488
      %v1490 = vpop.f32.mrf.mxu0
      %v1491 = vadd.f32 0.0, %v1490
      %1492 = vmatmul.bf16.gmra.mxu0 %v1037
      %v1493 = vpop.f32.mrf.mxu0
      %v1494 = vadd.f32 0.0, %v1493
      %v1495 = vpop.f32.mrf.mxu0
      %v1496 = vadd.f32 0.0, %v1495
      %1497 = vmatmul.bf16.gmra.mxu0 %v1040
      %v1498 = vpop.f32.mrf.mxu0
      %v1499 = vadd.f32 0.0, %v1498
      %v1500 = vpop.f32.mrf.mxu0
      %v1501 = vadd.f32 0.0, %v1500
      %1502 = vmatmul.bf16.gmra.mxu0 %v1043
      %v1503 = vpop.f32.mrf.mxu0
      %v1504 = vadd.f32 0.0, %v1503
      %v1505 = vpop.f32.mrf.mxu0
      %v1506 = vadd.f32 0.0, %v1505
      %1507 = vmatmul.bf16.gmra.mxu0 %v1046
      %v1508 = vpop.f32.mrf.mxu0
      %v1509 = vadd.f32 0.0, %v1508
      %v1510 = vpop.f32.mrf.mxu0
      %v1511 = vadd.f32 0.0, %v1510
      %1512 = vmatmul.bf16.gmra.mxu0 %v1049
      %v1513 = vpop.f32.mrf.mxu0
      %v1514 = vadd.f32 0.0, %v1513
      %v1515 = vpop.f32.mrf.mxu0
      %v1516 = vadd.f32 0.0, %v1515
      %1517 = vmatmul.bf16.gmra.mxu0 %v1052
      %v1518 = vpop.f32.mrf.mxu0
      %v1519 = vadd.f32 0.0, %v1518
      %v1520 = vpop.f32.mrf.mxu0
      %v1521 = vadd.f32 0.0, %v1520
      %1522 = vmatmul.bf16.gmra.mxu0 %v1055
      %v1523 = vpop.f32.mrf.mxu0
      %v1524 = vadd.f32 0.0, %v1523
      %v1525 = vpop.f32.mrf.mxu0
      %v1526 = vadd.f32 0.0, %v1525
      %1527 = vmatmul.bf16.gmra.mxu0 %v1058
      %v1528 = vpop.f32.mrf.mxu0
      %v1529 = vadd.f32 0.0, %v1528
      %v1530 = vpop.f32.mrf.mxu0
      %v1531 = vadd.f32 0.0, %v1530
      %1532 = vmatmul.bf16.gmra.mxu0 %v1061
      %v1533 = vpop.f32.mrf.mxu0
      %v1534 = vadd.f32 0.0, %v1533
      %v1535 = vpop.f32.mrf.mxu0
      %v1536 = vadd.f32 0.0, %v1535
      %1537 = vmatmul.bf16.gmra.mxu0 %v1258
      %v1538 = vpop.f32.mrf.mxu0
      %v1539 = vadd.f32 0.0, %v1538
      %v1540 = vpop.f32.mrf.mxu0
      %v1541 = vadd.f32 0.0, %v1540
      %1542 = vmatmul.bf16.gmra.mxu0 %v1454
      %v1543 = vpop.f32.mrf.mxu0
      %v1544 = vadd.f32 0.0, %v1543
      %v1545 = vpop.f32.mrf.mxu0
      %v1546 = vadd.f32 0.0, %v1545
      %1547 = vdwg.mxu0
      %v1548 = vadd.f32 %v1416, %v1469
      %v1549 = vadd.f32 %v1417, %v1471
      %v1550 = vadd.f32 %v1418, %v1474
      %v1551 = vadd.f32 %v1419, %v1476
      %v1552 = vadd.f32 %v1420, %v1479
      %v1553 = vadd.f32 %v1421, %v1481
      %v1554 = vadd.f32 %v1422, %v1484
      %v1555 = vadd.f32 %v1423, %v1486
      %v1556 = vadd.f32 %v1424, %v1489
      %v1557 = vadd.f32 %v1425, %v1491
      %v1558 = vadd.f32 %v1426, %v1494
      %v1559 = vadd.f32 %v1427, %v1496
      %v1560 = vadd.f32 %v1428, %v1499
      %v1561 = vadd.f32 %v1429, %v1501
      %v1562 = vadd.f32 %v1430, %v1504
      %v1563 = vadd.f32 %v1431, %v1506
      %v1564 = vadd.f32 %v1432, %v1509
      %v1565 = vadd.f32 %v1433, %v1511
      %v1566 = vadd.f32 %v1434, %v1514
      %v1567 = vadd.f32 %v1435, %v1516
      %v1568 = vadd.f32 %v1436, %v1519
      %v1569 = vadd.f32 %v1437, %v1521
      %v1570 = vadd.f32 %v1438, %v1524
      %v1571 = vadd.f32 %v1439, %v1526
      %v1572 = vadd.f32 %v1440, %v1529
      %v1573 = vadd.f32 %v1441, %v1531
      %v1574 = vadd.f32 %v1442, %v1534
      %v1575 = vadd.f32 %v1443, %v1536
      %v1576 = vadd.f32 %v1444, %v1539
      %v1577 = vadd.f32 %v1445, %v1541
      %v1578 = vadd.f32 %v1446, %v1544
      %v1579 = vadd.f32 %v1447, %v1546
      %1580 = vst.msk [vmem:[#allocation4] sm:$0xff] %vm246, %v1548
      %1581 = vst.msk [vmem:[#allocation4 + $0x8] sm:$0xff] %vm246, %v1549
      %1582 = vst.msk [vmem:[#allocation4 + $0x10] sm:$0xff] %vm246, %v1550
      %1583 = vst.msk [vmem:[#allocation4 + $0x18] sm:$0xff] %vm246, %v1551
      %1584 = vst.msk [vmem:[#allocation4 + $0x20] sm:$0xff] %vm246, %v1552
      %1585 = vst.msk [vmem:[#allocation4 + $0x28] sm:$0xff] %vm246, %v1553
      %1586 = vst.msk [vmem:[#allocation4 + $0x30] sm:$0xff] %vm246, %v1554
      %1587 = vst.msk [vmem:[#allocation4 + $0x38] sm:$0xff] %vm246, %v1555
      %1588 = vst.msk [vmem:[#allocation4 + $0x40] sm:$0xff] %vm246, %v1556
      %1589 = vst.msk [vmem:[#allocation4 + $0x48] sm:$0xff] %vm246, %v1557
      %1590 = vst.msk [vmem:[#allocation4 + $0x50] sm:$0xff] %vm246, %v1558
      %1591 = vst.msk [vmem:[#allocation4 + $0x58] sm:$0xff] %vm246, %v1559
      %1592 = vst.msk [vmem:[#allocation4 + $0x60] sm:$0xff] %vm246, %v1560
      %1593 = vst.msk [vmem:[#allocation4 + $0x68] sm:$0xff] %vm246, %v1561
      %1594 = vst.msk [vmem:[#allocation4 + $0x70] sm:$0xff] %vm246, %v1562
      %1595 = vst.msk [vmem:[#allocation4 + $0x78] sm:$0xff] %vm246, %v1563
      %1596 = vst.msk [vmem:[#allocation4 + $0x80] sm:$0xff] %vm246, %v1564
      %1597 = vst.msk [vmem:[#allocation4 + $0x88] sm:$0xff] %vm246, %v1565
      %1598 = vst.msk [vmem:[#allocation4 + $0x90] sm:$0xff] %vm246, %v1566
      %1599 = vst.msk [vmem:[#allocation4 + $0x98] sm:$0xff] %vm246, %v1567
      %1600 = vst.msk [vmem:[#allocation4 + $0xa0] sm:$0xff] %vm246, %v1568
      %1601 = vst.msk [vmem:[#allocation4 + $0xa8] sm:$0xff] %vm246, %v1569
      %1602 = vst.msk [vmem:[#allocation4 + $0xb0] sm:$0xff] %vm246, %v1570
      %1603 = vst.msk [vmem:[#allocation4 + $0xb8] sm:$0xff] %vm246, %v1571
      %1604 = vst.msk [vmem:[#allocation4 + $0xc0] sm:$0xff] %vm246, %v1572
      %1605 = vst.msk [vmem:[#allocation4 + $0xc8] sm:$0xff] %vm246, %v1573
      %1606 = vst.msk [vmem:[#allocation4 + $0xd0] sm:$0xff] %vm246, %v1574
      %1607 = vst.msk [vmem:[#allocation4 + $0xd8] sm:$0xff] %vm246, %v1575
      %1608 = vst.msk [vmem:[#allocation4 + $0xe0] sm:$0xff] %vm246, %v1576
      %1609 = vst.msk [vmem:[#allocation4 + $0xe8] sm:$0xff] %vm246, %v1577
      %1610 = vst.msk [vmem:[#allocation4 + $0xf0] sm:$0xff] %vm246, %v1578
      %1611 = vst.msk [vmem:[#allocation4 + $0xf8] sm:$0xff] %vm246, %v1579
      %v1612 = vld [vmem:[#allocation4] sm:$0xff]
      %v1613 = vld [vmem:[#allocation4 + $0x8] sm:$0xff]
      %v1614 = vld [vmem:[#allocation4 + $0x10] sm:$0xff]
      %v1615 = vld [vmem:[#allocation4 + $0x18] sm:$0xff]
      %v1616 = vld [vmem:[#allocation4 + $0x20] sm:$0xff]
      %v1617 = vld [vmem:[#allocation4 + $0x28] sm:$0xff]
      %v1618 = vld [vmem:[#allocation4 + $0x30] sm:$0xff]
      %v1619 = vld [vmem:[#allocation4 + $0x38] sm:$0xff]
      %v1620 = vld [vmem:[#allocation4 + $0x40] sm:$0xff]
      %v1621 = vld [vmem:[#allocation4 + $0x48] sm:$0xff]
      %v1622 = vld [vmem:[#allocation4 + $0x50] sm:$0xff]
      %v1623 = vld [vmem:[#allocation4 + $0x58] sm:$0xff]
      %v1624 = vld [vmem:[#allocation4 + $0x60] sm:$0xff]
      %v1625 = vld [vmem:[#allocation4 + $0x68] sm:$0xff]
      %v1626 = vld [vmem:[#allocation4 + $0x70] sm:$0xff]
      %v1627 = vld [vmem:[#allocation4 + $0x78] sm:$0xff]
      %v1628 = vld [vmem:[#allocation4 + $0x80] sm:$0xff]
      %v1629 = vld [vmem:[#allocation4 + $0x88] sm:$0xff]
      %v1630 = vld [vmem:[#allocation4 + $0x90] sm:$0xff]
      %v1631 = vld [vmem:[#allocation4 + $0x98] sm:$0xff]
      %v1632 = vld [vmem:[#allocation4 + $0xa0] sm:$0xff]
      %v1633 = vld [vmem:[#allocation4 + $0xa8] sm:$0xff]
      %v1634 = vld [vmem:[#allocation4 + $0xb0] sm:$0xff]
      %v1635 = vld [vmem:[#allocation4 + $0xb8] sm:$0xff]
      %v1636 = vld [vmem:[#allocation4 + $0xc0] sm:$0xff]
      %v1637 = vld [vmem:[#allocation4 + $0xc8] sm:$0xff]
      %v1638 = vld [vmem:[#allocation4 + $0xd0] sm:$0xff]
      %v1639 = vld [vmem:[#allocation4 + $0xd8] sm:$0xff]
      %v1640 = vld [vmem:[#allocation4 + $0xe0] sm:$0xff]
      %v1641 = vld [vmem:[#allocation4 + $0xe8] sm:$0xff]
      %v1642 = vld [vmem:[#allocation4 + $0xf0] sm:$0xff]
      %v1643 = vld [vmem:[#allocation4 + $0xf8] sm:$0xff]
      %vm1644 = vsmask.f32 3328
      %vm1645 = vsmask.f32 7440
      %vm1646 = vmor %vm1644, %vm1645
      %v1648 = vshrl.u32 %v840, 16
      %v1650 = vrot.slane %v1648, 4
      %v1651 = vshll.u32 %v840, 16
      %v1653 = vrot.slane %v1651, 5
      %v1654 = vor.u32 %v1650, %v1653
      %v1655 = vrot.slane %v1654, 4
      %v1657 = vshll.u32 %v841, 16
      %v1659 = vrot.slane %v1657, 5
      %v1660 = vsel %vm1646, %v1655, %v1659
      %v1661 = vshrl.u32 %v841, 16
      %v1663 = vrot.slane %v1661, 4
      %v1664 = vor.u32 %v1663, %v1659
      %v1665 = vrot.slane %v1664, 4
      %v1667 = vshll.u32 %v842, 16
      %v1669 = vrot.slane %v1667, 5
      %v1670 = vsel %vm1646, %v1665, %v1669
      %v1672 = vshrl.u32 %v843, 16
      %v1674 = vrot.slane %v1672, 4
      %v1675 = vshll.u32 %v843, 16
      %v1677 = vrot.slane %v1675, 5
      %v1678 = vor.u32 %v1674, %v1677
      %v1679 = vrot.slane %v1678, 4
      %v1681 = vshll.u32 %v844, 16
      %v1683 = vrot.slane %v1681, 5
      %v1684 = vsel %vm1646, %v1679, %v1683
      %v1685 = vshrl.u32 %v844, 16
      %v1687 = vrot.slane %v1685, 4
      %v1688 = vor.u32 %v1687, %v1683
      %v1689 = vrot.slane %v1688, 4
      %v1691 = vshll.u32 %v845, 16
      %v1693 = vrot.slane %v1691, 5
      %v1694 = vsel %vm1646, %v1689, %v1693
      %v1696 = vshrl.u32 %v846, 16
      %v1698 = vrot.slane %v1696, 4
      %v1699 = vshll.u32 %v846, 16
      %v1701 = vrot.slane %v1699, 5
      %v1702 = vor.u32 %v1698, %v1701
      %v1703 = vrot.slane %v1702, 4
      %v1705 = vshll.u32 %v847, 16
      %v1707 = vrot.slane %v1705, 5
      %v1708 = vsel %vm1646, %v1703, %v1707
      %v1709 = vshrl.u32 %v847, 16
      %v1711 = vrot.slane %v1709, 4
      %v1712 = vor.u32 %v1711, %v1707
      %v1713 = vrot.slane %v1712, 4
      %v1715 = vshll.u32 %v848, 16
      %v1717 = vrot.slane %v1715, 5
      %v1718 = vsel %vm1646, %v1713, %v1717
      %v1720 = vshrl.u32 %v849, 16
      %v1722 = vrot.slane %v1720, 4
      %v1723 = vshll.u32 %v849, 16
      %v1725 = vrot.slane %v1723, 5
      %v1726 = vor.u32 %v1722, %v1725
      %v1727 = vrot.slane %v1726, 4
      %v1729 = vshll.u32 %v850, 16
      %v1731 = vrot.slane %v1729, 5
      %v1732 = vsel %vm1646, %v1727, %v1731
      %v1733 = vshrl.u32 %v850, 16
      %v1735 = vrot.slane %v1733, 4
      %v1736 = vor.u32 %v1735, %v1731
      %v1737 = vrot.slane %v1736, 4
      %v1739 = vshll.u32 %v851, 16
      %v1741 = vrot.slane %v1739, 5
      %v1742 = vsel %vm1646, %v1737, %v1741
      %v1744 = vshrl.u32 %v852, 16
      %v1746 = vrot.slane %v1744, 4
      %v1747 = vshll.u32 %v852, 16
      %v1749 = vrot.slane %v1747, 5
      %v1750 = vor.u32 %v1746, %v1749
      %v1751 = vrot.slane %v1750, 4
      %v1753 = vshll.u32 %v853, 16
      %v1755 = vrot.slane %v1753, 5
      %v1756 = vsel %vm1646, %v1751, %v1755
      %v1757 = vshrl.u32 %v853, 16
      %v1759 = vrot.slane %v1757, 4
      %v1760 = vor.u32 %v1759, %v1755
      %v1761 = vrot.slane %v1760, 4
      %v1763 = vshll.u32 %v854, 16
      %v1765 = vrot.slane %v1763, 5
      %v1766 = vsel %vm1646, %v1761, %v1765
      %v1768 = vshrl.u32 %v855, 16
      %v1770 = vrot.slane %v1768, 4
      %v1771 = vshll.u32 %v855, 16
      %v1773 = vrot.slane %v1771, 5
      %v1774 = vor.u32 %v1770, %v1773
      %v1775 = vrot.slane %v1774, 4
      %v1777 = vshll.u32 %v856, 16
      %v1779 = vrot.slane %v1777, 5
      %v1780 = vsel %vm1646, %v1775, %v1779
      %v1781 = vshrl.u32 %v856, 16
      %v1783 = vrot.slane %v1781, 4
      %v1784 = vor.u32 %v1783, %v1779
      %v1785 = vrot.slane %v1784, 4
      %v1787 = vshll.u32 %v857, 16
      %v1789 = vrot.slane %v1787, 5
      %v1790 = vsel %vm1646, %v1785, %v1789
      %v1792 = vshrl.u32 %v858, 16
      %v1794 = vrot.slane %v1792, 4
      %v1795 = vshll.u32 %v858, 16
      %v1797 = vrot.slane %v1795, 5
      %v1798 = vor.u32 %v1794, %v1797
      %v1799 = vrot.slane %v1798, 4
      %v1801 = vshll.u32 %v859, 16
      %v1803 = vrot.slane %v1801, 5
      %v1804 = vsel %vm1646, %v1799, %v1803
      %v1805 = vshrl.u32 %v859, 16
      %v1807 = vrot.slane %v1805, 4
      %v1808 = vor.u32 %v1807, %v1803
      %v1809 = vrot.slane %v1808, 4
      %v1811 = vshll.u32 %v860, 16
      %v1813 = vrot.slane %v1811, 5
      %v1814 = vsel %vm1646, %v1809, %v1813
      %v1816 = vshrl.u32 %v861, 16
      %v1818 = vrot.slane %v1816, 4
      %v1819 = vshll.u32 %v861, 16
      %v1821 = vrot.slane %v1819, 5
      %v1822 = vor.u32 %v1818, %v1821
      %v1823 = vrot.slane %v1822, 4
      %v1825 = vshll.u32 %v862, 16
      %v1827 = vrot.slane %v1825, 5
      %v1828 = vsel %vm1646, %v1823, %v1827
      %v1829 = vshrl.u32 %v862, 16
      %v1831 = vrot.slane %v1829, 4
      %v1832 = vor.u32 %v1831, %v1827
      %v1833 = vrot.slane %v1832, 4
      %v1835 = vshll.u32 %v863, 16
      %v1837 = vrot.slane %v1835, 5
      %v1838 = vsel %vm1646, %v1833, %v1837
      %v1840 = vshrl.u32 %v864, 16
      %v1842 = vrot.slane %v1840, 4
      %v1843 = vshll.u32 %v864, 16
      %v1845 = vrot.slane %v1843, 5
      %v1846 = vor.u32 %v1842, %v1845
      %v1847 = vrot.slane %v1846, 4
      %v1849 = vshll.u32 %v865, 16
      %v1851 = vrot.slane %v1849, 5
      %v1852 = vsel %vm1646, %v1847, %v1851
      %v1853 = vshrl.u32 %v865, 16
      %v1855 = vrot.slane %v1853, 4
      %v1856 = vor.u32 %v1855, %v1851
      %v1857 = vrot.slane %v1856, 4
      %v1859 = vshll.u32 %v866, 16
      %v1861 = vrot.slane %v1859, 5
      %v1862 = vsel %vm1646, %v1857, %v1861
      %v1864 = vshrl.u32 %v867, 16
      %v1866 = vrot.slane %v1864, 4
      %v1867 = vshll.u32 %v867, 16
      %v1869 = vrot.slane %v1867, 5
      %v1870 = vor.u32 %v1866, %v1869
      %v1871 = vrot.slane %v1870, 4
      %v1873 = vshll.u32 %v868, 16
      %v1875 = vrot.slane %v1873, 5
      %v1876 = vsel %vm1646, %v1871, %v1875
      %v1877 = vshrl.u32 %v868, 16
      %v1879 = vrot.slane %v1877, 4
      %v1880 = vor.u32 %v1879, %v1875
      %v1881 = vrot.slane %v1880, 4
      %v1883 = vshll.u32 %v869, 16
      %v1885 = vrot.slane %v1883, 5
      %v1886 = vsel %vm1646, %v1881, %v1885
      %v1888 = vshrl.u32 %v870, 16
      %v1890 = vrot.slane %v1888, 4
      %v1891 = vshll.u32 %v870, 16
      %v1893 = vrot.slane %v1891, 5
      %v1894 = vor.u32 %v1890, %v1893
      %v1895 = vrot.slane %v1894, 4
      %v1897 = vshll.u32 %v871, 16
      %v1899 = vrot.slane %v1897, 5
      %v1900 = vsel %vm1646, %v1895, %v1899
      %v1901 = vshrl.u32 %v871, 16
      %v1903 = vrot.slane %v1901, 4
      %v1904 = vor.u32 %v1903, %v1899
      %v1905 = vrot.slane %v1904, 4
      %v1907 = vshll.u32 %v872, 16
      %v1909 = vrot.slane %v1907, 5
      %v1910 = vsel %vm1646, %v1905, %v1909
      %v1912 = vshrl.u32 %v873, 16
      %v1914 = vrot.slane %v1912, 4
      %v1915 = vshll.u32 %v873, 16
      %v1917 = vrot.slane %v1915, 5
      %v1918 = vor.u32 %v1914, %v1917
      %v1919 = vrot.slane %v1918, 4
      %v1921 = vshll.u32 %v874, 16
      %v1923 = vrot.slane %v1921, 5
      %v1924 = vsel %vm1646, %v1919, %v1923
      %v1925 = vshrl.u32 %v874, 16
      %v1927 = vrot.slane %v1925, 4
      %v1928 = vor.u32 %v1927, %v1923
      %v1929 = vrot.slane %v1928, 4
      %v1931 = vshll.u32 %v875, 16
      %v1933 = vrot.slane %v1931, 5
      %v1934 = vsel %vm1646, %v1929, %v1933
      %v1936 = vshrl.u32 %v876, 16
      %v1938 = vrot.slane %v1936, 4
      %v1939 = vshll.u32 %v876, 16
      %v1941 = vrot.slane %v1939, 5
      %v1942 = vor.u32 %v1938, %v1941
      %v1943 = vrot.slane %v1942, 4
      %v1945 = vshll.u32 %v877, 16
      %v1947 = vrot.slane %v1945, 5
      %v1948 = vsel %vm1646, %v1943, %v1947
      %v1949 = vshrl.u32 %v877, 16
      %v1951 = vrot.slane %v1949, 4
      %v1952 = vor.u32 %v1951, %v1947
      %v1953 = vrot.slane %v1952, 4
      %v1955 = vshll.u32 %v878, 16
      %v1957 = vrot.slane %v1955, 5
      %v1958 = vsel %vm1646, %v1953, %v1957
      %v1960 = vshrl.u32 %v879, 16
      %v1962 = vrot.slane %v1960, 4
      %v1963 = vshll.u32 %v879, 16
      %v1965 = vrot.slane %v1963, 5
      %v1966 = vor.u32 %v1962, %v1965
      %v1967 = vrot.slane %v1966, 4
      %v1969 = vshll.u32 %v880, 16
      %v1971 = vrot.slane %v1969, 5
      %v1972 = vsel %vm1646, %v1967, %v1971
      %v1973 = vshrl.u32 %v880, 16
      %v1975 = vrot.slane %v1973, 4
      %v1976 = vor.u32 %v1975, %v1971
      %v1977 = vrot.slane %v1976, 4
      %v1979 = vshll.u32 %v881, 16
      %v1981 = vrot.slane %v1979, 5
      %v1982 = vsel %vm1646, %v1977, %v1981
      %v1984 = vshrl.u32 %v882, 16
      %v1986 = vrot.slane %v1984, 4
      %v1987 = vshll.u32 %v882, 16
      %v1989 = vrot.slane %v1987, 5
      %v1990 = vor.u32 %v1986, %v1989
      %v1991 = vrot.slane %v1990, 4
      %v1993 = vshll.u32 %v883, 16
      %v1995 = vrot.slane %v1993, 5
      %v1996 = vsel %vm1646, %v1991, %v1995
      %v1997 = vshrl.u32 %v883, 16
      %v1999 = vrot.slane %v1997, 4
      %v2000 = vor.u32 %v1999, %v1995
      %v2001 = vrot.slane %v2000, 4
      %v2003 = vshll.u32 %v884, 16
      %v2005 = vrot.slane %v2003, 5
      %v2006 = vsel %vm1646, %v2001, %v2005
      %v2008 = vshrl.u32 %v885, 16
      %v2010 = vrot.slane %v2008, 4
      %v2011 = vshll.u32 %v885, 16
      %v2013 = vrot.slane %v2011, 5
      %v2014 = vor.u32 %v2010, %v2013
      %v2015 = vrot.slane %v2014, 4
      %v2017 = vshll.u32 %v886, 16
      %v2019 = vrot.slane %v2017, 5
      %v2020 = vsel %vm1646, %v2015, %v2019
      %v2021 = vshrl.u32 %v886, 16
      %v2023 = vrot.slane %v2021, 4
      %v2024 = vor.u32 %v2023, %v2019
      %v2025 = vrot.slane %v2024, 4
      %v2027 = vshll.u32 %v887, 16
      %v2029 = vrot.slane %v2027, 5
      %v2030 = vsel %vm1646, %v2025, %v2029
      %v2031 = vunpack.c.l.b16 %v1660
      %v2032 = vunpack.c.l.b16 %v1670
      %v2033 = vunpack.c.l.b16 %v1684
      %v2034 = vunpack.c.l.b16 %v1694
      %v2035 = vunpack.c.l.b16 %v1708
      %v2036 = vunpack.c.l.b16 %v1718
      %v2037 = vunpack.c.l.b16 %v1732
      %v2038 = vunpack.c.l.b16 %v1742
      %v2039 = vunpack.c.l.b16 %v1756
      %v2040 = vunpack.c.l.b16 %v1766
      %v2041 = vunpack.c.l.b16 %v1780
      %v2042 = vunpack.c.l.b16 %v1790
      %v2043 = vunpack.c.l.b16 %v1804
      %v2044 = vunpack.c.l.b16 %v1814
      %v2045 = vunpack.c.l.b16 %v1828
      %v2046 = vunpack.c.l.b16 %v1838
      %v2047 = vunpack.c.l.b16 %v1852
      %v2048 = vunpack.c.l.b16 %v1862
      %v2049 = vunpack.c.l.b16 %v1876
      %v2050 = vunpack.c.l.b16 %v1886
      %v2051 = vunpack.c.l.b16 %v1900
      %v2052 = vunpack.c.l.b16 %v1910
      %v2053 = vunpack.c.l.b16 %v1924
      %v2054 = vunpack.c.l.b16 %v1934
      %v2055 = vunpack.c.l.b16 %v1948
      %v2056 = vunpack.c.l.b16 %v1958
      %v2057 = vunpack.c.l.b16 %v1972
      %v2058 = vunpack.c.l.b16 %v1982
      %v2059 = vunpack.c.l.b16 %v1996
      %v2060 = vunpack.c.l.b16 %v2006
      %v2061 = vunpack.c.l.b16 %v2020
      %v2062 = vunpack.c.l.b16 %v2030
      %v2063 = vpack.c.b16 %v2032, %v2031
      %v2064 = vpack.c.b16 %v2034, %v2033
      %v2065 = vpack.c.b16 %v2036, %v2035
      %v2066 = vpack.c.b16 %v2038, %v2037
      %v2067 = vpack.c.b16 %v2040, %v2039
      %v2068 = vpack.c.b16 %v2042, %v2041
      %v2069 = vpack.c.b16 %v2044, %v2043
      %v2070 = vpack.c.b16 %v2046, %v2045
      %v2071 = vpack.c.b16 %v2048, %v2047
      %v2072 = vpack.c.b16 %v2050, %v2049
      %v2073 = vpack.c.b16 %v2052, %v2051
      %v2074 = vpack.c.b16 %v2054, %v2053
      %v2075 = vpack.c.b16 %v2056, %v2055
      %v2076 = vpack.c.b16 %v2058, %v2057
      %v2077 = vpack.c.b16 %v2060, %v2059
      %v2078 = vpack.c.b16 %v2062, %v2061
      %v2080 = vsel %vm246, %v2063, 0
      %v2083 = vsel %vm246, %v2064, 0
      %v2086 = vsel %vm246, %v2065, 0
      %v2089 = vsel %vm246, %v2066, 0
      %v2092 = vsel %vm246, %v2067, 0
      %v2095 = vsel %vm246, %v2068, 0
      %v2098 = vsel %vm246, %v2069, 0
      %v2101 = vsel %vm246, %v2070, 0
      %v2104 = vsel %vm246, %v2071, 0
      %v2107 = vsel %vm246, %v2072, 0
      %v2110 = vsel %vm246, %v2073, 0
      %v2113 = vsel %vm246, %v2074, 0
      %v2116 = vsel %vm246, %v2075, 0
      %v2119 = vsel %vm246, %v2076, 0
      %v2122 = vsel %vm246, %v2077, 0
      %v2125 = vsel %vm246, %v2078, 0
      %v2128 = vsel %vm1063, %v895, 0
      %2130 = vmatpush.bf16.msra.mxu0 0
      %2131 = vmatpush.bf16.msra.mxu0 0
      %2132 = vmatpush.bf16.msra.mxu0 0
      %2133 = vmatpush.bf16.msra.mxu0 0
      %2134 = vmatpush.bf16.msra.mxu0 0
      %2135 = vmatpush.bf16.msra.mxu0 0
      %2136 = vmatpush.bf16.msra.mxu0 0
      %2137 = vmatpush.bf16.msra.mxu0 %v2128
      %2138 = vmatmul.bf16.gmra.mxu0 %v2080
      %v2139 = vpop.f32.mrf.mxu0
      %v2140 = vadd.f32 0.0, %v2139
      %v2141 = vpop.f32.mrf.mxu0
      %v2142 = vadd.f32 0.0, %v2141
      %2143 = vmatmul.bf16.gmra.mxu0 %v2083
      %v2144 = vpop.f32.mrf.mxu0
      %v2145 = vadd.f32 0.0, %v2144
      %v2146 = vpop.f32.mrf.mxu0
      %v2147 = vadd.f32 0.0, %v2146
      %2148 = vmatmul.bf16.gmra.mxu0 %v2086
      %v2149 = vpop.f32.mrf.mxu0
      %v2150 = vadd.f32 0.0, %v2149
      %v2151 = vpop.f32.mrf.mxu0
      %v2152 = vadd.f32 0.0, %v2151
      %2153 = vmatmul.bf16.gmra.mxu0 %v2089
      %v2154 = vpop.f32.mrf.mxu0
      %v2155 = vadd.f32 0.0, %v2154
      %v2156 = vpop.f32.mrf.mxu0
      %v2157 = vadd.f32 0.0, %v2156
      %2158 = vmatmul.bf16.gmra.mxu0 %v2092
      %v2159 = vpop.f32.mrf.mxu0
      %v2160 = vadd.f32 0.0, %v2159
      %v2161 = vpop.f32.mrf.mxu0
      %v2162 = vadd.f32 0.0, %v2161
      %2163 = vmatmul.bf16.gmra.mxu0 %v2095
      %v2164 = vpop.f32.mrf.mxu0
      %v2165 = vadd.f32 0.0, %v2164
      %v2166 = vpop.f32.mrf.mxu0
      %v2167 = vadd.f32 0.0, %v2166
      %2168 = vmatmul.bf16.gmra.mxu0 %v2098
      %v2169 = vpop.f32.mrf.mxu0
      %v2170 = vadd.f32 0.0, %v2169
      %v2171 = vpop.f32.mrf.mxu0
      %v2172 = vadd.f32 0.0, %v2171
      %2173 = vmatmul.bf16.gmra.mxu0 %v2101
      %v2174 = vpop.f32.mrf.mxu0
      %v2175 = vadd.f32 0.0, %v2174
      %v2176 = vpop.f32.mrf.mxu0
      %v2177 = vadd.f32 0.0, %v2176
      %2178 = vmatmul.bf16.gmra.mxu0 %v2104
      %v2179 = vpop.f32.mrf.mxu0
      %v2180 = vadd.f32 0.0, %v2179
      %v2181 = vpop.f32.mrf.mxu0
      %v2182 = vadd.f32 0.0, %v2181
      %2183 = vmatmul.bf16.gmra.mxu0 %v2107
      %v2184 = vpop.f32.mrf.mxu0
      %v2185 = vadd.f32 0.0, %v2184
      %v2186 = vpop.f32.mrf.mxu0
      %v2187 = vadd.f32 0.0, %v2186
      %2188 = vmatmul.bf16.gmra.mxu0 %v2110
      %v2189 = vpop.f32.mrf.mxu0
      %v2190 = vadd.f32 0.0, %v2189
      %v2191 = vpop.f32.mrf.mxu0
      %v2192 = vadd.f32 0.0, %v2191
      %2193 = vmatmul.bf16.gmra.mxu0 %v2113
      %v2194 = vpop.f32.mrf.mxu0
      %v2195 = vadd.f32 0.0, %v2194
      %v2196 = vpop.f32.mrf.mxu0
      %v2197 = vadd.f32 0.0, %v2196
      %2198 = vmatmul.bf16.gmra.mxu0 %v2116
      %v2199 = vpop.f32.mrf.mxu0
      %v2200 = vadd.f32 0.0, %v2199
      %v2201 = vpop.f32.mrf.mxu0
      %v2202 = vadd.f32 0.0, %v2201
      %2203 = vmatmul.bf16.gmra.mxu0 %v2119
      %v2204 = vpop.f32.mrf.mxu0
      %v2205 = vadd.f32 0.0, %v2204
      %v2206 = vpop.f32.mrf.mxu0
      %v2207 = vadd.f32 0.0, %v2206
      %2208 = vmatmul.bf16.gmra.mxu0 %v2122
      %v2209 = vpop.f32.mrf.mxu0
      %v2210 = vadd.f32 0.0, %v2209
      %v2211 = vpop.f32.mrf.mxu0
      %v2212 = vadd.f32 0.0, %v2211
      %2213 = vmatmul.bf16.gmra.mxu0 %v2125
      %v2214 = vpop.f32.mrf.mxu0
      %v2215 = vadd.f32 0.0, %v2214
      %v2216 = vpop.f32.mrf.mxu0
      %v2217 = vadd.f32 0.0, %v2216
      %2218 = vdwg.mxu0
      %v2219 = vadd.f32 %v1612, %v2140
      %v2220 = vadd.f32 %v1613, %v2142
      %v2221 = vadd.f32 %v1614, %v2145
      %v2222 = vadd.f32 %v1615, %v2147
      %v2223 = vadd.f32 %v1616, %v2150
      %v2224 = vadd.f32 %v1617, %v2152
      %v2225 = vadd.f32 %v1618, %v2155
      %v2226 = vadd.f32 %v1619, %v2157
      %v2227 = vadd.f32 %v1620, %v2160
      %v2228 = vadd.f32 %v1621, %v2162
      %v2229 = vadd.f32 %v1622, %v2165
      %v2230 = vadd.f32 %v1623, %v2167
      %v2231 = vadd.f32 %v1624, %v2170
      %v2232 = vadd.f32 %v1625, %v2172
      %v2233 = vadd.f32 %v1626, %v2175
      %v2234 = vadd.f32 %v1627, %v2177
      %v2235 = vadd.f32 %v1628, %v2180
      %v2236 = vadd.f32 %v1629, %v2182
      %v2237 = vadd.f32 %v1630, %v2185
      %v2238 = vadd.f32 %v1631, %v2187
      %v2239 = vadd.f32 %v1632, %v2190
      %v2240 = vadd.f32 %v1633, %v2192
      %v2241 = vadd.f32 %v1634, %v2195
      %v2242 = vadd.f32 %v1635, %v2197
      %v2243 = vadd.f32 %v1636, %v2200
      %v2244 = vadd.f32 %v1637, %v2202
      %v2245 = vadd.f32 %v1638, %v2205
      %v2246 = vadd.f32 %v1639, %v2207
      %v2247 = vadd.f32 %v1640, %v2210
      %v2248 = vadd.f32 %v1641, %v2212
      %v2249 = vadd.f32 %v1642, %v2215
      %v2250 = vadd.f32 %v1643, %v2217
      %2251 = vst.msk [vmem:[#allocation4] sm:$0xff] %vm246, %v2219
      %2252 = vst.msk [vmem:[#allocation4 + $0x8] sm:$0xff] %vm246, %v2220
      %2253 = vst.msk [vmem:[#allocation4 + $0x10] sm:$0xff] %vm246, %v2221
      %2254 = vst.msk [vmem:[#allocation4 + $0x18] sm:$0xff] %vm246, %v2222
      %2255 = vst.msk [vmem:[#allocation4 + $0x20] sm:$0xff] %vm246, %v2223
      %2256 = vst.msk [vmem:[#allocation4 + $0x28] sm:$0xff] %vm246, %v2224
      %2257 = vst.msk [vmem:[#allocation4 + $0x30] sm:$0xff] %vm246, %v2225
      %2258 = vst.msk [vmem:[#allocation4 + $0x38] sm:$0xff] %vm246, %v2226
      %2259 = vst.msk [vmem:[#allocation4 + $0x40] sm:$0xff] %vm246, %v2227
      %2260 = vst.msk [vmem:[#allocation4 + $0x48] sm:$0xff] %vm246, %v2228
      %2261 = vst.msk [vmem:[#allocation4 + $0x50] sm:$0xff] %vm246, %v2229
      %2262 = vst.msk [vmem:[#allocation4 + $0x58] sm:$0xff] %vm246, %v2230
      %2263 = vst.msk [vmem:[#allocation4 + $0x60] sm:$0xff] %vm246, %v2231
      %2264 = vst.msk [vmem:[#allocation4 + $0x68] sm:$0xff] %vm246, %v2232
      %2265 = vst.msk [vmem:[#allocation4 + $0x70] sm:$0xff] %vm246, %v2233
      %2266 = vst.msk [vmem:[#allocation4 + $0x78] sm:$0xff] %vm246, %v2234
      %2267 = vst.msk [vmem:[#allocation4 + $0x80] sm:$0xff] %vm246, %v2235
      %2268 = vst.msk [vmem:[#allocation4 + $0x88] sm:$0xff] %vm246, %v2236
      %2269 = vst.msk [vmem:[#allocation4 + $0x90] sm:$0xff] %vm246, %v2237
      %2270 = vst.msk [vmem:[#allocation4 + $0x98] sm:$0xff] %vm246, %v2238
      %2271 = vst.msk [vmem:[#allocation4 + $0xa0] sm:$0xff] %vm246, %v2239
      %2272 = vst.msk [vmem:[#allocation4 + $0xa8] sm:$0xff] %vm246, %v2240
      %2273 = vst.msk [vmem:[#allocation4 + $0xb0] sm:$0xff] %vm246, %v2241
      %2274 = vst.msk [vmem:[#allocation4 + $0xb8] sm:$0xff] %vm246, %v2242
      %2275 = vst.msk [vmem:[#allocation4 + $0xc0] sm:$0xff] %vm246, %v2243
      %2276 = vst.msk [vmem:[#allocation4 + $0xc8] sm:$0xff] %vm246, %v2244
      %2277 = vst.msk [vmem:[#allocation4 + $0xd0] sm:$0xff] %vm246, %v2245
      %2278 = vst.msk [vmem:[#allocation4 + $0xd8] sm:$0xff] %vm246, %v2246
      %2279 = vst.msk [vmem:[#allocation4 + $0xe0] sm:$0xff] %vm246, %v2247
      %2280 = vst.msk [vmem:[#allocation4 + $0xe8] sm:$0xff] %vm246, %v2248
      %2281 = vst.msk [vmem:[#allocation4 + $0xf0] sm:$0xff] %vm246, %v2249
      %2282 = vst.msk [vmem:[#allocation4 + $0xf8] sm:$0xff] %vm246, %v2250
      %v2283 = vld [vmem:[#allocation4] sm:$0xff]
      %v2284 = vld [vmem:[#allocation4 + $0x8] sm:$0xff]
      %v2285 = vld [vmem:[#allocation4 + $0x10] sm:$0xff]
      %v2286 = vld [vmem:[#allocation4 + $0x18] sm:$0xff]
      %v2287 = vld [vmem:[#allocation4 + $0x20] sm:$0xff]
      %v2288 = vld [vmem:[#allocation4 + $0x28] sm:$0xff]
      %v2289 = vld [vmem:[#allocation4 + $0x30] sm:$0xff]
      %v2290 = vld [vmem:[#allocation4 + $0x38] sm:$0xff]
      %v2291 = vld [vmem:[#allocation4 + $0x40] sm:$0xff]
      %v2292 = vld [vmem:[#allocation4 + $0x48] sm:$0xff]
      %v2293 = vld [vmem:[#allocation4 + $0x50] sm:$0xff]
      %v2294 = vld [vmem:[#allocation4 + $0x58] sm:$0xff]
      %v2295 = vld [vmem:[#allocation4 + $0x60] sm:$0xff]
      %v2296 = vld [vmem:[#allocation4 + $0x68] sm:$0xff]
      %v2297 = vld [vmem:[#allocation4 + $0x70] sm:$0xff]
      %v2298 = vld [vmem:[#allocation4 + $0x78] sm:$0xff]
      %v2299 = vld [vmem:[#allocation4 + $0x80] sm:$0xff]
      %v2300 = vld [vmem:[#allocation4 + $0x88] sm:$0xff]
      %v2301 = vld [vmem:[#allocation4 + $0x90] sm:$0xff]
      %v2302 = vld [vmem:[#allocation4 + $0x98] sm:$0xff]
      %v2303 = vld [vmem:[#allocation4 + $0xa0] sm:$0xff]
      %v2304 = vld [vmem:[#allocation4 + $0xa8] sm:$0xff]
      %v2305 = vld [vmem:[#allocation4 + $0xb0] sm:$0xff]
      %v2306 = vld [vmem:[#allocation4 + $0xb8] sm:$0xff]
      %v2307 = vld [vmem:[#allocation4 + $0xc0] sm:$0xff]
      %v2308 = vld [vmem:[#allocation4 + $0xc8] sm:$0xff]
      %v2309 = vld [vmem:[#allocation4 + $0xd0] sm:$0xff]
      %v2310 = vld [vmem:[#allocation4 + $0xd8] sm:$0xff]
      %v2311 = vld [vmem:[#allocation4 + $0xe0] sm:$0xff]
      %v2312 = vld [vmem:[#allocation4 + $0xe8] sm:$0xff]
      %v2313 = vld [vmem:[#allocation4 + $0xf0] sm:$0xff]
      %v2314 = vld [vmem:[#allocation4 + $0xf8] sm:$0xff]
      %v2316 = vshrl.u32 %v888, 16
      %v2318 = vrot.slane %v2316, 4
      %v2319 = vshll.u32 %v888, 16
      %v2321 = vrot.slane %v2319, 5
      %v2322 = vor.u32 %v2318, %v2321
      %v2323 = vrot.slane %v2322, 4
      %v2325 = vshll.u32 %v889, 16
      %v2327 = vrot.slane %v2325, 5
      %v2328 = vsel %vm1646, %v2323, %v2327
      %v2329 = vshrl.u32 %v889, 16
      %v2331 = vrot.slane %v2329, 4
      %v2332 = vor.u32 %v2331, %v2327
      %v2333 = vrot.slane %v2332, 4
      %v2335 = vshll.u32 %v890, 16
      %v2337 = vrot.slane %v2335, 5
      %v2338 = vsel %vm1646, %v2333, %v2337
      %v2339 = vunpack.c.l.b16 %v2328
      %v2340 = vunpack.c.l.b16 %v2338
      %v2341 = vpack.c.b16 %v2340, %v2339
      %v2343 = vsel %vm246, %v2341, 0
      %v2346 = vsel %vm1063, %v898, 0
      %2348 = vmatpush.bf16.msra.mxu0 0
      %2349 = vmatpush.bf16.msra.mxu0 0
      %2350 = vmatpush.bf16.msra.mxu0 0
      %2351 = vmatpush.bf16.msra.mxu0 0
      %2352 = vmatpush.bf16.msra.mxu0 0
      %2353 = vmatpush.bf16.msra.mxu0 0
      %2354 = vmatpush.bf16.msra.mxu0 0
      %2355 = vmatpush.bf16.msra.mxu0 %v2346
      %2356 = vmatmul.bf16.gmra.mxu0 %v2083
      %v2357 = vpop.f32.mrf.mxu0
      %v2358 = vadd.f32 0.0, %v2357
      %v2359 = vpop.f32.mrf.mxu0
      %v2360 = vadd.f32 0.0, %v2359
      %2361 = vmatmul.bf16.gmra.mxu0 %v2086
      %v2362 = vpop.f32.mrf.mxu0
      %v2363 = vadd.f32 0.0, %v2362
      %v2364 = vpop.f32.mrf.mxu0
      %v2365 = vadd.f32 0.0, %v2364
      %2366 = vmatmul.bf16.gmra.mxu0 %v2089
      %v2367 = vpop.f32.mrf.mxu0
      %v2368 = vadd.f32 0.0, %v2367
      %v2369 = vpop.f32.mrf.mxu0
      %v2370 = vadd.f32 0.0, %v2369
      %2371 = vmatmul.bf16.gmra.mxu0 %v2092
      %v2372 = vpop.f32.mrf.mxu0
      %v2373 = vadd.f32 0.0, %v2372
      %v2374 = vpop.f32.mrf.mxu0
      %v2375 = vadd.f32 0.0, %v2374
      %2376 = vmatmul.bf16.gmra.mxu0 %v2095
      %v2377 = vpop.f32.mrf.mxu0
      %v2378 = vadd.f32 0.0, %v2377
      %v2379 = vpop.f32.mrf.mxu0
      %v2380 = vadd.f32 0.0, %v2379
      %2381 = vmatmul.bf16.gmra.mxu0 %v2098
      %v2382 = vpop.f32.mrf.mxu0
      %v2383 = vadd.f32 0.0, %v2382
      %v2384 = vpop.f32.mrf.mxu0
      %v2385 = vadd.f32 0.0, %v2384
      %2386 = vmatmul.bf16.gmra.mxu0 %v2101
      %v2387 = vpop.f32.mrf.mxu0
      %v2388 = vadd.f32 0.0, %v2387
      %v2389 = vpop.f32.mrf.mxu0
      %v2390 = vadd.f32 0.0, %v2389
      %2391 = vmatmul.bf16.gmra.mxu0 %v2104
      %v2392 = vpop.f32.mrf.mxu0
      %v2393 = vadd.f32 0.0, %v2392
      %v2394 = vpop.f32.mrf.mxu0
      %v2395 = vadd.f32 0.0, %v2394
      %2396 = vmatmul.bf16.gmra.mxu0 %v2107
      %v2397 = vpop.f32.mrf.mxu0
      %v2398 = vadd.f32 0.0, %v2397
      %v2399 = vpop.f32.mrf.mxu0
      %v2400 = vadd.f32 0.0, %v2399
      %2401 = vmatmul.bf16.gmra.mxu0 %v2110
      %v2402 = vpop.f32.mrf.mxu0
      %v2403 = vadd.f32 0.0, %v2402
      %v2404 = vpop.f32.mrf.mxu0
      %v2405 = vadd.f32 0.0, %v2404
      %2406 = vmatmul.bf16.gmra.mxu0 %v2113
      %v2407 = vpop.f32.mrf.mxu0
      %v2408 = vadd.f32 0.0, %v2407
      %v2409 = vpop.f32.mrf.mxu0
      %v2410 = vadd.f32 0.0, %v2409
      %2411 = vmatmul.bf16.gmra.mxu0 %v2116
      %v2412 = vpop.f32.mrf.mxu0
      %v2413 = vadd.f32 0.0, %v2412
      %v2414 = vpop.f32.mrf.mxu0
      %v2415 = vadd.f32 0.0, %v2414
      %2416 = vmatmul.bf16.gmra.mxu0 %v2119
      %v2417 = vpop.f32.mrf.mxu0
      %v2418 = vadd.f32 0.0, %v2417
      %v2419 = vpop.f32.mrf.mxu0
      %v2420 = vadd.f32 0.0, %v2419
      %2421 = vmatmul.bf16.gmra.mxu0 %v2122
      %v2422 = vpop.f32.mrf.mxu0
      %v2423 = vadd.f32 0.0, %v2422
      %v2424 = vpop.f32.mrf.mxu0
      %v2425 = vadd.f32 0.0, %v2424
      %2426 = vmatmul.bf16.gmra.mxu0 %v2125
      %v2427 = vpop.f32.mrf.mxu0
      %v2428 = vadd.f32 0.0, %v2427
      %v2429 = vpop.f32.mrf.mxu0
      %v2430 = vadd.f32 0.0, %v2429
      %2431 = vmatmul.bf16.gmra.mxu0 %v2343
      %v2432 = vpop.f32.mrf.mxu0
      %v2433 = vadd.f32 0.0, %v2432
      %v2434 = vpop.f32.mrf.mxu0
      %v2435 = vadd.f32 0.0, %v2434
      %2436 = vdwg.mxu0
      %v2437 = vadd.f32 %v2283, %v2358
      %v2438 = vadd.f32 %v2284, %v2360
      %v2439 = vadd.f32 %v2285, %v2363
      %v2440 = vadd.f32 %v2286, %v2365
      %v2441 = vadd.f32 %v2287, %v2368
      %v2442 = vadd.f32 %v2288, %v2370
      %v2443 = vadd.f32 %v2289, %v2373
      %v2444 = vadd.f32 %v2290, %v2375
      %v2445 = vadd.f32 %v2291, %v2378
      %v2446 = vadd.f32 %v2292, %v2380
      %v2447 = vadd.f32 %v2293, %v2383
      %v2448 = vadd.f32 %v2294, %v2385
      %v2449 = vadd.f32 %v2295, %v2388
      %v2450 = vadd.f32 %v2296, %v2390
      %v2451 = vadd.f32 %v2297, %v2393
      %v2452 = vadd.f32 %v2298, %v2395
      %v2453 = vadd.f32 %v2299, %v2398
      %v2454 = vadd.f32 %v2300, %v2400
      %v2455 = vadd.f32 %v2301, %v2403
      %v2456 = vadd.f32 %v2302, %v2405
      %v2457 = vadd.f32 %v2303, %v2408
      %v2458 = vadd.f32 %v2304, %v2410
      %v2459 = vadd.f32 %v2305, %v2413
      %v2460 = vadd.f32 %v2306, %v2415
      %v2461 = vadd.f32 %v2307, %v2418
      %v2462 = vadd.f32 %v2308, %v2420
      %v2463 = vadd.f32 %v2309, %v2423
      %v2464 = vadd.f32 %v2310, %v2425
      %v2465 = vadd.f32 %v2311, %v2428
      %v2466 = vadd.f32 %v2312, %v2430
      %v2467 = vadd.f32 %v2313, %v2433
      %v2468 = vadd.f32 %v2314, %v2435
      %2469 = vst.msk [vmem:[#allocation4] sm:$0xff] %vm246, %v2437
      %2470 = vst.msk [vmem:[#allocation4 + $0x8] sm:$0xff] %vm246, %v2438
      %2471 = vst.msk [vmem:[#allocation4 + $0x10] sm:$0xff] %vm246, %v2439
      %2472 = vst.msk [vmem:[#allocation4 + $0x18] sm:$0xff] %vm246, %v2440
      %2473 = vst.msk [vmem:[#allocation4 + $0x20] sm:$0xff] %vm246, %v2441
      %2474 = vst.msk [vmem:[#allocation4 + $0x28] sm:$0xff] %vm246, %v2442
      %2475 = vst.msk [vmem:[#allocation4 + $0x30] sm:$0xff] %vm246, %v2443
      %2476 = vst.msk [vmem:[#allocation4 + $0x38] sm:$0xff] %vm246, %v2444
      %2477 = vst.msk [vmem:[#allocation4 + $0x40] sm:$0xff] %vm246, %v2445
      %2478 = vst.msk [vmem:[#allocation4 + $0x48] sm:$0xff] %vm246, %v2446
      %2479 = vst.msk [vmem:[#allocation4 + $0x50] sm:$0xff] %vm246, %v2447
      %2480 = vst.msk [vmem:[#allocation4 + $0x58] sm:$0xff] %vm246, %v2448
      %2481 = vst.msk [vmem:[#allocation4 + $0x60] sm:$0xff] %vm246, %v2449
      %2482 = vst.msk [vmem:[#allocation4 + $0x68] sm:$0xff] %vm246, %v2450
      %2483 = vst.msk [vmem:[#allocation4 + $0x70] sm:$0xff] %vm246, %v2451
      %2484 = vst.msk [vmem:[#allocation4 + $0x78] sm:$0xff] %vm246, %v2452
      %2485 = vst.msk [vmem:[#allocation4 + $0x80] sm:$0xff] %vm246, %v2453
      %2486 = vst.msk [vmem:[#allocation4 + $0x88] sm:$0xff] %vm246, %v2454
      %2487 = vst.msk [vmem:[#allocation4 + $0x90] sm:$0xff] %vm246, %v2455
      %2488 = vst.msk [vmem:[#allocation4 + $0x98] sm:$0xff] %vm246, %v2456
      %2489 = vst.msk [vmem:[#allocation4 + $0xa0] sm:$0xff] %vm246, %v2457
      %2490 = vst.msk [vmem:[#allocation4 + $0xa8] sm:$0xff] %vm246, %v2458
      %2491 = vst.msk [vmem:[#allocation4 + $0xb0] sm:$0xff] %vm246, %v2459
      %2492 = vst.msk [vmem:[#allocation4 + $0xb8] sm:$0xff] %vm246, %v2460
      %2493 = vst.msk [vmem:[#allocation4 + $0xc0] sm:$0xff] %vm246, %v2461
      %2494 = vst.msk [vmem:[#allocation4 + $0xc8] sm:$0xff] %vm246, %v2462
      %2495 = vst.msk [vmem:[#allocation4 + $0xd0] sm:$0xff] %vm246, %v2463
      %2496 = vst.msk [vmem:[#allocation4 + $0xd8] sm:$0xff] %vm246, %v2464
      %2497 = vst.msk [vmem:[#allocation4 + $0xe0] sm:$0xff] %vm246, %v2465
      %2498 = vst.msk [vmem:[#allocation4 + $0xe8] sm:$0xff] %vm246, %v2466
      %2499 = vst.msk [vmem:[#allocation4 + $0xf0] sm:$0xff] %vm246, %v2467
      %2500 = vst.msk [vmem:[#allocation4 + $0xf8] sm:$0xff] %vm246, %v2468
      %v2501 = vld [vmem:[#allocation4] sm:$0xff]
      %v2502 = vld [vmem:[#allocation4 + $0x8] sm:$0xff]
      %v2503 = vld [vmem:[#allocation4 + $0x10] sm:$0xff]
      %v2504 = vld [vmem:[#allocation4 + $0x18] sm:$0xff]
      %v2505 = vld [vmem:[#allocation4 + $0x20] sm:$0xff]
      %v2506 = vld [vmem:[#allocation4 + $0x28] sm:$0xff]
      %v2507 = vld [vmem:[#allocation4 + $0x30] sm:$0xff]
      %v2508 = vld [vmem:[#allocation4 + $0x38] sm:$0xff]
      %v2509 = vld [vmem:[#allocation4 + $0x40] sm:$0xff]
      %v2510 = vld [vmem:[#allocation4 + $0x48] sm:$0xff]
      %v2511 = vld [vmem:[#allocation4 + $0x50] sm:$0xff]
      %v2512 = vld [vmem:[#allocation4 + $0x58] sm:$0xff]
      %v2513 = vld [vmem:[#allocation4 + $0x60] sm:$0xff]
      %v2514 = vld [vmem:[#allocation4 + $0x68] sm:$0xff]
      %v2515 = vld [vmem:[#allocation4 + $0x70] sm:$0xff]
      %v2516 = vld [vmem:[#allocation4 + $0x78] sm:$0xff]
      %v2517 = vld [vmem:[#allocation4 + $0x80] sm:$0xff]
      %v2518 = vld [vmem:[#allocation4 + $0x88] sm:$0xff]
      %v2519 = vld [vmem:[#allocation4 + $0x90] sm:$0xff]
      %v2520 = vld [vmem:[#allocation4 + $0x98] sm:$0xff]
      %v2521 = vld [vmem:[#allocation4 + $0xa0] sm:$0xff]
      %v2522 = vld [vmem:[#allocation4 + $0xa8] sm:$0xff]
      %v2523 = vld [vmem:[#allocation4 + $0xb0] sm:$0xff]
      %v2524 = vld [vmem:[#allocation4 + $0xb8] sm:$0xff]
      %v2525 = vld [vmem:[#allocation4 + $0xc0] sm:$0xff]
      %v2526 = vld [vmem:[#allocation4 + $0xc8] sm:$0xff]
      %v2527 = vld [vmem:[#allocation4 + $0xd0] sm:$0xff]
      %v2528 = vld [vmem:[#allocation4 + $0xd8] sm:$0xff]
      %v2529 = vld [vmem:[#allocation4 + $0xe0] sm:$0xff]
      %v2530 = vld [vmem:[#allocation4 + $0xe8] sm:$0xff]
      %v2531 = vld [vmem:[#allocation4 + $0xf0] sm:$0xff]
      %v2532 = vld [vmem:[#allocation4 + $0xf8] sm:$0xff]
      %v2534 = vshrl.u32 %v891, 16
      %v2536 = vrot.slane %v2534, 4
      %v2537 = vshll.u32 %v891, 16
      %v2539 = vrot.slane %v2537, 5
      %v2540 = vor.u32 %v2536, %v2539
      %v2541 = vrot.slane %v2540, 4
      %v2543 = vshll.u32 %v892, 16
      %v2545 = vrot.slane %v2543, 5
      %v2546 = vsel %vm1646, %v2541, %v2545
      %v2547 = vshrl.u32 %v892, 16
      %v2549 = vrot.slane %v2547, 4
      %v2550 = vor.u32 %v2549, %v2545
      %v2551 = vrot.slane %v2550, 4
      %v2553 = vshll.u32 %v893, 16
      %v2555 = vrot.slane %v2553, 5
      %v2556 = vsel %vm1646, %v2551, %v2555
      %v2557 = vunpack.c.l.b16 %v2546
      %v2558 = vunpack.c.l.b16 %v2556
      %v2559 = vpack.c.b16 %v2558, %v2557
      %v2561 = vsel %vm246, %v2559, 0
      %v2564 = vsel %vm1063, %v901, 0
      %2566 = vmatpush.bf16.msra.mxu0 0
      %2567 = vmatpush.bf16.msra.mxu0 0
      %2568 = vmatpush.bf16.msra.mxu0 0
      %2569 = vmatpush.bf16.msra.mxu0 0
      %2570 = vmatpush.bf16.msra.mxu0 0
      %2571 = vmatpush.bf16.msra.mxu0 0
      %2572 = vmatpush.bf16.msra.mxu0 0
      %2573 = vmatpush.bf16.msra.mxu0 %v2564
      %2574 = vmatmul.bf16.gmra.mxu0 %v2086
      %v2575 = vpop.f32.mrf.mxu0
      %v2576 = vadd.f32 0.0, %v2575
      %v2577 = vpop.f32.mrf.mxu0
      %v2578 = vadd.f32 0.0, %v2577
      %2579 = vmatmul.bf16.gmra.mxu0 %v2089
      %v2580 = vpop.f32.mrf.mxu0
      %v2581 = vadd.f32 0.0, %v2580
      %v2582 = vpop.f32.mrf.mxu0
      %v2583 = vadd.f32 0.0, %v2582
      %2584 = vmatmul.bf16.gmra.mxu0 %v2092
      %v2585 = vpop.f32.mrf.mxu0
      %v2586 = vadd.f32 0.0, %v2585
      %v2587 = vpop.f32.mrf.mxu0
      %v2588 = vadd.f32 0.0, %v2587
      %2589 = vmatmul.bf16.gmra.mxu0 %v2095
      %v2590 = vpop.f32.mrf.mxu0
      %v2591 = vadd.f32 0.0, %v2590
      %v2592 = vpop.f32.mrf.mxu0
      %v2593 = vadd.f32 0.0, %v2592
      %2594 = vmatmul.bf16.gmra.mxu0 %v2098
      %v2595 = vpop.f32.mrf.mxu0
      %v2596 = vadd.f32 0.0, %v2595
      %v2597 = vpop.f32.mrf.mxu0
      %v2598 = vadd.f32 0.0, %v2597
      %2599 = vmatmul.bf16.gmra.mxu0 %v2101
      %v2600 = vpop.f32.mrf.mxu0
      %v2601 = vadd.f32 0.0, %v2600
      %v2602 = vpop.f32.mrf.mxu0
      %v2603 = vadd.f32 0.0, %v2602
      %2604 = vmatmul.bf16.gmra.mxu0 %v2104
      %v2605 = vpop.f32.mrf.mxu0
      %v2606 = vadd.f32 0.0, %v2605
      %v2607 = vpop.f32.mrf.mxu0
      %v2608 = vadd.f32 0.0, %v2607
      %2609 = vmatmul.bf16.gmra.mxu0 %v2107
      %v2610 = vpop.f32.mrf.mxu0
      %v2611 = vadd.f32 0.0, %v2610
      %v2612 = vpop.f32.mrf.mxu0
      %v2613 = vadd.f32 0.0, %v2612
      %2614 = vmatmul.bf16.gmra.mxu0 %v2110
      %v2615 = vpop.f32.mrf.mxu0
      %v2616 = vadd.f32 0.0, %v2615
      %v2617 = vpop.f32.mrf.mxu0
      %v2618 = vadd.f32 0.0, %v2617
      %2619 = vmatmul.bf16.gmra.mxu0 %v2113
      %v2620 = vpop.f32.mrf.mxu0
      %v2621 = vadd.f32 0.0, %v2620
      %v2622 = vpop.f32.mrf.mxu0
      %v2623 = vadd.f32 0.0, %v2622
      %2624 = vmatmul.bf16.gmra.mxu0 %v2116
      %v2625 = vpop.f32.mrf.mxu0
      %v2626 = vadd.f32 0.0, %v2625
      %v2627 = vpop.f32.mrf.mxu0
      %v2628 = vadd.f32 0.0, %v2627
      %2629 = vmatmul.bf16.gmra.mxu0 %v2119
      %v2630 = vpop.f32.mrf.mxu0
      %v2631 = vadd.f32 0.0, %v2630
      %v2632 = vpop.f32.mrf.mxu0
      %v2633 = vadd.f32 0.0, %v2632
      %2634 = vmatmul.bf16.gmra.mxu0 %v2122
      %v2635 = vpop.f32.mrf.mxu0
      %v2636 = vadd.f32 0.0, %v2635
      %v2637 = vpop.f32.mrf.mxu0
      %v2638 = vadd.f32 0.0, %v2637
      %2639 = vmatmul.bf16.gmra.mxu0 %v2125
      %v2640 = vpop.f32.mrf.mxu0
      %v2641 = vadd.f32 0.0, %v2640
      %v2642 = vpop.f32.mrf.mxu0
      %v2643 = vadd.f32 0.0, %v2642
      %2644 = vmatmul.bf16.gmra.mxu0 %v2343
      %v2645 = vpop.f32.mrf.mxu0
      %v2646 = vadd.f32 0.0, %v2645
      %v2647 = vpop.f32.mrf.mxu0
      %v2648 = vadd.f32 0.0, %v2647
      %2649 = vmatmul.bf16.gmra.mxu0 %v2561
      %v2650 = vpop.f32.mrf.mxu0
      %v2651 = vadd.f32 0.0, %v2650
      %v2652 = vpop.f32.mrf.mxu0
      %v2653 = vadd.f32 0.0, %v2652
      %2654 = vdwg.mxu0
      %v2655 = vadd.f32 %v2501, %v2576
      %v2656 = vadd.f32 %v2502, %v2578
      %v2657 = vadd.f32 %v2503, %v2581
      %v2658 = vadd.f32 %v2504, %v2583
      %v2659 = vadd.f32 %v2505, %v2586
      %v2660 = vadd.f32 %v2506, %v2588
      %v2661 = vadd.f32 %v2507, %v2591
      %v2662 = vadd.f32 %v2508, %v2593
      %v2663 = vadd.f32 %v2509, %v2596
      %v2664 = vadd.f32 %v2510, %v2598
      %v2665 = vadd.f32 %v2511, %v2601
      %v2666 = vadd.f32 %v2512, %v2603
      %v2667 = vadd.f32 %v2513, %v2606
      %v2668 = vadd.f32 %v2514, %v2608
      %v2669 = vadd.f32 %v2515, %v2611
      %v2670 = vadd.f32 %v2516, %v2613
      %v2671 = vadd.f32 %v2517, %v2616
      %v2672 = vadd.f32 %v2518, %v2618
      %v2673 = vadd.f32 %v2519, %v2621
      %v2674 = vadd.f32 %v2520, %v2623
      %v2675 = vadd.f32 %v2521, %v2626
      %v2676 = vadd.f32 %v2522, %v2628
      %v2677 = vadd.f32 %v2523, %v2631
      %v2678 = vadd.f32 %v2524, %v2633
      %v2679 = vadd.f32 %v2525, %v2636
      %v2680 = vadd.f32 %v2526, %v2638
      %v2681 = vadd.f32 %v2527, %v2641
      %v2682 = vadd.f32 %v2528, %v2643
      %v2683 = vadd.f32 %v2529, %v2646
      %v2684 = vadd.f32 %v2530, %v2648
      %v2685 = vadd.f32 %v2531, %v2651
      %v2686 = vadd.f32 %v2532, %v2653
      %2687 = vst.msk [vmem:[#allocation4] sm:$0xff] %vm246, %v2655
      %2688 = vst.msk [vmem:[#allocation4 + $0x8] sm:$0xff] %vm246, %v2656
      %2689 = vst.msk [vmem:[#allocation4 + $0x10] sm:$0xff] %vm246, %v2657
      %2690 = vst.msk [vmem:[#allocation4 + $0x18] sm:$0xff] %vm246, %v2658
      %2691 = vst.msk [vmem:[#allocation4 + $0x20] sm:$0xff] %vm246, %v2659
      %2692 = vst.msk [vmem:[#allocation4 + $0x28] sm:$0xff] %vm246, %v2660
      %2693 = vst.msk [vmem:[#allocation4 + $0x30] sm:$0xff] %vm246, %v2661
      %2694 = vst.msk [vmem:[#allocation4 + $0x38] sm:$0xff] %vm246, %v2662
      %2695 = vst.msk [vmem:[#allocation4 + $0x40] sm:$0xff] %vm246, %v2663
      %2696 = vst.msk [vmem:[#allocation4 + $0x48] sm:$0xff] %vm246, %v2664
      %2697 = vst.msk [vmem:[#allocation4 + $0x50] sm:$0xff] %vm246, %v2665
      %2698 = vst.msk [vmem:[#allocation4 + $0x58] sm:$0xff] %vm246, %v2666
      %2699 = vst.msk [vmem:[#allocation4 + $0x60] sm:$0xff] %vm246, %v2667
      %2700 = vst.msk [vmem:[#allocation4 + $0x68] sm:$0xff] %vm246, %v2668
      %2701 = vst.msk [vmem:[#allocation4 + $0x70] sm:$0xff] %vm246, %v2669
      %2702 = vst.msk [vmem:[#allocation4 + $0x78] sm:$0xff] %vm246, %v2670
      %2703 = vst.msk [vmem:[#allocation4 + $0x80] sm:$0xff] %vm246, %v2671
      %2704 = vst.msk [vmem:[#allocation4 + $0x88] sm:$0xff] %vm246, %v2672
      %2705 = vst.msk [vmem:[#allocation4 + $0x90] sm:$0xff] %vm246, %v2673
      %2706 = vst.msk [vmem:[#allocation4 + $0x98] sm:$0xff] %vm246, %v2674
      %2707 = vst.msk [vmem:[#allocation4 + $0xa0] sm:$0xff] %vm246, %v2675
      %2708 = vst.msk [vmem:[#allocation4 + $0xa8] sm:$0xff] %vm246, %v2676
      %2709 = vst.msk [vmem:[#allocation4 + $0xb0] sm:$0xff] %vm246, %v2677
      %2710 = vst.msk [vmem:[#allocation4 + $0xb8] sm:$0xff] %vm246, %v2678
      %2711 = vst.msk [vmem:[#allocation4 + $0xc0] sm:$0xff] %vm246, %v2679
      %2712 = vst.msk [vmem:[#allocation4 + $0xc8] sm:$0xff] %vm246, %v2680
      %2713 = vst.msk [vmem:[#allocation4 + $0xd0] sm:$0xff] %vm246, %v2681
      %2714 = vst.msk [vmem:[#allocation4 + $0xd8] sm:$0xff] %vm246, %v2682
      %2715 = vst.msk [vmem:[#allocation4 + $0xe0] sm:$0xff] %vm246, %v2683
      %2716 = vst.msk [vmem:[#allocation4 + $0xe8] sm:$0xff] %vm246, %v2684
      %2717 = vst.msk [vmem:[#allocation4 + $0xf0] sm:$0xff] %vm246, %v2685
      %2718 = vst.msk [vmem:[#allocation4 + $0xf8] sm:$0xff] %vm246, %v2686
      %v2719 = vld [vmem:[#allocation4] sm:$0xff]
      %v2720 = vld [vmem:[#allocation4 + $0x8] sm:$0xff]
      %v2721 = vld [vmem:[#allocation4 + $0x10] sm:$0xff]
      %v2722 = vld [vmem:[#allocation4 + $0x18] sm:$0xff]
      %v2723 = vld [vmem:[#allocation4 + $0x20] sm:$0xff]
      %v2724 = vld [vmem:[#allocation4 + $0x28] sm:$0xff]
      %v2725 = vld [vmem:[#allocation4 + $0x30] sm:$0xff]
      %v2726 = vld [vmem:[#allocation4 + $0x38] sm:$0xff]
      %v2727 = vld [vmem:[#allocation4 + $0x40] sm:$0xff]
      %v2728 = vld [vmem:[#allocation4 + $0x48] sm:$0xff]
      %v2729 = vld [vmem:[#allocation4 + $0x50] sm:$0xff]
      %v2730 = vld [vmem:[#allocation4 + $0x58] sm:$0xff]
      %v2731 = vld [vmem:[#allocation4 + $0x60] sm:$0xff]
      %v2732 = vld [vmem:[#allocation4 + $0x68] sm:$0xff]
      %v2733 = vld [vmem:[#allocation4 + $0x70] sm:$0xff]
      %v2734 = vld [vmem:[#allocation4 + $0x78] sm:$0xff]
      %v2735 = vld [vmem:[#allocation4 + $0x80] sm:$0xff]
      %v2736 = vld [vmem:[#allocation4 + $0x88] sm:$0xff]
      %v2737 = vld [vmem:[#allocation4 + $0x90] sm:$0xff]
      %v2738 = vld [vmem:[#allocation4 + $0x98] sm:$0xff]
      %v2739 = vld [vmem:[#allocation4 + $0xa0] sm:$0xff]
      %v2740 = vld [vmem:[#allocation4 + $0xa8] sm:$0xff]
      %v2741 = vld [vmem:[#allocation4 + $0xb0] sm:$0xff]
      %v2742 = vld [vmem:[#allocation4 + $0xb8] sm:$0xff]
      %v2743 = vld [vmem:[#allocation4 + $0xc0] sm:$0xff]
      %v2744 = vld [vmem:[#allocation4 + $0xc8] sm:$0xff]
      %v2745 = vld [vmem:[#allocation4 + $0xd0] sm:$0xff]
      %v2746 = vld [vmem:[#allocation4 + $0xd8] sm:$0xff]
      %v2747 = vld [vmem:[#allocation4 + $0xe0] sm:$0xff]
      %v2748 = vld [vmem:[#allocation4 + $0xe8] sm:$0xff]
      %v2749 = vld [vmem:[#allocation4 + $0xf0] sm:$0xff]
      %v2750 = vld [vmem:[#allocation4 + $0xf8] sm:$0xff]
      %vm2767 = vcmask 1042432
      %vm2768 = vcmask 1046532
      %vm2769 = vmor %vm2767, %vm2768
      %v2770 = vrot.slane %v840, 5
      %v2771 = vrot.slane %v2770, 4
      %v2772 = vrot.slane %v841, 5
      %v2773 = vsel %vm2769, %v2771, %v2772
      %v2774 = vrot.slane %v2772, 4
      %v2775 = vrot.slane %v842, 5
      %v2776 = vsel %vm2769, %v2774, %v2775
      %v2777 = vrot.slane %v843, 5
      %v2778 = vrot.slane %v2777, 4
      %v2779 = vrot.slane %v844, 5
      %v2780 = vsel %vm2769, %v2778, %v2779
      %v2781 = vrot.slane %v2779, 4
      %v2782 = vrot.slane %v845, 5
      %v2783 = vsel %vm2769, %v2781, %v2782
      %v2784 = vrot.slane %v846, 5
      %v2785 = vrot.slane %v2784, 4
      %v2786 = vrot.slane %v847, 5
      %v2787 = vsel %vm2769, %v2785, %v2786
      %v2788 = vrot.slane %v2786, 4
      %v2789 = vrot.slane %v848, 5
      %v2790 = vsel %vm2769, %v2788, %v2789
      %v2791 = vrot.slane %v849, 5
      %v2792 = vrot.slane %v2791, 4
      %v2793 = vrot.slane %v850, 5
      %v2794 = vsel %vm2769, %v2792, %v2793
      %v2795 = vrot.slane %v2793, 4
      %v2796 = vrot.slane %v851, 5
      %v2797 = vsel %vm2769, %v2795, %v2796
      %v2798 = vrot.slane %v852, 5
      %v2799 = vrot.slane %v2798, 4
      %v2800 = vrot.slane %v853, 5
      %v2801 = vsel %vm2769, %v2799, %v2800
      %v2802 = vrot.slane %v2800, 4
      %v2803 = vrot.slane %v854, 5
      %v2804 = vsel %vm2769, %v2802, %v2803
      %v2805 = vrot.slane %v855, 5
      %v2806 = vrot.slane %v2805, 4
      %v2807 = vrot.slane %v856, 5
      %v2808 = vsel %vm2769, %v2806, %v2807
      %v2809 = vrot.slane %v2807, 4
      %v2810 = vrot.slane %v857, 5
      %v2811 = vsel %vm2769, %v2809, %v2810
      %v2812 = vrot.slane %v858, 5
      %v2813 = vrot.slane %v2812, 4
      %v2814 = vrot.slane %v859, 5
      %v2815 = vsel %vm2769, %v2813, %v2814
      %v2816 = vrot.slane %v2814, 4
      %v2817 = vrot.slane %v860, 5
      %v2818 = vsel %vm2769, %v2816, %v2817
      %v2819 = vrot.slane %v861, 5
      %v2820 = vrot.slane %v2819, 4
      %v2821 = vrot.slane %v862, 5
      %v2822 = vsel %vm2769, %v2820, %v2821
      %v2823 = vrot.slane %v2821, 4
      %v2824 = vrot.slane %v863, 5
      %v2825 = vsel %vm2769, %v2823, %v2824
      %v2826 = vrot.slane %v864, 5
      %v2827 = vrot.slane %v2826, 4
      %v2828 = vrot.slane %v865, 5
      %v2829 = vsel %vm2769, %v2827, %v2828
      %v2830 = vrot.slane %v2828, 4
      %v2831 = vrot.slane %v866, 5
      %v2832 = vsel %vm2769, %v2830, %v2831
      %v2833 = vrot.slane %v867, 5
      %v2834 = vrot.slane %v2833, 4
      %v2835 = vrot.slane %v868, 5
      %v2836 = vsel %vm2769, %v2834, %v2835
      %v2837 = vrot.slane %v2835, 4
      %v2838 = vrot.slane %v869, 5
      %v2839 = vsel %vm2769, %v2837, %v2838
      %v2840 = vrot.slane %v870, 5
      %v2841 = vrot.slane %v2840, 4
      %v2842 = vrot.slane %v871, 5
      %v2843 = vsel %vm2769, %v2841, %v2842
      %v2844 = vrot.slane %v2842, 4
      %v2845 = vrot.slane %v872, 5
      %v2846 = vsel %vm2769, %v2844, %v2845
      %v2847 = vrot.slane %v873, 5
      %v2848 = vrot.slane %v2847, 4
      %v2849 = vrot.slane %v874, 5
      %v2850 = vsel %vm2769, %v2848, %v2849
      %v2851 = vrot.slane %v2849, 4
      %v2852 = vrot.slane %v875, 5
      %v2853 = vsel %vm2769, %v2851, %v2852
      %v2854 = vrot.slane %v876, 5
      %v2855 = vrot.slane %v2854, 4
      %v2856 = vrot.slane %v877, 5
      %v2857 = vsel %vm2769, %v2855, %v2856
      %v2858 = vrot.slane %v2856, 4
      %v2859 = vrot.slane %v878, 5
      %v2860 = vsel %vm2769, %v2858, %v2859
      %v2861 = vrot.slane %v879, 5
      %v2862 = vrot.slane %v2861, 4
      %v2863 = vrot.slane %v880, 5
      %v2864 = vsel %vm2769, %v2862, %v2863
      %v2865 = vrot.slane %v2863, 4
      %v2866 = vrot.slane %v881, 5
      %v2867 = vsel %vm2769, %v2865, %v2866
      %v2868 = vrot.slane %v882, 5
      %v2869 = vrot.slane %v2868, 4
      %v2870 = vrot.slane %v883, 5
      %v2871 = vsel %vm2769, %v2869, %v2870
      %v2872 = vrot.slane %v2870, 4
      %v2873 = vrot.slane %v884, 5
      %v2874 = vsel %vm2769, %v2872, %v2873
      %v2875 = vrot.slane %v885, 5
      %v2876 = vrot.slane %v2875, 4
      %v2877 = vrot.slane %v886, 5
      %v2878 = vsel %vm2769, %v2876, %v2877
      %v2879 = vrot.slane %v2877, 4
      %v2880 = vrot.slane %v887, 5
      %v2881 = vsel %vm2769, %v2879, %v2880
      %v2882 = vunpack.c.l.b16 %v2773
      %v2883 = vunpack.c.l.b16 %v2776
      %v2884 = vunpack.c.l.b16 %v2780
      %v2885 = vunpack.c.l.b16 %v2783
      %v2886 = vunpack.c.l.b16 %v2787
      %v2887 = vunpack.c.l.b16 %v2790
      %v2888 = vunpack.c.l.b16 %v2794
      %v2889 = vunpack.c.l.b16 %v2797
      %v2890 = vunpack.c.l.b16 %v2801
      %v2891 = vunpack.c.l.b16 %v2804
      %v2892 = vunpack.c.l.b16 %v2808
      %v2893 = vunpack.c.l.b16 %v2811
      %v2894 = vunpack.c.l.b16 %v2815
      %v2895 = vunpack.c.l.b16 %v2818
      %v2896 = vunpack.c.l.b16 %v2822
      %v2897 = vunpack.c.l.b16 %v2825
      %v2898 = vunpack.c.l.b16 %v2829
      %v2899 = vunpack.c.l.b16 %v2832
      %v2900 = vunpack.c.l.b16 %v2836
      %v2901 = vunpack.c.l.b16 %v2839
      %v2902 = vunpack.c.l.b16 %v2843
      %v2903 = vunpack.c.l.b16 %v2846
      %v2904 = vunpack.c.l.b16 %v2850
      %v2905 = vunpack.c.l.b16 %v2853
      %v2906 = vunpack.c.l.b16 %v2857
      %v2907 = vunpack.c.l.b16 %v2860
      %v2908 = vunpack.c.l.b16 %v2864
      %v2909 = vunpack.c.l.b16 %v2867
      %v2910 = vunpack.c.l.b16 %v2871
      %v2911 = vunpack.c.l.b16 %v2874
      %v2912 = vunpack.c.l.b16 %v2878
      %v2913 = vunpack.c.l.b16 %v2881
      %v2914 = vpack.c.b16 %v2883, %v2882
      %v2915 = vpack.c.b16 %v2885, %v2884
      %v2916 = vpack.c.b16 %v2887, %v2886
      %v2917 = vpack.c.b16 %v2889, %v2888
      %v2918 = vpack.c.b16 %v2891, %v2890
      %v2919 = vpack.c.b16 %v2893, %v2892
      %v2920 = vpack.c.b16 %v2895, %v2894
      %v2921 = vpack.c.b16 %v2897, %v2896
      %v2922 = vpack.c.b16 %v2899, %v2898
      %v2923 = vpack.c.b16 %v2901, %v2900
      %v2924 = vpack.c.b16 %v2903, %v2902
      %v2925 = vpack.c.b16 %v2905, %v2904
      %v2926 = vpack.c.b16 %v2907, %v2906
      %v2927 = vpack.c.b16 %v2909, %v2908
      %v2928 = vpack.c.b16 %v2911, %v2910
      %v2929 = vpack.c.b16 %v2913, %v2912
      %v2931 = vsel %vm246, %v2914, 0
      %v2934 = vsel %vm246, %v2915, 0
      %v2937 = vsel %vm246, %v2916, 0
      %v2940 = vsel %vm246, %v2917, 0
      %v2943 = vsel %vm246, %v2918, 0
      %v2946 = vsel %vm246, %v2919, 0
      %v2949 = vsel %vm246, %v2920, 0
      %v2952 = vsel %vm246, %v2921, 0
      %v2955 = vsel %vm246, %v2922, 0
      %v2958 = vsel %vm246, %v2923, 0
      %v2961 = vsel %vm246, %v2924, 0
      %v2964 = vsel %vm246, %v2925, 0
      %v2967 = vsel %vm246, %v2926, 0
      %v2970 = vsel %vm246, %v2927, 0
      %v2973 = vsel %vm246, %v2928, 0
      %v2976 = vsel %vm246, %v2929, 0
      %v2979 = vsel %vm1063, %v896, 0
      %2981 = vmatpush.bf16.msra.mxu0 0
      %2982 = vmatpush.bf16.msra.mxu0 0
      %2983 = vmatpush.bf16.msra.mxu0 0
      %2984 = vmatpush.bf16.msra.mxu0 0
      %2985 = vmatpush.bf16.msra.mxu0 0
      %2986 = vmatpush.bf16.msra.mxu0 0
      %2987 = vmatpush.bf16.msra.mxu0 0
      %2988 = vmatpush.bf16.msra.mxu0 %v2979
      %2989 = vmatmul.bf16.gmra.mxu0 %v2931
      %v2990 = vpop.f32.mrf.mxu0
      %v2991 = vadd.f32 0.0, %v2990
      %v2992 = vpop.f32.mrf.mxu0
      %v2993 = vadd.f32 0.0, %v2992
      %2994 = vmatmul.bf16.gmra.mxu0 %v2934
      %v2995 = vpop.f32.mrf.mxu0
      %v2996 = vadd.f32 0.0, %v2995
      %v2997 = vpop.f32.mrf.mxu0
      %v2998 = vadd.f32 0.0, %v2997
      %2999 = vmatmul.bf16.gmra.mxu0 %v2937
      %v3000 = vpop.f32.mrf.mxu0
      %v3001 = vadd.f32 0.0, %v3000
      %v3002 = vpop.f32.mrf.mxu0
      %v3003 = vadd.f32 0.0, %v3002
      %3004 = vmatmul.bf16.gmra.mxu0 %v2940
      %v3005 = vpop.f32.mrf.mxu0
      %v3006 = vadd.f32 0.0, %v3005
      %v3007 = vpop.f32.mrf.mxu0
      %v3008 = vadd.f32 0.0, %v3007
      %3009 = vmatmul.bf16.gmra.mxu0 %v2943
      %v3010 = vpop.f32.mrf.mxu0
      %v3011 = vadd.f32 0.0, %v3010
      %v3012 = vpop.f32.mrf.mxu0
      %v3013 = vadd.f32 0.0, %v3012
      %3014 = vmatmul.bf16.gmra.mxu0 %v2946
      %v3015 = vpop.f32.mrf.mxu0
      %v3016 = vadd.f32 0.0, %v3015
      %v3017 = vpop.f32.mrf.mxu0
      %v3018 = vadd.f32 0.0, %v3017
      %3019 = vmatmul.bf16.gmra.mxu0 %v2949
      %v3020 = vpop.f32.mrf.mxu0
      %v3021 = vadd.f32 0.0, %v3020
      %v3022 = vpop.f32.mrf.mxu0
      %v3023 = vadd.f32 0.0, %v3022
      %3024 = vmatmul.bf16.gmra.mxu0 %v2952
      %v3025 = vpop.f32.mrf.mxu0
      %v3026 = vadd.f32 0.0, %v3025
      %v3027 = vpop.f32.mrf.mxu0
      %v3028 = vadd.f32 0.0, %v3027
      %3029 = vmatmul.bf16.gmra.mxu0 %v2955
      %v3030 = vpop.f32.mrf.mxu0
      %v3031 = vadd.f32 0.0, %v3030
      %v3032 = vpop.f32.mrf.mxu0
      %v3033 = vadd.f32 0.0, %v3032
      %3034 = vmatmul.bf16.gmra.mxu0 %v2958
      %v3035 = vpop.f32.mrf.mxu0
      %v3036 = vadd.f32 0.0, %v3035
      %v3037 = vpop.f32.mrf.mxu0
      %v3038 = vadd.f32 0.0, %v3037
      %3039 = vmatmul.bf16.gmra.mxu0 %v2961
      %v3040 = vpop.f32.mrf.mxu0
      %v3041 = vadd.f32 0.0, %v3040
      %v3042 = vpop.f32.mrf.mxu0
      %v3043 = vadd.f32 0.0, %v3042
      %3044 = vmatmul.bf16.gmra.mxu0 %v2964
      %v3045 = vpop.f32.mrf.mxu0
      %v3046 = vadd.f32 0.0, %v3045
      %v3047 = vpop.f32.mrf.mxu0
      %v3048 = vadd.f32 0.0, %v3047
      %3049 = vmatmul.bf16.gmra.mxu0 %v2967
      %v3050 = vpop.f32.mrf.mxu0
      %v3051 = vadd.f32 0.0, %v3050
      %v3052 = vpop.f32.mrf.mxu0
      %v3053 = vadd.f32 0.0, %v3052
      %3054 = vmatmul.bf16.gmra.mxu0 %v2970
      %v3055 = vpop.f32.mrf.mxu0
      %v3056 = vadd.f32 0.0, %v3055
      %v3057 = vpop.f32.mrf.mxu0
      %v3058 = vadd.f32 0.0, %v3057
      %3059 = vmatmul.bf16.gmra.mxu0 %v2973
      %v3060 = vpop.f32.mrf.mxu0
      %v3061 = vadd.f32 0.0, %v3060
      %v3062 = vpop.f32.mrf.mxu0
      %v3063 = vadd.f32 0.0, %v3062
      %3064 = vmatmul.bf16.gmra.mxu0 %v2976
      %v3065 = vpop.f32.mrf.mxu0
      %v3066 = vadd.f32 0.0, %v3065
      %v3067 = vpop.f32.mrf.mxu0
      %v3068 = vadd.f32 0.0, %v3067
      %3069 = vdwg.mxu0
      %v3070 = vadd.f32 %v2719, %v2991
      %v3071 = vadd.f32 %v2720, %v2993
      %v3072 = vadd.f32 %v2721, %v2996
      %v3073 = vadd.f32 %v2722, %v2998
      %v3074 = vadd.f32 %v2723, %v3001
      %v3075 = vadd.f32 %v2724, %v3003
      %v3076 = vadd.f32 %v2725, %v3006
      %v3077 = vadd.f32 %v2726, %v3008
      %v3078 = vadd.f32 %v2727, %v3011
      %v3079 = vadd.f32 %v2728, %v3013
      %v3080 = vadd.f32 %v2729, %v3016
      %v3081 = vadd.f32 %v2730, %v3018
      %v3082 = vadd.f32 %v2731, %v3021
      %v3083 = vadd.f32 %v2732, %v3023
      %v3084 = vadd.f32 %v2733, %v3026
      %v3085 = vadd.f32 %v2734, %v3028
      %v3086 = vadd.f32 %v2735, %v3031
      %v3087 = vadd.f32 %v2736, %v3033
      %v3088 = vadd.f32 %v2737, %v3036
      %v3089 = vadd.f32 %v2738, %v3038
      %v3090 = vadd.f32 %v2739, %v3041
      %v3091 = vadd.f32 %v2740, %v3043
      %v3092 = vadd.f32 %v2741, %v3046
      %v3093 = vadd.f32 %v2742, %v3048
      %v3094 = vadd.f32 %v2743, %v3051
      %v3095 = vadd.f32 %v2744, %v3053
      %v3096 = vadd.f32 %v2745, %v3056
      %v3097 = vadd.f32 %v2746, %v3058
      %v3098 = vadd.f32 %v2747, %v3061
      %v3099 = vadd.f32 %v2748, %v3063
      %v3100 = vadd.f32 %v2749, %v3066
      %v3101 = vadd.f32 %v2750, %v3068
      %3102 = vst.msk [vmem:[#allocation4] sm:$0xff] %vm246, %v3070
      %3103 = vst.msk [vmem:[#allocation4 + $0x8] sm:$0xff] %vm246, %v3071
      %3104 = vst.msk [vmem:[#allocation4 + $0x10] sm:$0xff] %vm246, %v3072
      %3105 = vst.msk [vmem:[#allocation4 + $0x18] sm:$0xff] %vm246, %v3073
      %3106 = vst.msk [vmem:[#allocation4 + $0x20] sm:$0xff] %vm246, %v3074
      %3107 = vst.msk [vmem:[#allocation4 + $0x28] sm:$0xff] %vm246, %v3075
      %3108 = vst.msk [vmem:[#allocation4 + $0x30] sm:$0xff] %vm246, %v3076
      %3109 = vst.msk [vmem:[#allocation4 + $0x38] sm:$0xff] %vm246, %v3077
      %3110 = vst.msk [vmem:[#allocation4 + $0x40] sm:$0xff] %vm246, %v3078
      %3111 = vst.msk [vmem:[#allocation4 + $0x48] sm:$0xff] %vm246, %v3079
      %3112 = vst.msk [vmem:[#allocation4 + $0x50] sm:$0xff] %vm246, %v3080
      %3113 = vst.msk [vmem:[#allocation4 + $0x58] sm:$0xff] %vm246, %v3081
      %3114 = vst.msk [vmem:[#allocation4 + $0x60] sm:$0xff] %vm246, %v3082
      %3115 = vst.msk [vmem:[#allocation4 + $0x68] sm:$0xff] %vm246, %v3083
      %3116 = vst.msk [vmem:[#allocation4 + $0x70] sm:$0xff] %vm246, %v3084
      %3117 = vst.msk [vmem:[#allocation4 + $0x78] sm:$0xff] %vm246, %v3085
      %3118 = vst.msk [vmem:[#allocation4 + $0x80] sm:$0xff] %vm246, %v3086
      %3119 = vst.msk [vmem:[#allocation4 + $0x88] sm:$0xff] %vm246, %v3087
      %3120 = vst.msk [vmem:[#allocation4 + $0x90] sm:$0xff] %vm246, %v3088
      %3121 = vst.msk [vmem:[#allocation4 + $0x98] sm:$0xff] %vm246, %v3089
      %3122 = vst.msk [vmem:[#allocation4 + $0xa0] sm:$0xff] %vm246, %v3090
      %3123 = vst.msk [vmem:[#allocation4 + $0xa8] sm:$0xff] %vm246, %v3091
      %3124 = vst.msk [vmem:[#allocation4 + $0xb0] sm:$0xff] %vm246, %v3092
      %3125 = vst.msk [vmem:[#allocation4 + $0xb8] sm:$0xff] %vm246, %v3093
      %3126 = vst.msk [vmem:[#allocation4 + $0xc0] sm:$0xff] %vm246, %v3094
      %3127 = vst.msk [vmem:[#allocation4 + $0xc8] sm:$0xff] %vm246, %v3095
      %3128 = vst.msk [vmem:[#allocation4 + $0xd0] sm:$0xff] %vm246, %v3096
      %3129 = vst.msk [vmem:[#allocation4 + $0xd8] sm:$0xff] %vm246, %v3097
      %3130 = vst.msk [vmem:[#allocation4 + $0xe0] sm:$0xff] %vm246, %v3098
      %3131 = vst.msk [vmem:[#allocation4 + $0xe8] sm:$0xff] %vm246, %v3099
      %3132 = vst.msk [vmem:[#allocation4 + $0xf0] sm:$0xff] %vm246, %v3100
      %3133 = vst.msk [vmem:[#allocation4 + $0xf8] sm:$0xff] %vm246, %v3101
      %v3134 = vld [vmem:[#allocation4] sm:$0xff]
      %v3135 = vld [vmem:[#allocation4 + $0x8] sm:$0xff]
      %v3136 = vld [vmem:[#allocation4 + $0x10] sm:$0xff]
      %v3137 = vld [vmem:[#allocation4 + $0x18] sm:$0xff]
      %v3138 = vld [vmem:[#allocation4 + $0x20] sm:$0xff]
      %v3139 = vld [vmem:[#allocation4 + $0x28] sm:$0xff]
      %v3140 = vld [vmem:[#allocation4 + $0x30] sm:$0xff]
      %v3141 = vld [vmem:[#allocation4 + $0x38] sm:$0xff]
      %v3142 = vld [vmem:[#allocation4 + $0x40] sm:$0xff]
      %v3143 = vld [vmem:[#allocation4 + $0x48] sm:$0xff]
      %v3144 = vld [vmem:[#allocation4 + $0x50] sm:$0xff]
      %v3145 = vld [vmem:[#allocation4 + $0x58] sm:$0xff]
      %v3146 = vld [vmem:[#allocation4 + $0x60] sm:$0xff]
      %v3147 = vld [vmem:[#allocation4 + $0x68] sm:$0xff]
      %v3148 = vld [vmem:[#allocation4 + $0x70] sm:$0xff]
      %v3149 = vld [vmem:[#allocation4 + $0x78] sm:$0xff]
      %v3150 = vld [vmem:[#allocation4 + $0x80] sm:$0xff]
      %v3151 = vld [vmem:[#allocation4 + $0x88] sm:$0xff]
      %v3152 = vld [vmem:[#allocation4 + $0x90] sm:$0xff]
      %v3153 = vld [vmem:[#allocation4 + $0x98] sm:$0xff]
      %v3154 = vld [vmem:[#allocation4 + $0xa0] sm:$0xff]
      %v3155 = vld [vmem:[#allocation4 + $0xa8] sm:$0xff]
      %v3156 = vld [vmem:[#allocation4 + $0xb0] sm:$0xff]
      %v3157 = vld [vmem:[#allocation4 + $0xb8] sm:$0xff]
      %v3158 = vld [vmem:[#allocation4 + $0xc0] sm:$0xff]
      %v3159 = vld [vmem:[#allocation4 + $0xc8] sm:$0xff]
      %v3160 = vld [vmem:[#allocation4 + $0xd0] sm:$0xff]
      %v3161 = vld [vmem:[#allocation4 + $0xd8] sm:$0xff]
      %v3162 = vld [vmem:[#allocation4 + $0xe0] sm:$0xff]
      %v3163 = vld [vmem:[#allocation4 + $0xe8] sm:$0xff]
      %v3164 = vld [vmem:[#allocation4 + $0xf0] sm:$0xff]
      %v3165 = vld [vmem:[#allocation4 + $0xf8] sm:$0xff]
      %v3167 = vrot.slane %v888, 5
      %v3168 = vrot.slane %v3167, 4
      %v3169 = vrot.slane %v889, 5
      %v3170 = vsel %vm2769, %v3168, %v3169
      %v3171 = vrot.slane %v3169, 4
      %v3172 = vrot.slane %v890, 5
      %v3173 = vsel %vm2769, %v3171, %v3172
      %v3174 = vunpack.c.l.b16 %v3170
      %v3175 = vunpack.c.l.b16 %v3173
      %v3176 = vpack.c.b16 %v3175, %v3174
      %v3178 = vsel %vm246, %v3176, 0
      %v3181 = vsel %vm1063, %v899, 0
      %3183 = vmatpush.bf16.msra.mxu0 0
      %3184 = vmatpush.bf16.msra.mxu0 0
      %3185 = vmatpush.bf16.msra.mxu0 0
      %3186 = vmatpush.bf16.msra.mxu0 0
      %3187 = vmatpush.bf16.msra.mxu0 0
      %3188 = vmatpush.bf16.msra.mxu0 0
      %3189 = vmatpush.bf16.msra.mxu0 0
      %3190 = vmatpush.bf16.msra.mxu0 %v3181
      %3191 = vmatmul.bf16.gmra.mxu0 %v2934
      %v3192 = vpop.f32.mrf.mxu0
      %v3193 = vadd.f32 0.0, %v3192
      %v3194 = vpop.f32.mrf.mxu0
      %v3195 = vadd.f32 0.0, %v3194
      %3196 = vmatmul.bf16.gmra.mxu0 %v2937
      %v3197 = vpop.f32.mrf.mxu0
      %v3198 = vadd.f32 0.0, %v3197
      %v3199 = vpop.f32.mrf.mxu0
      %v3200 = vadd.f32 0.0, %v3199
      %3201 = vmatmul.bf16.gmra.mxu0 %v2940
      %v3202 = vpop.f32.mrf.mxu0
      %v3203 = vadd.f32 0.0, %v3202
      %v3204 = vpop.f32.mrf.mxu0
      %v3205 = vadd.f32 0.0, %v3204
      %3206 = vmatmul.bf16.gmra.mxu0 %v2943
      %v3207 = vpop.f32.mrf.mxu0
      %v3208 = vadd.f32 0.0, %v3207
      %v3209 = vpop.f32.mrf.mxu0
      %v3210 = vadd.f32 0.0, %v3209
      %3211 = vmatmul.bf16.gmra.mxu0 %v2946
      %v3212 = vpop.f32.mrf.mxu0
      %v3213 = vadd.f32 0.0, %v3212
      %v3214 = vpop.f32.mrf.mxu0
      %v3215 = vadd.f32 0.0, %v3214
      %3216 = vmatmul.bf16.gmra.mxu0 %v2949
      %v3217 = vpop.f32.mrf.mxu0
      %v3218 = vadd.f32 0.0, %v3217
      %v3219 = vpop.f32.mrf.mxu0
      %v3220 = vadd.f32 0.0, %v3219
      %3221 = vmatmul.bf16.gmra.mxu0 %v2952
      %v3222 = vpop.f32.mrf.mxu0
      %v3223 = vadd.f32 0.0, %v3222
      %v3224 = vpop.f32.mrf.mxu0
      %v3225 = vadd.f32 0.0, %v3224
      %3226 = vmatmul.bf16.gmra.mxu0 %v2955
      %v3227 = vpop.f32.mrf.mxu0
      %v3228 = vadd.f32 0.0, %v3227
      %v3229 = vpop.f32.mrf.mxu0
      %v3230 = vadd.f32 0.0, %v3229
      %3231 = vmatmul.bf16.gmra.mxu0 %v2958
      %v3232 = vpop.f32.mrf.mxu0
      %v3233 = vadd.f32 0.0, %v3232
      %v3234 = vpop.f32.mrf.mxu0
      %v3235 = vadd.f32 0.0, %v3234
      %3236 = vmatmul.bf16.gmra.mxu0 %v2961
      %v3237 = vpop.f32.mrf.mxu0
      %v3238 = vadd.f32 0.0, %v3237
      %v3239 = vpop.f32.mrf.mxu0
      %v3240 = vadd.f32 0.0, %v3239
      %3241 = vmatmul.bf16.gmra.mxu0 %v2964
      %v3242 = vpop.f32.mrf.mxu0
      %v3243 = vadd.f32 0.0, %v3242
      %v3244 = vpop.f32.mrf.mxu0
      %v3245 = vadd.f32 0.0, %v3244
      %3246 = vmatmul.bf16.gmra.mxu0 %v2967
      %v3247 = vpop.f32.mrf.mxu0
      %v3248 = vadd.f32 0.0, %v3247
      %v3249 = vpop.f32.mrf.mxu0
      %v3250 = vadd.f32 0.0, %v3249
      %3251 = vmatmul.bf16.gmra.mxu0 %v2970
      %v3252 = vpop.f32.mrf.mxu0
      %v3253 = vadd.f32 0.0, %v3252
      %v3254 = vpop.f32.mrf.mxu0
      %v3255 = vadd.f32 0.0, %v3254
      %3256 = vmatmul.bf16.gmra.mxu0 %v2973
      %v3257 = vpop.f32.mrf.mxu0
      %v3258 = vadd.f32 0.0, %v3257
      %v3259 = vpop.f32.mrf.mxu0
      %v3260 = vadd.f32 0.0, %v3259
      %3261 = vmatmul.bf16.gmra.mxu0 %v2976
      %v3262 = vpop.f32.mrf.mxu0
      %v3263 = vadd.f32 0.0, %v3262
      %v3264 = vpop.f32.mrf.mxu0
      %v3265 = vadd.f32 0.0, %v3264
      %3266 = vmatmul.bf16.gmra.mxu0 %v3178
      %v3267 = vpop.f32.mrf.mxu0
      %v3268 = vadd.f32 0.0, %v3267
      %v3269 = vpop.f32.mrf.mxu0
      %v3270 = vadd.f32 0.0, %v3269
      %3271 = vdwg.mxu0
      %v3272 = vadd.f32 %v3134, %v3193
      %v3273 = vadd.f32 %v3135, %v3195
      %v3274 = vadd.f32 %v3136, %v3198
      %v3275 = vadd.f32 %v3137, %v3200
      %v3276 = vadd.f32 %v3138, %v3203
      %v3277 = vadd.f32 %v3139, %v3205
      %v3278 = vadd.f32 %v3140, %v3208
      %v3279 = vadd.f32 %v3141, %v3210
      %v3280 = vadd.f32 %v3142, %v3213
      %v3281 = vadd.f32 %v3143, %v3215
      %v3282 = vadd.f32 %v3144, %v3218
      %v3283 = vadd.f32 %v3145, %v3220
      %v3284 = vadd.f32 %v3146, %v3223
      %v3285 = vadd.f32 %v3147, %v3225
      %v3286 = vadd.f32 %v3148, %v3228
      %v3287 = vadd.f32 %v3149, %v3230
      %v3288 = vadd.f32 %v3150, %v3233
      %v3289 = vadd.f32 %v3151, %v3235
      %v3290 = vadd.f32 %v3152, %v3238
      %v3291 = vadd.f32 %v3153, %v3240
      %v3292 = vadd.f32 %v3154, %v3243
      %v3293 = vadd.f32 %v3155, %v3245
      %v3294 = vadd.f32 %v3156, %v3248
      %v3295 = vadd.f32 %v3157, %v3250
      %v3296 = vadd.f32 %v3158, %v3253
      %v3297 = vadd.f32 %v3159, %v3255
      %v3298 = vadd.f32 %v3160, %v3258
      %v3299 = vadd.f32 %v3161, %v3260
      %v3300 = vadd.f32 %v3162, %v3263
      %v3301 = vadd.f32 %v3163, %v3265
      %v3302 = vadd.f32 %v3164, %v3268
      %v3303 = vadd.f32 %v3165, %v3270
      %3304 = vst.msk [vmem:[#allocation4] sm:$0xff] %vm246, %v3272
      %3305 = vst.msk [vmem:[#allocation4 + $0x8] sm:$0xff] %vm246, %v3273
      %3306 = vst.msk [vmem:[#allocation4 + $0x10] sm:$0xff] %vm246, %v3274
      %3307 = vst.msk [vmem:[#allocation4 + $0x18] sm:$0xff] %vm246, %v3275
      %3308 = vst.msk [vmem:[#allocation4 + $0x20] sm:$0xff] %vm246, %v3276
      %3309 = vst.msk [vmem:[#allocation4 + $0x28] sm:$0xff] %vm246, %v3277
      %3310 = vst.msk [vmem:[#allocation4 + $0x30] sm:$0xff] %vm246, %v3278
      %3311 = vst.msk [vmem:[#allocation4 + $0x38] sm:$0xff] %vm246, %v3279
      %3312 = vst.msk [vmem:[#allocation4 + $0x40] sm:$0xff] %vm246, %v3280
      %3313 = vst.msk [vmem:[#allocation4 + $0x48] sm:$0xff] %vm246, %v3281
      %3314 = vst.msk [vmem:[#allocation4 + $0x50] sm:$0xff] %vm246, %v3282
      %3315 = vst.msk [vmem:[#allocation4 + $0x58] sm:$0xff] %vm246, %v3283
      %3316 = vst.msk [vmem:[#allocation4 + $0x60] sm:$0xff] %vm246, %v3284
      %3317 = vst.msk [vmem:[#allocation4 + $0x68] sm:$0xff] %vm246, %v3285
      %3318 = vst.msk [vmem:[#allocation4 + $0x70] sm:$0xff] %vm246, %v3286
      %3319 = vst.msk [vmem:[#allocation4 + $0x78] sm:$0xff] %vm246, %v3287
      %3320 = vst.msk [vmem:[#allocation4 + $0x80] sm:$0xff] %vm246, %v3288
      %3321 = vst.msk [vmem:[#allocation4 + $0x88] sm:$0xff] %vm246, %v3289
      %3322 = vst.msk [vmem:[#allocation4 + $0x90] sm:$0xff] %vm246, %v3290
      %3323 = vst.msk [vmem:[#allocation4 + $0x98] sm:$0xff] %vm246, %v3291
      %3324 = vst.msk [vmem:[#allocation4 + $0xa0] sm:$0xff] %vm246, %v3292
      %3325 = vst.msk [vmem:[#allocation4 + $0xa8] sm:$0xff] %vm246, %v3293
      %3326 = vst.msk [vmem:[#allocation4 + $0xb0] sm:$0xff] %vm246, %v3294
      %3327 = vst.msk [vmem:[#allocation4 + $0xb8] sm:$0xff] %vm246, %v3295
      %3328 = vst.msk [vmem:[#allocation4 + $0xc0] sm:$0xff] %vm246, %v3296
      %3329 = vst.msk [vmem:[#allocation4 + $0xc8] sm:$0xff] %vm246, %v3297
      %3330 = vst.msk [vmem:[#allocation4 + $0xd0] sm:$0xff] %vm246, %v3298
      %3331 = vst.msk [vmem:[#allocation4 + $0xd8] sm:$0xff] %vm246, %v3299
      %3332 = vst.msk [vmem:[#allocation4 + $0xe0] sm:$0xff] %vm246, %v3300
      %3333 = vst.msk [vmem:[#allocation4 + $0xe8] sm:$0xff] %vm246, %v3301
      %3334 = vst.msk [vmem:[#allocation4 + $0xf0] sm:$0xff] %vm246, %v3302
      %3335 = vst.msk [vmem:[#allocation4 + $0xf8] sm:$0xff] %vm246, %v3303
      %v3336 = vld [vmem:[#allocation4] sm:$0xff]
      %v3337 = vld [vmem:[#allocation4 + $0x8] sm:$0xff]
      %v3338 = vld [vmem:[#allocation4 + $0x10] sm:$0xff]
      %v3339 = vld [vmem:[#allocation4 + $0x18] sm:$0xff]
      %v3340 = vld [vmem:[#allocation4 + $0x20] sm:$0xff]
      %v3341 = vld [vmem:[#allocation4 + $0x28] sm:$0xff]
      %v3342 = vld [vmem:[#allocation4 + $0x30] sm:$0xff]
      %v3343 = vld [vmem:[#allocation4 + $0x38] sm:$0xff]
      %v3344 = vld [vmem:[#allocation4 + $0x40] sm:$0xff]
      %v3345 = vld [vmem:[#allocation4 + $0x48] sm:$0xff]
      %v3346 = vld [vmem:[#allocation4 + $0x50] sm:$0xff]
      %v3347 = vld [vmem:[#allocation4 + $0x58] sm:$0xff]
      %v3348 = vld [vmem:[#allocation4 + $0x60] sm:$0xff]
      %v3349 = vld [vmem:[#allocation4 + $0x68] sm:$0xff]
      %v3350 = vld [vmem:[#allocation4 + $0x70] sm:$0xff]
      %v3351 = vld [vmem:[#allocation4 + $0x78] sm:$0xff]
      %v3352 = vld [vmem:[#allocation4 + $0x80] sm:$0xff]
      %v3353 = vld [vmem:[#allocation4 + $0x88] sm:$0xff]
      %v3354 = vld [vmem:[#allocation4 + $0x90] sm:$0xff]
      %v3355 = vld [vmem:[#allocation4 + $0x98] sm:$0xff]
      %v3356 = vld [vmem:[#allocation4 + $0xa0] sm:$0xff]
      %v3357 = vld [vmem:[#allocation4 + $0xa8] sm:$0xff]
      %v3358 = vld [vmem:[#allocation4 + $0xb0] sm:$0xff]
      %v3359 = vld [vmem:[#allocation4 + $0xb8] sm:$0xff]
      %v3360 = vld [vmem:[#allocation4 + $0xc0] sm:$0xff]
      %v3361 = vld [vmem:[#allocation4 + $0xc8] sm:$0xff]
      %v3362 = vld [vmem:[#allocation4 + $0xd0] sm:$0xff]
      %v3363 = vld [vmem:[#allocation4 + $0xd8] sm:$0xff]
      %v3364 = vld [vmem:[#allocation4 + $0xe0] sm:$0xff]
      %v3365 = vld [vmem:[#allocation4 + $0xe8] sm:$0xff]
      %v3366 = vld [vmem:[#allocation4 + $0xf0] sm:$0xff]
      %v3367 = vld [vmem:[#allocation4 + $0xf8] sm:$0xff]
      %v3369 = vrot.slane %v891, 5
      %v3370 = vrot.slane %v3369, 4
      %v3371 = vrot.slane %v892, 5
      %v3372 = vsel %vm2769, %v3370, %v3371
      %v3373 = vrot.slane %v3371, 4
      %v3374 = vrot.slane %v893, 5
      %v3375 = vsel %vm2769, %v3373, %v3374
      %v3376 = vunpack.c.l.b16 %v3372
      %v3377 = vunpack.c.l.b16 %v3375
      %v3378 = vpack.c.b16 %v3377, %v3376
      %v3380 = vsel %vm246, %v3378, 0
      %v3383 = vsel %vm1063, %v902, 0
      %3385 = vmatpush.bf16.msra.mxu0 0
      %3386 = vmatpush.bf16.msra.mxu0 0
      %3387 = vmatpush.bf16.msra.mxu0 0
      %3388 = vmatpush.bf16.msra.mxu0 0
      %3389 = vmatpush.bf16.msra.mxu0 0
      %3390 = vmatpush.bf16.msra.mxu0 0
      %3391 = vmatpush.bf16.msra.mxu0 0
      %3392 = vmatpush.bf16.msra.mxu0 %v3383
      %3393 = vmatmul.bf16.gmra.mxu0 %v2937
      %v3394 = vpop.f32.mrf.mxu0
      %v3395 = vadd.f32 0.0, %v3394
      %v3396 = vpop.f32.mrf.mxu0
      %v3397 = vadd.f32 0.0, %v3396
      %3398 = vmatmul.bf16.gmra.mxu0 %v2940
      %v3399 = vpop.f32.mrf.mxu0
      %v3400 = vadd.f32 0.0, %v3399
      %v3401 = vpop.f32.mrf.mxu0
      %v3402 = vadd.f32 0.0, %v3401
      %3403 = vmatmul.bf16.gmra.mxu0 %v2943
      %v3404 = vpop.f32.mrf.mxu0
      %v3405 = vadd.f32 0.0, %v3404
      %v3406 = vpop.f32.mrf.mxu0
      %v3407 = vadd.f32 0.0, %v3406
      %3408 = vmatmul.bf16.gmra.mxu0 %v2946
      %v3409 = vpop.f32.mrf.mxu0
      %v3410 = vadd.f32 0.0, %v3409
      %v3411 = vpop.f32.mrf.mxu0
      %v3412 = vadd.f32 0.0, %v3411
      %3413 = vmatmul.bf16.gmra.mxu0 %v2949
      %v3414 = vpop.f32.mrf.mxu0
      %v3415 = vadd.f32 0.0, %v3414
      %v3416 = vpop.f32.mrf.mxu0
      %v3417 = vadd.f32 0.0, %v3416
      %3418 = vmatmul.bf16.gmra.mxu0 %v2952
      %v3419 = vpop.f32.mrf.mxu0
      %v3420 = vadd.f32 0.0, %v3419
      %v3421 = vpop.f32.mrf.mxu0
      %v3422 = vadd.f32 0.0, %v3421
      %3423 = vmatmul.bf16.gmra.mxu0 %v2955
      %v3424 = vpop.f32.mrf.mxu0
      %v3425 = vadd.f32 0.0, %v3424
      %v3426 = vpop.f32.mrf.mxu0
      %v3427 = vadd.f32 0.0, %v3426
      %3428 = vmatmul.bf16.gmra.mxu0 %v2958
      %v3429 = vpop.f32.mrf.mxu0
      %v3430 = vadd.f32 0.0, %v3429
      %v3431 = vpop.f32.mrf.mxu0
      %v3432 = vadd.f32 0.0, %v3431
      %3433 = vmatmul.bf16.gmra.mxu0 %v2961
      %v3434 = vpop.f32.mrf.mxu0
      %v3435 = vadd.f32 0.0, %v3434
      %v3436 = vpop.f32.mrf.mxu0
      %v3437 = vadd.f32 0.0, %v3436
      %3438 = vmatmul.bf16.gmra.mxu0 %v2964
      %v3439 = vpop.f32.mrf.mxu0
      %v3440 = vadd.f32 0.0, %v3439
      %v3441 = vpop.f32.mrf.mxu0
      %v3442 = vadd.f32 0.0, %v3441
      %3443 = vmatmul.bf16.gmra.mxu0 %v2967
      %v3444 = vpop.f32.mrf.mxu0
      %v3445 = vadd.f32 0.0, %v3444
      %v3446 = vpop.f32.mrf.mxu0
      %v3447 = vadd.f32 0.0, %v3446
      %3448 = vmatmul.bf16.gmra.mxu0 %v2970
      %v3449 = vpop.f32.mrf.mxu0
      %v3450 = vadd.f32 0.0, %v3449
      %v3451 = vpop.f32.mrf.mxu0
      %v3452 = vadd.f32 0.0, %v3451
      %3453 = vmatmul.bf16.gmra.mxu0 %v2973
      %v3454 = vpop.f32.mrf.mxu0
      %v3455 = vadd.f32 0.0, %v3454
      %v3456 = vpop.f32.mrf.mxu0
      %v3457 = vadd.f32 0.0, %v3456
      %3458 = vmatmul.bf16.gmra.mxu0 %v2976
      %v3459 = vpop.f32.mrf.mxu0
      %v3460 = vadd.f32 0.0, %v3459
      %v3461 = vpop.f32.mrf.mxu0
      %v3462 = vadd.f32 0.0, %v3461
      %3463 = vmatmul.bf16.gmra.mxu0 %v3178
      %v3464 = vpop.f32.mrf.mxu0
      %v3465 = vadd.f32 0.0, %v3464
      %v3466 = vpop.f32.mrf.mxu0
      %v3467 = vadd.f32 0.0, %v3466
      %3468 = vmatmul.bf16.gmra.mxu0 %v3380
      %v3469 = vpop.f32.mrf.mxu0
      %v3470 = vadd.f32 0.0, %v3469
      %v3471 = vpop.f32.mrf.mxu0
      %v3472 = vadd.f32 0.0, %v3471
      %3473 = vdwg.mxu0
      %v3474 = vadd.f32 %v3336, %v3395
      %v3475 = vadd.f32 %v3337, %v3397
      %v3476 = vadd.f32 %v3338, %v3400
      %v3477 = vadd.f32 %v3339, %v3402
      %v3478 = vadd.f32 %v3340, %v3405
      %v3479 = vadd.f32 %v3341, %v3407
      %v3480 = vadd.f32 %v3342, %v3410
      %v3481 = vadd.f32 %v3343, %v3412
      %v3482 = vadd.f32 %v3344, %v3415
      %v3483 = vadd.f32 %v3345, %v3417
      %v3484 = vadd.f32 %v3346, %v3420
      %v3485 = vadd.f32 %v3347, %v3422
      %v3486 = vadd.f32 %v3348, %v3425
      %v3487 = vadd.f32 %v3349, %v3427
      %v3488 = vadd.f32 %v3350, %v3430
      %v3489 = vadd.f32 %v3351, %v3432
      %v3490 = vadd.f32 %v3352, %v3435
      %v3491 = vadd.f32 %v3353, %v3437
      %v3492 = vadd.f32 %v3354, %v3440
      %v3493 = vadd.f32 %v3355, %v3442
      %v3494 = vadd.f32 %v3356, %v3445
      %v3495 = vadd.f32 %v3357, %v3447
      %v3496 = vadd.f32 %v3358, %v3450
      %v3497 = vadd.f32 %v3359, %v3452
      %v3498 = vadd.f32 %v3360, %v3455
      %v3499 = vadd.f32 %v3361, %v3457
      %v3500 = vadd.f32 %v3362, %v3460
      %v3501 = vadd.f32 %v3363, %v3462
      %v3502 = vadd.f32 %v3364, %v3465
      %v3503 = vadd.f32 %v3365, %v3467
      %v3504 = vadd.f32 %v3366, %v3470
      %v3505 = vadd.f32 %v3367, %v3472
      %3506 = vst.msk [vmem:[#allocation4] sm:$0xff] %vm246, %v3474
      %3507 = vst.msk [vmem:[#allocation4 + $0x8] sm:$0xff] %vm246, %v3475
      %3508 = vst.msk [vmem:[#allocation4 + $0x10] sm:$0xff] %vm246, %v3476
      %3509 = vst.msk [vmem:[#allocation4 + $0x18] sm:$0xff] %vm246, %v3477
      %3510 = vst.msk [vmem:[#allocation4 + $0x20] sm:$0xff] %vm246, %v3478
      %3511 = vst.msk [vmem:[#allocation4 + $0x28] sm:$0xff] %vm246, %v3479
      %3512 = vst.msk [vmem:[#allocation4 + $0x30] sm:$0xff] %vm246, %v3480
      %3513 = vst.msk [vmem:[#allocation4 + $0x38] sm:$0xff] %vm246, %v3481
      %3514 = vst.msk [vmem:[#allocation4 + $0x40] sm:$0xff] %vm246, %v3482
      %3515 = vst.msk [vmem:[#allocation4 + $0x48] sm:$0xff] %vm246, %v3483
      %3516 = vst.msk [vmem:[#allocation4 + $0x50] sm:$0xff] %vm246, %v3484
      %3517 = vst.msk [vmem:[#allocation4 + $0x58] sm:$0xff] %vm246, %v3485
      %3518 = vst.msk [vmem:[#allocation4 + $0x60] sm:$0xff] %vm246, %v3486
      %3519 = vst.msk [vmem:[#allocation4 + $0x68] sm:$0xff] %vm246, %v3487
      %3520 = vst.msk [vmem:[#allocation4 + $0x70] sm:$0xff] %vm246, %v3488
      %3521 = vst.msk [vmem:[#allocation4 + $0x78] sm:$0xff] %vm246, %v3489
      %3522 = vst.msk [vmem:[#allocation4 + $0x80] sm:$0xff] %vm246, %v3490
      %3523 = vst.msk [vmem:[#allocation4 + $0x88] sm:$0xff] %vm246, %v3491
      %3524 = vst.msk [vmem:[#allocation4 + $0x90] sm:$0xff] %vm246, %v3492
      %3525 = vst.msk [vmem:[#allocation4 + $0x98] sm:$0xff] %vm246, %v3493
      %3526 = vst.msk [vmem:[#allocation4 + $0xa0] sm:$0xff] %vm246, %v3494
      %3527 = vst.msk [vmem:[#allocation4 + $0xa8] sm:$0xff] %vm246, %v3495
      %3528 = vst.msk [vmem:[#allocation4 + $0xb0] sm:$0xff] %vm246, %v3496
      %3529 = vst.msk [vmem:[#allocation4 + $0xb8] sm:$0xff] %vm246, %v3497
      %3530 = vst.msk [vmem:[#allocation4 + $0xc0] sm:$0xff] %vm246, %v3498
      %3531 = vst.msk [vmem:[#allocation4 + $0xc8] sm:$0xff] %vm246, %v3499
      %3532 = vst.msk [vmem:[#allocation4 + $0xd0] sm:$0xff] %vm246, %v3500
      %3533 = vst.msk [vmem:[#allocation4 + $0xd8] sm:$0xff] %vm246, %v3501
      %3534 = vst.msk [vmem:[#allocation4 + $0xe0] sm:$0xff] %vm246, %v3502
      %3535 = vst.msk [vmem:[#allocation4 + $0xe8] sm:$0xff] %vm246, %v3503
      %3536 = vst.msk [vmem:[#allocation4 + $0xf0] sm:$0xff] %vm246, %v3504
      %3537 = vst.msk [vmem:[#allocation4 + $0xf8] sm:$0xff] %vm246, %v3505
      %3538 = vst.msk [vmem:[#allocation3] sm:$0xf] %vm279, 0
      %3539 = vst.msk [vmem:[#allocation3 + $0x4] sm:$0xf] %vm279, 0
      %3540 = vst.msk [vmem:[#allocation3 + $0x8] sm:$0x1] %vm282, 0
      %3541 = vst.msk [vmem:[#allocation3 + $0xc] sm:$0xf] %vm279, 0
      %3542 = vst.msk [vmem:[#allocation3 + $0x10] sm:$0xf] %vm279, 0
      %3543 = vst.msk [vmem:[#allocation3 + $0x14] sm:$0x1] %vm282, 0
      %3544 = vst.msk [vmem:[#allocation3 + $0x18] sm:$0xf] %vm279, 0
      %3545 = vst.msk [vmem:[#allocation3 + $0x1c] sm:$0xf] %vm279, 0
      %3546 = vst.msk [vmem:[#allocation3 + $0x20] sm:$0x1] %vm282, 0
      %3547 = vst.msk [vmem:[#allocation3 + $0x24] sm:$0xf] %vm279, 0
      %3548 = vst.msk [vmem:[#allocation3 + $0x28] sm:$0xf] %vm279, 0
      %3549 = vst.msk [vmem:[#allocation3 + $0x2c] sm:$0x1] %vm282, 0
      %3550 = vst.msk [vmem:[#allocation3 + $0x30] sm:$0xf] %vm279, 0
      %3551 = vst.msk [vmem:[#allocation3 + $0x34] sm:$0xf] %vm279, 0
      %3552 = vst.msk [vmem:[#allocation3 + $0x38] sm:$0x1] %vm282, 0
      %3553 = vst.msk [vmem:[#allocation3 + $0x3c] sm:$0xf] %vm279, 0
      %3554 = vst.msk [vmem:[#allocation3 + $0x40] sm:$0xf] %vm279, 0
      %3555 = vst.msk [vmem:[#allocation3 + $0x44] sm:$0x1] %vm282, 0
      %3556 = vst.msk [vmem:[#allocation3 + $0x48] sm:$0xf] %vm279, 0
      %3557 = vst.msk [vmem:[#allocation3 + $0x4c] sm:$0xf] %vm279, 0
      %3558 = vst.msk [vmem:[#allocation3 + $0x50] sm:$0x1] %vm282, 0
      %3559 = vst.msk [vmem:[#allocation3 + $0x54] sm:$0xf] %vm279, 0
      %3560 = vst.msk [vmem:[#allocation3 + $0x58] sm:$0xf] %vm279, 0
      %3561 = vst.msk [vmem:[#allocation3 + $0x5c] sm:$0x1] %vm282, 0
      %3562 = vst.msk [vmem:[#allocation3 + $0x60] sm:$0xf] %vm279, 0
      %3563 = vst.msk [vmem:[#allocation3 + $0x64] sm:$0xf] %vm279, 0
      %3564 = vst.msk [vmem:[#allocation3 + $0x68] sm:$0x1] %vm282, 0
      %3565 = vst.msk [vmem:[#allocation3 + $0x6c] sm:$0xf] %vm279, 0
      %3566 = vst.msk [vmem:[#allocation3 + $0x70] sm:$0xf] %vm279, 0
      %3567 = vst.msk [vmem:[#allocation3 + $0x74] sm:$0x1] %vm282, 0
      %3568 = vst.msk [vmem:[#allocation3 + $0x78] sm:$0xf] %vm279, 0
      %3569 = vst.msk [vmem:[#allocation3 + $0x7c] sm:$0xf] %vm279, 0
      %3570 = vst.msk [vmem:[#allocation3 + $0x80] sm:$0x1] %vm282, 0
      %3571 = vst.msk [vmem:[#allocation3 + $0x84] sm:$0xf] %vm279, 0
      %3572 = vst.msk [vmem:[#allocation3 + $0x88] sm:$0xf] %vm279, 0
      %3573 = vst.msk [vmem:[#allocation3 + $0x8c] sm:$0x1] %vm282, 0
      %3574 = vst.msk [vmem:[#allocation3 + $0x90] sm:$0xf] %vm279, 0
      %3575 = vst.msk [vmem:[#allocation3 + $0x94] sm:$0xf] %vm279, 0
      %3576 = vst.msk [vmem:[#allocation3 + $0x98] sm:$0x1] %vm282, 0
      %3577 = vst.msk [vmem:[#allocation3 + $0x9c] sm:$0xf] %vm279, 0
      %3578 = vst.msk [vmem:[#allocation3 + $0xa0] sm:$0xf] %vm279, 0
      %3579 = vst.msk [vmem:[#allocation3 + $0xa4] sm:$0x1] %vm282, 0
      %3580 = vst.msk [vmem:[#allocation3 + $0xa8] sm:$0xf] %vm279, 0
      %3581 = vst.msk [vmem:[#allocation3 + $0xac] sm:$0xf] %vm279, 0
      %3582 = vst.msk [vmem:[#allocation3 + $0xb0] sm:$0x1] %vm282, 0
      %3583 = vst.msk [vmem:[#allocation3 + $0xb4] sm:$0xf] %vm279, 0
      %3584 = vst.msk [vmem:[#allocation3 + $0xb8] sm:$0xf] %vm279, 0
      %3585 = vst.msk [vmem:[#allocation3 + $0xbc] sm:$0x1] %vm282, 0
      %3586 = vst.msk [vmem:[#allocation3 + $0xc0] sm:$0xf] %vm279, 0
      %3587 = vst.msk [vmem:[#allocation3 + $0xc4] sm:$0xf] %vm279, 0
      %3588 = vst.msk [vmem:[#allocation3 + $0xc8] sm:$0x1] %vm282, 0
      %3589 = vst.msk [vmem:[#allocation3 + $0xcc] sm:$0xf] %vm279, 0
      %3590 = vst.msk [vmem:[#allocation3 + $0xd0] sm:$0xf] %vm279, 0
      %3591 = vst.msk [vmem:[#allocation3 + $0xd4] sm:$0x1] %vm282, 0
      %v3592 = vld [vmem:[%s239] sm:$0xff]
      %v3593 = vld [vmem:[%s239 + $0x8] sm:$0xff]
      %v3594 = vld [vmem:[%s239 + $0x10] sm:$0xff]
      %v3595 = vld [vmem:[%s239 + $0x18] sm:$0xff]
      %v3596 = vld [vmem:[%s239 + $0x20] sm:$0xff]
      %v3597 = vld [vmem:[%s239 + $0x28] sm:$0xff]
      %v3598 = vld [vmem:[%s239 + $0x30] sm:$0xff]
      %v3599 = vld [vmem:[%s239 + $0x38] sm:$0xff]
      %v3600 = vld [vmem:[%s239 + $0x40] sm:$0xff]
      %v3601 = vld [vmem:[%s239 + $0x48] sm:$0xff]
      %v3602 = vld [vmem:[%s239 + $0x50] sm:$0xff]
      %v3603 = vld [vmem:[%s239 + $0x58] sm:$0xff]
      %v3604 = vld [vmem:[%s239 + $0x60] sm:$0xff]
      %v3605 = vld [vmem:[%s239 + $0x68] sm:$0xff]
      %v3606 = vld [vmem:[%s239 + $0x70] sm:$0xff]
      %v3607 = vld [vmem:[%s239 + $0x78] sm:$0xff]
      %v3608 = vld [vmem:[%s239 + $0x80] sm:$0xff]
      %v3609 = vld [vmem:[%s239 + $0x88] sm:$0xff]
      %v3610 = vld [vmem:[%s239 + $0x90] sm:$0xff]
      %v3611 = vld [vmem:[%s239 + $0x98] sm:$0xff]
      %v3612 = vld [vmem:[%s239 + $0xa0] sm:$0xff]
      %v3613 = vld [vmem:[%s239 + $0xa8] sm:$0xff]
      %v3614 = vld [vmem:[%s239 + $0xb0] sm:$0xff]
      %v3615 = vld [vmem:[%s239 + $0xb8] sm:$0xff]
      %v3616 = vld [vmem:[%s239 + $0xc0] sm:$0xff]
      %v3617 = vld [vmem:[%s239 + $0xc8] sm:$0xff]
      %v3618 = vld [vmem:[%s239 + $0xd0] sm:$0xff]
      %v3619 = vld [vmem:[%s239 + $0xd8] sm:$0xff]
      %v3620 = vld [vmem:[%s239 + $0xe0] sm:$0xff]
      %v3621 = vld [vmem:[%s239 + $0xe8] sm:$0xff]
      %v3622 = vld [vmem:[%s239 + $0xf0] sm:$0xff]
      %v3623 = vld [vmem:[%s239 + $0xf8] sm:$0xff]
      %v3624 = vpack.c.bf16 %v3592, %v3592
      %v3625 = vpack.c.bf16 %v3593, %v3593
      %v3626 = vpack.c.bf16 %v3594, %v3594
      %v3627 = vpack.c.bf16 %v3595, %v3595
      %v3628 = vpack.c.bf16 %v3596, %v3596
      %v3629 = vpack.c.bf16 %v3597, %v3597
      %v3630 = vpack.c.bf16 %v3598, %v3598
      %v3631 = vpack.c.bf16 %v3599, %v3599
      %v3632 = vpack.c.bf16 %v3600, %v3600
      %v3633 = vpack.c.bf16 %v3601, %v3601
      %v3634 = vpack.c.bf16 %v3602, %v3602
      %v3635 = vpack.c.bf16 %v3603, %v3603
      %v3636 = vpack.c.bf16 %v3604, %v3604
      %v3637 = vpack.c.bf16 %v3605, %v3605
      %v3638 = vpack.c.bf16 %v3606, %v3606
      %v3639 = vpack.c.bf16 %v3607, %v3607
      %v3640 = vpack.c.bf16 %v3608, %v3608
      %v3641 = vpack.c.bf16 %v3609, %v3609
      %v3642 = vpack.c.bf16 %v3610, %v3610
      %v3643 = vpack.c.bf16 %v3611, %v3611
      %v3644 = vpack.c.bf16 %v3612, %v3612
      %v3645 = vpack.c.bf16 %v3613, %v3613
      %v3646 = vpack.c.bf16 %v3614, %v3614
      %v3647 = vpack.c.bf16 %v3615, %v3615
      %v3648 = vpack.c.bf16 %v3616, %v3616
      %v3649 = vpack.c.bf16 %v3617, %v3617
      %v3650 = vpack.c.bf16 %v3618, %v3618
      %v3651 = vpack.c.bf16 %v3619, %v3619
      %v3652 = vpack.c.bf16 %v3620, %v3620
      %v3653 = vpack.c.bf16 %v3621, %v3621
      %v3654 = vpack.c.bf16 %v3622, %v3622
      %v3655 = vpack.c.bf16 %v3623, %v3623
      %v3657 = vshrl.u32 %v3624, 16
      %v3659 = vrot.slane %v3657, 7
      %v3660 = vshll.u32 %v3624, 16
      %v3662 = vor.u32 %v3659, %v3660
      %v3663 = vrot.slane %v3659, 4
      %v3665 = vshrl.u32 %v3625, 16
      %v3667 = vrot.slane %v3665, 7
      %v3668 = vshll.u32 %v3625, 16
      %v3670 = vor.u32 %v3667, %v3668
      %v3671 = vsel %vm401, %v3663, %v3670
      %v3672 = vrot.slane %v3667, 4
      %v3674 = vshrl.u32 %v3626, 16
      %v3676 = vrot.slane %v3674, 7
      %v3677 = vshll.u32 %v3626, 16
      %v3679 = vor.u32 %v3676, %v3677
      %v3680 = vrot.slane %v3676, 4
      %v3682 = vshrl.u32 %v3627, 16
      %v3684 = vrot.slane %v3682, 7
      %v3685 = vshll.u32 %v3627, 16
      %v3687 = vor.u32 %v3684, %v3685
      %v3688 = vsel %vm401, %v3680, %v3687
      %v3689 = vrot.slane %v3684, 4
      %v3691 = vshrl.u32 %v3628, 16
      %v3693 = vrot.slane %v3691, 7
      %v3694 = vshll.u32 %v3628, 16
      %v3696 = vor.u32 %v3693, %v3694
      %v3697 = vrot.slane %v3693, 4
      %v3699 = vshrl.u32 %v3629, 16
      %v3701 = vrot.slane %v3699, 7
      %v3702 = vshll.u32 %v3629, 16
      %v3704 = vor.u32 %v3701, %v3702
      %v3705 = vsel %vm401, %v3697, %v3704
      %v3706 = vrot.slane %v3701, 4
      %v3708 = vshrl.u32 %v3630, 16
      %v3710 = vrot.slane %v3708, 7
      %v3711 = vshll.u32 %v3630, 16
      %v3713 = vor.u32 %v3710, %v3711
      %v3714 = vrot.slane %v3710, 4
      %v3716 = vshrl.u32 %v3631, 16
      %v3718 = vrot.slane %v3716, 7
      %v3719 = vshll.u32 %v3631, 16
      %v3721 = vor.u32 %v3718, %v3719
      %v3722 = vsel %vm401, %v3714, %v3721
      %v3723 = vrot.slane %v3718, 4
      %v3725 = vshrl.u32 %v3632, 16
      %v3727 = vrot.slane %v3725, 7
      %v3728 = vshll.u32 %v3632, 16
      %v3730 = vor.u32 %v3727, %v3728
      %v3731 = vrot.slane %v3727, 4
      %v3733 = vshrl.u32 %v3633, 16
      %v3735 = vrot.slane %v3733, 7
      %v3736 = vshll.u32 %v3633, 16
      %v3738 = vor.u32 %v3735, %v3736
      %v3739 = vsel %vm401, %v3731, %v3738
      %v3740 = vrot.slane %v3735, 4
      %v3742 = vshrl.u32 %v3634, 16
      %v3744 = vrot.slane %v3742, 7
      %v3745 = vshll.u32 %v3634, 16
      %v3747 = vor.u32 %v3744, %v3745
      %v3748 = vrot.slane %v3744, 4
      %v3750 = vshrl.u32 %v3635, 16
      %v3752 = vrot.slane %v3750, 7
      %v3753 = vshll.u32 %v3635, 16
      %v3755 = vor.u32 %v3752, %v3753
      %v3756 = vsel %vm401, %v3748, %v3755
      %v3757 = vrot.slane %v3752, 4
      %v3759 = vshrl.u32 %v3636, 16
      %v3761 = vrot.slane %v3759, 7
      %v3762 = vshll.u32 %v3636, 16
      %v3764 = vor.u32 %v3761, %v3762
      %v3765 = vrot.slane %v3761, 4
      %v3767 = vshrl.u32 %v3637, 16
      %v3769 = vrot.slane %v3767, 7
      %v3770 = vshll.u32 %v3637, 16
      %v3772 = vor.u32 %v3769, %v3770
      %v3773 = vsel %vm401, %v3765, %v3772
      %v3774 = vrot.slane %v3769, 4
      %v3776 = vshrl.u32 %v3638, 16
      %v3778 = vrot.slane %v3776, 7
      %v3779 = vshll.u32 %v3638, 16
      %v3781 = vor.u32 %v3778, %v3779
      %v3782 = vrot.slane %v3778, 4
      %v3784 = vshrl.u32 %v3639, 16
      %v3786 = vrot.slane %v3784, 7
      %v3787 = vshll.u32 %v3639, 16
      %v3789 = vor.u32 %v3786, %v3787
      %v3790 = vsel %vm401, %v3782, %v3789
      %v3791 = vrot.slane %v3786, 4
      %v3793 = vshrl.u32 %v3640, 16
      %v3795 = vrot.slane %v3793, 7
      %v3796 = vshll.u32 %v3640, 16
      %v3798 = vor.u32 %v3795, %v3796
      %v3799 = vrot.slane %v3795, 4
      %v3801 = vshrl.u32 %v3641, 16
      %v3803 = vrot.slane %v3801, 7
      %v3804 = vshll.u32 %v3641, 16
      %v3806 = vor.u32 %v3803, %v3804
      %v3807 = vsel %vm401, %v3799, %v3806
      %v3808 = vrot.slane %v3803, 4
      %v3810 = vshrl.u32 %v3642, 16
      %v3812 = vrot.slane %v3810, 7
      %v3813 = vshll.u32 %v3642, 16
      %v3815 = vor.u32 %v3812, %v3813
      %v3816 = vrot.slane %v3812, 4
      %v3818 = vshrl.u32 %v3643, 16
      %v3820 = vrot.slane %v3818, 7
      %v3821 = vshll.u32 %v3643, 16
      %v3823 = vor.u32 %v3820, %v3821
      %v3824 = vsel %vm401, %v3816, %v3823
      %v3825 = vrot.slane %v3820, 4
      %v3827 = vshrl.u32 %v3644, 16
      %v3829 = vrot.slane %v3827, 7
      %v3830 = vshll.u32 %v3644, 16
      %v3832 = vor.u32 %v3829, %v3830
      %v3833 = vrot.slane %v3829, 4
      %v3835 = vshrl.u32 %v3645, 16
      %v3837 = vrot.slane %v3835, 7
      %v3838 = vshll.u32 %v3645, 16
      %v3840 = vor.u32 %v3837, %v3838
      %v3841 = vsel %vm401, %v3833, %v3840
      %v3842 = vrot.slane %v3837, 4
      %v3844 = vshrl.u32 %v3646, 16
      %v3846 = vrot.slane %v3844, 7
      %v3847 = vshll.u32 %v3646, 16
      %v3849 = vor.u32 %v3846, %v3847
      %v3850 = vrot.slane %v3846, 4
      %v3852 = vshrl.u32 %v3647, 16
      %v3854 = vrot.slane %v3852, 7
      %v3855 = vshll.u32 %v3647, 16
      %v3857 = vor.u32 %v3854, %v3855
      %v3858 = vsel %vm401, %v3850, %v3857
      %v3859 = vrot.slane %v3854, 4
      %v3861 = vshrl.u32 %v3648, 16
      %v3863 = vrot.slane %v3861, 7
      %v3864 = vshll.u32 %v3648, 16
      %v3866 = vor.u32 %v3863, %v3864
      %v3867 = vrot.slane %v3863, 4
      %v3869 = vshrl.u32 %v3649, 16
      %v3871 = vrot.slane %v3869, 7
      %v3872 = vshll.u32 %v3649, 16
      %v3874 = vor.u32 %v3871, %v3872
      %v3875 = vsel %vm401, %v3867, %v3874
      %v3876 = vrot.slane %v3871, 4
      %v3878 = vshrl.u32 %v3650, 16
      %v3880 = vrot.slane %v3878, 7
      %v3881 = vshll.u32 %v3650, 16
      %v3883 = vor.u32 %v3880, %v3881
      %v3884 = vrot.slane %v3880, 4
      %v3886 = vshrl.u32 %v3651, 16
      %v3888 = vrot.slane %v3886, 7
      %v3889 = vshll.u32 %v3651, 16
      %v3891 = vor.u32 %v3888, %v3889
      %v3892 = vsel %vm401, %v3884, %v3891
      %v3893 = vrot.slane %v3888, 4
      %v3895 = vshrl.u32 %v3652, 16
      %v3897 = vrot.slane %v3895, 7
      %v3898 = vshll.u32 %v3652, 16
      %v3900 = vor.u32 %v3897, %v3898
      %v3901 = vrot.slane %v3897, 4
      %v3903 = vshrl.u32 %v3653, 16
      %v3905 = vrot.slane %v3903, 7
      %v3906 = vshll.u32 %v3653, 16
      %v3908 = vor.u32 %v3905, %v3906
      %v3909 = vsel %vm401, %v3901, %v3908
      %v3910 = vrot.slane %v3905, 4
      %v3912 = vshrl.u32 %v3654, 16
      %v3914 = vrot.slane %v3912, 7
      %v3915 = vshll.u32 %v3654, 16
      %v3917 = vor.u32 %v3914, %v3915
      %v3918 = vrot.slane %v3914, 4
      %v3920 = vshrl.u32 %v3655, 16
      %v3922 = vrot.slane %v3920, 7
      %v3923 = vshll.u32 %v3655, 16
      %v3925 = vor.u32 %v3922, %v3923
      %v3926 = vsel %vm401, %v3918, %v3925
      %v3927 = vrot.slane %v3922, 4
      %s3976 = scalar_lea.vmem [#allocation3], 12
      %v3977 = vld [vmem:[%s3976] sm:$0xf]
      %v3978 = vsel %vm725, %v3662, %v3977
      %3979 = vst [vmem:[%s3976] sm:$0xf] %v3978
      %3980 = vst.msk [vmem:[%s3976 + $0x4] sm:$0xf] %vm279, %v3671
      %v3981 = vld [vmem:[%s3976 + $0x8] sm:$0x1]
      %v3982 = vsel %vm731, %v3672, %v3981
      %3983 = vst [vmem:[%s3976 + $0x8] sm:$0x1] %v3982
      %v3984 = vld [vmem:[%s3976 + $0xc] sm:$0xf]
      %v3985 = vsel %vm725, %v3679, %v3984
      %3986 = vst [vmem:[%s3976 + $0xc] sm:$0xf] %v3985
      %3987 = vst.msk [vmem:[%s3976 + $0x10] sm:$0xf] %vm279, %v3688
      %v3988 = vld [vmem:[%s3976 + $0x14] sm:$0x1]
      %v3989 = vsel %vm731, %v3689, %v3988
      %3990 = vst [vmem:[%s3976 + $0x14] sm:$0x1] %v3989
      %v3991 = vld [vmem:[%s3976 + $0x18] sm:$0xf]
      %v3992 = vsel %vm725, %v3696, %v3991
      %3993 = vst [vmem:[%s3976 + $0x18] sm:$0xf] %v3992
      %3994 = vst.msk [vmem:[%s3976 + $0x1c] sm:$0xf] %vm279, %v3705
      %v3995 = vld [vmem:[%s3976 + $0x20] sm:$0x1]
      %v3996 = vsel %vm731, %v3706, %v3995
      %3997 = vst [vmem:[%s3976 + $0x20] sm:$0x1] %v3996
      %v3998 = vld [vmem:[%s3976 + $0x24] sm:$0xf]
      %v3999 = vsel %vm725, %v3713, %v3998
      %4000 = vst [vmem:[%s3976 + $0x24] sm:$0xf] %v3999
      %4001 = vst.msk [vmem:[%s3976 + $0x28] sm:$0xf] %vm279, %v3722
      %v4002 = vld [vmem:[%s3976 + $0x2c] sm:$0x1]
      %v4003 = vsel %vm731, %v3723, %v4002
      %4004 = vst [vmem:[%s3976 + $0x2c] sm:$0x1] %v4003
      %v4005 = vld [vmem:[%s3976 + $0x30] sm:$0xf]
      %v4006 = vsel %vm725, %v3730, %v4005
      %4007 = vst [vmem:[%s3976 + $0x30] sm:$0xf] %v4006
      %4008 = vst.msk [vmem:[%s3976 + $0x34] sm:$0xf] %vm279, %v3739
      %v4009 = vld [vmem:[%s3976 + $0x38] sm:$0x1]
      %v4010 = vsel %vm731, %v3740, %v4009
      %4011 = vst [vmem:[%s3976 + $0x38] sm:$0x1] %v4010
      %v4012 = vld [vmem:[%s3976 + $0x3c] sm:$0xf]
      %v4013 = vsel %vm725, %v3747, %v4012
      %4014 = vst [vmem:[%s3976 + $0x3c] sm:$0xf] %v4013
      %4015 = vst.msk [vmem:[%s3976 + $0x40] sm:$0xf] %vm279, %v3756
      %v4016 = vld [vmem:[%s3976 + $0x44] sm:$0x1]
      %v4017 = vsel %vm731, %v3757, %v4016
      %4018 = vst [vmem:[%s3976 + $0x44] sm:$0x1] %v4017
      %v4019 = vld [vmem:[%s3976 + $0x48] sm:$0xf]
      %v4020 = vsel %vm725, %v3764, %v4019
      %4021 = vst [vmem:[%s3976 + $0x48] sm:$0xf] %v4020
      %4022 = vst.msk [vmem:[%s3976 + $0x4c] sm:$0xf] %vm279, %v3773
      %v4023 = vld [vmem:[%s3976 + $0x50] sm:$0x1]
      %v4024 = vsel %vm731, %v3774, %v4023
      %4025 = vst [vmem:[%s3976 + $0x50] sm:$0x1] %v4024
      %v4026 = vld [vmem:[%s3976 + $0x54] sm:$0xf]
      %v4027 = vsel %vm725, %v3781, %v4026
      %4028 = vst [vmem:[%s3976 + $0x54] sm:$0xf] %v4027
      %4029 = vst.msk [vmem:[%s3976 + $0x58] sm:$0xf] %vm279, %v3790
      %v4030 = vld [vmem:[%s3976 + $0x5c] sm:$0x1]
      %v4031 = vsel %vm731, %v3791, %v4030
      %4032 = vst [vmem:[%s3976 + $0x5c] sm:$0x1] %v4031
      %v4033 = vld [vmem:[%s3976 + $0x60] sm:$0xf]
      %v4034 = vsel %vm725, %v3798, %v4033
      %4035 = vst [vmem:[%s3976 + $0x60] sm:$0xf] %v4034
      %4036 = vst.msk [vmem:[%s3976 + $0x64] sm:$0xf] %vm279, %v3807
      %v4037 = vld [vmem:[%s3976 + $0x68] sm:$0x1]
      %v4038 = vsel %vm731, %v3808, %v4037
      %4039 = vst [vmem:[%s3976 + $0x68] sm:$0x1] %v4038
      %v4040 = vld [vmem:[%s3976 + $0x6c] sm:$0xf]
      %v4041 = vsel %vm725, %v3815, %v4040
      %4042 = vst [vmem:[%s3976 + $0x6c] sm:$0xf] %v4041
      %4043 = vst.msk [vmem:[%s3976 + $0x70] sm:$0xf] %vm279, %v3824
      %v4044 = vld [vmem:[%s3976 + $0x74] sm:$0x1]
      %v4045 = vsel %vm731, %v3825, %v4044
      %4046 = vst [vmem:[%s3976 + $0x74] sm:$0x1] %v4045
      %v4047 = vld [vmem:[%s3976 + $0x78] sm:$0xf]
      %v4048 = vsel %vm725, %v3832, %v4047
      %4049 = vst [vmem:[%s3976 + $0x78] sm:$0xf] %v4048
      %4050 = vst.msk [vmem:[%s3976 + $0x7c] sm:$0xf] %vm279, %v3841
      %v4051 = vld [vmem:[%s3976 + $0x80] sm:$0x1]
      %v4052 = vsel %vm731, %v3842, %v4051
      %4053 = vst [vmem:[%s3976 + $0x80] sm:$0x1] %v4052
      %v4054 = vld [vmem:[%s3976 + $0x84] sm:$0xf]
      %v4055 = vsel %vm725, %v3849, %v4054
      %4056 = vst [vmem:[%s3976 + $0x84] sm:$0xf] %v4055
      %4057 = vst.msk [vmem:[%s3976 + $0x88] sm:$0xf] %vm279, %v3858
      %v4058 = vld [vmem:[%s3976 + $0x8c] sm:$0x1]
      %v4059 = vsel %vm731, %v3859, %v4058
      %4060 = vst [vmem:[%s3976 + $0x8c] sm:$0x1] %v4059
      %v4061 = vld [vmem:[%s3976 + $0x90] sm:$0xf]
      %v4062 = vsel %vm725, %v3866, %v4061
      %4063 = vst [vmem:[%s3976 + $0x90] sm:$0xf] %v4062
      %4064 = vst.msk [vmem:[%s3976 + $0x94] sm:$0xf] %vm279, %v3875
      %v4065 = vld [vmem:[%s3976 + $0x98] sm:$0x1]
      %v4066 = vsel %vm731, %v3876, %v4065
      %4067 = vst [vmem:[%s3976 + $0x98] sm:$0x1] %v4066
      %v4068 = vld [vmem:[%s3976 + $0x9c] sm:$0xf]
      %v4069 = vsel %vm725, %v3883, %v4068
      %4070 = vst [vmem:[%s3976 + $0x9c] sm:$0xf] %v4069
      %4071 = vst.msk [vmem:[%s3976 + $0xa0] sm:$0xf] %vm279, %v3892
      %v4072 = vld [vmem:[%s3976 + $0xa4] sm:$0x1]
      %v4073 = vsel %vm731, %v3893, %v4072
      %4074 = vst [vmem:[%s3976 + $0xa4] sm:$0x1] %v4073
      %v4075 = vld [vmem:[%s3976 + $0xa8] sm:$0xf]
      %v4076 = vsel %vm725, %v3900, %v4075
      %4077 = vst [vmem:[%s3976 + $0xa8] sm:$0xf] %v4076
      %4078 = vst.msk [vmem:[%s3976 + $0xac] sm:$0xf] %vm279, %v3909
      %v4079 = vld [vmem:[%s3976 + $0xb0] sm:$0x1]
      %v4080 = vsel %vm731, %v3910, %v4079
      %4081 = vst [vmem:[%s3976 + $0xb0] sm:$0x1] %v4080
      %v4082 = vld [vmem:[%s3976 + $0xb4] sm:$0xf]
      %v4083 = vsel %vm725, %v3917, %v4082
      %4084 = vst [vmem:[%s3976 + $0xb4] sm:$0xf] %v4083
      %4085 = vst.msk [vmem:[%s3976 + $0xb8] sm:$0xf] %vm279, %v3926
      %v4086 = vld [vmem:[%s3976 + $0xbc] sm:$0x1]
      %v4087 = vsel %vm731, %v3927, %v4086
      %4088 = vst [vmem:[%s3976 + $0xbc] sm:$0x1] %v4087
      %v4089 = vld [vmem:[#allocation3] sm:$0xf]
      %v4090 = vld [vmem:[#allocation3 + $0x4] sm:$0xf]
      %v4091 = vld [vmem:[#allocation3 + $0x8] sm:$0x1]
      %v4092 = vld [vmem:[#allocation3 + $0xc] sm:$0xf]
      %v4093 = vld [vmem:[#allocation3 + $0x10] sm:$0xf]
      %v4094 = vld [vmem:[#allocation3 + $0x14] sm:$0x1]
      %v4095 = vld [vmem:[#allocation3 + $0x18] sm:$0xf]
      %v4096 = vld [vmem:[#allocation3 + $0x1c] sm:$0xf]
      %v4097 = vld [vmem:[#allocation3 + $0x20] sm:$0x1]
      %v4098 = vld [vmem:[#allocation3 + $0x24] sm:$0xf]
      %v4099 = vld [vmem:[#allocation3 + $0x28] sm:$0xf]
      %v4100 = vld [vmem:[#allocation3 + $0x2c] sm:$0x1]
      %v4101 = vld [vmem:[#allocation3 + $0x30] sm:$0xf]
      %v4102 = vld [vmem:[#allocation3 + $0x34] sm:$0xf]
      %v4103 = vld [vmem:[#allocation3 + $0x38] sm:$0x1]
      %v4104 = vld [vmem:[#allocation3 + $0x3c] sm:$0xf]
      %v4105 = vld [vmem:[#allocation3 + $0x40] sm:$0xf]
      %v4106 = vld [vmem:[#allocation3 + $0x44] sm:$0x1]
      %v4107 = vld [vmem:[#allocation3 + $0x48] sm:$0xf]
      %v4108 = vld [vmem:[#allocation3 + $0x4c] sm:$0xf]
      %v4109 = vld [vmem:[#allocation3 + $0x50] sm:$0x1]
      %v4110 = vld [vmem:[#allocation3 + $0x54] sm:$0xf]
      %v4111 = vld [vmem:[#allocation3 + $0x58] sm:$0xf]
      %v4112 = vld [vmem:[#allocation3 + $0x5c] sm:$0x1]
      %v4113 = vld [vmem:[#allocation3 + $0x60] sm:$0xf]
      %v4114 = vld [vmem:[#allocation3 + $0x64] sm:$0xf]
      %v4115 = vld [vmem:[#allocation3 + $0x68] sm:$0x1]
      %v4116 = vld [vmem:[#allocation3 + $0x6c] sm:$0xf]
      %v4117 = vld [vmem:[#allocation3 + $0x70] sm:$0xf]
      %v4118 = vld [vmem:[#allocation3 + $0x74] sm:$0x1]
      %v4119 = vld [vmem:[#allocation3 + $0x78] sm:$0xf]
      %v4120 = vld [vmem:[#allocation3 + $0x7c] sm:$0xf]
      %v4121 = vld [vmem:[#allocation3 + $0x80] sm:$0x1]
      %v4122 = vld [vmem:[#allocation3 + $0x84] sm:$0xf]
      %v4123 = vld [vmem:[#allocation3 + $0x88] sm:$0xf]
      %v4124 = vld [vmem:[#allocation3 + $0x8c] sm:$0x1]
      %v4125 = vld [vmem:[#allocation3 + $0x90] sm:$0xf]
      %v4126 = vld [vmem:[#allocation3 + $0x94] sm:$0xf]
      %v4127 = vld [vmem:[#allocation3 + $0x98] sm:$0x1]
      %v4128 = vld [vmem:[#allocation3 + $0x9c] sm:$0xf]
      %v4129 = vld [vmem:[#allocation3 + $0xa0] sm:$0xf]
      %v4130 = vld [vmem:[#allocation3 + $0xa4] sm:$0x1]
      %v4131 = vld [vmem:[#allocation3 + $0xa8] sm:$0xf]
      %v4132 = vld [vmem:[#allocation3 + $0xac] sm:$0xf]
      %v4133 = vld [vmem:[#allocation3 + $0xb0] sm:$0x1]
      %v4134 = vld [vmem:[#allocation3 + $0xb4] sm:$0xf]
      %v4135 = vld [vmem:[#allocation3 + $0xb8] sm:$0xf]
      %v4136 = vld [vmem:[#allocation3 + $0xbc] sm:$0x1]
      %v4137 = vld [vmem:[#allocation3 + $0xc0] sm:$0xf]
      %v4138 = vld [vmem:[#allocation3 + $0xc4] sm:$0xf]
      %v4139 = vld [vmem:[#allocation3 + $0xc8] sm:$0x1]
      %v4140 = vld [vmem:[#allocation3 + $0xcc] sm:$0xf]
      %v4141 = vld [vmem:[#allocation3 + $0xd0] sm:$0xf]
      %v4142 = vld [vmem:[#allocation3 + $0xd4] sm:$0x1]
      %v4143 = vld [vmem:[%s3] sm:$0xf]
      %v4144 = vld [vmem:[%s3 + $0x4] sm:$0xf]
      %v4145 = vld [vmem:[%s3 + $0x8] sm:$0xf]
      %v4146 = vld [vmem:[%s3 + $0xc] sm:$0xf]
      %v4147 = vld [vmem:[%s3 + $0x10] sm:$0xf]
      %v4148 = vld [vmem:[%s3 + $0x14] sm:$0xf]
      %v4149 = vld [vmem:[%s3 + $0x18] sm:$0xf]
      %v4150 = vld [vmem:[%s3 + $0x1c] sm:$0xf]
      %v4151 = vld [vmem:[%s3 + $0x20] sm:$0xf]
      %v4152 = vld [vmem:[#allocation4] sm:$0xff]
      %v4153 = vld [vmem:[#allocation4 + $0x8] sm:$0xff]
      %v4154 = vld [vmem:[#allocation4 + $0x10] sm:$0xff]
      %v4155 = vld [vmem:[#allocation4 + $0x18] sm:$0xff]
      %v4156 = vld [vmem:[#allocation4 + $0x20] sm:$0xff]
      %v4157 = vld [vmem:[#allocation4 + $0x28] sm:$0xff]
      %v4158 = vld [vmem:[#allocation4 + $0x30] sm:$0xff]
      %v4159 = vld [vmem:[#allocation4 + $0x38] sm:$0xff]
      %v4160 = vld [vmem:[#allocation4 + $0x40] sm:$0xff]
      %v4161 = vld [vmem:[#allocation4 + $0x48] sm:$0xff]
      %v4162 = vld [vmem:[#allocation4 + $0x50] sm:$0xff]
      %v4163 = vld [vmem:[#allocation4 + $0x58] sm:$0xff]
      %v4164 = vld [vmem:[#allocation4 + $0x60] sm:$0xff]
      %v4165 = vld [vmem:[#allocation4 + $0x68] sm:$0xff]
      %v4166 = vld [vmem:[#allocation4 + $0x70] sm:$0xff]
      %v4167 = vld [vmem:[#allocation4 + $0x78] sm:$0xff]
      %v4168 = vld [vmem:[#allocation4 + $0x80] sm:$0xff]
      %v4169 = vld [vmem:[#allocation4 + $0x88] sm:$0xff]
      %v4170 = vld [vmem:[#allocation4 + $0x90] sm:$0xff]
      %v4171 = vld [vmem:[#allocation4 + $0x98] sm:$0xff]
      %v4172 = vld [vmem:[#allocation4 + $0xa0] sm:$0xff]
      %v4173 = vld [vmem:[#allocation4 + $0xa8] sm:$0xff]
      %v4174 = vld [vmem:[#allocation4 + $0xb0] sm:$0xff]
      %v4175 = vld [vmem:[#allocation4 + $0xb8] sm:$0xff]
      %v4176 = vld [vmem:[#allocation4 + $0xc0] sm:$0xff]
      %v4177 = vld [vmem:[#allocation4 + $0xc8] sm:$0xff]
      %v4178 = vld [vmem:[#allocation4 + $0xd0] sm:$0xff]
      %v4179 = vld [vmem:[#allocation4 + $0xd8] sm:$0xff]
      %v4180 = vld [vmem:[#allocation4 + $0xe0] sm:$0xff]
      %v4181 = vld [vmem:[#allocation4 + $0xe8] sm:$0xff]
      %v4182 = vld [vmem:[#allocation4 + $0xf0] sm:$0xff]
      %v4183 = vld [vmem:[#allocation4 + $0xf8] sm:$0xff]
      %v4216 = vunpack.c.l.b16 %v4089
      %v4217 = vunpack.c.l.b16 %v4090
      %v4218 = vunpack.c.l.b16 %v4092
      %v4219 = vunpack.c.l.b16 %v4093
      %v4220 = vunpack.c.l.b16 %v4095
      %v4221 = vunpack.c.l.b16 %v4096
      %v4222 = vunpack.c.l.b16 %v4098
      %v4223 = vunpack.c.l.b16 %v4099
      %v4224 = vunpack.c.l.b16 %v4101
      %v4225 = vunpack.c.l.b16 %v4102
      %v4226 = vunpack.c.l.b16 %v4104
      %v4227 = vunpack.c.l.b16 %v4105
      %v4228 = vunpack.c.l.b16 %v4107
      %v4229 = vunpack.c.l.b16 %v4108
      %v4230 = vunpack.c.l.b16 %v4110
      %v4231 = vunpack.c.l.b16 %v4111
      %v4232 = vunpack.c.l.b16 %v4113
      %v4233 = vunpack.c.l.b16 %v4114
      %v4234 = vunpack.c.l.b16 %v4116
      %v4235 = vunpack.c.l.b16 %v4117
      %v4236 = vunpack.c.l.b16 %v4119
      %v4237 = vunpack.c.l.b16 %v4120
      %v4238 = vunpack.c.l.b16 %v4122
      %v4239 = vunpack.c.l.b16 %v4123
      %v4240 = vunpack.c.l.b16 %v4125
      %v4241 = vunpack.c.l.b16 %v4126
      %v4242 = vunpack.c.l.b16 %v4128
      %v4243 = vunpack.c.l.b16 %v4129
      %v4244 = vunpack.c.l.b16 %v4131
      %v4245 = vunpack.c.l.b16 %v4132
      %v4246 = vunpack.c.l.b16 %v4134
      %v4247 = vunpack.c.l.b16 %v4135
      %v4248 = vpack.c.b16 %v4217, %v4216
      %v4249 = vpack.c.b16 %v4219, %v4218
      %v4250 = vpack.c.b16 %v4221, %v4220
      %v4251 = vpack.c.b16 %v4223, %v4222
      %v4252 = vpack.c.b16 %v4225, %v4224
      %v4253 = vpack.c.b16 %v4227, %v4226
      %v4254 = vpack.c.b16 %v4229, %v4228
      %v4255 = vpack.c.b16 %v4231, %v4230
      %v4256 = vpack.c.b16 %v4233, %v4232
      %v4257 = vpack.c.b16 %v4235, %v4234
      %v4258 = vpack.c.b16 %v4237, %v4236
      %v4259 = vpack.c.b16 %v4239, %v4238
      %v4260 = vpack.c.b16 %v4241, %v4240
      %v4261 = vpack.c.b16 %v4243, %v4242
      %v4262 = vpack.c.b16 %v4245, %v4244
      %v4263 = vpack.c.b16 %v4247, %v4246
      %v4265 = vsel %vm246, %v4248, 0
      %v4268 = vsel %vm246, %v4249, 0
      %v4271 = vsel %vm246, %v4250, 0
      %v4274 = vsel %vm246, %v4251, 0
      %v4277 = vsel %vm246, %v4252, 0
      %v4280 = vsel %vm246, %v4253, 0
      %v4283 = vsel %vm246, %v4254, 0
      %v4286 = vsel %vm246, %v4255, 0
      %v4289 = vsel %vm246, %v4256, 0
      %v4292 = vsel %vm246, %v4257, 0
      %v4295 = vsel %vm246, %v4258, 0
      %v4298 = vsel %vm246, %v4259, 0
      %v4301 = vsel %vm246, %v4260, 0
      %v4304 = vsel %vm246, %v4261, 0
      %v4307 = vsel %vm246, %v4262, 0
      %v4310 = vsel %vm246, %v4263, 0
      %v4313 = vsel %vm1063, %v4143, 0
      %4315 = vmatpush.bf16.msra.mxu0 0
      %4316 = vmatpush.bf16.msra.mxu0 0
      %4317 = vmatpush.bf16.msra.mxu0 0
      %4318 = vmatpush.bf16.msra.mxu0 0
      %4319 = vmatpush.bf16.msra.mxu0 0
      %4320 = vmatpush.bf16.msra.mxu0 0
      %4321 = vmatpush.bf16.msra.mxu0 0
      %4322 = vmatpush.bf16.msra.mxu0 %v4313
      %4323 = vmatmul.bf16.gmra.mxu0 %v4265
      %v4324 = vpop.f32.mrf.mxu0
      %v4325 = vadd.f32 0.0, %v4324
      %v4326 = vpop.f32.mrf.mxu0
      %v4327 = vadd.f32 0.0, %v4326
      %4328 = vmatmul.bf16.gmra.mxu0 %v4268
      %v4329 = vpop.f32.mrf.mxu0
      %v4330 = vadd.f32 0.0, %v4329
      %v4331 = vpop.f32.mrf.mxu0
      %v4332 = vadd.f32 0.0, %v4331
      %4333 = vmatmul.bf16.gmra.mxu0 %v4271
      %v4334 = vpop.f32.mrf.mxu0
      %v4335 = vadd.f32 0.0, %v4334
      %v4336 = vpop.f32.mrf.mxu0
      %v4337 = vadd.f32 0.0, %v4336
      %4338 = vmatmul.bf16.gmra.mxu0 %v4274
      %v4339 = vpop.f32.mrf.mxu0
      %v4340 = vadd.f32 0.0, %v4339
      %v4341 = vpop.f32.mrf.mxu0
      %v4342 = vadd.f32 0.0, %v4341
      %4343 = vmatmul.bf16.gmra.mxu0 %v4277
      %v4344 = vpop.f32.mrf.mxu0
      %v4345 = vadd.f32 0.0, %v4344
      %v4346 = vpop.f32.mrf.mxu0
      %v4347 = vadd.f32 0.0, %v4346
      %4348 = vmatmul.bf16.gmra.mxu0 %v4280
      %v4349 = vpop.f32.mrf.mxu0
      %v4350 = vadd.f32 0.0, %v4349
      %v4351 = vpop.f32.mrf.mxu0
      %v4352 = vadd.f32 0.0, %v4351
      %4353 = vmatmul.bf16.gmra.mxu0 %v4283
      %v4354 = vpop.f32.mrf.mxu0
      %v4355 = vadd.f32 0.0, %v4354
      %v4356 = vpop.f32.mrf.mxu0
      %v4357 = vadd.f32 0.0, %v4356
      %4358 = vmatmul.bf16.gmra.mxu0 %v4286
      %v4359 = vpop.f32.mrf.mxu0
      %v4360 = vadd.f32 0.0, %v4359
      %v4361 = vpop.f32.mrf.mxu0
      %v4362 = vadd.f32 0.0, %v4361
      %4363 = vmatmul.bf16.gmra.mxu0 %v4289
      %v4364 = vpop.f32.mrf.mxu0
      %v4365 = vadd.f32 0.0, %v4364
      %v4366 = vpop.f32.mrf.mxu0
      %v4367 = vadd.f32 0.0, %v4366
      %4368 = vmatmul.bf16.gmra.mxu0 %v4292
      %v4369 = vpop.f32.mrf.mxu0
      %v4370 = vadd.f32 0.0, %v4369
      %v4371 = vpop.f32.mrf.mxu0
      %v4372 = vadd.f32 0.0, %v4371
      %4373 = vmatmul.bf16.gmra.mxu0 %v4295
      %v4374 = vpop.f32.mrf.mxu0
      %v4375 = vadd.f32 0.0, %v4374
      %v4376 = vpop.f32.mrf.mxu0
      %v4377 = vadd.f32 0.0, %v4376
      %4378 = vmatmul.bf16.gmra.mxu0 %v4298
      %v4379 = vpop.f32.mrf.mxu0
      %v4380 = vadd.f32 0.0, %v4379
      %v4381 = vpop.f32.mrf.mxu0
      %v4382 = vadd.f32 0.0, %v4381
      %4383 = vmatmul.bf16.gmra.mxu0 %v4301
      %v4384 = vpop.f32.mrf.mxu0
      %v4385 = vadd.f32 0.0, %v4384
      %v4386 = vpop.f32.mrf.mxu0
      %v4387 = vadd.f32 0.0, %v4386
      %4388 = vmatmul.bf16.gmra.mxu0 %v4304
      %v4389 = vpop.f32.mrf.mxu0
      %v4390 = vadd.f32 0.0, %v4389
      %v4391 = vpop.f32.mrf.mxu0
      %v4392 = vadd.f32 0.0, %v4391
      %4393 = vmatmul.bf16.gmra.mxu0 %v4307
      %v4394 = vpop.f32.mrf.mxu0
      %v4395 = vadd.f32 0.0, %v4394
      %v4396 = vpop.f32.mrf.mxu0
      %v4397 = vadd.f32 0.0, %v4396
      %4398 = vmatmul.bf16.gmra.mxu0 %v4310
      %v4399 = vpop.f32.mrf.mxu0
      %v4400 = vadd.f32 0.0, %v4399
      %v4401 = vpop.f32.mrf.mxu0
      %v4402 = vadd.f32 0.0, %v4401
      %4403 = vdwg.mxu0
      %v4404 = vadd.f32 %v4152, %v4325
      %v4405 = vadd.f32 %v4153, %v4327
      %v4406 = vadd.f32 %v4154, %v4330
      %v4407 = vadd.f32 %v4155, %v4332
      %v4408 = vadd.f32 %v4156, %v4335
      %v4409 = vadd.f32 %v4157, %v4337
      %v4410 = vadd.f32 %v4158, %v4340
      %v4411 = vadd.f32 %v4159, %v4342
      %v4412 = vadd.f32 %v4160, %v4345
      %v4413 = vadd.f32 %v4161, %v4347
      %v4414 = vadd.f32 %v4162, %v4350
      %v4415 = vadd.f32 %v4163, %v4352
      %v4416 = vadd.f32 %v4164, %v4355
      %v4417 = vadd.f32 %v4165, %v4357
      %v4418 = vadd.f32 %v4166, %v4360
      %v4419 = vadd.f32 %v4167, %v4362
      %v4420 = vadd.f32 %v4168, %v4365
      %v4421 = vadd.f32 %v4169, %v4367
      %v4422 = vadd.f32 %v4170, %v4370
      %v4423 = vadd.f32 %v4171, %v4372
      %v4424 = vadd.f32 %v4172, %v4375
      %v4425 = vadd.f32 %v4173, %v4377
      %v4426 = vadd.f32 %v4174, %v4380
      %v4427 = vadd.f32 %v4175, %v4382
      %v4428 = vadd.f32 %v4176, %v4385
      %v4429 = vadd.f32 %v4177, %v4387
      %v4430 = vadd.f32 %v4178, %v4390
      %v4431 = vadd.f32 %v4179, %v4392
      %v4432 = vadd.f32 %v4180, %v4395
      %v4433 = vadd.f32 %v4181, %v4397
      %v4434 = vadd.f32 %v4182, %v4400
      %v4435 = vadd.f32 %v4183, %v4402
      %4436 = vst.msk [vmem:[#allocation4] sm:$0xff] %vm246, %v4404
      %4437 = vst.msk [vmem:[#allocation4 + $0x8] sm:$0xff] %vm246, %v4405
      %4438 = vst.msk [vmem:[#allocation4 + $0x10] sm:$0xff] %vm246, %v4406
      %4439 = vst.msk [vmem:[#allocation4 + $0x18] sm:$0xff] %vm246, %v4407
      %4440 = vst.msk [vmem:[#allocation4 + $0x20] sm:$0xff] %vm246, %v4408
      %4441 = vst.msk [vmem:[#allocation4 + $0x28] sm:$0xff] %vm246, %v4409
      %4442 = vst.msk [vmem:[#allocation4 + $0x30] sm:$0xff] %vm246, %v4410
      %4443 = vst.msk [vmem:[#allocation4 + $0x38] sm:$0xff] %vm246, %v4411
      %4444 = vst.msk [vmem:[#allocation4 + $0x40] sm:$0xff] %vm246, %v4412
      %4445 = vst.msk [vmem:[#allocation4 + $0x48] sm:$0xff] %vm246, %v4413
      %4446 = vst.msk [vmem:[#allocation4 + $0x50] sm:$0xff] %vm246, %v4414
      %4447 = vst.msk [vmem:[#allocation4 + $0x58] sm:$0xff] %vm246, %v4415
      %4448 = vst.msk [vmem:[#allocation4 + $0x60] sm:$0xff] %vm246, %v4416
      %4449 = vst.msk [vmem:[#allocation4 + $0x68] sm:$0xff] %vm246, %v4417
      %4450 = vst.msk [vmem:[#allocation4 + $0x70] sm:$0xff] %vm246, %v4418
      %4451 = vst.msk [vmem:[#allocation4 + $0x78] sm:$0xff] %vm246, %v4419
      %4452 = vst.msk [vmem:[#allocation4 + $0x80] sm:$0xff] %vm246, %v4420
      %4453 = vst.msk [vmem:[#allocation4 + $0x88] sm:$0xff] %vm246, %v4421
      %4454 = vst.msk [vmem:[#allocation4 + $0x90] sm:$0xff] %vm246, %v4422
      %4455 = vst.msk [vmem:[#allocation4 + $0x98] sm:$0xff] %vm246, %v4423
      %4456 = vst.msk [vmem:[#allocation4 + $0xa0] sm:$0xff] %vm246, %v4424
      %4457 = vst.msk [vmem:[#allocation4 + $0xa8] sm:$0xff] %vm246, %v4425
      %4458 = vst.msk [vmem:[#allocation4 + $0xb0] sm:$0xff] %vm246, %v4426
      %4459 = vst.msk [vmem:[#allocation4 + $0xb8] sm:$0xff] %vm246, %v4427
      %4460 = vst.msk [vmem:[#allocation4 + $0xc0] sm:$0xff] %vm246, %v4428
      %4461 = vst.msk [vmem:[#allocation4 + $0xc8] sm:$0xff] %vm246, %v4429
      %4462 = vst.msk [vmem:[#allocation4 + $0xd0] sm:$0xff] %vm246, %v4430
      %4463 = vst.msk [vmem:[#allocation4 + $0xd8] sm:$0xff] %vm246, %v4431
      %4464 = vst.msk [vmem:[#allocation4 + $0xe0] sm:$0xff] %vm246, %v4432
      %4465 = vst.msk [vmem:[#allocation4 + $0xe8] sm:$0xff] %vm246, %v4433
      %4466 = vst.msk [vmem:[#allocation4 + $0xf0] sm:$0xff] %vm246, %v4434
      %4467 = vst.msk [vmem:[#allocation4 + $0xf8] sm:$0xff] %vm246, %v4435
      %v4468 = vld [vmem:[#allocation4] sm:$0xff]
      %v4469 = vld [vmem:[#allocation4 + $0x8] sm:$0xff]
      %v4470 = vld [vmem:[#allocation4 + $0x10] sm:$0xff]
      %v4471 = vld [vmem:[#allocation4 + $0x18] sm:$0xff]
      %v4472 = vld [vmem:[#allocation4 + $0x20] sm:$0xff]
      %v4473 = vld [vmem:[#allocation4 + $0x28] sm:$0xff]
      %v4474 = vld [vmem:[#allocation4 + $0x30] sm:$0xff]
      %v4475 = vld [vmem:[#allocation4 + $0x38] sm:$0xff]
      %v4476 = vld [vmem:[#allocation4 + $0x40] sm:$0xff]
      %v4477 = vld [vmem:[#allocation4 + $0x48] sm:$0xff]
      %v4478 = vld [vmem:[#allocation4 + $0x50] sm:$0xff]
      %v4479 = vld [vmem:[#allocation4 + $0x58] sm:$0xff]
      %v4480 = vld [vmem:[#allocation4 + $0x60] sm:$0xff]
      %v4481 = vld [vmem:[#allocation4 + $0x68] sm:$0xff]
      %v4482 = vld [vmem:[#allocation4 + $0x70] sm:$0xff]
      %v4483 = vld [vmem:[#allocation4 + $0x78] sm:$0xff]
      %v4484 = vld [vmem:[#allocation4 + $0x80] sm:$0xff]
      %v4485 = vld [vmem:[#allocation4 + $0x88] sm:$0xff]
      %v4486 = vld [vmem:[#allocation4 + $0x90] sm:$0xff]
      %v4487 = vld [vmem:[#allocation4 + $0x98] sm:$0xff]
      %v4488 = vld [vmem:[#allocation4 + $0xa0] sm:$0xff]
      %v4489 = vld [vmem:[#allocation4 + $0xa8] sm:$0xff]
      %v4490 = vld [vmem:[#allocation4 + $0xb0] sm:$0xff]
      %v4491 = vld [vmem:[#allocation4 + $0xb8] sm:$0xff]
      %v4492 = vld [vmem:[#allocation4 + $0xc0] sm:$0xff]
      %v4493 = vld [vmem:[#allocation4 + $0xc8] sm:$0xff]
      %v4494 = vld [vmem:[#allocation4 + $0xd0] sm:$0xff]
      %v4495 = vld [vmem:[#allocation4 + $0xd8] sm:$0xff]
      %v4496 = vld [vmem:[#allocation4 + $0xe0] sm:$0xff]
      %v4497 = vld [vmem:[#allocation4 + $0xe8] sm:$0xff]
      %v4498 = vld [vmem:[#allocation4 + $0xf0] sm:$0xff]
      %v4499 = vld [vmem:[#allocation4 + $0xf8] sm:$0xff]
      %v4502 = vunpack.c.l.b16 %v4137
      %v4503 = vunpack.c.l.b16 %v4138
      %v4504 = vpack.c.b16 %v4503, %v4502
      %v4506 = vsel %vm246, %v4504, 0
      %v4509 = vsel %vm1063, %v4146, 0
      %4511 = vmatpush.bf16.msra.mxu0 0
      %4512 = vmatpush.bf16.msra.mxu0 0
      %4513 = vmatpush.bf16.msra.mxu0 0
      %4514 = vmatpush.bf16.msra.mxu0 0
      %4515 = vmatpush.bf16.msra.mxu0 0
      %4516 = vmatpush.bf16.msra.mxu0 0
      %4517 = vmatpush.bf16.msra.mxu0 0
      %4518 = vmatpush.bf16.msra.mxu0 %v4509
      %4519 = vmatmul.bf16.gmra.mxu0 %v4268
      %v4520 = vpop.f32.mrf.mxu0
      %v4521 = vadd.f32 0.0, %v4520
      %v4522 = vpop.f32.mrf.mxu0
      %v4523 = vadd.f32 0.0, %v4522
      %4524 = vmatmul.bf16.gmra.mxu0 %v4271
      %v4525 = vpop.f32.mrf.mxu0
      %v4526 = vadd.f32 0.0, %v4525
      %v4527 = vpop.f32.mrf.mxu0
      %v4528 = vadd.f32 0.0, %v4527
      %4529 = vmatmul.bf16.gmra.mxu0 %v4274
      %v4530 = vpop.f32.mrf.mxu0
      %v4531 = vadd.f32 0.0, %v4530
      %v4532 = vpop.f32.mrf.mxu0
      %v4533 = vadd.f32 0.0, %v4532
      %4534 = vmatmul.bf16.gmra.mxu0 %v4277
      %v4535 = vpop.f32.mrf.mxu0
      %v4536 = vadd.f32 0.0, %v4535
      %v4537 = vpop.f32.mrf.mxu0
      %v4538 = vadd.f32 0.0, %v4537
      %4539 = vmatmul.bf16.gmra.mxu0 %v4280
      %v4540 = vpop.f32.mrf.mxu0
      %v4541 = vadd.f32 0.0, %v4540
      %v4542 = vpop.f32.mrf.mxu0
      %v4543 = vadd.f32 0.0, %v4542
      %4544 = vmatmul.bf16.gmra.mxu0 %v4283
      %v4545 = vpop.f32.mrf.mxu0
      %v4546 = vadd.f32 0.0, %v4545
      %v4547 = vpop.f32.mrf.mxu0
      %v4548 = vadd.f32 0.0, %v4547
      %4549 = vmatmul.bf16.gmra.mxu0 %v4286
      %v4550 = vpop.f32.mrf.mxu0
      %v4551 = vadd.f32 0.0, %v4550
      %v4552 = vpop.f32.mrf.mxu0
      %v4553 = vadd.f32 0.0, %v4552
      %4554 = vmatmul.bf16.gmra.mxu0 %v4289
      %v4555 = vpop.f32.mrf.mxu0
      %v4556 = vadd.f32 0.0, %v4555
      %v4557 = vpop.f32.mrf.mxu0
      %v4558 = vadd.f32 0.0, %v4557
      %4559 = vmatmul.bf16.gmra.mxu0 %v4292
      %v4560 = vpop.f32.mrf.mxu0
      %v4561 = vadd.f32 0.0, %v4560
      %v4562 = vpop.f32.mrf.mxu0
      %v4563 = vadd.f32 0.0, %v4562
      %4564 = vmatmul.bf16.gmra.mxu0 %v4295
      %v4565 = vpop.f32.mrf.mxu0
      %v4566 = vadd.f32 0.0, %v4565
      %v4567 = vpop.f32.mrf.mxu0
      %v4568 = vadd.f32 0.0, %v4567
      %4569 = vmatmul.bf16.gmra.mxu0 %v4298
      %v4570 = vpop.f32.mrf.mxu0
      %v4571 = vadd.f32 0.0, %v4570
      %v4572 = vpop.f32.mrf.mxu0
      %v4573 = vadd.f32 0.0, %v4572
      %4574 = vmatmul.bf16.gmra.mxu0 %v4301
      %v4575 = vpop.f32.mrf.mxu0
      %v4576 = vadd.f32 0.0, %v4575
      %v4577 = vpop.f32.mrf.mxu0
      %v4578 = vadd.f32 0.0, %v4577
      %4579 = vmatmul.bf16.gmra.mxu0 %v4304
      %v4580 = vpop.f32.mrf.mxu0
      %v4581 = vadd.f32 0.0, %v4580
      %v4582 = vpop.f32.mrf.mxu0
      %v4583 = vadd.f32 0.0, %v4582
      %4584 = vmatmul.bf16.gmra.mxu0 %v4307
      %v4585 = vpop.f32.mrf.mxu0
      %v4586 = vadd.f32 0.0, %v4585
      %v4587 = vpop.f32.mrf.mxu0
      %v4588 = vadd.f32 0.0, %v4587
      %4589 = vmatmul.bf16.gmra.mxu0 %v4310
      %v4590 = vpop.f32.mrf.mxu0
      %v4591 = vadd.f32 0.0, %v4590
      %v4592 = vpop.f32.mrf.mxu0
      %v4593 = vadd.f32 0.0, %v4592
      %4594 = vmatmul.bf16.gmra.mxu0 %v4506
      %v4595 = vpop.f32.mrf.mxu0
      %v4596 = vadd.f32 0.0, %v4595
      %v4597 = vpop.f32.mrf.mxu0
      %v4598 = vadd.f32 0.0, %v4597
      %4599 = vdwg.mxu0
      %v4600 = vadd.f32 %v4468, %v4521
      %v4601 = vadd.f32 %v4469, %v4523
      %v4602 = vadd.f32 %v4470, %v4526
      %v4603 = vadd.f32 %v4471, %v4528
      %v4604 = vadd.f32 %v4472, %v4531
      %v4605 = vadd.f32 %v4473, %v4533
      %v4606 = vadd.f32 %v4474, %v4536
      %v4607 = vadd.f32 %v4475, %v4538
      %v4608 = vadd.f32 %v4476, %v4541
      %v4609 = vadd.f32 %v4477, %v4543
      %v4610 = vadd.f32 %v4478, %v4546
      %v4611 = vadd.f32 %v4479, %v4548
      %v4612 = vadd.f32 %v4480, %v4551
      %v4613 = vadd.f32 %v4481, %v4553
      %v4614 = vadd.f32 %v4482, %v4556
      %v4615 = vadd.f32 %v4483, %v4558
      %v4616 = vadd.f32 %v4484, %v4561
      %v4617 = vadd.f32 %v4485, %v4563
      %v4618 = vadd.f32 %v4486, %v4566
      %v4619 = vadd.f32 %v4487, %v4568
      %v4620 = vadd.f32 %v4488, %v4571
      %v4621 = vadd.f32 %v4489, %v4573
      %v4622 = vadd.f32 %v4490, %v4576
      %v4623 = vadd.f32 %v4491, %v4578
      %v4624 = vadd.f32 %v4492, %v4581
      %v4625 = vadd.f32 %v4493, %v4583
      %v4626 = vadd.f32 %v4494, %v4586
      %v4627 = vadd.f32 %v4495, %v4588
      %v4628 = vadd.f32 %v4496, %v4591
      %v4629 = vadd.f32 %v4497, %v4593
      %v4630 = vadd.f32 %v4498, %v4596
      %v4631 = vadd.f32 %v4499, %v4598
      %4632 = vst.msk [vmem:[#allocation4] sm:$0xff] %vm246, %v4600
      %4633 = vst.msk [vmem:[#allocation4 + $0x8] sm:$0xff] %vm246, %v4601
      %4634 = vst.msk [vmem:[#allocation4 + $0x10] sm:$0xff] %vm246, %v4602
      %4635 = vst.msk [vmem:[#allocation4 + $0x18] sm:$0xff] %vm246, %v4603
      %4636 = vst.msk [vmem:[#allocation4 + $0x20] sm:$0xff] %vm246, %v4604
      %4637 = vst.msk [vmem:[#allocation4 + $0x28] sm:$0xff] %vm246, %v4605
      %4638 = vst.msk [vmem:[#allocation4 + $0x30] sm:$0xff] %vm246, %v4606
      %4639 = vst.msk [vmem:[#allocation4 + $0x38] sm:$0xff] %vm246, %v4607
      %4640 = vst.msk [vmem:[#allocation4 + $0x40] sm:$0xff] %vm246, %v4608
      %4641 = vst.msk [vmem:[#allocation4 + $0x48] sm:$0xff] %vm246, %v4609
      %4642 = vst.msk [vmem:[#allocation4 + $0x50] sm:$0xff] %vm246, %v4610
      %4643 = vst.msk [vmem:[#allocation4 + $0x58] sm:$0xff] %vm246, %v4611
      %4644 = vst.msk [vmem:[#allocation4 + $0x60] sm:$0xff] %vm246, %v4612
      %4645 = vst.msk [vmem:[#allocation4 + $0x68] sm:$0xff] %vm246, %v4613
      %4646 = vst.msk [vmem:[#allocation4 + $0x70] sm:$0xff] %vm246, %v4614
      %4647 = vst.msk [vmem:[#allocation4 + $0x78] sm:$0xff] %vm246, %v4615
      %4648 = vst.msk [vmem:[#allocation4 + $0x80] sm:$0xff] %vm246, %v4616
      %4649 = vst.msk [vmem:[#allocation4 + $0x88] sm:$0xff] %vm246, %v4617
      %4650 = vst.msk [vmem:[#allocation4 + $0x90] sm:$0xff] %vm246, %v4618
      %4651 = vst.msk [vmem:[#allocation4 + $0x98] sm:$0xff] %vm246, %v4619
      %4652 = vst.msk [vmem:[#allocation4 + $0xa0] sm:$0xff] %vm246, %v4620
      %4653 = vst.msk [vmem:[#allocation4 + $0xa8] sm:$0xff] %vm246, %v4621
      %4654 = vst.msk [vmem:[#allocation4 + $0xb0] sm:$0xff] %vm246, %v4622
      %4655 = vst.msk [vmem:[#allocation4 + $0xb8] sm:$0xff] %vm246, %v4623
      %4656 = vst.msk [vmem:[#allocation4 + $0xc0] sm:$0xff] %vm246, %v4624
      %4657 = vst.msk [vmem:[#allocation4 + $0xc8] sm:$0xff] %vm246, %v4625
      %4658 = vst.msk [vmem:[#allocation4 + $0xd0] sm:$0xff] %vm246, %v4626
      %4659 = vst.msk [vmem:[#allocation4 + $0xd8] sm:$0xff] %vm246, %v4627
      %4660 = vst.msk [vmem:[#allocation4 + $0xe0] sm:$0xff] %vm246, %v4628
      %4661 = vst.msk [vmem:[#allocation4 + $0xe8] sm:$0xff] %vm246, %v4629
      %4662 = vst.msk [vmem:[#allocation4 + $0xf0] sm:$0xff] %vm246, %v4630
      %4663 = vst.msk [vmem:[#allocation4 + $0xf8] sm:$0xff] %vm246, %v4631
      %v4664 = vld [vmem:[#allocation4] sm:$0xff]
      %v4665 = vld [vmem:[#allocation4 + $0x8] sm:$0xff]
      %v4666 = vld [vmem:[#allocation4 + $0x10] sm:$0xff]
      %v4667 = vld [vmem:[#allocation4 + $0x18] sm:$0xff]
      %v4668 = vld [vmem:[#allocation4 + $0x20] sm:$0xff]
      %v4669 = vld [vmem:[#allocation4 + $0x28] sm:$0xff]
      %v4670 = vld [vmem:[#allocation4 + $0x30] sm:$0xff]
      %v4671 = vld [vmem:[#allocation4 + $0x38] sm:$0xff]
      %v4672 = vld [vmem:[#allocation4 + $0x40] sm:$0xff]
      %v4673 = vld [vmem:[#allocation4 + $0x48] sm:$0xff]
      %v4674 = vld [vmem:[#allocation4 + $0x50] sm:$0xff]
      %v4675 = vld [vmem:[#allocation4 + $0x58] sm:$0xff]
      %v4676 = vld [vmem:[#allocation4 + $0x60] sm:$0xff]
      %v4677 = vld [vmem:[#allocation4 + $0x68] sm:$0xff]
      %v4678 = vld [vmem:[#allocation4 + $0x70] sm:$0xff]
      %v4679 = vld [vmem:[#allocation4 + $0x78] sm:$0xff]
      %v4680 = vld [vmem:[#allocation4 + $0x80] sm:$0xff]
      %v4681 = vld [vmem:[#allocation4 + $0x88] sm:$0xff]
      %v4682 = vld [vmem:[#allocation4 + $0x90] sm:$0xff]
      %v4683 = vld [vmem:[#allocation4 + $0x98] sm:$0xff]
      %v4684 = vld [vmem:[#allocation4 + $0xa0] sm:$0xff]
      %v4685 = vld [vmem:[#allocation4 + $0xa8] sm:$0xff]
      %v4686 = vld [vmem:[#allocation4 + $0xb0] sm:$0xff]
      %v4687 = vld [vmem:[#allocation4 + $0xb8] sm:$0xff]
      %v4688 = vld [vmem:[#allocation4 + $0xc0] sm:$0xff]
      %v4689 = vld [vmem:[#allocation4 + $0xc8] sm:$0xff]
      %v4690 = vld [vmem:[#allocation4 + $0xd0] sm:$0xff]
      %v4691 = vld [vmem:[#allocation4 + $0xd8] sm:$0xff]
      %v4692 = vld [vmem:[#allocation4 + $0xe0] sm:$0xff]
      %v4693 = vld [vmem:[#allocation4 + $0xe8] sm:$0xff]
      %v4694 = vld [vmem:[#allocation4 + $0xf0] sm:$0xff]
      %v4695 = vld [vmem:[#allocation4 + $0xf8] sm:$0xff]
      %v4698 = vunpack.c.l.b16 %v4140
      %v4699 = vunpack.c.l.b16 %v4141
      %v4700 = vpack.c.b16 %v4699, %v4698
      %v4702 = vsel %vm246, %v4700, 0
      %v4705 = vsel %vm1063, %v4149, 0
      %4707 = vmatpush.bf16.msra.mxu0 0
      %4708 = vmatpush.bf16.msra.mxu0 0
      %4709 = vmatpush.bf16.msra.mxu0 0
      %4710 = vmatpush.bf16.msra.mxu0 0
      %4711 = vmatpush.bf16.msra.mxu0 0
      %4712 = vmatpush.bf16.msra.mxu0 0
      %4713 = vmatpush.bf16.msra.mxu0 0
      %4714 = vmatpush.bf16.msra.mxu0 %v4705
      %4715 = vmatmul.bf16.gmra.mxu0 %v4271
      %v4716 = vpop.f32.mrf.mxu0
      %v4717 = vadd.f32 0.0, %v4716
      %v4718 = vpop.f32.mrf.mxu0
      %v4719 = vadd.f32 0.0, %v4718
      %4720 = vmatmul.bf16.gmra.mxu0 %v4274
      %v4721 = vpop.f32.mrf.mxu0
      %v4722 = vadd.f32 0.0, %v4721
      %v4723 = vpop.f32.mrf.mxu0
      %v4724 = vadd.f32 0.0, %v4723
      %4725 = vmatmul.bf16.gmra.mxu0 %v4277
      %v4726 = vpop.f32.mrf.mxu0
      %v4727 = vadd.f32 0.0, %v4726
      %v4728 = vpop.f32.mrf.mxu0
      %v4729 = vadd.f32 0.0, %v4728
      %4730 = vmatmul.bf16.gmra.mxu0 %v4280
      %v4731 = vpop.f32.mrf.mxu0
      %v4732 = vadd.f32 0.0, %v4731
      %v4733 = vpop.f32.mrf.mxu0
      %v4734 = vadd.f32 0.0, %v4733
      %4735 = vmatmul.bf16.gmra.mxu0 %v4283
      %v4736 = vpop.f32.mrf.mxu0
      %v4737 = vadd.f32 0.0, %v4736
      %v4738 = vpop.f32.mrf.mxu0
      %v4739 = vadd.f32 0.0, %v4738
      %4740 = vmatmul.bf16.gmra.mxu0 %v4286
      %v4741 = vpop.f32.mrf.mxu0
      %v4742 = vadd.f32 0.0, %v4741
      %v4743 = vpop.f32.mrf.mxu0
      %v4744 = vadd.f32 0.0, %v4743
      %4745 = vmatmul.bf16.gmra.mxu0 %v4289
      %v4746 = vpop.f32.mrf.mxu0
      %v4747 = vadd.f32 0.0, %v4746
      %v4748 = vpop.f32.mrf.mxu0
      %v4749 = vadd.f32 0.0, %v4748
      %4750 = vmatmul.bf16.gmra.mxu0 %v4292
      %v4751 = vpop.f32.mrf.mxu0
      %v4752 = vadd.f32 0.0, %v4751
      %v4753 = vpop.f32.mrf.mxu0
      %v4754 = vadd.f32 0.0, %v4753
      %4755 = vmatmul.bf16.gmra.mxu0 %v4295
      %v4756 = vpop.f32.mrf.mxu0
      %v4757 = vadd.f32 0.0, %v4756
      %v4758 = vpop.f32.mrf.mxu0
      %v4759 = vadd.f32 0.0, %v4758
      %4760 = vmatmul.bf16.gmra.mxu0 %v4298
      %v4761 = vpop.f32.mrf.mxu0
      %v4762 = vadd.f32 0.0, %v4761
      %v4763 = vpop.f32.mrf.mxu0
      %v4764 = vadd.f32 0.0, %v4763
      %4765 = vmatmul.bf16.gmra.mxu0 %v4301
      %v4766 = vpop.f32.mrf.mxu0
      %v4767 = vadd.f32 0.0, %v4766
      %v4768 = vpop.f32.mrf.mxu0
      %v4769 = vadd.f32 0.0, %v4768
      %4770 = vmatmul.bf16.gmra.mxu0 %v4304
      %v4771 = vpop.f32.mrf.mxu0
      %v4772 = vadd.f32 0.0, %v4771
      %v4773 = vpop.f32.mrf.mxu0
      %v4774 = vadd.f32 0.0, %v4773
      %4775 = vmatmul.bf16.gmra.mxu0 %v4307
      %v4776 = vpop.f32.mrf.mxu0
      %v4777 = vadd.f32 0.0, %v4776
      %v4778 = vpop.f32.mrf.mxu0
      %v4779 = vadd.f32 0.0, %v4778
      %4780 = vmatmul.bf16.gmra.mxu0 %v4310
      %v4781 = vpop.f32.mrf.mxu0
      %v4782 = vadd.f32 0.0, %v4781
      %v4783 = vpop.f32.mrf.mxu0
      %v4784 = vadd.f32 0.0, %v4783
      %4785 = vmatmul.bf16.gmra.mxu0 %v4506
      %v4786 = vpop.f32.mrf.mxu0
      %v4787 = vadd.f32 0.0, %v4786
      %v4788 = vpop.f32.mrf.mxu0
      %v4789 = vadd.f32 0.0, %v4788
      %4790 = vmatmul.bf16.gmra.mxu0 %v4702
      %v4791 = vpop.f32.mrf.mxu0
      %v4792 = vadd.f32 0.0, %v4791
      %v4793 = vpop.f32.mrf.mxu0
      %v4794 = vadd.f32 0.0, %v4793
      %4795 = vdwg.mxu0
      %v4796 = vadd.f32 %v4664, %v4717
      %v4797 = vadd.f32 %v4665, %v4719
      %v4798 = vadd.f32 %v4666, %v4722
      %v4799 = vadd.f32 %v4667, %v4724
      %v4800 = vadd.f32 %v4668, %v4727
      %v4801 = vadd.f32 %v4669, %v4729
      %v4802 = vadd.f32 %v4670, %v4732
      %v4803 = vadd.f32 %v4671, %v4734
      %v4804 = vadd.f32 %v4672, %v4737
      %v4805 = vadd.f32 %v4673, %v4739
      %v4806 = vadd.f32 %v4674, %v4742
      %v4807 = vadd.f32 %v4675, %v4744
      %v4808 = vadd.f32 %v4676, %v4747
      %v4809 = vadd.f32 %v4677, %v4749
      %v4810 = vadd.f32 %v4678, %v4752
      %v4811 = vadd.f32 %v4679, %v4754
      %v4812 = vadd.f32 %v4680, %v4757
      %v4813 = vadd.f32 %v4681, %v4759
      %v4814 = vadd.f32 %v4682, %v4762
      %v4815 = vadd.f32 %v4683, %v4764
      %v4816 = vadd.f32 %v4684, %v4767
      %v4817 = vadd.f32 %v4685, %v4769
      %v4818 = vadd.f32 %v4686, %v4772
      %v4819 = vadd.f32 %v4687, %v4774
      %v4820 = vadd.f32 %v4688, %v4777
      %v4821 = vadd.f32 %v4689, %v4779
      %v4822 = vadd.f32 %v4690, %v4782
      %v4823 = vadd.f32 %v4691, %v4784
      %v4824 = vadd.f32 %v4692, %v4787
      %v4825 = vadd.f32 %v4693, %v4789
      %v4826 = vadd.f32 %v4694, %v4792
      %v4827 = vadd.f32 %v4695, %v4794
      %4828 = vst.msk [vmem:[#allocation4] sm:$0xff] %vm246, %v4796
      %4829 = vst.msk [vmem:[#allocation4 + $0x8] sm:$0xff] %vm246, %v4797
      %4830 = vst.msk [vmem:[#allocation4 + $0x10] sm:$0xff] %vm246, %v4798
      %4831 = vst.msk [vmem:[#allocation4 + $0x18] sm:$0xff] %vm246, %v4799
      %4832 = vst.msk [vmem:[#allocation4 + $0x20] sm:$0xff] %vm246, %v4800
      %4833 = vst.msk [vmem:[#allocation4 + $0x28] sm:$0xff] %vm246, %v4801
      %4834 = vst.msk [vmem:[#allocation4 + $0x30] sm:$0xff] %vm246, %v4802
      %4835 = vst.msk [vmem:[#allocation4 + $0x38] sm:$0xff] %vm246, %v4803
      %4836 = vst.msk [vmem:[#allocation4 + $0x40] sm:$0xff] %vm246, %v4804
      %4837 = vst.msk [vmem:[#allocation4 + $0x48] sm:$0xff] %vm246, %v4805
      %4838 = vst.msk [vmem:[#allocation4 + $0x50] sm:$0xff] %vm246, %v4806
      %4839 = vst.msk [vmem:[#allocation4 + $0x58] sm:$0xff] %vm246, %v4807
      %4840 = vst.msk [vmem:[#allocation4 + $0x60] sm:$0xff] %vm246, %v4808
      %4841 = vst.msk [vmem:[#allocation4 + $0x68] sm:$0xff] %vm246, %v4809
      %4842 = vst.msk [vmem:[#allocation4 + $0x70] sm:$0xff] %vm246, %v4810
      %4843 = vst.msk [vmem:[#allocation4 + $0x78] sm:$0xff] %vm246, %v4811
      %4844 = vst.msk [vmem:[#allocation4 + $0x80] sm:$0xff] %vm246, %v4812
      %4845 = vst.msk [vmem:[#allocation4 + $0x88] sm:$0xff] %vm246, %v4813
      %4846 = vst.msk [vmem:[#allocation4 + $0x90] sm:$0xff] %vm246, %v4814
      %4847 = vst.msk [vmem:[#allocation4 + $0x98] sm:$0xff] %vm246, %v4815
      %4848 = vst.msk [vmem:[#allocation4 + $0xa0] sm:$0xff] %vm246, %v4816
      %4849 = vst.msk [vmem:[#allocation4 + $0xa8] sm:$0xff] %vm246, %v4817
      %4850 = vst.msk [vmem:[#allocation4 + $0xb0] sm:$0xff] %vm246, %v4818
      %4851 = vst.msk [vmem:[#allocation4 + $0xb8] sm:$0xff] %vm246, %v4819
      %4852 = vst.msk [vmem:[#allocation4 + $0xc0] sm:$0xff] %vm246, %v4820
      %4853 = vst.msk [vmem:[#allocation4 + $0xc8] sm:$0xff] %vm246, %v4821
      %4854 = vst.msk [vmem:[#allocation4 + $0xd0] sm:$0xff] %vm246, %v4822
      %4855 = vst.msk [vmem:[#allocation4 + $0xd8] sm:$0xff] %vm246, %v4823
      %4856 = vst.msk [vmem:[#allocation4 + $0xe0] sm:$0xff] %vm246, %v4824
      %4857 = vst.msk [vmem:[#allocation4 + $0xe8] sm:$0xff] %vm246, %v4825
      %4858 = vst.msk [vmem:[#allocation4 + $0xf0] sm:$0xff] %vm246, %v4826
      %4859 = vst.msk [vmem:[#allocation4 + $0xf8] sm:$0xff] %vm246, %v4827
      %v4860 = vld [vmem:[#allocation4] sm:$0xff]
      %v4861 = vld [vmem:[#allocation4 + $0x8] sm:$0xff]
      %v4862 = vld [vmem:[#allocation4 + $0x10] sm:$0xff]
      %v4863 = vld [vmem:[#allocation4 + $0x18] sm:$0xff]
      %v4864 = vld [vmem:[#allocation4 + $0x20] sm:$0xff]
      %v4865 = vld [vmem:[#allocation4 + $0x28] sm:$0xff]
      %v4866 = vld [vmem:[#allocation4 + $0x30] sm:$0xff]
      %v4867 = vld [vmem:[#allocation4 + $0x38] sm:$0xff]
      %v4868 = vld [vmem:[#allocation4 + $0x40] sm:$0xff]
      %v4869 = vld [vmem:[#allocation4 + $0x48] sm:$0xff]
      %v4870 = vld [vmem:[#allocation4 + $0x50] sm:$0xff]
      %v4871 = vld [vmem:[#allocation4 + $0x58] sm:$0xff]
      %v4872 = vld [vmem:[#allocation4 + $0x60] sm:$0xff]
      %v4873 = vld [vmem:[#allocation4 + $0x68] sm:$0xff]
      %v4874 = vld [vmem:[#allocation4 + $0x70] sm:$0xff]
      %v4875 = vld [vmem:[#allocation4 + $0x78] sm:$0xff]
      %v4876 = vld [vmem:[#allocation4 + $0x80] sm:$0xff]
      %v4877 = vld [vmem:[#allocation4 + $0x88] sm:$0xff]
      %v4878 = vld [vmem:[#allocation4 + $0x90] sm:$0xff]
      %v4879 = vld [vmem:[#allocation4 + $0x98] sm:$0xff]
      %v4880 = vld [vmem:[#allocation4 + $0xa0] sm:$0xff]
      %v4881 = vld [vmem:[#allocation4 + $0xa8] sm:$0xff]
      %v4882 = vld [vmem:[#allocation4 + $0xb0] sm:$0xff]
      %v4883 = vld [vmem:[#allocation4 + $0xb8] sm:$0xff]
      %v4884 = vld [vmem:[#allocation4 + $0xc0] sm:$0xff]
      %v4885 = vld [vmem:[#allocation4 + $0xc8] sm:$0xff]
      %v4886 = vld [vmem:[#allocation4 + $0xd0] sm:$0xff]
      %v4887 = vld [vmem:[#allocation4 + $0xd8] sm:$0xff]
      %v4888 = vld [vmem:[#allocation4 + $0xe0] sm:$0xff]
      %v4889 = vld [vmem:[#allocation4 + $0xe8] sm:$0xff]
      %v4890 = vld [vmem:[#allocation4 + $0xf0] sm:$0xff]
      %v4891 = vld [vmem:[#allocation4 + $0xf8] sm:$0xff]
      %v4893 = vshrl.u32 %v4089, 16
      %v4895 = vrot.slane %v4893, 4
      %v4896 = vshll.u32 %v4089, 16
      %v4898 = vrot.slane %v4896, 5
      %v4899 = vor.u32 %v4895, %v4898
      %v4900 = vrot.slane %v4899, 4
      %v4902 = vshll.u32 %v4090, 16
      %v4904 = vrot.slane %v4902, 5
      %v4905 = vsel %vm1646, %v4900, %v4904
      %v4906 = vshrl.u32 %v4090, 16
      %v4908 = vrot.slane %v4906, 4
      %v4909 = vor.u32 %v4908, %v4904
      %v4910 = vrot.slane %v4909, 4
      %v4912 = vshll.u32 %v4091, 16
      %v4914 = vrot.slane %v4912, 5
      %v4915 = vsel %vm1646, %v4910, %v4914
      %v4917 = vshrl.u32 %v4092, 16
      %v4919 = vrot.slane %v4917, 4
      %v4920 = vshll.u32 %v4092, 16
      %v4922 = vrot.slane %v4920, 5
      %v4923 = vor.u32 %v4919, %v4922
      %v4924 = vrot.slane %v4923, 4
      %v4926 = vshll.u32 %v4093, 16
      %v4928 = vrot.slane %v4926, 5
      %v4929 = vsel %vm1646, %v4924, %v4928
      %v4930 = vshrl.u32 %v4093, 16
      %v4932 = vrot.slane %v4930, 4
      %v4933 = vor.u32 %v4932, %v4928
      %v4934 = vrot.slane %v4933, 4
      %v4936 = vshll.u32 %v4094, 16
      %v4938 = vrot.slane %v4936, 5
      %v4939 = vsel %vm1646, %v4934, %v4938
      %v4941 = vshrl.u32 %v4095, 16
      %v4943 = vrot.slane %v4941, 4
      %v4944 = vshll.u32 %v4095, 16
      %v4946 = vrot.slane %v4944, 5
      %v4947 = vor.u32 %v4943, %v4946
      %v4948 = vrot.slane %v4947, 4
      %v4950 = vshll.u32 %v4096, 16
      %v4952 = vrot.slane %v4950, 5
      %v4953 = vsel %vm1646, %v4948, %v4952
      %v4954 = vshrl.u32 %v4096, 16
      %v4956 = vrot.slane %v4954, 4
      %v4957 = vor.u32 %v4956, %v4952
      %v4958 = vrot.slane %v4957, 4
      %v4960 = vshll.u32 %v4097, 16
      %v4962 = vrot.slane %v4960, 5
      %v4963 = vsel %vm1646, %v4958, %v4962
      %v4965 = vshrl.u32 %v4098, 16
      %v4967 = vrot.slane %v4965, 4
      %v4968 = vshll.u32 %v4098, 16
      %v4970 = vrot.slane %v4968, 5
      %v4971 = vor.u32 %v4967, %v4970
      %v4972 = vrot.slane %v4971, 4
      %v4974 = vshll.u32 %v4099, 16
      %v4976 = vrot.slane %v4974, 5
      %v4977 = vsel %vm1646, %v4972, %v4976
      %v4978 = vshrl.u32 %v4099, 16
      %v4980 = vrot.slane %v4978, 4
      %v4981 = vor.u32 %v4980, %v4976
      %v4982 = vrot.slane %v4981, 4
      %v4984 = vshll.u32 %v4100, 16
      %v4986 = vrot.slane %v4984, 5
      %v4987 = vsel %vm1646, %v4982, %v4986
      %v4989 = vshrl.u32 %v4101, 16
      %v4991 = vrot.slane %v4989, 4
      %v4992 = vshll.u32 %v4101, 16
      %v4994 = vrot.slane %v4992, 5
      %v4995 = vor.u32 %v4991, %v4994
      %v4996 = vrot.slane %v4995, 4
      %v4998 = vshll.u32 %v4102, 16
      %v5000 = vrot.slane %v4998, 5
      %v5001 = vsel %vm1646, %v4996, %v5000
      %v5002 = vshrl.u32 %v4102, 16
      %v5004 = vrot.slane %v5002, 4
      %v5005 = vor.u32 %v5004, %v5000
      %v5006 = vrot.slane %v5005, 4
      %v5008 = vshll.u32 %v4103, 16
      %v5010 = vrot.slane %v5008, 5
      %v5011 = vsel %vm1646, %v5006, %v5010
      %v5013 = vshrl.u32 %v4104, 16
      %v5015 = vrot.slane %v5013, 4
      %v5016 = vshll.u32 %v4104, 16
      %v5018 = vrot.slane %v5016, 5
      %v5019 = vor.u32 %v5015, %v5018
      %v5020 = vrot.slane %v5019, 4
      %v5022 = vshll.u32 %v4105, 16
      %v5024 = vrot.slane %v5022, 5
      %v5025 = vsel %vm1646, %v5020, %v5024
      %v5026 = vshrl.u32 %v4105, 16
      %v5028 = vrot.slane %v5026, 4
      %v5029 = vor.u32 %v5028, %v5024
      %v5030 = vrot.slane %v5029, 4
      %v5032 = vshll.u32 %v4106, 16
      %v5034 = vrot.slane %v5032, 5
      %v5035 = vsel %vm1646, %v5030, %v5034
      %v5037 = vshrl.u32 %v4107, 16
      %v5039 = vrot.slane %v5037, 4
      %v5040 = vshll.u32 %v4107, 16
      %v5042 = vrot.slane %v5040, 5
      %v5043 = vor.u32 %v5039, %v5042
      %v5044 = vrot.slane %v5043, 4
      %v5046 = vshll.u32 %v4108, 16
      %v5048 = vrot.slane %v5046, 5
      %v5049 = vsel %vm1646, %v5044, %v5048
      %v5050 = vshrl.u32 %v4108, 16
      %v5052 = vrot.slane %v5050, 4
      %v5053 = vor.u32 %v5052, %v5048
      %v5054 = vrot.slane %v5053, 4
      %v5056 = vshll.u32 %v4109, 16
      %v5058 = vrot.slane %v5056, 5
      %v5059 = vsel %vm1646, %v5054, %v5058
      %v5061 = vshrl.u32 %v4110, 16
      %v5063 = vrot.slane %v5061, 4
      %v5064 = vshll.u32 %v4110, 16
      %v5066 = vrot.slane %v5064, 5
      %v5067 = vor.u32 %v5063, %v5066
      %v5068 = vrot.slane %v5067, 4
      %v5070 = vshll.u32 %v4111, 16
      %v5072 = vrot.slane %v5070, 5
      %v5073 = vsel %vm1646, %v5068, %v5072
      %v5074 = vshrl.u32 %v4111, 16
      %v5076 = vrot.slane %v5074, 4
      %v5077 = vor.u32 %v5076, %v5072
      %v5078 = vrot.slane %v5077, 4
      %v5080 = vshll.u32 %v4112, 16
      %v5082 = vrot.slane %v5080, 5
      %v5083 = vsel %vm1646, %v5078, %v5082
      %v5085 = vshrl.u32 %v4113, 16
      %v5087 = vrot.slane %v5085, 4
      %v5088 = vshll.u32 %v4113, 16
      %v5090 = vrot.slane %v5088, 5
      %v5091 = vor.u32 %v5087, %v5090
      %v5092 = vrot.slane %v5091, 4
      %v5094 = vshll.u32 %v4114, 16
      %v5096 = vrot.slane %v5094, 5
      %v5097 = vsel %vm1646, %v5092, %v5096
      %v5098 = vshrl.u32 %v4114, 16
      %v5100 = vrot.slane %v5098, 4
      %v5101 = vor.u32 %v5100, %v5096
      %v5102 = vrot.slane %v5101, 4
      %v5104 = vshll.u32 %v4115, 16
      %v5106 = vrot.slane %v5104, 5
      %v5107 = vsel %vm1646, %v5102, %v5106
      %v5109 = vshrl.u32 %v4116, 16
      %v5111 = vrot.slane %v5109, 4
      %v5112 = vshll.u32 %v4116, 16
      %v5114 = vrot.slane %v5112, 5
      %v5115 = vor.u32 %v5111, %v5114
      %v5116 = vrot.slane %v5115, 4
      %v5118 = vshll.u32 %v4117, 16
      %v5120 = vrot.slane %v5118, 5
      %v5121 = vsel %vm1646, %v5116, %v5120
      %v5122 = vshrl.u32 %v4117, 16
      %v5124 = vrot.slane %v5122, 4
      %v5125 = vor.u32 %v5124, %v5120
      %v5126 = vrot.slane %v5125, 4
      %v5128 = vshll.u32 %v4118, 16
      %v5130 = vrot.slane %v5128, 5
      %v5131 = vsel %vm1646, %v5126, %v5130
      %v5133 = vshrl.u32 %v4119, 16
      %v5135 = vrot.slane %v5133, 4
      %v5136 = vshll.u32 %v4119, 16
      %v5138 = vrot.slane %v5136, 5
      %v5139 = vor.u32 %v5135, %v5138
      %v5140 = vrot.slane %v5139, 4
      %v5142 = vshll.u32 %v4120, 16
      %v5144 = vrot.slane %v5142, 5
      %v5145 = vsel %vm1646, %v5140, %v5144
      %v5146 = vshrl.u32 %v4120, 16
      %v5148 = vrot.slane %v5146, 4
      %v5149 = vor.u32 %v5148, %v5144
      %v5150 = vrot.slane %v5149, 4
      %v5152 = vshll.u32 %v4121, 16
      %v5154 = vrot.slane %v5152, 5
      %v5155 = vsel %vm1646, %v5150, %v5154
      %v5157 = vshrl.u32 %v4122, 16
      %v5159 = vrot.slane %v5157, 4
      %v5160 = vshll.u32 %v4122, 16
      %v5162 = vrot.slane %v5160, 5
      %v5163 = vor.u32 %v5159, %v5162
      %v5164 = vrot.slane %v5163, 4
      %v5166 = vshll.u32 %v4123, 16
      %v5168 = vrot.slane %v5166, 5
      %v5169 = vsel %vm1646, %v5164, %v5168
      %v5170 = vshrl.u32 %v4123, 16
      %v5172 = vrot.slane %v5170, 4
      %v5173 = vor.u32 %v5172, %v5168
      %v5174 = vrot.slane %v5173, 4
      %v5176 = vshll.u32 %v4124, 16
      %v5178 = vrot.slane %v5176, 5
      %v5179 = vsel %vm1646, %v5174, %v5178
      %v5181 = vshrl.u32 %v4125, 16
      %v5183 = vrot.slane %v5181, 4
      %v5184 = vshll.u32 %v4125, 16
      %v5186 = vrot.slane %v5184, 5
      %v5187 = vor.u32 %v5183, %v5186
      %v5188 = vrot.slane %v5187, 4
      %v5190 = vshll.u32 %v4126, 16
      %v5192 = vrot.slane %v5190, 5
      %v5193 = vsel %vm1646, %v5188, %v5192
      %v5194 = vshrl.u32 %v4126, 16
      %v5196 = vrot.slane %v5194, 4
      %v5197 = vor.u32 %v5196, %v5192
      %v5198 = vrot.slane %v5197, 4
      %v5200 = vshll.u32 %v4127, 16
      %v5202 = vrot.slane %v5200, 5
      %v5203 = vsel %vm1646, %v5198, %v5202
      %v5205 = vshrl.u32 %v4128, 16
      %v5207 = vrot.slane %v5205, 4
      %v5208 = vshll.u32 %v4128, 16
      %v5210 = vrot.slane %v5208, 5
      %v5211 = vor.u32 %v5207, %v5210
      %v5212 = vrot.slane %v5211, 4
      %v5214 = vshll.u32 %v4129, 16
      %v5216 = vrot.slane %v5214, 5
      %v5217 = vsel %vm1646, %v5212, %v5216
      %v5218 = vshrl.u32 %v4129, 16
      %v5220 = vrot.slane %v5218, 4
      %v5221 = vor.u32 %v5220, %v5216
      %v5222 = vrot.slane %v5221, 4
      %v5224 = vshll.u32 %v4130, 16
      %v5226 = vrot.slane %v5224, 5
      %v5227 = vsel %vm1646, %v5222, %v5226
      %v5229 = vshrl.u32 %v4131, 16
      %v5231 = vrot.slane %v5229, 4
      %v5232 = vshll.u32 %v4131, 16
      %v5234 = vrot.slane %v5232, 5
      %v5235 = vor.u32 %v5231, %v5234
      %v5236 = vrot.slane %v5235, 4
      %v5238 = vshll.u32 %v4132, 16
      %v5240 = vrot.slane %v5238, 5
      %v5241 = vsel %vm1646, %v5236, %v5240
      %v5242 = vshrl.u32 %v4132, 16
      %v5244 = vrot.slane %v5242, 4
      %v5245 = vor.u32 %v5244, %v5240
      %v5246 = vrot.slane %v5245, 4
      %v5248 = vshll.u32 %v4133, 16
      %v5250 = vrot.slane %v5248, 5
      %v5251 = vsel %vm1646, %v5246, %v5250
      %v5253 = vshrl.u32 %v4134, 16
      %v5255 = vrot.slane %v5253, 4
      %v5256 = vshll.u32 %v4134, 16
      %v5258 = vrot.slane %v5256, 5
      %v5259 = vor.u32 %v5255, %v5258
      %v5260 = vrot.slane %v5259, 4
      %v5262 = vshll.u32 %v4135, 16
      %v5264 = vrot.slane %v5262, 5
      %v5265 = vsel %vm1646, %v5260, %v5264
      %v5266 = vshrl.u32 %v4135, 16
      %v5268 = vrot.slane %v5266, 4
      %v5269 = vor.u32 %v5268, %v5264
      %v5270 = vrot.slane %v5269, 4
      %v5272 = vshll.u32 %v4136, 16
      %v5274 = vrot.slane %v5272, 5
      %v5275 = vsel %vm1646, %v5270, %v5274
      %v5276 = vunpack.c.l.b16 %v4905
      %v5277 = vunpack.c.l.b16 %v4915
      %v5278 = vunpack.c.l.b16 %v4929
      %v5279 = vunpack.c.l.b16 %v4939
      %v5280 = vunpack.c.l.b16 %v4953
      %v5281 = vunpack.c.l.b16 %v4963
      %v5282 = vunpack.c.l.b16 %v4977
      %v5283 = vunpack.c.l.b16 %v4987
      %v5284 = vunpack.c.l.b16 %v5001
      %v5285 = vunpack.c.l.b16 %v5011
      %v5286 = vunpack.c.l.b16 %v5025
      %v5287 = vunpack.c.l.b16 %v5035
      %v5288 = vunpack.c.l.b16 %v5049
      %v5289 = vunpack.c.l.b16 %v5059
      %v5290 = vunpack.c.l.b16 %v5073
      %v5291 = vunpack.c.l.b16 %v5083
      %v5292 = vunpack.c.l.b16 %v5097
      %v5293 = vunpack.c.l.b16 %v5107
      %v5294 = vunpack.c.l.b16 %v5121
      %v5295 = vunpack.c.l.b16 %v5131
      %v5296 = vunpack.c.l.b16 %v5145
      %v5297 = vunpack.c.l.b16 %v5155
      %v5298 = vunpack.c.l.b16 %v5169
      %v5299 = vunpack.c.l.b16 %v5179
      %v5300 = vunpack.c.l.b16 %v5193
      %v5301 = vunpack.c.l.b16 %v5203
      %v5302 = vunpack.c.l.b16 %v5217
      %v5303 = vunpack.c.l.b16 %v5227
      %v5304 = vunpack.c.l.b16 %v5241
      %v5305 = vunpack.c.l.b16 %v5251
      %v5306 = vunpack.c.l.b16 %v5265
      %v5307 = vunpack.c.l.b16 %v5275
      %v5308 = vpack.c.b16 %v5277, %v5276
      %v5309 = vpack.c.b16 %v5279, %v5278
      %v5310 = vpack.c.b16 %v5281, %v5280
      %v5311 = vpack.c.b16 %v5283, %v5282
      %v5312 = vpack.c.b16 %v5285, %v5284
      %v5313 = vpack.c.b16 %v5287, %v5286
      %v5314 = vpack.c.b16 %v5289, %v5288
      %v5315 = vpack.c.b16 %v5291, %v5290
      %v5316 = vpack.c.b16 %v5293, %v5292
      %v5317 = vpack.c.b16 %v5295, %v5294
      %v5318 = vpack.c.b16 %v5297, %v5296
      %v5319 = vpack.c.b16 %v5299, %v5298
      %v5320 = vpack.c.b16 %v5301, %v5300
      %v5321 = vpack.c.b16 %v5303, %v5302
      %v5322 = vpack.c.b16 %v5305, %v5304
      %v5323 = vpack.c.b16 %v5307, %v5306
      %v5325 = vsel %vm246, %v5308, 0
      %v5328 = vsel %vm246, %v5309, 0
      %v5331 = vsel %vm246, %v5310, 0
      %v5334 = vsel %vm246, %v5311, 0
      %v5337 = vsel %vm246, %v5312, 0
      %v5340 = vsel %vm246, %v5313, 0
      %v5343 = vsel %vm246, %v5314, 0
      %v5346 = vsel %vm246, %v5315, 0
      %v5349 = vsel %vm246, %v5316, 0
      %v5352 = vsel %vm246, %v5317, 0
      %v5355 = vsel %vm246, %v5318, 0
      %v5358 = vsel %vm246, %v5319, 0
      %v5361 = vsel %vm246, %v5320, 0
      %v5364 = vsel %vm246, %v5321, 0
      %v5367 = vsel %vm246, %v5322, 0
      %v5370 = vsel %vm246, %v5323, 0
      %v5373 = vsel %vm1063, %v4144, 0
      %5375 = vmatpush.bf16.msra.mxu0 0
      %5376 = vmatpush.bf16.msra.mxu0 0
      %5377 = vmatpush.bf16.msra.mxu0 0
      %5378 = vmatpush.bf16.msra.mxu0 0
      %5379 = vmatpush.bf16.msra.mxu0 0
      %5380 = vmatpush.bf16.msra.mxu0 0
      %5381 = vmatpush.bf16.msra.mxu0 0
      %5382 = vmatpush.bf16.msra.mxu0 %v5373
      %5383 = vmatmul.bf16.gmra.mxu0 %v5325
      %v5384 = vpop.f32.mrf.mxu0
      %v5385 = vadd.f32 0.0, %v5384
      %v5386 = vpop.f32.mrf.mxu0
      %v5387 = vadd.f32 0.0, %v5386
      %5388 = vmatmul.bf16.gmra.mxu0 %v5328
      %v5389 = vpop.f32.mrf.mxu0
      %v5390 = vadd.f32 0.0, %v5389
      %v5391 = vpop.f32.mrf.mxu0
      %v5392 = vadd.f32 0.0, %v5391
      %5393 = vmatmul.bf16.gmra.mxu0 %v5331
      %v5394 = vpop.f32.mrf.mxu0
      %v5395 = vadd.f32 0.0, %v5394
      %v5396 = vpop.f32.mrf.mxu0
      %v5397 = vadd.f32 0.0, %v5396
      %5398 = vmatmul.bf16.gmra.mxu0 %v5334
      %v5399 = vpop.f32.mrf.mxu0
      %v5400 = vadd.f32 0.0, %v5399
      %v5401 = vpop.f32.mrf.mxu0
      %v5402 = vadd.f32 0.0, %v5401
      %5403 = vmatmul.bf16.gmra.mxu0 %v5337
      %v5404 = vpop.f32.mrf.mxu0
      %v5405 = vadd.f32 0.0, %v5404
      %v5406 = vpop.f32.mrf.mxu0
      %v5407 = vadd.f32 0.0, %v5406
      %5408 = vmatmul.bf16.gmra.mxu0 %v5340
      %v5409 = vpop.f32.mrf.mxu0
      %v5410 = vadd.f32 0.0, %v5409
      %v5411 = vpop.f32.mrf.mxu0
      %v5412 = vadd.f32 0.0, %v5411
      %5413 = vmatmul.bf16.gmra.mxu0 %v5343
      %v5414 = vpop.f32.mrf.mxu0
      %v5415 = vadd.f32 0.0, %v5414
      %v5416 = vpop.f32.mrf.mxu0
      %v5417 = vadd.f32 0.0, %v5416
      %5418 = vmatmul.bf16.gmra.mxu0 %v5346
      %v5419 = vpop.f32.mrf.mxu0
      %v5420 = vadd.f32 0.0, %v5419
      %v5421 = vpop.f32.mrf.mxu0
      %v5422 = vadd.f32 0.0, %v5421
      %5423 = vmatmul.bf16.gmra.mxu0 %v5349
      %v5424 = vpop.f32.mrf.mxu0
      %v5425 = vadd.f32 0.0, %v5424
      %v5426 = vpop.f32.mrf.mxu0
      %v5427 = vadd.f32 0.0, %v5426
      %5428 = vmatmul.bf16.gmra.mxu0 %v5352
      %v5429 = vpop.f32.mrf.mxu0
      %v5430 = vadd.f32 0.0, %v5429
      %v5431 = vpop.f32.mrf.mxu0
      %v5432 = vadd.f32 0.0, %v5431
      %5433 = vmatmul.bf16.gmra.mxu0 %v5355
      %v5434 = vpop.f32.mrf.mxu0
      %v5435 = vadd.f32 0.0, %v5434
      %v5436 = vpop.f32.mrf.mxu0
      %v5437 = vadd.f32 0.0, %v5436
      %5438 = vmatmul.bf16.gmra.mxu0 %v5358
      %v5439 = vpop.f32.mrf.mxu0
      %v5440 = vadd.f32 0.0, %v5439
      %v5441 = vpop.f32.mrf.mxu0
      %v5442 = vadd.f32 0.0, %v5441
      %5443 = vmatmul.bf16.gmra.mxu0 %v5361
      %v5444 = vpop.f32.mrf.mxu0
      %v5445 = vadd.f32 0.0, %v5444
      %v5446 = vpop.f32.mrf.mxu0
      %v5447 = vadd.f32 0.0, %v5446
      %5448 = vmatmul.bf16.gmra.mxu0 %v5364
      %v5449 = vpop.f32.mrf.mxu0
      %v5450 = vadd.f32 0.0, %v5449
      %v5451 = vpop.f32.mrf.mxu0
      %v5452 = vadd.f32 0.0, %v5451
      %5453 = vmatmul.bf16.gmra.mxu0 %v5367
      %v5454 = vpop.f32.mrf.mxu0
      %v5455 = vadd.f32 0.0, %v5454
      %v5456 = vpop.f32.mrf.mxu0
      %v5457 = vadd.f32 0.0, %v5456
      %5458 = vmatmul.bf16.gmra.mxu0 %v5370
      %v5459 = vpop.f32.mrf.mxu0
      %v5460 = vadd.f32 0.0, %v5459
      %v5461 = vpop.f32.mrf.mxu0
      %v5462 = vadd.f32 0.0, %v5461
      %5463 = vdwg.mxu0
      %v5464 = vadd.f32 %v4860, %v5385
      %v5465 = vadd.f32 %v4861, %v5387
      %v5466 = vadd.f32 %v4862, %v5390
      %v5467 = vadd.f32 %v4863, %v5392
      %v5468 = vadd.f32 %v4864, %v5395
      %v5469 = vadd.f32 %v4865, %v5397
      %v5470 = vadd.f32 %v4866, %v5400
      %v5471 = vadd.f32 %v4867, %v5402
      %v5472 = vadd.f32 %v4868, %v5405
      %v5473 = vadd.f32 %v4869, %v5407
      %v5474 = vadd.f32 %v4870, %v5410
      %v5475 = vadd.f32 %v4871, %v5412
      %v5476 = vadd.f32 %v4872, %v5415
      %v5477 = vadd.f32 %v4873, %v5417
      %v5478 = vadd.f32 %v4874, %v5420
      %v5479 = vadd.f32 %v4875, %v5422
      %v5480 = vadd.f32 %v4876, %v5425
      %v5481 = vadd.f32 %v4877, %v5427
      %v5482 = vadd.f32 %v4878, %v5430
      %v5483 = vadd.f32 %v4879, %v5432
      %v5484 = vadd.f32 %v4880, %v5435
      %v5485 = vadd.f32 %v4881, %v5437
      %v5486 = vadd.f32 %v4882, %v5440
      %v5487 = vadd.f32 %v4883, %v5442
      %v5488 = vadd.f32 %v4884, %v5445
      %v5489 = vadd.f32 %v4885, %v5447
      %v5490 = vadd.f32 %v4886, %v5450
      %v5491 = vadd.f32 %v4887, %v5452
      %v5492 = vadd.f32 %v4888, %v5455
      %v5493 = vadd.f32 %v4889, %v5457
      %v5494 = vadd.f32 %v4890, %v5460
      %v5495 = vadd.f32 %v4891, %v5462
      %5496 = vst.msk [vmem:[#allocation4] sm:$0xff] %vm246, %v5464
      %5497 = vst.msk [vmem:[#allocation4 + $0x8] sm:$0xff] %vm246, %v5465
      %5498 = vst.msk [vmem:[#allocation4 + $0x10] sm:$0xff] %vm246, %v5466
      %5499 = vst.msk [vmem:[#allocation4 + $0x18] sm:$0xff] %vm246, %v5467
      %5500 = vst.msk [vmem:[#allocation4 + $0x20] sm:$0xff] %vm246, %v5468
      %5501 = vst.msk [vmem:[#allocation4 + $0x28] sm:$0xff] %vm246, %v5469
      %5502 = vst.msk [vmem:[#allocation4 + $0x30] sm:$0xff] %vm246, %v5470
      %5503 = vst.msk [vmem:[#allocation4 + $0x38] sm:$0xff] %vm246, %v5471
      %5504 = vst.msk [vmem:[#allocation4 + $0x40] sm:$0xff] %vm246, %v5472
      %5505 = vst.msk [vmem:[#allocation4 + $0x48] sm:$0xff] %vm246, %v5473
      %5506 = vst.msk [vmem:[#allocation4 + $0x50] sm:$0xff] %vm246, %v5474
      %5507 = vst.msk [vmem:[#allocation4 + $0x58] sm:$0xff] %vm246, %v5475
      %5508 = vst.msk [vmem:[#allocation4 + $0x60] sm:$0xff] %vm246, %v5476
      %5509 = vst.msk [vmem:[#allocation4 + $0x68] sm:$0xff] %vm246, %v5477
      %5510 = vst.msk [vmem:[#allocation4 + $0x70] sm:$0xff] %vm246, %v5478
      %5511 = vst.msk [vmem:[#allocation4 + $0x78] sm:$0xff] %vm246, %v5479
      %5512 = vst.msk [vmem:[#allocation4 + $0x80] sm:$0xff] %vm246, %v5480
      %5513 = vst.msk [vmem:[#allocation4 + $0x88] sm:$0xff] %vm246, %v5481
      %5514 = vst.msk [vmem:[#allocation4 + $0x90] sm:$0xff] %vm246, %v5482
      %5515 = vst.msk [vmem:[#allocation4 + $0x98] sm:$0xff] %vm246, %v5483
      %5516 = vst.msk [vmem:[#allocation4 + $0xa0] sm:$0xff] %vm246, %v5484
      %5517 = vst.msk [vmem:[#allocation4 + $0xa8] sm:$0xff] %vm246, %v5485
      %5518 = vst.msk [vmem:[#allocation4 + $0xb0] sm:$0xff] %vm246, %v5486
      %5519 = vst.msk [vmem:[#allocation4 + $0xb8] sm:$0xff] %vm246, %v5487
      %5520 = vst.msk [vmem:[#allocation4 + $0xc0] sm:$0xff] %vm246, %v5488
      %5521 = vst.msk [vmem:[#allocation4 + $0xc8] sm:$0xff] %vm246, %v5489
      %5522 = vst.msk [vmem:[#allocation4 + $0xd0] sm:$0xff] %vm246, %v5490
      %5523 = vst.msk [vmem:[#allocation4 + $0xd8] sm:$0xff] %vm246, %v5491
      %5524 = vst.msk [vmem:[#allocation4 + $0xe0] sm:$0xff] %vm246, %v5492
      %5525 = vst.msk [vmem:[#allocation4 + $0xe8] sm:$0xff] %vm246, %v5493
      %5526 = vst.msk [vmem:[#allocation4 + $0xf0] sm:$0xff] %vm246, %v5494
      %5527 = vst.msk [vmem:[#allocation4 + $0xf8] sm:$0xff] %vm246, %v5495
      %v5528 = vld [vmem:[#allocation4] sm:$0xff]
      %v5529 = vld [vmem:[#allocation4 + $0x8] sm:$0xff]
      %v5530 = vld [vmem:[#allocation4 + $0x10] sm:$0xff]
      %v5531 = vld [vmem:[#allocation4 + $0x18] sm:$0xff]
      %v5532 = vld [vmem:[#allocation4 + $0x20] sm:$0xff]
      %v5533 = vld [vmem:[#allocation4 + $0x28] sm:$0xff]
      %v5534 = vld [vmem:[#allocation4 + $0x30] sm:$0xff]
      %v5535 = vld [vmem:[#allocation4 + $0x38] sm:$0xff]
      %v5536 = vld [vmem:[#allocation4 + $0x40] sm:$0xff]
      %v5537 = vld [vmem:[#allocation4 + $0x48] sm:$0xff]
      %v5538 = vld [vmem:[#allocation4 + $0x50] sm:$0xff]
      %v5539 = vld [vmem:[#allocation4 + $0x58] sm:$0xff]
      %v5540 = vld [vmem:[#allocation4 + $0x60] sm:$0xff]
      %v5541 = vld [vmem:[#allocation4 + $0x68] sm:$0xff]
      %v5542 = vld [vmem:[#allocation4 + $0x70] sm:$0xff]
      %v5543 = vld [vmem:[#allocation4 + $0x78] sm:$0xff]
      %v5544 = vld [vmem:[#allocation4 + $0x80] sm:$0xff]
      %v5545 = vld [vmem:[#allocation4 + $0x88] sm:$0xff]
      %v5546 = vld [vmem:[#allocation4 + $0x90] sm:$0xff]
      %v5547 = vld [vmem:[#allocation4 + $0x98] sm:$0xff]
      %v5548 = vld [vmem:[#allocation4 + $0xa0] sm:$0xff]
      %v5549 = vld [vmem:[#allocation4 + $0xa8] sm:$0xff]
      %v5550 = vld [vmem:[#allocation4 + $0xb0] sm:$0xff]
      %v5551 = vld [vmem:[#allocation4 + $0xb8] sm:$0xff]
      %v5552 = vld [vmem:[#allocation4 + $0xc0] sm:$0xff]
      %v5553 = vld [vmem:[#allocation4 + $0xc8] sm:$0xff]
      %v5554 = vld [vmem:[#allocation4 + $0xd0] sm:$0xff]
      %v5555 = vld [vmem:[#allocation4 + $0xd8] sm:$0xff]
      %v5556 = vld [vmem:[#allocation4 + $0xe0] sm:$0xff]
      %v5557 = vld [vmem:[#allocation4 + $0xe8] sm:$0xff]
      %v5558 = vld [vmem:[#allocation4 + $0xf0] sm:$0xff]
      %v5559 = vld [vmem:[#allocation4 + $0xf8] sm:$0xff]
      %v5561 = vshrl.u32 %v4137, 16
      %v5563 = vrot.slane %v5561, 4
      %v5564 = vshll.u32 %v4137, 16
      %v5566 = vrot.slane %v5564, 5
      %v5567 = vor.u32 %v5563, %v5566
      %v5568 = vrot.slane %v5567, 4
      %v5570 = vshll.u32 %v4138, 16
      %v5572 = vrot.slane %v5570, 5
      %v5573 = vsel %vm1646, %v5568, %v5572
      %v5574 = vshrl.u32 %v4138, 16
      %v5576 = vrot.slane %v5574, 4
      %v5577 = vor.u32 %v5576, %v5572
      %v5578 = vrot.slane %v5577, 4
      %v5580 = vshll.u32 %v4139, 16
      %v5582 = vrot.slane %v5580, 5
      %v5583 = vsel %vm1646, %v5578, %v5582
      %v5584 = vunpack.c.l.b16 %v5573
      %v5585 = vunpack.c.l.b16 %v5583
      %v5586 = vpack.c.b16 %v5585, %v5584
      %v5588 = vsel %vm246, %v5586, 0
      %v5591 = vsel %vm1063, %v4147, 0
      %5593 = vmatpush.bf16.msra.mxu0 0
      %5594 = vmatpush.bf16.msra.mxu0 0
      %5595 = vmatpush.bf16.msra.mxu0 0
      %5596 = vmatpush.bf16.msra.mxu0 0
      %5597 = vmatpush.bf16.msra.mxu0 0
      %5598 = vmatpush.bf16.msra.mxu0 0
      %5599 = vmatpush.bf16.msra.mxu0 0
      %5600 = vmatpush.bf16.msra.mxu0 %v5591
      %5601 = vmatmul.bf16.gmra.mxu0 %v5328
      %v5602 = vpop.f32.mrf.mxu0
      %v5603 = vadd.f32 0.0, %v5602
      %v5604 = vpop.f32.mrf.mxu0
      %v5605 = vadd.f32 0.0, %v5604
      %5606 = vmatmul.bf16.gmra.mxu0 %v5331
      %v5607 = vpop.f32.mrf.mxu0
      %v5608 = vadd.f32 0.0, %v5607
      %v5609 = vpop.f32.mrf.mxu0
      %v5610 = vadd.f32 0.0, %v5609
      %5611 = vmatmul.bf16.gmra.mxu0 %v5334
      %v5612 = vpop.f32.mrf.mxu0
      %v5613 = vadd.f32 0.0, %v5612
      %v5614 = vpop.f32.mrf.mxu0
      %v5615 = vadd.f32 0.0, %v5614
      %5616 = vmatmul.bf16.gmra.mxu0 %v5337
      %v5617 = vpop.f32.mrf.mxu0
      %v5618 = vadd.f32 0.0, %v5617
      %v5619 = vpop.f32.mrf.mxu0
      %v5620 = vadd.f32 0.0, %v5619
      %5621 = vmatmul.bf16.gmra.mxu0 %v5340
      %v5622 = vpop.f32.mrf.mxu0
      %v5623 = vadd.f32 0.0, %v5622
      %v5624 = vpop.f32.mrf.mxu0
      %v5625 = vadd.f32 0.0, %v5624
      %5626 = vmatmul.bf16.gmra.mxu0 %v5343
      %v5627 = vpop.f32.mrf.mxu0
      %v5628 = vadd.f32 0.0, %v5627
      %v5629 = vpop.f32.mrf.mxu0
      %v5630 = vadd.f32 0.0, %v5629
      %5631 = vmatmul.bf16.gmra.mxu0 %v5346
      %v5632 = vpop.f32.mrf.mxu0
      %v5633 = vadd.f32 0.0, %v5632
      %v5634 = vpop.f32.mrf.mxu0
      %v5635 = vadd.f32 0.0, %v5634
      %5636 = vmatmul.bf16.gmra.mxu0 %v5349
      %v5637 = vpop.f32.mrf.mxu0
      %v5638 = vadd.f32 0.0, %v5637
      %v5639 = vpop.f32.mrf.mxu0
      %v5640 = vadd.f32 0.0, %v5639
      %5641 = vmatmul.bf16.gmra.mxu0 %v5352
      %v5642 = vpop.f32.mrf.mxu0
      %v5643 = vadd.f32 0.0, %v5642
      %v5644 = vpop.f32.mrf.mxu0
      %v5645 = vadd.f32 0.0, %v5644
      %5646 = vmatmul.bf16.gmra.mxu0 %v5355
      %v5647 = vpop.f32.mrf.mxu0
      %v5648 = vadd.f32 0.0, %v5647
      %v5649 = vpop.f32.mrf.mxu0
      %v5650 = vadd.f32 0.0, %v5649
      %5651 = vmatmul.bf16.gmra.mxu0 %v5358
      %v5652 = vpop.f32.mrf.mxu0
      %v5653 = vadd.f32 0.0, %v5652
      %v5654 = vpop.f32.mrf.mxu0
      %v5655 = vadd.f32 0.0, %v5654
      %5656 = vmatmul.bf16.gmra.mxu0 %v5361
      %v5657 = vpop.f32.mrf.mxu0
      %v5658 = vadd.f32 0.0, %v5657
      %v5659 = vpop.f32.mrf.mxu0
      %v5660 = vadd.f32 0.0, %v5659
      %5661 = vmatmul.bf16.gmra.mxu0 %v5364
      %v5662 = vpop.f32.mrf.mxu0
      %v5663 = vadd.f32 0.0, %v5662
      %v5664 = vpop.f32.mrf.mxu0
      %v5665 = vadd.f32 0.0, %v5664
      %5666 = vmatmul.bf16.gmra.mxu0 %v5367
      %v5667 = vpop.f32.mrf.mxu0
      %v5668 = vadd.f32 0.0, %v5667
      %v5669 = vpop.f32.mrf.mxu0
      %v5670 = vadd.f32 0.0, %v5669
      %5671 = vmatmul.bf16.gmra.mxu0 %v5370
      %v5672 = vpop.f32.mrf.mxu0
      %v5673 = vadd.f32 0.0, %v5672
      %v5674 = vpop.f32.mrf.mxu0
      %v5675 = vadd.f32 0.0, %v5674
      %5676 = vmatmul.bf16.gmra.mxu0 %v5588
      %v5677 = vpop.f32.mrf.mxu0
      %v5678 = vadd.f32 0.0, %v5677
      %v5679 = vpop.f32.mrf.mxu0
      %v5680 = vadd.f32 0.0, %v5679
      %5681 = vdwg.mxu0
      %v5682 = vadd.f32 %v5528, %v5603
      %v5683 = vadd.f32 %v5529, %v5605
      %v5684 = vadd.f32 %v5530, %v5608
      %v5685 = vadd.f32 %v5531, %v5610
      %v5686 = vadd.f32 %v5532, %v5613
      %v5687 = vadd.f32 %v5533, %v5615
      %v5688 = vadd.f32 %v5534, %v5618
      %v5689 = vadd.f32 %v5535, %v5620
      %v5690 = vadd.f32 %v5536, %v5623
      %v5691 = vadd.f32 %v5537, %v5625
      %v5692 = vadd.f32 %v5538, %v5628
      %v5693 = vadd.f32 %v5539, %v5630
      %v5694 = vadd.f32 %v5540, %v5633
      %v5695 = vadd.f32 %v5541, %v5635
      %v5696 = vadd.f32 %v5542, %v5638
      %v5697 = vadd.f32 %v5543, %v5640
      %v5698 = vadd.f32 %v5544, %v5643
      %v5699 = vadd.f32 %v5545, %v5645
      %v5700 = vadd.f32 %v5546, %v5648
      %v5701 = vadd.f32 %v5547, %v5650
      %v5702 = vadd.f32 %v5548, %v5653
      %v5703 = vadd.f32 %v5549, %v5655
      %v5704 = vadd.f32 %v5550, %v5658
      %v5705 = vadd.f32 %v5551, %v5660
      %v5706 = vadd.f32 %v5552, %v5663
      %v5707 = vadd.f32 %v5553, %v5665
      %v5708 = vadd.f32 %v5554, %v5668
      %v5709 = vadd.f32 %v5555, %v5670
      %v5710 = vadd.f32 %v5556, %v5673
      %v5711 = vadd.f32 %v5557, %v5675
      %v5712 = vadd.f32 %v5558, %v5678
      %v5713 = vadd.f32 %v5559, %v5680
      %5714 = vst.msk [vmem:[#allocation4] sm:$0xff] %vm246, %v5682
      %5715 = vst.msk [vmem:[#allocation4 + $0x8] sm:$0xff] %vm246, %v5683
      %5716 = vst.msk [vmem:[#allocation4 + $0x10] sm:$0xff] %vm246, %v5684
      %5717 = vst.msk [vmem:[#allocation4 + $0x18] sm:$0xff] %vm246, %v5685
      %5718 = vst.msk [vmem:[#allocation4 + $0x20] sm:$0xff] %vm246, %v5686
      %5719 = vst.msk [vmem:[#allocation4 + $0x28] sm:$0xff] %vm246, %v5687
      %5720 = vst.msk [vmem:[#allocation4 + $0x30] sm:$0xff] %vm246, %v5688
      %5721 = vst.msk [vmem:[#allocation4 + $0x38] sm:$0xff] %vm246, %v5689
      %5722 = vst.msk [vmem:[#allocation4 + $0x40] sm:$0xff] %vm246, %v5690
      %5723 = vst.msk [vmem:[#allocation4 + $0x48] sm:$0xff] %vm246, %v5691
      %5724 = vst.msk [vmem:[#allocation4 + $0x50] sm:$0xff] %vm246, %v5692
      %5725 = vst.msk [vmem:[#allocation4 + $0x58] sm:$0xff] %vm246, %v5693
      %5726 = vst.msk [vmem:[#allocation4 + $0x60] sm:$0xff] %vm246, %v5694
      %5727 = vst.msk [vmem:[#allocation4 + $0x68] sm:$0xff] %vm246, %v5695
      %5728 = vst.msk [vmem:[#allocation4 + $0x70] sm:$0xff] %vm246, %v5696
      %5729 = vst.msk [vmem:[#allocation4 + $0x78] sm:$0xff] %vm246, %v5697
      %5730 = vst.msk [vmem:[#allocation4 + $0x80] sm:$0xff] %vm246, %v5698
      %5731 = vst.msk [vmem:[#allocation4 + $0x88] sm:$0xff] %vm246, %v5699
      %5732 = vst.msk [vmem:[#allocation4 + $0x90] sm:$0xff] %vm246, %v5700
      %5733 = vst.msk [vmem:[#allocation4 + $0x98] sm:$0xff] %vm246, %v5701
      %5734 = vst.msk [vmem:[#allocation4 + $0xa0] sm:$0xff] %vm246, %v5702
      %5735 = vst.msk [vmem:[#allocation4 + $0xa8] sm:$0xff] %vm246, %v5703
      %5736 = vst.msk [vmem:[#allocation4 + $0xb0] sm:$0xff] %vm246, %v5704
      %5737 = vst.msk [vmem:[#allocation4 + $0xb8] sm:$0xff] %vm246, %v5705
      %5738 = vst.msk [vmem:[#allocation4 + $0xc0] sm:$0xff] %vm246, %v5706
      %5739 = vst.msk [vmem:[#allocation4 + $0xc8] sm:$0xff] %vm246, %v5707
      %5740 = vst.msk [vmem:[#allocation4 + $0xd0] sm:$0xff] %vm246, %v5708
      %5741 = vst.msk [vmem:[#allocation4 + $0xd8] sm:$0xff] %vm246, %v5709
      %5742 = vst.msk [vmem:[#allocation4 + $0xe0] sm:$0xff] %vm246, %v5710
      %5743 = vst.msk [vmem:[#allocation4 + $0xe8] sm:$0xff] %vm246, %v5711
      %5744 = vst.msk [vmem:[#allocation4 + $0xf0] sm:$0xff] %vm246, %v5712
      %5745 = vst.msk [vmem:[#allocation4 + $0xf8] sm:$0xff] %vm246, %v5713
      %v5746 = vld [vmem:[#allocation4] sm:$0xff]
      %v5747 = vld [vmem:[#allocation4 + $0x8] sm:$0xff]
      %v5748 = vld [vmem:[#allocation4 + $0x10] sm:$0xff]
      %v5749 = vld [vmem:[#allocation4 + $0x18] sm:$0xff]
      %v5750 = vld [vmem:[#allocation4 + $0x20] sm:$0xff]
      %v5751 = vld [vmem:[#allocation4 + $0x28] sm:$0xff]
      %v5752 = vld [vmem:[#allocation4 + $0x30] sm:$0xff]
      %v5753 = vld [vmem:[#allocation4 + $0x38] sm:$0xff]
      %v5754 = vld [vmem:[#allocation4 + $0x40] sm:$0xff]
      %v5755 = vld [vmem:[#allocation4 + $0x48] sm:$0xff]
      %v5756 = vld [vmem:[#allocation4 + $0x50] sm:$0xff]
      %v5757 = vld [vmem:[#allocation4 + $0x58] sm:$0xff]
      %v5758 = vld [vmem:[#allocation4 + $0x60] sm:$0xff]
      %v5759 = vld [vmem:[#allocation4 + $0x68] sm:$0xff]
      %v5760 = vld [vmem:[#allocation4 + $0x70] sm:$0xff]
      %v5761 = vld [vmem:[#allocation4 + $0x78] sm:$0xff]
      %v5762 = vld [vmem:[#allocation4 + $0x80] sm:$0xff]
      %v5763 = vld [vmem:[#allocation4 + $0x88] sm:$0xff]
      %v5764 = vld [vmem:[#allocation4 + $0x90] sm:$0xff]
      %v5765 = vld [vmem:[#allocation4 + $0x98] sm:$0xff]
      %v5766 = vld [vmem:[#allocation4 + $0xa0] sm:$0xff]
      %v5767 = vld [vmem:[#allocation4 + $0xa8] sm:$0xff]
      %v5768 = vld [vmem:[#allocation4 + $0xb0] sm:$0xff]
      %v5769 = vld [vmem:[#allocation4 + $0xb8] sm:$0xff]
      %v5770 = vld [vmem:[#allocation4 + $0xc0] sm:$0xff]
      %v5771 = vld [vmem:[#allocation4 + $0xc8] sm:$0xff]
      %v5772 = vld [vmem:[#allocation4 + $0xd0] sm:$0xff]
      %v5773 = vld [vmem:[#allocation4 + $0xd8] sm:$0xff]
      %v5774 = vld [vmem:[#allocation4 + $0xe0] sm:$0xff]
      %v5775 = vld [vmem:[#allocation4 + $0xe8] sm:$0xff]
      %v5776 = vld [vmem:[#allocation4 + $0xf0] sm:$0xff]
      %v5777 = vld [vmem:[#allocation4 + $0xf8] sm:$0xff]
      %v5779 = vshrl.u32 %v4140, 16
      %v5781 = vrot.slane %v5779, 4
      %v5782 = vshll.u32 %v4140, 16
      %v5784 = vrot.slane %v5782, 5
      %v5785 = vor.u32 %v5781, %v5784
      %v5786 = vrot.slane %v5785, 4
      %v5788 = vshll.u32 %v4141, 16
      %v5790 = vrot.slane %v5788, 5
      %v5791 = vsel %vm1646, %v5786, %v5790
      %v5792 = vshrl.u32 %v4141, 16
      %v5794 = vrot.slane %v5792, 4
      %v5795 = vor.u32 %v5794, %v5790
      %v5796 = vrot.slane %v5795, 4
      %v5798 = vshll.u32 %v4142, 16
      %v5800 = vrot.slane %v5798, 5
      %v5801 = vsel %vm1646, %v5796, %v5800
      %v5802 = vunpack.c.l.b16 %v5791
      %v5803 = vunpack.c.l.b16 %v5801
      %v5804 = vpack.c.b16 %v5803, %v5802
      %v5806 = vsel %vm246, %v5804, 0
      %v5809 = vsel %vm1063, %v4150, 0
      %5811 = vmatpush.bf16.msra.mxu0 0
      %5812 = vmatpush.bf16.msra.mxu0 0
      %5813 = vmatpush.bf16.msra.mxu0 0
      %5814 = vmatpush.bf16.msra.mxu0 0
      %5815 = vmatpush.bf16.msra.mxu0 0
      %5816 = vmatpush.bf16.msra.mxu0 0
      %5817 = vmatpush.bf16.msra.mxu0 0
      %5818 = vmatpush.bf16.msra.mxu0 %v5809
      %5819 = vmatmul.bf16.gmra.mxu0 %v5331
      %v5820 = vpop.f32.mrf.mxu0
      %v5821 = vadd.f32 0.0, %v5820
      %v5822 = vpop.f32.mrf.mxu0
      %v5823 = vadd.f32 0.0, %v5822
      %5824 = vmatmul.bf16.gmra.mxu0 %v5334
      %v5825 = vpop.f32.mrf.mxu0
      %v5826 = vadd.f32 0.0, %v5825
      %v5827 = vpop.f32.mrf.mxu0
      %v5828 = vadd.f32 0.0, %v5827
      %5829 = vmatmul.bf16.gmra.mxu0 %v5337
      %v5830 = vpop.f32.mrf.mxu0
      %v5831 = vadd.f32 0.0, %v5830
      %v5832 = vpop.f32.mrf.mxu0
      %v5833 = vadd.f32 0.0, %v5832
      %5834 = vmatmul.bf16.gmra.mxu0 %v5340
      %v5835 = vpop.f32.mrf.mxu0
      %v5836 = vadd.f32 0.0, %v5835
      %v5837 = vpop.f32.mrf.mxu0
      %v5838 = vadd.f32 0.0, %v5837
      %5839 = vmatmul.bf16.gmra.mxu0 %v5343
      %v5840 = vpop.f32.mrf.mxu0
      %v5841 = vadd.f32 0.0, %v5840
      %v5842 = vpop.f32.mrf.mxu0
      %v5843 = vadd.f32 0.0, %v5842
      %5844 = vmatmul.bf16.gmra.mxu0 %v5346
      %v5845 = vpop.f32.mrf.mxu0
      %v5846 = vadd.f32 0.0, %v5845
      %v5847 = vpop.f32.mrf.mxu0
      %v5848 = vadd.f32 0.0, %v5847
      %5849 = vmatmul.bf16.gmra.mxu0 %v5349
      %v5850 = vpop.f32.mrf.mxu0
      %v5851 = vadd.f32 0.0, %v5850
      %v5852 = vpop.f32.mrf.mxu0
      %v5853 = vadd.f32 0.0, %v5852
      %5854 = vmatmul.bf16.gmra.mxu0 %v5352
      %v5855 = vpop.f32.mrf.mxu0
      %v5856 = vadd.f32 0.0, %v5855
      %v5857 = vpop.f32.mrf.mxu0
      %v5858 = vadd.f32 0.0, %v5857
      %5859 = vmatmul.bf16.gmra.mxu0 %v5355
      %v5860 = vpop.f32.mrf.mxu0
      %v5861 = vadd.f32 0.0, %v5860
      %v5862 = vpop.f32.mrf.mxu0
      %v5863 = vadd.f32 0.0, %v5862
      %5864 = vmatmul.bf16.gmra.mxu0 %v5358
      %v5865 = vpop.f32.mrf.mxu0
      %v5866 = vadd.f32 0.0, %v5865
      %v5867 = vpop.f32.mrf.mxu0
      %v5868 = vadd.f32 0.0, %v5867
      %5869 = vmatmul.bf16.gmra.mxu0 %v5361
      %v5870 = vpop.f32.mrf.mxu0
      %v5871 = vadd.f32 0.0, %v5870
      %v5872 = vpop.f32.mrf.mxu0
      %v5873 = vadd.f32 0.0, %v5872
      %5874 = vmatmul.bf16.gmra.mxu0 %v5364
      %v5875 = vpop.f32.mrf.mxu0
      %v5876 = vadd.f32 0.0, %v5875
      %v5877 = vpop.f32.mrf.mxu0
      %v5878 = vadd.f32 0.0, %v5877
      %5879 = vmatmul.bf16.gmra.mxu0 %v5367
      %v5880 = vpop.f32.mrf.mxu0
      %v5881 = vadd.f32 0.0, %v5880
      %v5882 = vpop.f32.mrf.mxu0
      %v5883 = vadd.f32 0.0, %v5882
      %5884 = vmatmul.bf16.gmra.mxu0 %v5370
      %v5885 = vpop.f32.mrf.mxu0
      %v5886 = vadd.f32 0.0, %v5885
      %v5887 = vpop.f32.mrf.mxu0
      %v5888 = vadd.f32 0.0, %v5887
      %5889 = vmatmul.bf16.gmra.mxu0 %v5588
      %v5890 = vpop.f32.mrf.mxu0
      %v5891 = vadd.f32 0.0, %v5890
      %v5892 = vpop.f32.mrf.mxu0
      %v5893 = vadd.f32 0.0, %v5892
      %5894 = vmatmul.bf16.gmra.mxu0 %v5806
      %v5895 = vpop.f32.mrf.mxu0
      %v5896 = vadd.f32 0.0, %v5895
      %v5897 = vpop.f32.mrf.mxu0
      %v5898 = vadd.f32 0.0, %v5897
      %5899 = vdwg.mxu0
      %v5900 = vadd.f32 %v5746, %v5821
      %v5901 = vadd.f32 %v5747, %v5823
      %v5902 = vadd.f32 %v5748, %v5826
      %v5903 = vadd.f32 %v5749, %v5828
      %v5904 = vadd.f32 %v5750, %v5831
      %v5905 = vadd.f32 %v5751, %v5833
      %v5906 = vadd.f32 %v5752, %v5836
      %v5907 = vadd.f32 %v5753, %v5838
      %v5908 = vadd.f32 %v5754, %v5841
      %v5909 = vadd.f32 %v5755, %v5843
      %v5910 = vadd.f32 %v5756, %v5846
      %v5911 = vadd.f32 %v5757, %v5848
      %v5912 = vadd.f32 %v5758, %v5851
      %v5913 = vadd.f32 %v5759, %v5853
      %v5914 = vadd.f32 %v5760, %v5856
      %v5915 = vadd.f32 %v5761, %v5858
      %v5916 = vadd.f32 %v5762, %v5861
      %v5917 = vadd.f32 %v5763, %v5863
      %v5918 = vadd.f32 %v5764, %v5866
      %v5919 = vadd.f32 %v5765, %v5868
      %v5920 = vadd.f32 %v5766, %v5871
      %v5921 = vadd.f32 %v5767, %v5873
      %v5922 = vadd.f32 %v5768, %v5876
      %v5923 = vadd.f32 %v5769, %v5878
      %v5924 = vadd.f32 %v5770, %v5881
      %v5925 = vadd.f32 %v5771, %v5883
      %v5926 = vadd.f32 %v5772, %v5886
      %v5927 = vadd.f32 %v5773, %v5888
      %v5928 = vadd.f32 %v5774, %v5891
      %v5929 = vadd.f32 %v5775, %v5893
      %v5930 = vadd.f32 %v5776, %v5896
      %v5931 = vadd.f32 %v5777, %v5898
      %5932 = vst.msk [vmem:[#allocation4] sm:$0xff] %vm246, %v5900
      %5933 = vst.msk [vmem:[#allocation4 + $0x8] sm:$0xff] %vm246, %v5901
      %5934 = vst.msk [vmem:[#allocation4 + $0x10] sm:$0xff] %vm246, %v5902
      %5935 = vst.msk [vmem:[#allocation4 + $0x18] sm:$0xff] %vm246, %v5903
      %5936 = vst.msk [vmem:[#allocation4 + $0x20] sm:$0xff] %vm246, %v5904
      %5937 = vst.msk [vmem:[#allocation4 + $0x28] sm:$0xff] %vm246, %v5905
      %5938 = vst.msk [vmem:[#allocation4 + $0x30] sm:$0xff] %vm246, %v5906
      %5939 = vst.msk [vmem:[#allocation4 + $0x38] sm:$0xff] %vm246, %v5907
      %5940 = vst.msk [vmem:[#allocation4 + $0x40] sm:$0xff] %vm246, %v5908
      %5941 = vst.msk [vmem:[#allocation4 + $0x48] sm:$0xff] %vm246, %v5909
      %5942 = vst.msk [vmem:[#allocation4 + $0x50] sm:$0xff] %vm246, %v5910
      %5943 = vst.msk [vmem:[#allocation4 + $0x58] sm:$0xff] %vm246, %v5911
      %5944 = vst.msk [vmem:[#allocation4 + $0x60] sm:$0xff] %vm246, %v5912
      %5945 = vst.msk [vmem:[#allocation4 + $0x68] sm:$0xff] %vm246, %v5913
      %5946 = vst.msk [vmem:[#allocation4 + $0x70] sm:$0xff] %vm246, %v5914
      %5947 = vst.msk [vmem:[#allocation4 + $0x78] sm:$0xff] %vm246, %v5915
      %5948 = vst.msk [vmem:[#allocation4 + $0x80] sm:$0xff] %vm246, %v5916
      %5949 = vst.msk [vmem:[#allocation4 + $0x88] sm:$0xff] %vm246, %v5917
      %5950 = vst.msk [vmem:[#allocation4 + $0x90] sm:$0xff] %vm246, %v5918
      %5951 = vst.msk [vmem:[#allocation4 + $0x98] sm:$0xff] %vm246, %v5919
      %5952 = vst.msk [vmem:[#allocation4 + $0xa0] sm:$0xff] %vm246, %v5920
      %5953 = vst.msk [vmem:[#allocation4 + $0xa8] sm:$0xff] %vm246, %v5921
      %5954 = vst.msk [vmem:[#allocation4 + $0xb0] sm:$0xff] %vm246, %v5922
      %5955 = vst.msk [vmem:[#allocation4 + $0xb8] sm:$0xff] %vm246, %v5923
      %5956 = vst.msk [vmem:[#allocation4 + $0xc0] sm:$0xff] %vm246, %v5924
      %5957 = vst.msk [vmem:[#allocation4 + $0xc8] sm:$0xff] %vm246, %v5925
      %5958 = vst.msk [vmem:[#allocation4 + $0xd0] sm:$0xff] %vm246, %v5926
      %5959 = vst.msk [vmem:[#allocation4 + $0xd8] sm:$0xff] %vm246, %v5927
      %5960 = vst.msk [vmem:[#allocation4 + $0xe0] sm:$0xff] %vm246, %v5928
      %5961 = vst.msk [vmem:[#allocation4 + $0xe8] sm:$0xff] %vm246, %v5929
      %5962 = vst.msk [vmem:[#allocation4 + $0xf0] sm:$0xff] %vm246, %v5930
      %5963 = vst.msk [vmem:[#allocation4 + $0xf8] sm:$0xff] %vm246, %v5931
      %v5964 = vld [vmem:[#allocation4] sm:$0xff]
      %v5965 = vld [vmem:[#allocation4 + $0x8] sm:$0xff]
      %v5966 = vld [vmem:[#allocation4 + $0x10] sm:$0xff]
      %v5967 = vld [vmem:[#allocation4 + $0x18] sm:$0xff]
      %v5968 = vld [vmem:[#allocation4 + $0x20] sm:$0xff]
      %v5969 = vld [vmem:[#allocation4 + $0x28] sm:$0xff]
      %v5970 = vld [vmem:[#allocation4 + $0x30] sm:$0xff]
      %v5971 = vld [vmem:[#allocation4 + $0x38] sm:$0xff]
      %v5972 = vld [vmem:[#allocation4 + $0x40] sm:$0xff]
      %v5973 = vld [vmem:[#allocation4 + $0x48] sm:$0xff]
      %v5974 = vld [vmem:[#allocation4 + $0x50] sm:$0xff]
      %v5975 = vld [vmem:[#allocation4 + $0x58] sm:$0xff]
      %v5976 = vld [vmem:[#allocation4 + $0x60] sm:$0xff]
      %v5977 = vld [vmem:[#allocation4 + $0x68] sm:$0xff]
      %v5978 = vld [vmem:[#allocation4 + $0x70] sm:$0xff]
      %v5979 = vld [vmem:[#allocation4 + $0x78] sm:$0xff]
      %v5980 = vld [vmem:[#allocation4 + $0x80] sm:$0xff]
      %v5981 = vld [vmem:[#allocation4 + $0x88] sm:$0xff]
      %v5982 = vld [vmem:[#allocation4 + $0x90] sm:$0xff]
      %v5983 = vld [vmem:[#allocation4 + $0x98] sm:$0xff]
      %v5984 = vld [vmem:[#allocation4 + $0xa0] sm:$0xff]
      %v5985 = vld [vmem:[#allocation4 + $0xa8] sm:$0xff]
      %v5986 = vld [vmem:[#allocation4 + $0xb0] sm:$0xff]
      %v5987 = vld [vmem:[#allocation4 + $0xb8] sm:$0xff]
      %v5988 = vld [vmem:[#allocation4 + $0xc0] sm:$0xff]
      %v5989 = vld [vmem:[#allocation4 + $0xc8] sm:$0xff]
      %v5990 = vld [vmem:[#allocation4 + $0xd0] sm:$0xff]
      %v5991 = vld [vmem:[#allocation4 + $0xd8] sm:$0xff]
      %v5992 = vld [vmem:[#allocation4 + $0xe0] sm:$0xff]
      %v5993 = vld [vmem:[#allocation4 + $0xe8] sm:$0xff]
      %v5994 = vld [vmem:[#allocation4 + $0xf0] sm:$0xff]
      %v5995 = vld [vmem:[#allocation4 + $0xf8] sm:$0xff]
      %v6012 = vrot.slane %v4089, 5
      %v6013 = vrot.slane %v6012, 4
      %v6014 = vrot.slane %v4090, 5
      %v6015 = vsel %vm2769, %v6013, %v6014
      %v6016 = vrot.slane %v6014, 4
      %v6017 = vrot.slane %v4091, 5
      %v6018 = vsel %vm2769, %v6016, %v6017
      %v6019 = vrot.slane %v4092, 5
      %v6020 = vrot.slane %v6019, 4
      %v6021 = vrot.slane %v4093, 5
      %v6022 = vsel %vm2769, %v6020, %v6021
      %v6023 = vrot.slane %v6021, 4
      %v6024 = vrot.slane %v4094, 5
      %v6025 = vsel %vm2769, %v6023, %v6024
      %v6026 = vrot.slane %v4095, 5
      %v6027 = vrot.slane %v6026, 4
      %v6028 = vrot.slane %v4096, 5
      %v6029 = vsel %vm2769, %v6027, %v6028
      %v6030 = vrot.slane %v6028, 4
      %v6031 = vrot.slane %v4097, 5
      %v6032 = vsel %vm2769, %v6030, %v6031
      %v6033 = vrot.slane %v4098, 5
      %v6034 = vrot.slane %v6033, 4
      %v6035 = vrot.slane %v4099, 5
      %v6036 = vsel %vm2769, %v6034, %v6035
      %v6037 = vrot.slane %v6035, 4
      %v6038 = vrot.slane %v4100, 5
      %v6039 = vsel %vm2769, %v6037, %v6038
      %v6040 = vrot.slane %v4101, 5
      %v6041 = vrot.slane %v6040, 4
      %v6042 = vrot.slane %v4102, 5
      %v6043 = vsel %vm2769, %v6041, %v6042
      %v6044 = vrot.slane %v6042, 4
      %v6045 = vrot.slane %v4103, 5
      %v6046 = vsel %vm2769, %v6044, %v6045
      %v6047 = vrot.slane %v4104, 5
      %v6048 = vrot.slane %v6047, 4
      %v6049 = vrot.slane %v4105, 5
      %v6050 = vsel %vm2769, %v6048, %v6049
      %v6051 = vrot.slane %v6049, 4
      %v6052 = vrot.slane %v4106, 5
      %v6053 = vsel %vm2769, %v6051, %v6052
      %v6054 = vrot.slane %v4107, 5
      %v6055 = vrot.slane %v6054, 4
      %v6056 = vrot.slane %v4108, 5
      %v6057 = vsel %vm2769, %v6055, %v6056
      %v6058 = vrot.slane %v6056, 4
      %v6059 = vrot.slane %v4109, 5
      %v6060 = vsel %vm2769, %v6058, %v6059
      %v6061 = vrot.slane %v4110, 5
      %v6062 = vrot.slane %v6061, 4
      %v6063 = vrot.slane %v4111, 5
      %v6064 = vsel %vm2769, %v6062, %v6063
      %v6065 = vrot.slane %v6063, 4
      %v6066 = vrot.slane %v4112, 5
      %v6067 = vsel %vm2769, %v6065, %v6066
      %v6068 = vrot.slane %v4113, 5
      %v6069 = vrot.slane %v6068, 4
      %v6070 = vrot.slane %v4114, 5
      %v6071 = vsel %vm2769, %v6069, %v6070
      %v6072 = vrot.slane %v6070, 4
      %v6073 = vrot.slane %v4115, 5
      %v6074 = vsel %vm2769, %v6072, %v6073
      %v6075 = vrot.slane %v4116, 5
      %v6076 = vrot.slane %v6075, 4
      %v6077 = vrot.slane %v4117, 5
      %v6078 = vsel %vm2769, %v6076, %v6077
      %v6079 = vrot.slane %v6077, 4
      %v6080 = vrot.slane %v4118, 5
      %v6081 = vsel %vm2769, %v6079, %v6080
      %v6082 = vrot.slane %v4119, 5
      %v6083 = vrot.slane %v6082, 4
      %v6084 = vrot.slane %v4120, 5
      %v6085 = vsel %vm2769, %v6083, %v6084
      %v6086 = vrot.slane %v6084, 4
      %v6087 = vrot.slane %v4121, 5
      %v6088 = vsel %vm2769, %v6086, %v6087
      %v6089 = vrot.slane %v4122, 5
      %v6090 = vrot.slane %v6089, 4
      %v6091 = vrot.slane %v4123, 5
      %v6092 = vsel %vm2769, %v6090, %v6091
      %v6093 = vrot.slane %v6091, 4
      %v6094 = vrot.slane %v4124, 5
      %v6095 = vsel %vm2769, %v6093, %v6094
      %v6096 = vrot.slane %v4125, 5
      %v6097 = vrot.slane %v6096, 4
      %v6098 = vrot.slane %v4126, 5
      %v6099 = vsel %vm2769, %v6097, %v6098
      %v6100 = vrot.slane %v6098, 4
      %v6101 = vrot.slane %v4127, 5
      %v6102 = vsel %vm2769, %v6100, %v6101
      %v6103 = vrot.slane %v4128, 5
      %v6104 = vrot.slane %v6103, 4
      %v6105 = vrot.slane %v4129, 5
      %v6106 = vsel %vm2769, %v6104, %v6105
      %v6107 = vrot.slane %v6105, 4
      %v6108 = vrot.slane %v4130, 5
      %v6109 = vsel %vm2769, %v6107, %v6108
      %v6110 = vrot.slane %v4131, 5
      %v6111 = vrot.slane %v6110, 4
      %v6112 = vrot.slane %v4132, 5
      %v6113 = vsel %vm2769, %v6111, %v6112
      %v6114 = vrot.slane %v6112, 4
      %v6115 = vrot.slane %v4133, 5
      %v6116 = vsel %vm2769, %v6114, %v6115
      %v6117 = vrot.slane %v4134, 5
      %v6118 = vrot.slane %v6117, 4
      %v6119 = vrot.slane %v4135, 5
      %v6120 = vsel %vm2769, %v6118, %v6119
      %v6121 = vrot.slane %v6119, 4
      %v6122 = vrot.slane %v4136, 5
      %v6123 = vsel %vm2769, %v6121, %v6122
      %v6124 = vunpack.c.l.b16 %v6015
      %v6125 = vunpack.c.l.b16 %v6018
      %v6126 = vunpack.c.l.b16 %v6022
      %v6127 = vunpack.c.l.b16 %v6025
      %v6128 = vunpack.c.l.b16 %v6029
      %v6129 = vunpack.c.l.b16 %v6032
      %v6130 = vunpack.c.l.b16 %v6036
      %v6131 = vunpack.c.l.b16 %v6039
      %v6132 = vunpack.c.l.b16 %v6043
      %v6133 = vunpack.c.l.b16 %v6046
      %v6134 = vunpack.c.l.b16 %v6050
      %v6135 = vunpack.c.l.b16 %v6053
      %v6136 = vunpack.c.l.b16 %v6057
      %v6137 = vunpack.c.l.b16 %v6060
      %v6138 = vunpack.c.l.b16 %v6064
      %v6139 = vunpack.c.l.b16 %v6067
      %v6140 = vunpack.c.l.b16 %v6071
      %v6141 = vunpack.c.l.b16 %v6074
      %v6142 = vunpack.c.l.b16 %v6078
      %v6143 = vunpack.c.l.b16 %v6081
      %v6144 = vunpack.c.l.b16 %v6085
      %v6145 = vunpack.c.l.b16 %v6088
      %v6146 = vunpack.c.l.b16 %v6092
      %v6147 = vunpack.c.l.b16 %v6095
      %v6148 = vunpack.c.l.b16 %v6099
      %v6149 = vunpack.c.l.b16 %v6102
      %v6150 = vunpack.c.l.b16 %v6106
      %v6151 = vunpack.c.l.b16 %v6109
      %v6152 = vunpack.c.l.b16 %v6113
      %v6153 = vunpack.c.l.b16 %v6116
      %v6154 = vunpack.c.l.b16 %v6120
      %v6155 = vunpack.c.l.b16 %v6123
      %v6156 = vpack.c.b16 %v6125, %v6124
      %v6157 = vpack.c.b16 %v6127, %v6126
      %v6158 = vpack.c.b16 %v6129, %v6128
      %v6159 = vpack.c.b16 %v6131, %v6130
      %v6160 = vpack.c.b16 %v6133, %v6132
      %v6161 = vpack.c.b16 %v6135, %v6134
      %v6162 = vpack.c.b16 %v6137, %v6136
      %v6163 = vpack.c.b16 %v6139, %v6138
      %v6164 = vpack.c.b16 %v6141, %v6140
      %v6165 = vpack.c.b16 %v6143, %v6142
      %v6166 = vpack.c.b16 %v6145, %v6144
      %v6167 = vpack.c.b16 %v6147, %v6146
      %v6168 = vpack.c.b16 %v6149, %v6148
      %v6169 = vpack.c.b16 %v6151, %v6150
      %v6170 = vpack.c.b16 %v6153, %v6152
      %v6171 = vpack.c.b16 %v6155, %v6154
      %v6173 = vsel %vm246, %v6156, 0
      %v6176 = vsel %vm246, %v6157, 0
      %v6179 = vsel %vm246, %v6158, 0
      %v6182 = vsel %vm246, %v6159, 0
      %v6185 = vsel %vm246, %v6160, 0
      %v6188 = vsel %vm246, %v6161, 0
      %v6191 = vsel %vm246, %v6162, 0
      %v6194 = vsel %vm246, %v6163, 0
      %v6197 = vsel %vm246, %v6164, 0
      %v6200 = vsel %vm246, %v6165, 0
      %v6203 = vsel %vm246, %v6166, 0
      %v6206 = vsel %vm246, %v6167, 0
      %v6209 = vsel %vm246, %v6168, 0
      %v6212 = vsel %vm246, %v6169, 0
      %v6215 = vsel %vm246, %v6170, 0
      %v6218 = vsel %vm246, %v6171, 0
      %v6221 = vsel %vm1063, %v4145, 0
      %6223 = vmatpush.bf16.msra.mxu0 0
      %6224 = vmatpush.bf16.msra.mxu0 0
      %6225 = vmatpush.bf16.msra.mxu0 0
      %6226 = vmatpush.bf16.msra.mxu0 0
      %6227 = vmatpush.bf16.msra.mxu0 0
      %6228 = vmatpush.bf16.msra.mxu0 0
      %6229 = vmatpush.bf16.msra.mxu0 0
      %6230 = vmatpush.bf16.msra.mxu0 %v6221
      %6231 = vmatmul.bf16.gmra.mxu0 %v6173
      %v6232 = vpop.f32.mrf.mxu0
      %v6233 = vadd.f32 0.0, %v6232
      %v6234 = vpop.f32.mrf.mxu0
      %v6235 = vadd.f32 0.0, %v6234
      %6236 = vmatmul.bf16.gmra.mxu0 %v6176
      %v6237 = vpop.f32.mrf.mxu0
      %v6238 = vadd.f32 0.0, %v6237
      %v6239 = vpop.f32.mrf.mxu0
      %v6240 = vadd.f32 0.0, %v6239
      %6241 = vmatmul.bf16.gmra.mxu0 %v6179
      %v6242 = vpop.f32.mrf.mxu0
      %v6243 = vadd.f32 0.0, %v6242
      %v6244 = vpop.f32.mrf.mxu0
      %v6245 = vadd.f32 0.0, %v6244
      %6246 = vmatmul.bf16.gmra.mxu0 %v6182
      %v6247 = vpop.f32.mrf.mxu0
      %v6248 = vadd.f32 0.0, %v6247
      %v6249 = vpop.f32.mrf.mxu0
      %v6250 = vadd.f32 0.0, %v6249
      %6251 = vmatmul.bf16.gmra.mxu0 %v6185
      %v6252 = vpop.f32.mrf.mxu0
      %v6253 = vadd.f32 0.0, %v6252
      %v6254 = vpop.f32.mrf.mxu0
      %v6255 = vadd.f32 0.0, %v6254
      %6256 = vmatmul.bf16.gmra.mxu0 %v6188
      %v6257 = vpop.f32.mrf.mxu0
      %v6258 = vadd.f32 0.0, %v6257
      %v6259 = vpop.f32.mrf.mxu0
      %v6260 = vadd.f32 0.0, %v6259
      %6261 = vmatmul.bf16.gmra.mxu0 %v6191
      %v6262 = vpop.f32.mrf.mxu0
      %v6263 = vadd.f32 0.0, %v6262
      %v6264 = vpop.f32.mrf.mxu0
      %v6265 = vadd.f32 0.0, %v6264
      %6266 = vmatmul.bf16.gmra.mxu0 %v6194
      %v6267 = vpop.f32.mrf.mxu0
      %v6268 = vadd.f32 0.0, %v6267
      %v6269 = vpop.f32.mrf.mxu0
      %v6270 = vadd.f32 0.0, %v6269
      %6271 = vmatmul.bf16.gmra.mxu0 %v6197
      %v6272 = vpop.f32.mrf.mxu0
      %v6273 = vadd.f32 0.0, %v6272
      %v6274 = vpop.f32.mrf.mxu0
      %v6275 = vadd.f32 0.0, %v6274
      %6276 = vmatmul.bf16.gmra.mxu0 %v6200
      %v6277 = vpop.f32.mrf.mxu0
      %v6278 = vadd.f32 0.0, %v6277
      %v6279 = vpop.f32.mrf.mxu0
      %v6280 = vadd.f32 0.0, %v6279
      %6281 = vmatmul.bf16.gmra.mxu0 %v6203
      %v6282 = vpop.f32.mrf.mxu0
      %v6283 = vadd.f32 0.0, %v6282
      %v6284 = vpop.f32.mrf.mxu0
      %v6285 = vadd.f32 0.0, %v6284
      %6286 = vmatmul.bf16.gmra.mxu0 %v6206
      %v6287 = vpop.f32.mrf.mxu0
      %v6288 = vadd.f32 0.0, %v6287
      %v6289 = vpop.f32.mrf.mxu0
      %v6290 = vadd.f32 0.0, %v6289
      %6291 = vmatmul.bf16.gmra.mxu0 %v6209
      %v6292 = vpop.f32.mrf.mxu0
      %v6293 = vadd.f32 0.0, %v6292
      %v6294 = vpop.f32.mrf.mxu0
      %v6295 = vadd.f32 0.0, %v6294
      %6296 = vmatmul.bf16.gmra.mxu0 %v6212
      %v6297 = vpop.f32.mrf.mxu0
      %v6298 = vadd.f32 0.0, %v6297
      %v6299 = vpop.f32.mrf.mxu0
      %v6300 = vadd.f32 0.0, %v6299
      %6301 = vmatmul.bf16.gmra.mxu0 %v6215
      %v6302 = vpop.f32.mrf.mxu0
      %v6303 = vadd.f32 0.0, %v6302
      %v6304 = vpop.f32.mrf.mxu0
      %v6305 = vadd.f32 0.0, %v6304
      %6306 = vmatmul.bf16.gmra.mxu0 %v6218
      %v6307 = vpop.f32.mrf.mxu0
      %v6308 = vadd.f32 0.0, %v6307
      %v6309 = vpop.f32.mrf.mxu0
      %v6310 = vadd.f32 0.0, %v6309
      %6311 = vdwg.mxu0
      %v6312 = vadd.f32 %v5964, %v6233
      %v6313 = vadd.f32 %v5965, %v6235
      %v6314 = vadd.f32 %v5966, %v6238
      %v6315 = vadd.f32 %v5967, %v6240
      %v6316 = vadd.f32 %v5968, %v6243
      %v6317 = vadd.f32 %v5969, %v6245
      %v6318 = vadd.f32 %v5970, %v6248
      %v6319 = vadd.f32 %v5971, %v6250
      %v6320 = vadd.f32 %v5972, %v6253
      %v6321 = vadd.f32 %v5973, %v6255
      %v6322 = vadd.f32 %v5974, %v6258
      %v6323 = vadd.f32 %v5975, %v6260
      %v6324 = vadd.f32 %v5976, %v6263
      %v6325 = vadd.f32 %v5977, %v6265
      %v6326 = vadd.f32 %v5978, %v6268
      %v6327 = vadd.f32 %v5979, %v6270
      %v6328 = vadd.f32 %v5980, %v6273
      %v6329 = vadd.f32 %v5981, %v6275
      %v6330 = vadd.f32 %v5982, %v6278
      %v6331 = vadd.f32 %v5983, %v6280
      %v6332 = vadd.f32 %v5984, %v6283
      %v6333 = vadd.f32 %v5985, %v6285
      %v6334 = vadd.f32 %v5986, %v6288
      %v6335 = vadd.f32 %v5987, %v6290
      %v6336 = vadd.f32 %v5988, %v6293
      %v6337 = vadd.f32 %v5989, %v6295
      %v6338 = vadd.f32 %v5990, %v6298
      %v6339 = vadd.f32 %v5991, %v6300
      %v6340 = vadd.f32 %v5992, %v6303
      %v6341 = vadd.f32 %v5993, %v6305
      %v6342 = vadd.f32 %v5994, %v6308
      %v6343 = vadd.f32 %v5995, %v6310
      %6344 = vst.msk [vmem:[#allocation4] sm:$0xff] %vm246, %v6312
      %6345 = vst.msk [vmem:[#allocation4 + $0x8] sm:$0xff] %vm246, %v6313
      %6346 = vst.msk [vmem:[#allocation4 + $0x10] sm:$0xff] %vm246, %v6314
      %6347 = vst.msk [vmem:[#allocation4 + $0x18] sm:$0xff] %vm246, %v6315
      %6348 = vst.msk [vmem:[#allocation4 + $0x20] sm:$0xff] %vm246, %v6316
      %6349 = vst.msk [vmem:[#allocation4 + $0x28] sm:$0xff] %vm246, %v6317
      %6350 = vst.msk [vmem:[#allocation4 + $0x30] sm:$0xff] %vm246, %v6318
      %6351 = vst.msk [vmem:[#allocation4 + $0x38] sm:$0xff] %vm246, %v6319
      %6352 = vst.msk [vmem:[#allocation4 + $0x40] sm:$0xff] %vm246, %v6320
      %6353 = vst.msk [vmem:[#allocation4 + $0x48] sm:$0xff] %vm246, %v6321
      %6354 = vst.msk [vmem:[#allocation4 + $0x50] sm:$0xff] %vm246, %v6322
      %6355 = vst.msk [vmem:[#allocation4 + $0x58] sm:$0xff] %vm246, %v6323
      %6356 = vst.msk [vmem:[#allocation4 + $0x60] sm:$0xff] %vm246, %v6324
      %6357 = vst.msk [vmem:[#allocation4 + $0x68] sm:$0xff] %vm246, %v6325
      %6358 = vst.msk [vmem:[#allocation4 + $0x70] sm:$0xff] %vm246, %v6326
      %6359 = vst.msk [vmem:[#allocation4 + $0x78] sm:$0xff] %vm246, %v6327
      %6360 = vst.msk [vmem:[#allocation4 + $0x80] sm:$0xff] %vm246, %v6328
      %6361 = vst.msk [vmem:[#allocation4 + $0x88] sm:$0xff] %vm246, %v6329
      %6362 = vst.msk [vmem:[#allocation4 + $0x90] sm:$0xff] %vm246, %v6330
      %6363 = vst.msk [vmem:[#allocation4 + $0x98] sm:$0xff] %vm246, %v6331
      %6364 = vst.msk [vmem:[#allocation4 + $0xa0] sm:$0xff] %vm246, %v6332
      %6365 = vst.msk [vmem:[#allocation4 + $0xa8] sm:$0xff] %vm246, %v6333
      %6366 = vst.msk [vmem:[#allocation4 + $0xb0] sm:$0xff] %vm246, %v6334
      %6367 = vst.msk [vmem:[#allocation4 + $0xb8] sm:$0xff] %vm246, %v6335
      %6368 = vst.msk [vmem:[#allocation4 + $0xc0] sm:$0xff] %vm246, %v6336
      %6369 = vst.msk [vmem:[#allocation4 + $0xc8] sm:$0xff] %vm246, %v6337
      %6370 = vst.msk [vmem:[#allocation4 + $0xd0] sm:$0xff] %vm246, %v6338
      %6371 = vst.msk [vmem:[#allocation4 + $0xd8] sm:$0xff] %vm246, %v6339
      %6372 = vst.msk [vmem:[#allocation4 + $0xe0] sm:$0xff] %vm246, %v6340
      %6373 = vst.msk [vmem:[#allocation4 + $0xe8] sm:$0xff] %vm246, %v6341
      %6374 = vst.msk [vmem:[#allocation4 + $0xf0] sm:$0xff] %vm246, %v6342
      %6375 = vst.msk [vmem:[#allocation4 + $0xf8] sm:$0xff] %vm246, %v6343
      %v6376 = vld [vmem:[#allocation4] sm:$0xff]
      %v6377 = vld [vmem:[#allocation4 + $0x8] sm:$0xff]
      %v6378 = vld [vmem:[#allocation4 + $0x10] sm:$0xff]
      %v6379 = vld [vmem:[#allocation4 + $0x18] sm:$0xff]
      %v6380 = vld [vmem:[#allocation4 + $0x20] sm:$0xff]
      %v6381 = vld [vmem:[#allocation4 + $0x28] sm:$0xff]
      %v6382 = vld [vmem:[#allocation4 + $0x30] sm:$0xff]
      %v6383 = vld [vmem:[#allocation4 + $0x38] sm:$0xff]
      %v6384 = vld [vmem:[#allocation4 + $0x40] sm:$0xff]
      %v6385 = vld [vmem:[#allocation4 + $0x48] sm:$0xff]
      %v6386 = vld [vmem:[#allocation4 + $0x50] sm:$0xff]
      %v6387 = vld [vmem:[#allocation4 + $0x58] sm:$0xff]
      %v6388 = vld [vmem:[#allocation4 + $0x60] sm:$0xff]
      %v6389 = vld [vmem:[#allocation4 + $0x68] sm:$0xff]
      %v6390 = vld [vmem:[#allocation4 + $0x70] sm:$0xff]
      %v6391 = vld [vmem:[#allocation4 + $0x78] sm:$0xff]
      %v6392 = vld [vmem:[#allocation4 + $0x80] sm:$0xff]
      %v6393 = vld [vmem:[#allocation4 + $0x88] sm:$0xff]
      %v6394 = vld [vmem:[#allocation4 + $0x90] sm:$0xff]
      %v6395 = vld [vmem:[#allocation4 + $0x98] sm:$0xff]
      %v6396 = vld [vmem:[#allocation4 + $0xa0] sm:$0xff]
      %v6397 = vld [vmem:[#allocation4 + $0xa8] sm:$0xff]
      %v6398 = vld [vmem:[#allocation4 + $0xb0] sm:$0xff]
      %v6399 = vld [vmem:[#allocation4 + $0xb8] sm:$0xff]
      %v6400 = vld [vmem:[#allocation4 + $0xc0] sm:$0xff]
      %v6401 = vld [vmem:[#allocation4 + $0xc8] sm:$0xff]
      %v6402 = vld [vmem:[#allocation4 + $0xd0] sm:$0xff]
      %v6403 = vld [vmem:[#allocation4 + $0xd8] sm:$0xff]
      %v6404 = vld [vmem:[#allocation4 + $0xe0] sm:$0xff]
      %v6405 = vld [vmem:[#allocation4 + $0xe8] sm:$0xff]
      %v6406 = vld [vmem:[#allocation4 + $0xf0] sm:$0xff]
      %v6407 = vld [vmem:[#allocation4 + $0xf8] sm:$0xff]
      %v6409 = vrot.slane %v4137, 5
      %v6410 = vrot.slane %v6409, 4
      %v6411 = vrot.slane %v4138, 5
      %v6412 = vsel %vm2769, %v6410, %v6411
      %v6413 = vrot.slane %v6411, 4
      %v6414 = vrot.slane %v4139, 5
      %v6415 = vsel %vm2769, %v6413, %v6414
      %v6416 = vunpack.c.l.b16 %v6412
      %v6417 = vunpack.c.l.b16 %v6415
      %v6418 = vpack.c.b16 %v6417, %v6416
      %v6420 = vsel %vm246, %v6418, 0
      %v6423 = vsel %vm1063, %v4148, 0
      %6425 = vmatpush.bf16.msra.mxu0 0
      %6426 = vmatpush.bf16.msra.mxu0 0
      %6427 = vmatpush.bf16.msra.mxu0 0
      %6428 = vmatpush.bf16.msra.mxu0 0
      %6429 = vmatpush.bf16.msra.mxu0 0
      %6430 = vmatpush.bf16.msra.mxu0 0
      %6431 = vmatpush.bf16.msra.mxu0 0
      %6432 = vmatpush.bf16.msra.mxu0 %v6423
      %6433 = vmatmul.bf16.gmra.mxu0 %v6176
      %v6434 = vpop.f32.mrf.mxu0
      %v6435 = vadd.f32 0.0, %v6434
      %v6436 = vpop.f32.mrf.mxu0
      %v6437 = vadd.f32 0.0, %v6436
      %6438 = vmatmul.bf16.gmra.mxu0 %v6179
      %v6439 = vpop.f32.mrf.mxu0
      %v6440 = vadd.f32 0.0, %v6439
      %v6441 = vpop.f32.mrf.mxu0
      %v6442 = vadd.f32 0.0, %v6441
      %6443 = vmatmul.bf16.gmra.mxu0 %v6182
      %v6444 = vpop.f32.mrf.mxu0
      %v6445 = vadd.f32 0.0, %v6444
      %v6446 = vpop.f32.mrf.mxu0
      %v6447 = vadd.f32 0.0, %v6446
      %6448 = vmatmul.bf16.gmra.mxu0 %v6185
      %v6449 = vpop.f32.mrf.mxu0
      %v6450 = vadd.f32 0.0, %v6449
      %v6451 = vpop.f32.mrf.mxu0
      %v6452 = vadd.f32 0.0, %v6451
      %6453 = vmatmul.bf16.gmra.mxu0 %v6188
      %v6454 = vpop.f32.mrf.mxu0
      %v6455 = vadd.f32 0.0, %v6454
      %v6456 = vpop.f32.mrf.mxu0
      %v6457 = vadd.f32 0.0, %v6456
      %6458 = vmatmul.bf16.gmra.mxu0 %v6191
      %v6459 = vpop.f32.mrf.mxu0
      %v6460 = vadd.f32 0.0, %v6459
      %v6461 = vpop.f32.mrf.mxu0
      %v6462 = vadd.f32 0.0, %v6461
      %6463 = vmatmul.bf16.gmra.mxu0 %v6194
      %v6464 = vpop.f32.mrf.mxu0
      %v6465 = vadd.f32 0.0, %v6464
      %v6466 = vpop.f32.mrf.mxu0
      %v6467 = vadd.f32 0.0, %v6466
      %6468 = vmatmul.bf16.gmra.mxu0 %v6197
      %v6469 = vpop.f32.mrf.mxu0
      %v6470 = vadd.f32 0.0, %v6469
      %v6471 = vpop.f32.mrf.mxu0
      %v6472 = vadd.f32 0.0, %v6471
      %6473 = vmatmul.bf16.gmra.mxu0 %v6200
      %v6474 = vpop.f32.mrf.mxu0
      %v6475 = vadd.f32 0.0, %v6474
      %v6476 = vpop.f32.mrf.mxu0
      %v6477 = vadd.f32 0.0, %v6476
      %6478 = vmatmul.bf16.gmra.mxu0 %v6203
      %v6479 = vpop.f32.mrf.mxu0
      %v6480 = vadd.f32 0.0, %v6479
      %v6481 = vpop.f32.mrf.mxu0
      %v6482 = vadd.f32 0.0, %v6481
      %6483 = vmatmul.bf16.gmra.mxu0 %v6206
      %v6484 = vpop.f32.mrf.mxu0
      %v6485 = vadd.f32 0.0, %v6484
      %v6486 = vpop.f32.mrf.mxu0
      %v6487 = vadd.f32 0.0, %v6486
      %6488 = vmatmul.bf16.gmra.mxu0 %v6209
      %v6489 = vpop.f32.mrf.mxu0
      %v6490 = vadd.f32 0.0, %v6489
      %v6491 = vpop.f32.mrf.mxu0
      %v6492 = vadd.f32 0.0, %v6491
      %6493 = vmatmul.bf16.gmra.mxu0 %v6212
      %v6494 = vpop.f32.mrf.mxu0
      %v6495 = vadd.f32 0.0, %v6494
      %v6496 = vpop.f32.mrf.mxu0
      %v6497 = vadd.f32 0.0, %v6496
      %6498 = vmatmul.bf16.gmra.mxu0 %v6215
      %v6499 = vpop.f32.mrf.mxu0
      %v6500 = vadd.f32 0.0, %v6499
      %v6501 = vpop.f32.mrf.mxu0
      %v6502 = vadd.f32 0.0, %v6501
      %6503 = vmatmul.bf16.gmra.mxu0 %v6218
      %v6504 = vpop.f32.mrf.mxu0
      %v6505 = vadd.f32 0.0, %v6504
      %v6506 = vpop.f32.mrf.mxu0
      %v6507 = vadd.f32 0.0, %v6506
      %6508 = vmatmul.bf16.gmra.mxu0 %v6420
      %v6509 = vpop.f32.mrf.mxu0
      %v6510 = vadd.f32 0.0, %v6509
      %v6511 = vpop.f32.mrf.mxu0
      %v6512 = vadd.f32 0.0, %v6511
      %6513 = vdwg.mxu0
      %v6514 = vadd.f32 %v6376, %v6435
      %v6515 = vadd.f32 %v6377, %v6437
      %v6516 = vadd.f32 %v6378, %v6440
      %v6517 = vadd.f32 %v6379, %v6442
      %v6518 = vadd.f32 %v6380, %v6445
      %v6519 = vadd.f32 %v6381, %v6447
      %v6520 = vadd.f32 %v6382, %v6450
      %v6521 = vadd.f32 %v6383, %v6452
      %v6522 = vadd.f32 %v6384, %v6455
      %v6523 = vadd.f32 %v6385, %v6457
      %v6524 = vadd.f32 %v6386, %v6460
      %v6525 = vadd.f32 %v6387, %v6462
      %v6526 = vadd.f32 %v6388, %v6465
      %v6527 = vadd.f32 %v6389, %v6467
      %v6528 = vadd.f32 %v6390, %v6470
      %v6529 = vadd.f32 %v6391, %v6472
      %v6530 = vadd.f32 %v6392, %v6475
      %v6531 = vadd.f32 %v6393, %v6477
      %v6532 = vadd.f32 %v6394, %v6480
      %v6533 = vadd.f32 %v6395, %v6482
      %v6534 = vadd.f32 %v6396, %v6485
      %v6535 = vadd.f32 %v6397, %v6487
      %v6536 = vadd.f32 %v6398, %v6490
      %v6537 = vadd.f32 %v6399, %v6492
      %v6538 = vadd.f32 %v6400, %v6495
      %v6539 = vadd.f32 %v6401, %v6497
      %v6540 = vadd.f32 %v6402, %v6500
      %v6541 = vadd.f32 %v6403, %v6502
      %v6542 = vadd.f32 %v6404, %v6505
      %v6543 = vadd.f32 %v6405, %v6507
      %v6544 = vadd.f32 %v6406, %v6510
      %v6545 = vadd.f32 %v6407, %v6512
      %6546 = vst.msk [vmem:[#allocation4] sm:$0xff] %vm246, %v6514
      %6547 = vst.msk [vmem:[#allocation4 + $0x8] sm:$0xff] %vm246, %v6515
      %6548 = vst.msk [vmem:[#allocation4 + $0x10] sm:$0xff] %vm246, %v6516
      %6549 = vst.msk [vmem:[#allocation4 + $0x18] sm:$0xff] %vm246, %v6517
      %6550 = vst.msk [vmem:[#allocation4 + $0x20] sm:$0xff] %vm246, %v6518
      %6551 = vst.msk [vmem:[#allocation4 + $0x28] sm:$0xff] %vm246, %v6519
      %6552 = vst.msk [vmem:[#allocation4 + $0x30] sm:$0xff] %vm246, %v6520
      %6553 = vst.msk [vmem:[#allocation4 + $0x38] sm:$0xff] %vm246, %v6521
      %6554 = vst.msk [vmem:[#allocation4 + $0x40] sm:$0xff] %vm246, %v6522
      %6555 = vst.msk [vmem:[#allocation4 + $0x48] sm:$0xff] %vm246, %v6523
      %6556 = vst.msk [vmem:[#allocation4 + $0x50] sm:$0xff] %vm246, %v6524
      %6557 = vst.msk [vmem:[#allocation4 + $0x58] sm:$0xff] %vm246, %v6525
      %6558 = vst.msk [vmem:[#allocation4 + $0x60] sm:$0xff] %vm246, %v6526
      %6559 = vst.msk [vmem:[#allocation4 + $0x68] sm:$0xff] %vm246, %v6527
      %6560 = vst.msk [vmem:[#allocation4 + $0x70] sm:$0xff] %vm246, %v6528
      %6561 = vst.msk [vmem:[#allocation4 + $0x78] sm:$0xff] %vm246, %v6529
      %6562 = vst.msk [vmem:[#allocation4 + $0x80] sm:$0xff] %vm246, %v6530
      %6563 = vst.msk [vmem:[#allocation4 + $0x88] sm:$0xff] %vm246, %v6531
      %6564 = vst.msk [vmem:[#allocation4 + $0x90] sm:$0xff] %vm246, %v6532
      %6565 = vst.msk [vmem:[#allocation4 + $0x98] sm:$0xff] %vm246, %v6533
      %6566 = vst.msk [vmem:[#allocation4 + $0xa0] sm:$0xff] %vm246, %v6534
      %6567 = vst.msk [vmem:[#allocation4 + $0xa8] sm:$0xff] %vm246, %v6535
      %6568 = vst.msk [vmem:[#allocation4 + $0xb0] sm:$0xff] %vm246, %v6536
      %6569 = vst.msk [vmem:[#allocation4 + $0xb8] sm:$0xff] %vm246, %v6537
      %6570 = vst.msk [vmem:[#allocation4 + $0xc0] sm:$0xff] %vm246, %v6538
      %6571 = vst.msk [vmem:[#allocation4 + $0xc8] sm:$0xff] %vm246, %v6539
      %6572 = vst.msk [vmem:[#allocation4 + $0xd0] sm:$0xff] %vm246, %v6540
      %6573 = vst.msk [vmem:[#allocation4 + $0xd8] sm:$0xff] %vm246, %v6541
      %6574 = vst.msk [vmem:[#allocation4 + $0xe0] sm:$0xff] %vm246, %v6542
      %6575 = vst.msk [vmem:[#allocation4 + $0xe8] sm:$0xff] %vm246, %v6543
      %6576 = vst.msk [vmem:[#allocation4 + $0xf0] sm:$0xff] %vm246, %v6544
      %6577 = vst.msk [vmem:[#allocation4 + $0xf8] sm:$0xff] %vm246, %v6545
      %v6578 = vld [vmem:[#allocation4] sm:$0xff]
      %v6579 = vld [vmem:[#allocation4 + $0x8] sm:$0xff]
      %v6580 = vld [vmem:[#allocation4 + $0x10] sm:$0xff]
      %v6581 = vld [vmem:[#allocation4 + $0x18] sm:$0xff]
      %v6582 = vld [vmem:[#allocation4 + $0x20] sm:$0xff]
      %v6583 = vld [vmem:[#allocation4 + $0x28] sm:$0xff]
      %v6584 = vld [vmem:[#allocation4 + $0x30] sm:$0xff]
      %v6585 = vld [vmem:[#allocation4 + $0x38] sm:$0xff]
      %v6586 = vld [vmem:[#allocation4 + $0x40] sm:$0xff]
      %v6587 = vld [vmem:[#allocation4 + $0x48] sm:$0xff]
      %v6588 = vld [vmem:[#allocation4 + $0x50] sm:$0xff]
      %v6589 = vld [vmem:[#allocation4 + $0x58] sm:$0xff]
      %v6590 = vld [vmem:[#allocation4 + $0x60] sm:$0xff]
      %v6591 = vld [vmem:[#allocation4 + $0x68] sm:$0xff]
      %v6592 = vld [vmem:[#allocation4 + $0x70] sm:$0xff]
      %v6593 = vld [vmem:[#allocation4 + $0x78] sm:$0xff]
      %v6594 = vld [vmem:[#allocation4 + $0x80] sm:$0xff]
      %v6595 = vld [vmem:[#allocation4 + $0x88] sm:$0xff]
      %v6596 = vld [vmem:[#allocation4 + $0x90] sm:$0xff]
      %v6597 = vld [vmem:[#allocation4 + $0x98] sm:$0xff]
      %v6598 = vld [vmem:[#allocation4 + $0xa0] sm:$0xff]
      %v6599 = vld [vmem:[#allocation4 + $0xa8] sm:$0xff]
      %v6600 = vld [vmem:[#allocation4 + $0xb0] sm:$0xff]
      %v6601 = vld [vmem:[#allocation4 + $0xb8] sm:$0xff]
      %v6602 = vld [vmem:[#allocation4 + $0xc0] sm:$0xff]
      %v6603 = vld [vmem:[#allocation4 + $0xc8] sm:$0xff]
      %v6604 = vld [vmem:[#allocation4 + $0xd0] sm:$0xff]
      %v6605 = vld [vmem:[#allocation4 + $0xd8] sm:$0xff]
      %v6606 = vld [vmem:[#allocation4 + $0xe0] sm:$0xff]
      %v6607 = vld [vmem:[#allocation4 + $0xe8] sm:$0xff]
      %v6608 = vld [vmem:[#allocation4 + $0xf0] sm:$0xff]
      %v6609 = vld [vmem:[#allocation4 + $0xf8] sm:$0xff]
      %v6611 = vrot.slane %v4140, 5
      %v6612 = vrot.slane %v6611, 4
      %v6613 = vrot.slane %v4141, 5
      %v6614 = vsel %vm2769, %v6612, %v6613
      %v6615 = vrot.slane %v6613, 4
      %v6616 = vrot.slane %v4142, 5
      %v6617 = vsel %vm2769, %v6615, %v6616
      %v6618 = vunpack.c.l.b16 %v6614
      %v6619 = vunpack.c.l.b16 %v6617
      %v6620 = vpack.c.b16 %v6619, %v6618
      %v6622 = vsel %vm246, %v6620, 0
      %v6625 = vsel %vm1063, %v4151, 0
      %6627 = vmatpush.bf16.msra.mxu0 0
      %6628 = vmatpush.bf16.msra.mxu0 0
      %6629 = vmatpush.bf16.msra.mxu0 0
      %6630 = vmatpush.bf16.msra.mxu0 0
      %6631 = vmatpush.bf16.msra.mxu0 0
      %6632 = vmatpush.bf16.msra.mxu0 0
      %6633 = vmatpush.bf16.msra.mxu0 0
      %6634 = vmatpush.bf16.msra.mxu0 %v6625
      %6635 = vmatmul.bf16.gmra.mxu0 %v6179
      %v6636 = vpop.f32.mrf.mxu0
      %v6637 = vadd.f32 0.0, %v6636
      %v6638 = vpop.f32.mrf.mxu0
      %v6639 = vadd.f32 0.0, %v6638
      %6640 = vmatmul.bf16.gmra.mxu0 %v6182
      %v6641 = vpop.f32.mrf.mxu0
      %v6642 = vadd.f32 0.0, %v6641
      %v6643 = vpop.f32.mrf.mxu0
      %v6644 = vadd.f32 0.0, %v6643
      %6645 = vmatmul.bf16.gmra.mxu0 %v6185
      %v6646 = vpop.f32.mrf.mxu0
      %v6647 = vadd.f32 0.0, %v6646
      %v6648 = vpop.f32.mrf.mxu0
      %v6649 = vadd.f32 0.0, %v6648
      %6650 = vmatmul.bf16.gmra.mxu0 %v6188
      %v6651 = vpop.f32.mrf.mxu0
      %v6652 = vadd.f32 0.0, %v6651
      %v6653 = vpop.f32.mrf.mxu0
      %v6654 = vadd.f32 0.0, %v6653
      %6655 = vmatmul.bf16.gmra.mxu0 %v6191
      %v6656 = vpop.f32.mrf.mxu0
      %v6657 = vadd.f32 0.0, %v6656
      %v6658 = vpop.f32.mrf.mxu0
      %v6659 = vadd.f32 0.0, %v6658
      %6660 = vmatmul.bf16.gmra.mxu0 %v6194
      %v6661 = vpop.f32.mrf.mxu0
      %v6662 = vadd.f32 0.0, %v6661
      %v6663 = vpop.f32.mrf.mxu0
      %v6664 = vadd.f32 0.0, %v6663
      %6665 = vmatmul.bf16.gmra.mxu0 %v6197
      %v6666 = vpop.f32.mrf.mxu0
      %v6667 = vadd.f32 0.0, %v6666
      %v6668 = vpop.f32.mrf.mxu0
      %v6669 = vadd.f32 0.0, %v6668
      %6670 = vmatmul.bf16.gmra.mxu0 %v6200
      %v6671 = vpop.f32.mrf.mxu0
      %v6672 = vadd.f32 0.0, %v6671
      %v6673 = vpop.f32.mrf.mxu0
      %v6674 = vadd.f32 0.0, %v6673
      %6675 = vmatmul.bf16.gmra.mxu0 %v6203
      %v6676 = vpop.f32.mrf.mxu0
      %v6677 = vadd.f32 0.0, %v6676
      %v6678 = vpop.f32.mrf.mxu0
      %v6679 = vadd.f32 0.0, %v6678
      %6680 = vmatmul.bf16.gmra.mxu0 %v6206
      %v6681 = vpop.f32.mrf.mxu0
      %v6682 = vadd.f32 0.0, %v6681
      %v6683 = vpop.f32.mrf.mxu0
      %v6684 = vadd.f32 0.0, %v6683
      %6685 = vmatmul.bf16.gmra.mxu0 %v6209
      %v6686 = vpop.f32.mrf.mxu0
      %v6687 = vadd.f32 0.0, %v6686
      %v6688 = vpop.f32.mrf.mxu0
      %v6689 = vadd.f32 0.0, %v6688
      %6690 = vmatmul.bf16.gmra.mxu0 %v6212
      %v6691 = vpop.f32.mrf.mxu0
      %v6692 = vadd.f32 0.0, %v6691
      %v6693 = vpop.f32.mrf.mxu0
      %v6694 = vadd.f32 0.0, %v6693
      %6695 = vmatmul.bf16.gmra.mxu0 %v6215
      %v6696 = vpop.f32.mrf.mxu0
      %v6697 = vadd.f32 0.0, %v6696
      %v6698 = vpop.f32.mrf.mxu0
      %v6699 = vadd.f32 0.0, %v6698
      %6700 = vmatmul.bf16.gmra.mxu0 %v6218
      %v6701 = vpop.f32.mrf.mxu0
      %v6702 = vadd.f32 0.0, %v6701
      %v6703 = vpop.f32.mrf.mxu0
      %v6704 = vadd.f32 0.0, %v6703
      %6705 = vmatmul.bf16.gmra.mxu0 %v6420
      %v6706 = vpop.f32.mrf.mxu0
      %v6707 = vadd.f32 0.0, %v6706
      %v6708 = vpop.f32.mrf.mxu0
      %v6709 = vadd.f32 0.0, %v6708
      %6710 = vmatmul.bf16.gmra.mxu0 %v6622
      %v6711 = vpop.f32.mrf.mxu0
      %v6712 = vadd.f32 0.0, %v6711
      %v6713 = vpop.f32.mrf.mxu0
      %v6714 = vadd.f32 0.0, %v6713
      %6715 = vdwg.mxu0
      %v6716 = vadd.f32 %v6578, %v6637
      %v6717 = vadd.f32 %v6579, %v6639
      %v6718 = vadd.f32 %v6580, %v6642
      %v6719 = vadd.f32 %v6581, %v6644
      %v6720 = vadd.f32 %v6582, %v6647
      %v6721 = vadd.f32 %v6583, %v6649
      %v6722 = vadd.f32 %v6584, %v6652
      %v6723 = vadd.f32 %v6585, %v6654
      %v6724 = vadd.f32 %v6586, %v6657
      %v6725 = vadd.f32 %v6587, %v6659
      %v6726 = vadd.f32 %v6588, %v6662
      %v6727 = vadd.f32 %v6589, %v6664
      %v6728 = vadd.f32 %v6590, %v6667
      %v6729 = vadd.f32 %v6591, %v6669
      %v6730 = vadd.f32 %v6592, %v6672
      %v6731 = vadd.f32 %v6593, %v6674
      %v6732 = vadd.f32 %v6594, %v6677
      %v6733 = vadd.f32 %v6595, %v6679
      %v6734 = vadd.f32 %v6596, %v6682
      %v6735 = vadd.f32 %v6597, %v6684
      %v6736 = vadd.f32 %v6598, %v6687
      %v6737 = vadd.f32 %v6599, %v6689
      %v6738 = vadd.f32 %v6600, %v6692
      %v6739 = vadd.f32 %v6601, %v6694
      %v6740 = vadd.f32 %v6602, %v6697
      %v6741 = vadd.f32 %v6603, %v6699
      %v6742 = vadd.f32 %v6604, %v6702
      %v6743 = vadd.f32 %v6605, %v6704
      %v6744 = vadd.f32 %v6606, %v6707
      %v6745 = vadd.f32 %v6607, %v6709
      %v6746 = vadd.f32 %v6608, %v6712
      %v6747 = vadd.f32 %v6609, %v6714
      %6748 = vst.msk [vmem:[#allocation4] sm:$0xff] %vm246, %v6716
      %6749 = vst.msk [vmem:[#allocation4 + $0x8] sm:$0xff] %vm246, %v6717
      %6750 = vst.msk [vmem:[#allocation4 + $0x10] sm:$0xff] %vm246, %v6718
      %6751 = vst.msk [vmem:[#allocation4 + $0x18] sm:$0xff] %vm246, %v6719
      %6752 = vst.msk [vmem:[#allocation4 + $0x20] sm:$0xff] %vm246, %v6720
      %6753 = vst.msk [vmem:[#allocation4 + $0x28] sm:$0xff] %vm246, %v6721
      %6754 = vst.msk [vmem:[#allocation4 + $0x30] sm:$0xff] %vm246, %v6722
      %6755 = vst.msk [vmem:[#allocation4 + $0x38] sm:$0xff] %vm246, %v6723
      %6756 = vst.msk [vmem:[#allocation4 + $0x40] sm:$0xff] %vm246, %v6724
      %6757 = vst.msk [vmem:[#allocation4 + $0x48] sm:$0xff] %vm246, %v6725
      %6758 = vst.msk [vmem:[#allocation4 + $0x50] sm:$0xff] %vm246, %v6726
      %6759 = vst.msk [vmem:[#allocation4 + $0x58] sm:$0xff] %vm246, %v6727
      %6760 = vst.msk [vmem:[#allocation4 + $0x60] sm:$0xff] %vm246, %v6728
      %6761 = vst.msk [vmem:[#allocation4 + $0x68] sm:$0xff] %vm246, %v6729
      %6762 = vst.msk [vmem:[#allocation4 + $0x70] sm:$0xff] %vm246, %v6730
      %6763 = vst.msk [vmem:[#allocation4 + $0x78] sm:$0xff] %vm246, %v6731
      %6764 = vst.msk [vmem:[#allocation4 + $0x80] sm:$0xff] %vm246, %v6732
      %6765 = vst.msk [vmem:[#allocation4 + $0x88] sm:$0xff] %vm246, %v6733
      %6766 = vst.msk [vmem:[#allocation4 + $0x90] sm:$0xff] %vm246, %v6734
      %6767 = vst.msk [vmem:[#allocation4 + $0x98] sm:$0xff] %vm246, %v6735
      %6768 = vst.msk [vmem:[#allocation4 + $0xa0] sm:$0xff] %vm246, %v6736
      %6769 = vst.msk [vmem:[#allocation4 + $0xa8] sm:$0xff] %vm246, %v6737
      %6770 = vst.msk [vmem:[#allocation4 + $0xb0] sm:$0xff] %vm246, %v6738
      %6771 = vst.msk [vmem:[#allocation4 + $0xb8] sm:$0xff] %vm246, %v6739
      %6772 = vst.msk [vmem:[#allocation4 + $0xc0] sm:$0xff] %vm246, %v6740
      %6773 = vst.msk [vmem:[#allocation4 + $0xc8] sm:$0xff] %vm246, %v6741
      %6774 = vst.msk [vmem:[#allocation4 + $0xd0] sm:$0xff] %vm246, %v6742
      %6775 = vst.msk [vmem:[#allocation4 + $0xd8] sm:$0xff] %vm246, %v6743
      %6776 = vst.msk [vmem:[#allocation4 + $0xe0] sm:$0xff] %vm246, %v6744
      %6777 = vst.msk [vmem:[#allocation4 + $0xe8] sm:$0xff] %vm246, %v6745
      %6778 = vst.msk [vmem:[#allocation4 + $0xf0] sm:$0xff] %vm246, %v6746
      %6779 = vst.msk [vmem:[#allocation4 + $0xf8] sm:$0xff] %vm246, %v6747
      %v6780 = vld [vmem:[#allocation4] sm:$0xff]
      %v6781 = vld [vmem:[#allocation4 + $0x8] sm:$0xff]
      %v6782 = vld [vmem:[#allocation4 + $0x10] sm:$0xff]
      %v6783 = vld [vmem:[#allocation4 + $0x18] sm:$0xff]
      %v6784 = vld [vmem:[#allocation4 + $0x20] sm:$0xff]
      %v6785 = vld [vmem:[#allocation4 + $0x28] sm:$0xff]
      %v6786 = vld [vmem:[#allocation4 + $0x30] sm:$0xff]
      %v6787 = vld [vmem:[#allocation4 + $0x38] sm:$0xff]
      %v6788 = vld [vmem:[#allocation4 + $0x40] sm:$0xff]
      %v6789 = vld [vmem:[#allocation4 + $0x48] sm:$0xff]
      %v6790 = vld [vmem:[#allocation4 + $0x50] sm:$0xff]
      %v6791 = vld [vmem:[#allocation4 + $0x58] sm:$0xff]
      %v6792 = vld [vmem:[#allocation4 + $0x60] sm:$0xff]
      %v6793 = vld [vmem:[#allocation4 + $0x68] sm:$0xff]
      %v6794 = vld [vmem:[#allocation4 + $0x70] sm:$0xff]
      %v6795 = vld [vmem:[#allocation4 + $0x78] sm:$0xff]
      %v6796 = vld [vmem:[#allocation4 + $0x80] sm:$0xff]
      %v6797 = vld [vmem:[#allocation4 + $0x88] sm:$0xff]
      %v6798 = vld [vmem:[#allocation4 + $0x90] sm:$0xff]
      %v6799 = vld [vmem:[#allocation4 + $0x98] sm:$0xff]
      %v6800 = vld [vmem:[#allocation4 + $0xa0] sm:$0xff]
      %v6801 = vld [vmem:[#allocation4 + $0xa8] sm:$0xff]
      %v6802 = vld [vmem:[#allocation4 + $0xb0] sm:$0xff]
      %v6803 = vld [vmem:[#allocation4 + $0xb8] sm:$0xff]
      %v6804 = vld [vmem:[#allocation4 + $0xc0] sm:$0xff]
      %v6805 = vld [vmem:[#allocation4 + $0xc8] sm:$0xff]
      %v6806 = vld [vmem:[#allocation4 + $0xd0] sm:$0xff]
      %v6807 = vld [vmem:[#allocation4 + $0xd8] sm:$0xff]
      %v6808 = vld [vmem:[#allocation4 + $0xe0] sm:$0xff]
      %v6809 = vld [vmem:[#allocation4 + $0xe8] sm:$0xff]
      %v6810 = vld [vmem:[#allocation4 + $0xf0] sm:$0xff]
      %v6811 = vld [vmem:[#allocation4 + $0xf8] sm:$0xff]
      %v6812 = vld [vmem:[%s4] sm:$0x1]
      %v6814 = vperm.slane %v6812, 0
      %v6816 = vadd.f32 %v6780, %v6814
      %v6817 = vadd.f32 %v6781, %v6814
      %v6818 = vadd.f32 %v6782, %v6814
      %v6819 = vadd.f32 %v6783, %v6814
      %v6820 = vadd.f32 %v6784, %v6814
      %v6821 = vadd.f32 %v6785, %v6814
      %v6822 = vadd.f32 %v6786, %v6814
      %v6823 = vadd.f32 %v6787, %v6814
      %v6824 = vadd.f32 %v6788, %v6814
      %v6825 = vadd.f32 %v6789, %v6814
      %v6826 = vadd.f32 %v6790, %v6814
      %v6827 = vadd.f32 %v6791, %v6814
      %v6828 = vadd.f32 %v6792, %v6814
      %v6829 = vadd.f32 %v6793, %v6814
      %v6830 = vadd.f32 %v6794, %v6814
      %v6831 = vadd.f32 %v6795, %v6814
      %v6832 = vadd.f32 %v6796, %v6814
      %v6833 = vadd.f32 %v6797, %v6814
      %v6834 = vadd.f32 %v6798, %v6814
      %v6835 = vadd.f32 %v6799, %v6814
      %v6836 = vadd.f32 %v6800, %v6814
      %v6837 = vadd.f32 %v6801, %v6814
      %v6838 = vadd.f32 %v6802, %v6814
      %v6839 = vadd.f32 %v6803, %v6814
      %v6840 = vadd.f32 %v6804, %v6814
      %v6841 = vadd.f32 %v6805, %v6814
      %v6842 = vadd.f32 %v6806, %v6814
      %v6843 = vadd.f32 %v6807, %v6814
      %v6844 = vadd.f32 %v6808, %v6814
      %v6845 = vadd.f32 %v6809, %v6814
      %v6846 = vadd.f32 %v6810, %v6814
      %v6847 = vadd.f32 %v6811, %v6814
      %v6848 = vmax.f32 %v6816, 0.0
      %v6849 = vmax.f32 %v6817, 0.0
      %v6850 = vmax.f32 %v6818, 0.0
      %v6851 = vmax.f32 %v6819, 0.0
      %v6852 = vmax.f32 %v6820, 0.0
      %v6853 = vmax.f32 %v6821, 0.0
      %v6854 = vmax.f32 %v6822, 0.0
      %v6855 = vmax.f32 %v6823, 0.0
      %v6856 = vmax.f32 %v6824, 0.0
      %v6857 = vmax.f32 %v6825, 0.0
      %v6858 = vmax.f32 %v6826, 0.0
      %v6859 = vmax.f32 %v6827, 0.0
      %v6860 = vmax.f32 %v6828, 0.0
      %v6861 = vmax.f32 %v6829, 0.0
      %v6862 = vmax.f32 %v6830, 0.0
      %v6863 = vmax.f32 %v6831, 0.0
      %v6864 = vmax.f32 %v6832, 0.0
      %v6865 = vmax.f32 %v6833, 0.0
      %v6866 = vmax.f32 %v6834, 0.0
      %v6867 = vmax.f32 %v6835, 0.0
      %v6868 = vmax.f32 %v6836, 0.0
      %v6869 = vmax.f32 %v6837, 0.0
      %v6870 = vmax.f32 %v6838, 0.0
      %v6871 = vmax.f32 %v6839, 0.0
      %v6872 = vmax.f32 %v6840, 0.0
      %v6873 = vmax.f32 %v6841, 0.0
      %v6874 = vmax.f32 %v6842, 0.0
      %v6875 = vmax.f32 %v6843, 0.0
      %v6876 = vmax.f32 %v6844, 0.0
      %v6877 = vmax.f32 %v6845, 0.0
      %v6878 = vmax.f32 %v6846, 0.0
      %v6879 = vmax.f32 %v6847, 0.0
      %6880 = vst.msk [vmem:[%s244] sm:$0xff] %vm246, %v6848
      %6881 = vst.msk [vmem:[%s244 + $0x8] sm:$0xff] %vm246, %v6849
      %6882 = vst.msk [vmem:[%s244 + $0x10] sm:$0xff] %vm246, %v6850
      %6883 = vst.msk [vmem:[%s244 + $0x18] sm:$0xff] %vm246, %v6851
      %6884 = vst.msk [vmem:[%s244 + $0x20] sm:$0xff] %vm246, %v6852
      %6885 = vst.msk [vmem:[%s244 + $0x28] sm:$0xff] %vm246, %v6853
      %6886 = vst.msk [vmem:[%s244 + $0x30] sm:$0xff] %vm246, %v6854
      %6887 = vst.msk [vmem:[%s244 + $0x38] sm:$0xff] %vm246, %v6855
      %6888 = vst.msk [vmem:[%s244 + $0x40] sm:$0xff] %vm246, %v6856
      %6889 = vst.msk [vmem:[%s244 + $0x48] sm:$0xff] %vm246, %v6857
      %6890 = vst.msk [vmem:[%s244 + $0x50] sm:$0xff] %vm246, %v6858
      %6891 = vst.msk [vmem:[%s244 + $0x58] sm:$0xff] %vm246, %v6859
      %6892 = vst.msk [vmem:[%s244 + $0x60] sm:$0xff] %vm246, %v6860
      %6893 = vst.msk [vmem:[%s244 + $0x68] sm:$0xff] %vm246, %v6861
      %6894 = vst.msk [vmem:[%s244 + $0x70] sm:$0xff] %vm246, %v6862
      %6895 = vst.msk [vmem:[%s244 + $0x78] sm:$0xff] %vm246, %v6863
      %6896 = vst.msk [vmem:[%s244 + $0x80] sm:$0xff] %vm246, %v6864
      %6897 = vst.msk [vmem:[%s244 + $0x88] sm:$0xff] %vm246, %v6865
      %6898 = vst.msk [vmem:[%s244 + $0x90] sm:$0xff] %vm246, %v6866
      %6899 = vst.msk [vmem:[%s244 + $0x98] sm:$0xff] %vm246, %v6867
      %6900 = vst.msk [vmem:[%s244 + $0xa0] sm:$0xff] %vm246, %v6868
      %6901 = vst.msk [vmem:[%s244 + $0xa8] sm:$0xff] %vm246, %v6869
      %6902 = vst.msk [vmem:[%s244 + $0xb0] sm:$0xff] %vm246, %v6870
      %6903 = vst.msk [vmem:[%s244 + $0xb8] sm:$0xff] %vm246, %v6871
      %6904 = vst.msk [vmem:[%s244 + $0xc0] sm:$0xff] %vm246, %v6872
      %6905 = vst.msk [vmem:[%s244 + $0xc8] sm:$0xff] %vm246, %v6873
      %6906 = vst.msk [vmem:[%s244 + $0xd0] sm:$0xff] %vm246, %v6874
      %6907 = vst.msk [vmem:[%s244 + $0xd8] sm:$0xff] %vm246, %v6875
      %6908 = vst.msk [vmem:[%s244 + $0xe0] sm:$0xff] %vm246, %v6876
      %6909 = vst.msk [vmem:[%s244 + $0xe8] sm:$0xff] %vm246, %v6877
      %6910 = vst.msk [vmem:[%s244 + $0xf0] sm:$0xff] %vm246, %v6878
      %6911 = vst.msk [vmem:[%s244 + $0xf8] sm:$0xff] %vm246, %v6879
      %p6912 = scmp.lt.s32.totalorder %s16, 1
      %s6913 = scalar_select %p6912, %s16, 1
      %s6914 = smul.addr %s6913, 32
      %s6915 = smul.addr %s6914, 8
      %s6916 = scalar_lea.vmem %s5, %s6915
      // Predicated region
      $region41: #{decoder_block_forward.4} parent=39 // pred_check
        %p6917 = pneg %p149
      $region42: #{decoder_block_forward.4} parent=39 // pred_check_branch
        %6919 = sbr.rel (%p6917) target = $region44
      $region43: #{decoder_block_forward.4} parent=39 // pred_region
        _
      $region44: #{decoder_block_forward.4} parent=39 // pred_fallthru
        _
    $region40: #{decoder_block_forward.4} parent=5 // pred_fallthru
      _
    %p6920 = scmp.le.s32.totalorder 2, %s11
    // Predicated region
    $region45: #{decoder_block_forward.4} parent=5 // pred_check
      %p6921 = pneg %p6920
    $region46: #{decoder_block_forward.4} parent=5 // pred_check_branch
      %6923 = sbr.rel (%p6921) target = $region48
    $region47: #{decoder_block_forward.4} parent=5 // pred_region
      %s6924 = ssub.s32 %s11, 2
      // Predicated region
      $region49: #{decoder_block_forward.4} parent=47 // pred_check
        %p6925 = pneg %p155
      $region50: #{decoder_block_forward.4} parent=47 // pred_check_branch
        %6927 = sbr.rel (%p6925) target = $region52
      $region51: #{decoder_block_forward.4} parent=47 // pred_region
        %p6928 = scmp.lt.s32.totalorder %s17, 1
        %s6929 = scalar_select %p6928, %s17, 1
        %s6930 = smul.addr %s6929, 32
        %s6931 = smul.addr %s6930, 8
        %s6932 = scalar_lea.vmem %s5, %s6931
      $region52: #{decoder_block_forward.4} parent=47 // pred_fallthru
        _
    $region48: #{decoder_block_forward.4} parent=5 // pred_fallthru
      _
  $region6: #{decoder_block_forward.4} parent=0 // loop_footer
    %s15 = sadd.s32 1, %s11
  $region7: #{decoder_block_forward.4} parent=0 // loop_footer_branch
    %10 = sbr.rel target = $region3
  $region8: #{decoder_block_forward.4} parent=0 // loop_exit
    _

</llo_original>
